<compile_context>
chip_gen: v7x
topology: tpu7x:2x2x1
jax: 0.10.0
libtpu: 0.0.40
codegen_flags: <defaults>
</compile_context>

<pallas_src>
import functools

import jax
import jax.numpy as jnp
import numpy as np
from jax.experimental import pallas as pl
from jax.experimental.pallas import tpu as pltpu  # noqa: F401  (TPU backend assumed)


# Geometry implied by the module: 75x75 --conv(5,s5)--> 15x15 --conv(5,s5)--> 3x3.
_N_TAPS = 25              # 5x5 positions inside conv2's receptive-field window
_N_POS = 9                # 3x3 conv2 output positions
_C1 = 32                  # conv1 output channels
_C2 = 64                  # conv2 output channels
_PATCH1 = 4 * 5 * 5       # conv1 patch length (C, kh, kw)
_FC_IN = _C2 * _N_POS     # 576
_FC_HID = 2 * 256         # merged value + advantage hidden width


# ----------------------------------------------------------------------------
# Fused Pallas kernel
# ----------------------------------------------------------------------------
def _fused_dqn_kernel(p1_ref, w1c_ref, b1c_ref, w2p_ref, b2c_ref,
                      w1fc_ref, b1fc_ref, w2fc_ref, b2fc_ref, o_ref, *, bp):
    """conv1 -> conv2 -> merged dueling head; all intermediates stay on-chip.

    p1_ref rows are ordered ((kh,kw)-tap, conv2-output-position, padded-batch) so
    every slice below is a contiguous, 8-aligned static slice.
    """
    f32 = jnp.float32
    rpt = _N_POS * bp                        # rows per (kh, kw) tap (multiple of 8)

    w1c = w1c_ref[...]                       # (100, 32)
    b1c = b1c_ref[...]                       # (1, 32)

    # conv1 + conv2 fused: accumulate the 25 (kh, kw) taps of conv2's 5x5 window.
    acc_c2 = jnp.zeros((rpt, _C2), f32)
    for t in range(_N_TAPS):
        h1_t = jnp.maximum(
            jnp.dot(p1_ref[t * rpt:(t + 1) * rpt, :], w1c,
                    preferred_element_type=f32) + b1c, 0.0)            # (rpt, 32)
        acc_c2 = acc_c2 + jnp.dot(h1_t, w2p_ref[t * _C1:(t + 1) * _C1, :],
                                  preferred_element_type=f32)
    h2 = jnp.maximum(acc_c2 + b2c_ref[...], 0.0)      # (rpt, 64), rows = (pos, batch)

    # Merged noisy value/advantage tower (fc1V | fc1A), accumulated per position.
    acc_fc = jnp.zeros((bp, _FC_HID), f32)
    for i in range(_N_POS):
        acc_fc = acc_fc + jnp.dot(h2[i * bp:(i + 1) * bp, :],
                                  w1fc_ref[i * _C2:(i + 1) * _C2, :],
                                  preferred_element_type=f32)
    hidden = jnp.maximum(acc_fc + b1fc_ref[...], 0.0)                   # (bp, 512)

    # fc2 with the dueling mean-subtraction folded into the weights: one dense store.
    o_ref[...] = (jnp.dot(hidden, w2fc_ref[...], preferred_element_type=f32)
                  + b2fc_ref[...])


def _full_spec(shape):
    return pl.BlockSpec(shape, lambda *_: (0,) * len(shape))


# ----------------------------------------------------------------------------
# Glue: conv1 patch extraction (stride == kernel, no padding) in the kernel's order
# ----------------------------------------------------------------------------
def _conv1_patches(fx, bp):
    """fx: (B, 4, 75, 75) f32 -> (25 * 9 * bp, 100) conv1 patch matrix.

    Row index = ((kh*5+kw)*9 + (oh*3+ow)) * bp + b, feature index = c*25 + ph*5 + pw,
    where (oh, ow) is the conv2 output position and (kh, kw) the position inside its
    5x5 window.  Batch is padded to `bp` (multiple of 8) so all kernel slices align.
    """
    B = fx.shape[0]
    t = fx.reshape(B, 4, 3, 5, 5, 3, 5, 5)        # (b, c, oh, kh, ph, ow, kw, pw)
    t = t.transpose(3, 6, 2, 5, 0, 1, 4, 7)       # (kh, kw, oh, ow, b, c, ph, pw)
    t = t.reshape(_N_TAPS, _N_POS, B, _PATCH1)
    if bp != B:
        t = jnp.pad(t, ((0, 0), (0, 0), (0, bp - B), (0, 0)))
    return t.reshape(_N_TAPS * _N_POS * bp, _PATCH1)


# ----------------------------------------------------------------------------
# One-time parameter prep: fold layout permutations, 1/256 scale, tower merge and
# the dueling combine into the weights so the kernel is pure matmul + bias + ReLU.
# ----------------------------------------------------------------------------
def prepare_params(params, n_actions, atoms):
    # conv1: OIHW -> (C*kh*kw, O), x/256 input scale folded in (exact: /256 is 2^-8).
    w1c = params["conv1_w"].reshape(_C1, _PATCH1).T * (1.0 / 256.0)
    b1c = params["conv1_b"].reshape(1, _C1)

    # conv2: OIHW -> (kh, kw, C, O) -> (800, 64), matching the tap-major accumulation.
    w2p = params["conv2_w"].transpose(2, 3, 1, 0).reshape(_N_TAPS * _C1, _C2)
    b2c = params["conv2_b"].reshape(1, _C2)

    # fc1V / fc1A merged into one (576, 512) weight; rows permuted from PyTorch's
    # NCHW flatten order (c*9 + pos) to the kernel's (pos*64 + c) order.
    w1 = jnp.concatenate([params["fc1v_w"].T, params["fc1a_w"].T], axis=1)
    w1 = w1.reshape(_C2, _N_POS, _FC_HID).transpose(1, 0, 2).reshape(_FC_IN, _FC_HID)
    b1 = jnp.concatenate([params["fc1v_b"], params["fc1a_b"]]).reshape(1, _FC_HID)

    # fc2: dueling combine  val + adv - mean_a(adv)  folded into one (512, A*Z) weight.
    w2v = params["fcv2_w"].T                                      # (256, atoms)
    w2a = params["fca2_w"].T.reshape(256, n_actions, atoms)
    w2a = (w2a - w2a.mean(axis=1, keepdims=True)).reshape(256, n_actions * atoms)
    w2 = jnp.concatenate([jnp.tile(w2v, (1, n_actions)), w2a], axis=0)

    b2a = params["fca2_b"].reshape(n_actions, atoms)
    b2 = (jnp.tile(params["fcv2_b"], (n_actions,))
          + (b2a - b2a.mean(axis=0, keepdims=True)).reshape(-1)).reshape(1, -1)

    return dict(w1c=w1c, b1c=b1c, w2p=w2p, b2c=b2c,
                w1fc=w1, b1fc=b1, w2fc=w2, b2fc=b2)


# ----------------------------------------------------------------------------
# Forward pass (single fused pallas_call)
# ----------------------------------------------------------------------------
@functools.partial(jax.jit, static_argnames=("n_actions", "atoms"))
def dueling_dqn_forward(x, prep, *, n_actions, atoms):
    """x: (B, 4, 75, 75) NCHW. Returns (B, n_actions, atoms) float32."""
    B = x.shape[0]
    bp = max(8, -(-B // 8) * 8)                 # pad batch rows to a multiple of 8
    p1 = _conv1_patches(x.astype(jnp.float32), bp)

    args = [p1, prep["w1c"], prep["b1c"], prep["w2p"], prep["b2c"],
            prep["w1fc"], prep["b1fc"], prep["w2fc"], prep["b2fc"]]
    out = pl.pallas_call(
        functools.partial(_fused_dqn_kernel, bp=bp),
        out_shape=jax.ShapeDtypeStruct((bp, n_actions * atoms), jnp.float32),
        in_specs=[_full_spec(a.shape) for a in args],
        out_specs=_full_spec((bp, n_actions * atoms)),
    )(*args)
    return out[:B].reshape(B, n_actions, atoms)


# ----------------------------------------------------------------------------
# Parameter initialization (deterministic, mimicking the PyTorch __init__ shapes)
# ----------------------------------------------------------------------------
def init_params(key, n_actions, atoms):
    keys = jax.random.split(key, 16)

    def uniform(k, shape, bound):
        return jax.random.uniform(k, shape, jnp.float32, -bound, bound)

    fan1 = 4 * 5 * 5
    conv1_w = uniform(keys[0], (32, 4, 5, 5), 1.0 / np.sqrt(fan1))
    conv1_b = uniform(keys[1], (32,), 1.0 / np.sqrt(fan1))
    fan2 = 32 * 5 * 5
    conv2_w = uniform(keys[2], (64, 32, 5, 5), 1.0 / np.sqrt(fan2))
    conv2_b = uniform(keys[3], (64,), 1.0 / np.sqrt(fan2))

    def noisy_linear(kw, kb, ke, in_f, out_f, std_init=0.1):
        # Training-mode effective weights: mu + sigma * epsilon (factorized noise).
        mu_range = 1.0 / np.sqrt(in_f)
        w_mu = uniform(kw, (out_f, in_f), mu_range)
        b_mu = uniform(kb, (out_f,), mu_range)
        w_sigma = jnp.full((out_f, in_f), std_init / np.sqrt(in_f), jnp.float32)
        b_sigma = jnp.full((out_f,), std_init / np.sqrt(out_f), jnp.float32)
        ke_in, ke_out = jax.random.split(ke)

        def scale_noise(k, n):
            z = jax.random.normal(k, (n,), jnp.float32)
            return jnp.sign(z) * jnp.sqrt(jnp.abs(z))

        eps_in = scale_noise(ke_in, in_f)
        eps_out = scale_noise(ke_out, out_f)
        w = w_mu + w_sigma * jnp.outer(eps_out, eps_in)
        b = b_mu + b_sigma * eps_out
        return w, b

    fc1v_w, fc1v_b = noisy_linear(keys[4], keys[5], keys[6], 64 * 3 * 3, 256)
    fc1a_w, fc1a_b = noisy_linear(keys[7], keys[8], keys[9], 64 * 3 * 3, 256)
    fcv2_w, fcv2_b = noisy_linear(keys[10], keys[11], keys[12], 256, atoms)
    fca2_w, fca2_b = noisy_linear(keys[13], keys[14], keys[15], 256, n_actions * atoms)

    return dict(conv1_w=conv1_w, conv1_b=conv1_b, conv2_w=conv2_w, conv2_b=conv2_b,
                fc1v_w=fc1v_w, fc1v_b=fc1v_b, fcv2_w=fcv2_w, fcv2_b=fcv2_b,
                fc1a_w=fc1a_w, fc1a_b=fc1a_b, fca2_w=fca2_w, fca2_b=fca2_b)


# ----------------------------------------------------------------------------
# Pure-JAX reference (mirrors the PyTorch forward) for verification
# ----------------------------------------------------------------------------
def reference_forward(x, params, n_actions, atoms):
    B = x.shape[0]
    hp = jax.lax.Precision.HIGHEST
    fx = x.astype(jnp.float32) / 256.0
    y = jax.lax.conv_general_dilated(fx, params["conv1_w"], (5, 5), "VALID",
                                     dimension_numbers=("NCHW", "OIHW", "NCHW"),
                                     precision=hp)
    y = jax.nn.relu(y + params["conv1_b"][None, :, None, None])
    y = jax.lax.conv_general_dilated(y, params["conv2_w"], (5, 5), "VALID",
                                     dimension_numbers=("NCHW", "OIHW", "NCHW"),
                                     precision=hp)
    y = jax.nn.relu(y + params["conv2_b"][None, :, None, None])
    flat = y.reshape(B, -1)

    hv = jax.nn.relu(jnp.matmul(flat, params["fc1v_w"].T, precision=hp) + params["fc1v_b"])
    val = (jnp.matmul(hv, params["fcv2_w"].T, precision=hp) + params["fcv2_b"]).reshape(B, 1, atoms)
    ha = jax.nn.relu(jnp.matmul(flat, params["fc1a_w"].T, precision=hp) + params["fc1a_b"])
    adv = (jnp.matmul(ha, params["fca2_w"].T, precision=hp) + params["fca2_b"]).reshape(B, n_actions, atoms)
    adv_mean = adv.mean(axis=1, keepdims=True)
    return val + (adv - adv_mean)


# TODO(synk): optimizer (Adam), MSELoss, checkpoint save/load, the C51 softmax head
# (both/qvals/apply_softmax) and on-device noise resampling are training/IO concerns
# outside this forward pass.

if __name__ == "__main__":
    key = jax.random.PRNGKey(0)
    k_param, k_x = jax.random.split(key)

    n_actions, atoms = 6, 51
    params = init_params(k_param, n_actions, atoms)
    prep = prepare_params(params, n_actions, atoms)     # one-time weight prep

    # (B=2, C=4, H=75, W=75) -- the conv stack (5/5 twice) requires 75x75 -> 3x3.
    x = jax.random.uniform(k_x, (2, 4, 75, 75), jnp.float32, 0.0, 256.0)

    out = dueling_dqn_forward(x, prep, n_actions=n_actions, atoms=atoms)
    out = jax.block_until_ready(out)

    ref = jax.block_until_ready(reference_forward(x, params, n_actions, atoms))
    assert out.shape == (2, n_actions, atoms), out.shape
    np.testing.assert_allclose(np.asarray(out), np.asarray(ref), atol=5e-3, rtol=5e-3)

    print("KERNEL_OK")
</pallas_src>

<mosaic_0001>
module attributes {stable_mosaic.version = 11 : i64} {
  func.func @_fused_dqn_kernel(%arg0: memref<1800x100xf32, #tpu.memory_space<vmem>>, %arg1: memref<100x32xf32, #tpu.memory_space<vmem>>, %arg2: memref<1x32xf32, #tpu.memory_space<vmem>>, %arg3: memref<800x64xf32, #tpu.memory_space<vmem>>, %arg4: memref<1x64xf32, #tpu.memory_space<vmem>>, %arg5: memref<576x512xf32, #tpu.memory_space<vmem>>, %arg6: memref<1x512xf32, #tpu.memory_space<vmem>>, %arg7: memref<512x306xf32, #tpu.memory_space<vmem>>, %arg8: memref<1x306xf32, #tpu.memory_space<vmem>>, %arg9: memref<8x306xf32, #tpu.memory_space<vmem>>) attributes {dimension_semantics = [], scalar_prefetch = 0 : i64, scratch_operands = 0 : i64, tpu.core_type = #tpu.core_type<tc>} {
    %c0 = arith.constant 0 : index
    %c0_0 = arith.constant 0 : index
    %0 = vector.load %arg1[%c0, %c0_0] : memref<100x32xf32, #tpu.memory_space<vmem>>, vector<100x32xf32>
    %c0_1 = arith.constant 0 : index
    %c0_2 = arith.constant 0 : index
    %1 = vector.load %arg2[%c0_1, %c0_2] : memref<1x32xf32, #tpu.memory_space<vmem>>, vector<1x32xf32>
    %cst = arith.constant 0.000000e+00 : f32
    %2 = vector.broadcast %cst : f32 to vector<72x64xf32>
    %c0_3 = arith.constant 0 : index
    %c0_4 = arith.constant 0 : index
    %3 = vector.load %arg0[%c0_3, %c0_4] : memref<1800x100xf32, #tpu.memory_space<vmem>>, vector<72x100xf32>
    %cst_5 = arith.constant dense<0.000000e+00> : vector<72x32xf32>
    %4 = tpu.matmul %3, %0, %cst_5 {dimension_numbers = #tpu.dot_dimension_numbers<[1], [0], [0], [1], [0, 0, 1, 1], [], []>} : vector<72x100xf32>, vector<100x32xf32>, vector<72x32xf32> -> vector<72x32xf32>
    %5 = vector.broadcast %1 : vector<1x32xf32> to vector<72x32xf32>
    %6 = arith.addf %4, %5 : vector<72x32xf32>
    %cst_6 = arith.constant 0.000000e+00 : f32
    %7 = vector.broadcast %cst_6 : f32 to vector<72x32xf32>
    %8 = arith.maximumf %6, %7 : vector<72x32xf32>
    %c0_7 = arith.constant 0 : index
    %c0_8 = arith.constant 0 : index
    %9 = vector.load %arg3[%c0_7, %c0_8] : memref<800x64xf32, #tpu.memory_space<vmem>>, vector<32x64xf32>
    %cst_9 = arith.constant dense<0.000000e+00> : vector<72x64xf32>
    %10 = tpu.matmul %8, %9, %cst_9 {dimension_numbers = #tpu.dot_dimension_numbers<[1], [0], [0], [1], [0, 0, 1, 1], [], []>} : vector<72x32xf32>, vector<32x64xf32>, vector<72x64xf32> -> vector<72x64xf32>
    %11 = arith.addf %2, %10 : vector<72x64xf32>
    %c72 = arith.constant 72 : index
    %c0_10 = arith.constant 0 : index
    %12 = vector.load %arg0[%c72, %c0_10] : memref<1800x100xf32, #tpu.memory_space<vmem>>, vector<72x100xf32>
    %cst_11 = arith.constant dense<0.000000e+00> : vector<72x32xf32>
    %13 = tpu.matmul %12, %0, %cst_11 {dimension_numbers = #tpu.dot_dimension_numbers<[1], [0], [0], [1], [0, 0, 1, 1], [], []>} : vector<72x100xf32>, vector<100x32xf32>, vector<72x32xf32> -> vector<72x32xf32>
    %14 = vector.broadcast %1 : vector<1x32xf32> to vector<72x32xf32>
    %15 = arith.addf %13, %14 : vector<72x32xf32>
    %cst_12 = arith.constant 0.000000e+00 : f32
    %16 = vector.broadcast %cst_12 : f32 to vector<72x32xf32>
    %17 = arith.maximumf %15, %16 : vector<72x32xf32>
    %c32 = arith.constant 32 : index
    %c0_13 = arith.constant 0 : index
    %18 = vector.load %arg3[%c32, %c0_13] : memref<800x64xf32, #tpu.memory_space<vmem>>, vector<32x64xf32>
    %cst_14 = arith.constant dense<0.000000e+00> : vector<72x64xf32>
    %19 = tpu.matmul %17, %18, %cst_14 {dimension_numbers = #tpu.dot_dimension_numbers<[1], [0], [0], [1], [0, 0, 1, 1], [], []>} : vector<72x32xf32>, vector<32x64xf32>, vector<72x64xf32> -> vector<72x64xf32>
    %20 = arith.addf %11, %19 : vector<72x64xf32>
    %c144 = arith.constant 144 : index
    %c0_15 = arith.constant 0 : index
    %21 = vector.load %arg0[%c144, %c0_15] : memref<1800x100xf32, #tpu.memory_space<vmem>>, vector<72x100xf32>
    %cst_16 = arith.constant dense<0.000000e+00> : vector<72x32xf32>
    %22 = tpu.matmul %21, %0, %cst_16 {dimension_numbers = #tpu.dot_dimension_numbers<[1], [0], [0], [1], [0, 0, 1, 1], [], []>} : vector<72x100xf32>, vector<100x32xf32>, vector<72x32xf32> -> vector<72x32xf32>
    %23 = vector.broadcast %1 : vector<1x32xf32> to vector<72x32xf32>
    %24 = arith.addf %22, %23 : vector<72x32xf32>
    %cst_17 = arith.constant 0.000000e+00 : f32
    %25 = vector.broadcast %cst_17 : f32 to vector<72x32xf32>
    %26 = arith.maximumf %24, %25 : vector<72x32xf32>
    %c64 = arith.constant 64 : index
    %c0_18 = arith.constant 0 : index
    %27 = vector.load %arg3[%c64, %c0_18] : memref<800x64xf32, #tpu.memory_space<vmem>>, vector<32x64xf32>
    %cst_19 = arith.constant dense<0.000000e+00> : vector<72x64xf32>
    %28 = tpu.matmul %26, %27, %cst_19 {dimension_numbers = #tpu.dot_dimension_numbers<[1], [0], [0], [1], [0, 0, 1, 1], [], []>} : vector<72x32xf32>, vector<32x64xf32>, vector<72x64xf32> -> vector<72x64xf32>
    %29 = arith.addf %20, %28 : vector<72x64xf32>
    %c216 = arith.constant 216 : index
    %c0_20 = arith.constant 0 : index
    %30 = vector.load %arg0[%c216, %c0_20] : memref<1800x100xf32, #tpu.memory_space<vmem>>, vector<72x100xf32>
    %cst_21 = arith.constant dense<0.000000e+00> : vector<72x32xf32>
    %31 = tpu.matmul %30, %0, %cst_21 {dimension_numbers = #tpu.dot_dimension_numbers<[1], [0], [0], [1], [0, 0, 1, 1], [], []>} : vector<72x100xf32>, vector<100x32xf32>, vector<72x32xf32> -> vector<72x32xf32>
    %32 = vector.broadcast %1 : vector<1x32xf32> to vector<72x32xf32>
    %33 = arith.addf %31, %32 : vector<72x32xf32>
    %cst_22 = arith.constant 0.000000e+00 : f32
    %34 = vector.broadcast %cst_22 : f32 to vector<72x32xf32>
    %35 = arith.maximumf %33, %34 : vector<72x32xf32>
    %c96 = arith.constant 96 : index
    %c0_23 = arith.constant 0 : index
    %36 = vector.load %arg3[%c96, %c0_23] : memref<800x64xf32, #tpu.memory_space<vmem>>, vector<32x64xf32>
    %cst_24 = arith.constant dense<0.000000e+00> : vector<72x64xf32>
    %37 = tpu.matmul %35, %36, %cst_24 {dimension_numbers = #tpu.dot_dimension_numbers<[1], [0], [0], [1], [0, 0, 1, 1], [], []>} : vector<72x32xf32>, vector<32x64xf32>, vector<72x64xf32> -> vector<72x64xf32>
    %38 = arith.addf %29, %37 : vector<72x64xf32>
    %c288 = arith.constant 288 : index
    %c0_25 = arith.constant 0 : index
    %39 = vector.load %arg0[%c288, %c0_25] : memref<1800x100xf32, #tpu.memory_space<vmem>>, vector<72x100xf32>
    %cst_26 = arith.constant dense<0.000000e+00> : vector<72x32xf32>
    %40 = tpu.matmul %39, %0, %cst_26 {dimension_numbers = #tpu.dot_dimension_numbers<[1], [0], [0], [1], [0, 0, 1, 1], [], []>} : vector<72x100xf32>, vector<100x32xf32>, vector<72x32xf32> -> vector<72x32xf32>
    %41 = vector.broadcast %1 : vector<1x32xf32> to vector<72x32xf32>
    %42 = arith.addf %40, %41 : vector<72x32xf32>
    %cst_27 = arith.constant 0.000000e+00 : f32
    %43 = vector.broadcast %cst_27 : f32 to vector<72x32xf32>
    %44 = arith.maximumf %42, %43 : vector<72x32xf32>
    %c128 = arith.constant 128 : index
    %c0_28 = arith.constant 0 : index
    %45 = vector.load %arg3[%c128, %c0_28] : memref<800x64xf32, #tpu.memory_space<vmem>>, vector<32x64xf32>
    %cst_29 = arith.constant dense<0.000000e+00> : vector<72x64xf32>
    %46 = tpu.matmul %44, %45, %cst_29 {dimension_numbers = #tpu.dot_dimension_numbers<[1], [0], [0], [1], [0, 0, 1, 1], [], []>} : vector<72x32xf32>, vector<32x64xf32>, vector<72x64xf32> -> vector<72x64xf32>
    %47 = arith.addf %38, %46 : vector<72x64xf32>
    %c360 = arith.constant 360 : index
    %c0_30 = arith.constant 0 : index
    %48 = vector.load %arg0[%c360, %c0_30] : memref<1800x100xf32, #tpu.memory_space<vmem>>, vector<72x100xf32>
    %cst_31 = arith.constant dense<0.000000e+00> : vector<72x32xf32>
    %49 = tpu.matmul %48, %0, %cst_31 {dimension_numbers = #tpu.dot_dimension_numbers<[1], [0], [0], [1], [0, 0, 1, 1], [], []>} : vector<72x100xf32>, vector<100x32xf32>, vector<72x32xf32> -> vector<72x32xf32>
    %50 = vector.broadcast %1 : vector<1x32xf32> to vector<72x32xf32>
    %51 = arith.addf %49, %50 : vector<72x32xf32>
    %cst_32 = arith.constant 0.000000e+00 : f32
    %52 = vector.broadcast %cst_32 : f32 to vector<72x32xf32>
    %53 = arith.maximumf %51, %52 : vector<72x32xf32>
    %c160 = arith.constant 160 : index
    %c0_33 = arith.constant 0 : index
    %54 = vector.load %arg3[%c160, %c0_33] : memref<800x64xf32, #tpu.memory_space<vmem>>, vector<32x64xf32>
    %cst_34 = arith.constant dense<0.000000e+00> : vector<72x64xf32>
    %55 = tpu.matmul %53, %54, %cst_34 {dimension_numbers = #tpu.dot_dimension_numbers<[1], [0], [0], [1], [0, 0, 1, 1], [], []>} : vector<72x32xf32>, vector<32x64xf32>, vector<72x64xf32> -> vector<72x64xf32>
    %56 = arith.addf %47, %55 : vector<72x64xf32>
    %c432 = arith.constant 432 : index
    %c0_35 = arith.constant 0 : index
    %57 = vector.load %arg0[%c432, %c0_35] : memref<1800x100xf32, #tpu.memory_space<vmem>>, vector<72x100xf32>
    %cst_36 = arith.constant dense<0.000000e+00> : vector<72x32xf32>
    %58 = tpu.matmul %57, %0, %cst_36 {dimension_numbers = #tpu.dot_dimension_numbers<[1], [0], [0], [1], [0, 0, 1, 1], [], []>} : vector<72x100xf32>, vector<100x32xf32>, vector<72x32xf32> -> vector<72x32xf32>
    %59 = vector.broadcast %1 : vector<1x32xf32> to vector<72x32xf32>
    %60 = arith.addf %58, %59 : vector<72x32xf32>
    %cst_37 = arith.constant 0.000000e+00 : f32
    %61 = vector.broadcast %cst_37 : f32 to vector<72x32xf32>
    %62 = arith.maximumf %60, %61 : vector<72x32xf32>
    %c192 = arith.constant 192 : index
    %c0_38 = arith.constant 0 : index
    %63 = vector.load %arg3[%c192, %c0_38] : memref<800x64xf32, #tpu.memory_space<vmem>>, vector<32x64xf32>
    %cst_39 = arith.constant dense<0.000000e+00> : vector<72x64xf32>
    %64 = tpu.matmul %62, %63, %cst_39 {dimension_numbers = #tpu.dot_dimension_numbers<[1], [0], [0], [1], [0, 0, 1, 1], [], []>} : vector<72x32xf32>, vector<32x64xf32>, vector<72x64xf32> -> vector<72x64xf32>
    %65 = arith.addf %56, %64 : vector<72x64xf32>
    %c504 = arith.constant 504 : index
    %c0_40 = arith.constant 0 : index
    %66 = vector.load %arg0[%c504, %c0_40] : memref<1800x100xf32, #tpu.memory_space<vmem>>, vector<72x100xf32>
    %cst_41 = arith.constant dense<0.000000e+00> : vector<72x32xf32>
    %67 = tpu.matmul %66, %0, %cst_41 {dimension_numbers = #tpu.dot_dimension_numbers<[1], [0], [0], [1], [0, 0, 1, 1], [], []>} : vector<72x100xf32>, vector<100x32xf32>, vector<72x32xf32> -> vector<72x32xf32>
    %68 = vector.broadcast %1 : vector<1x32xf32> to vector<72x32xf32>
    %69 = arith.addf %67, %68 : vector<72x32xf32>
    %cst_42 = arith.constant 0.000000e+00 : f32
    %70 = vector.broadcast %cst_42 : f32 to vector<72x32xf32>
    %71 = arith.maximumf %69, %70 : vector<72x32xf32>
    %c224 = arith.constant 224 : index
    %c0_43 = arith.constant 0 : index
    %72 = vector.load %arg3[%c224, %c0_43] : memref<800x64xf32, #tpu.memory_space<vmem>>, vector<32x64xf32>
    %cst_44 = arith.constant dense<0.000000e+00> : vector<72x64xf32>
    %73 = tpu.matmul %71, %72, %cst_44 {dimension_numbers = #tpu.dot_dimension_numbers<[1], [0], [0], [1], [0, 0, 1, 1], [], []>} : vector<72x32xf32>, vector<32x64xf32>, vector<72x64xf32> -> vector<72x64xf32>
    %74 = arith.addf %65, %73 : vector<72x64xf32>
    %c576 = arith.constant 576 : index
    %c0_45 = arith.constant 0 : index
    %75 = vector.load %arg0[%c576, %c0_45] : memref<1800x100xf32, #tpu.memory_space<vmem>>, vector<72x100xf32>
    %cst_46 = arith.constant dense<0.000000e+00> : vector<72x32xf32>
    %76 = tpu.matmul %75, %0, %cst_46 {dimension_numbers = #tpu.dot_dimension_numbers<[1], [0], [0], [1], [0, 0, 1, 1], [], []>} : vector<72x100xf32>, vector<100x32xf32>, vector<72x32xf32> -> vector<72x32xf32>
    %77 = vector.broadcast %1 : vector<1x32xf32> to vector<72x32xf32>
    %78 = arith.addf %76, %77 : vector<72x32xf32>
    %cst_47 = arith.constant 0.000000e+00 : f32
    %79 = vector.broadcast %cst_47 : f32 to vector<72x32xf32>
    %80 = arith.maximumf %78, %79 : vector<72x32xf32>
    %c256 = arith.constant 256 : index
    %c0_48 = arith.constant 0 : index
    %81 = vector.load %arg3[%c256, %c0_48] : memref<800x64xf32, #tpu.memory_space<vmem>>, vector<32x64xf32>
    %cst_49 = arith.constant dense<0.000000e+00> : vector<72x64xf32>
    %82 = tpu.matmul %80, %81, %cst_49 {dimension_numbers = #tpu.dot_dimension_numbers<[1], [0], [0], [1], [0, 0, 1, 1], [], []>} : vector<72x32xf32>, vector<32x64xf32>, vector<72x64xf32> -> vector<72x64xf32>
    %83 = arith.addf %74, %82 : vector<72x64xf32>
    %c648 = arith.constant 648 : index
    %c0_50 = arith.constant 0 : index
    %84 = vector.load %arg0[%c648, %c0_50] : memref<1800x100xf32, #tpu.memory_space<vmem>>, vector<72x100xf32>
    %cst_51 = arith.constant dense<0.000000e+00> : vector<72x32xf32>
    %85 = tpu.matmul %84, %0, %cst_51 {dimension_numbers = #tpu.dot_dimension_numbers<[1], [0], [0], [1], [0, 0, 1, 1], [], []>} : vector<72x100xf32>, vector<100x32xf32>, vector<72x32xf32> -> vector<72x32xf32>
    %86 = vector.broadcast %1 : vector<1x32xf32> to vector<72x32xf32>
    %87 = arith.addf %85, %86 : vector<72x32xf32>
    %cst_52 = arith.constant 0.000000e+00 : f32
    %88 = vector.broadcast %cst_52 : f32 to vector<72x32xf32>
    %89 = arith.maximumf %87, %88 : vector<72x32xf32>
    %c288_53 = arith.constant 288 : index
    %c0_54 = arith.constant 0 : index
    %90 = vector.load %arg3[%c288_53, %c0_54] : memref<800x64xf32, #tpu.memory_space<vmem>>, vector<32x64xf32>
    %cst_55 = arith.constant dense<0.000000e+00> : vector<72x64xf32>
    %91 = tpu.matmul %89, %90, %cst_55 {dimension_numbers = #tpu.dot_dimension_numbers<[1], [0], [0], [1], [0, 0, 1, 1], [], []>} : vector<72x32xf32>, vector<32x64xf32>, vector<72x64xf32> -> vector<72x64xf32>
    %92 = arith.addf %83, %91 : vector<72x64xf32>
    %c720 = arith.constant 720 : index
    %c0_56 = arith.constant 0 : index
    %93 = vector.load %arg0[%c720, %c0_56] : memref<1800x100xf32, #tpu.memory_space<vmem>>, vector<72x100xf32>
    %cst_57 = arith.constant dense<0.000000e+00> : vector<72x32xf32>
    %94 = tpu.matmul %93, %0, %cst_57 {dimension_numbers = #tpu.dot_dimension_numbers<[1], [0], [0], [1], [0, 0, 1, 1], [], []>} : vector<72x100xf32>, vector<100x32xf32>, vector<72x32xf32> -> vector<72x32xf32>
    %95 = vector.broadcast %1 : vector<1x32xf32> to vector<72x32xf32>
    %96 = arith.addf %94, %95 : vector<72x32xf32>
    %cst_58 = arith.constant 0.000000e+00 : f32
    %97 = vector.broadcast %cst_58 : f32 to vector<72x32xf32>
    %98 = arith.maximumf %96, %97 : vector<72x32xf32>
    %c320 = arith.constant 320 : index
    %c0_59 = arith.constant 0 : index
    %99 = vector.load %arg3[%c320, %c0_59] : memref<800x64xf32, #tpu.memory_space<vmem>>, vector<32x64xf32>
    %cst_60 = arith.constant dense<0.000000e+00> : vector<72x64xf32>
    %100 = tpu.matmul %98, %99, %cst_60 {dimension_numbers = #tpu.dot_dimension_numbers<[1], [0], [0], [1], [0, 0, 1, 1], [], []>} : vector<72x32xf32>, vector<32x64xf32>, vector<72x64xf32> -> vector<72x64xf32>
    %101 = arith.addf %92, %100 : vector<72x64xf32>
    %c792 = arith.constant 792 : index
    %c0_61 = arith.constant 0 : index
    %102 = vector.load %arg0[%c792, %c0_61] : memref<1800x100xf32, #tpu.memory_space<vmem>>, vector<72x100xf32>
    %cst_62 = arith.constant dense<0.000000e+00> : vector<72x32xf32>
    %103 = tpu.matmul %102, %0, %cst_62 {dimension_numbers = #tpu.dot_dimension_numbers<[1], [0], [0], [1], [0, 0, 1, 1], [], []>} : vector<72x100xf32>, vector<100x32xf32>, vector<72x32xf32> -> vector<72x32xf32>
    %104 = vector.broadcast %1 : vector<1x32xf32> to vector<72x32xf32>
    %105 = arith.addf %103, %104 : vector<72x32xf32>
    %cst_63 = arith.constant 0.000000e+00 : f32
    %106 = vector.broadcast %cst_63 : f32 to vector<72x32xf32>
    %107 = arith.maximumf %105, %106 : vector<72x32xf32>
    %c352 = arith.constant 352 : index
    %c0_64 = arith.constant 0 : index
    %108 = vector.load %arg3[%c352, %c0_64] : memref<800x64xf32, #tpu.memory_space<vmem>>, vector<32x64xf32>
    %cst_65 = arith.constant dense<0.000000e+00> : vector<72x64xf32>
    %109 = tpu.matmul %107, %108, %cst_65 {dimension_numbers = #tpu.dot_dimension_numbers<[1], [0], [0], [1], [0, 0, 1, 1], [], []>} : vector<72x32xf32>, vector<32x64xf32>, vector<72x64xf32> -> vector<72x64xf32>
    %110 = arith.addf %101, %109 : vector<72x64xf32>
    %c864 = arith.constant 864 : index
    %c0_66 = arith.constant 0 : index
    %111 = vector.load %arg0[%c864, %c0_66] : memref<1800x100xf32, #tpu.memory_space<vmem>>, vector<72x100xf32>
    %cst_67 = arith.constant dense<0.000000e+00> : vector<72x32xf32>
    %112 = tpu.matmul %111, %0, %cst_67 {dimension_numbers = #tpu.dot_dimension_numbers<[1], [0], [0], [1], [0, 0, 1, 1], [], []>} : vector<72x100xf32>, vector<100x32xf32>, vector<72x32xf32> -> vector<72x32xf32>
    %113 = vector.broadcast %1 : vector<1x32xf32> to vector<72x32xf32>
    %114 = arith.addf %112, %113 : vector<72x32xf32>
    %cst_68 = arith.constant 0.000000e+00 : f32
    %115 = vector.broadcast %cst_68 : f32 to vector<72x32xf32>
    %116 = arith.maximumf %114, %115 : vector<72x32xf32>
    %c384 = arith.constant 384 : index
    %c0_69 = arith.constant 0 : index
    %117 = vector.load %arg3[%c384, %c0_69] : memref<800x64xf32, #tpu.memory_space<vmem>>, vector<32x64xf32>
    %cst_70 = arith.constant dense<0.000000e+00> : vector<72x64xf32>
    %118 = tpu.matmul %116, %117, %cst_70 {dimension_numbers = #tpu.dot_dimension_numbers<[1], [0], [0], [1], [0, 0, 1, 1], [], []>} : vector<72x32xf32>, vector<32x64xf32>, vector<72x64xf32> -> vector<72x64xf32>
    %119 = arith.addf %110, %118 : vector<72x64xf32>
    %c936 = arith.constant 936 : index
    %c0_71 = arith.constant 0 : index
    %120 = vector.load %arg0[%c936, %c0_71] : memref<1800x100xf32, #tpu.memory_space<vmem>>, vector<72x100xf32>
    %cst_72 = arith.constant dense<0.000000e+00> : vector<72x32xf32>
    %121 = tpu.matmul %120, %0, %cst_72 {dimension_numbers = #tpu.dot_dimension_numbers<[1], [0], [0], [1], [0, 0, 1, 1], [], []>} : vector<72x100xf32>, vector<100x32xf32>, vector<72x32xf32> -> vector<72x32xf32>
    %122 = vector.broadcast %1 : vector<1x32xf32> to vector<72x32xf32>
    %123 = arith.addf %121, %122 : vector<72x32xf32>
    %cst_73 = arith.constant 0.000000e+00 : f32
    %124 = vector.broadcast %cst_73 : f32 to vector<72x32xf32>
    %125 = arith.maximumf %123, %124 : vector<72x32xf32>
    %c416 = arith.constant 416 : index
    %c0_74 = arith.constant 0 : index
    %126 = vector.load %arg3[%c416, %c0_74] : memref<800x64xf32, #tpu.memory_space<vmem>>, vector<32x64xf32>
    %cst_75 = arith.constant dense<0.000000e+00> : vector<72x64xf32>
    %127 = tpu.matmul %125, %126, %cst_75 {dimension_numbers = #tpu.dot_dimension_numbers<[1], [0], [0], [1], [0, 0, 1, 1], [], []>} : vector<72x32xf32>, vector<32x64xf32>, vector<72x64xf32> -> vector<72x64xf32>
    %128 = arith.addf %119, %127 : vector<72x64xf32>
    %c1008 = arith.constant 1008 : index
    %c0_76 = arith.constant 0 : index
    %129 = vector.load %arg0[%c1008, %c0_76] : memref<1800x100xf32, #tpu.memory_space<vmem>>, vector<72x100xf32>
    %cst_77 = arith.constant dense<0.000000e+00> : vector<72x32xf32>
    %130 = tpu.matmul %129, %0, %cst_77 {dimension_numbers = #tpu.dot_dimension_numbers<[1], [0], [0], [1], [0, 0, 1, 1], [], []>} : vector<72x100xf32>, vector<100x32xf32>, vector<72x32xf32> -> vector<72x32xf32>
    %131 = vector.broadcast %1 : vector<1x32xf32> to vector<72x32xf32>
    %132 = arith.addf %130, %131 : vector<72x32xf32>
    %cst_78 = arith.constant 0.000000e+00 : f32
    %133 = vector.broadcast %cst_78 : f32 to vector<72x32xf32>
    %134 = arith.maximumf %132, %133 : vector<72x32xf32>
    %c448 = arith.constant 448 : index
    %c0_79 = arith.constant 0 : index
    %135 = vector.load %arg3[%c448, %c0_79] : memref<800x64xf32, #tpu.memory_space<vmem>>, vector<32x64xf32>
    %cst_80 = arith.constant dense<0.000000e+00> : vector<72x64xf32>
    %136 = tpu.matmul %134, %135, %cst_80 {dimension_numbers = #tpu.dot_dimension_numbers<[1], [0], [0], [1], [0, 0, 1, 1], [], []>} : vector<72x32xf32>, vector<32x64xf32>, vector<72x64xf32> -> vector<72x64xf32>
    %137 = arith.addf %128, %136 : vector<72x64xf32>
    %c1080 = arith.constant 1080 : index
    %c0_81 = arith.constant 0 : index
    %138 = vector.load %arg0[%c1080, %c0_81] : memref<1800x100xf32, #tpu.memory_space<vmem>>, vector<72x100xf32>
    %cst_82 = arith.constant dense<0.000000e+00> : vector<72x32xf32>
    %139 = tpu.matmul %138, %0, %cst_82 {dimension_numbers = #tpu.dot_dimension_numbers<[1], [0], [0], [1], [0, 0, 1, 1], [], []>} : vector<72x100xf32>, vector<100x32xf32>, vector<72x32xf32> -> vector<72x32xf32>
    %140 = vector.broadcast %1 : vector<1x32xf32> to vector<72x32xf32>
    %141 = arith.addf %139, %140 : vector<72x32xf32>
    %cst_83 = arith.constant 0.000000e+00 : f32
    %142 = vector.broadcast %cst_83 : f32 to vector<72x32xf32>
    %143 = arith.maximumf %141, %142 : vector<72x32xf32>
    %c480 = arith.constant 480 : index
    %c0_84 = arith.constant 0 : index
    %144 = vector.load %arg3[%c480, %c0_84] : memref<800x64xf32, #tpu.memory_space<vmem>>, vector<32x64xf32>
    %cst_85 = arith.constant dense<0.000000e+00> : vector<72x64xf32>
    %145 = tpu.matmul %143, %144, %cst_85 {dimension_numbers = #tpu.dot_dimension_numbers<[1], [0], [0], [1], [0, 0, 1, 1], [], []>} : vector<72x32xf32>, vector<32x64xf32>, vector<72x64xf32> -> vector<72x64xf32>
    %146 = arith.addf %137, %145 : vector<72x64xf32>
    %c1152 = arith.constant 1152 : index
    %c0_86 = arith.constant 0 : index
    %147 = vector.load %arg0[%c1152, %c0_86] : memref<1800x100xf32, #tpu.memory_space<vmem>>, vector<72x100xf32>
    %cst_87 = arith.constant dense<0.000000e+00> : vector<72x32xf32>
    %148 = tpu.matmul %147, %0, %cst_87 {dimension_numbers = #tpu.dot_dimension_numbers<[1], [0], [0], [1], [0, 0, 1, 1], [], []>} : vector<72x100xf32>, vector<100x32xf32>, vector<72x32xf32> -> vector<72x32xf32>
    %149 = vector.broadcast %1 : vector<1x32xf32> to vector<72x32xf32>
    %150 = arith.addf %148, %149 : vector<72x32xf32>
    %cst_88 = arith.constant 0.000000e+00 : f32
    %151 = vector.broadcast %cst_88 : f32 to vector<72x32xf32>
    %152 = arith.maximumf %150, %151 : vector<72x32xf32>
    %c512 = arith.constant 512 : index
    %c0_89 = arith.constant 0 : index
    %153 = vector.load %arg3[%c512, %c0_89] : memref<800x64xf32, #tpu.memory_space<vmem>>, vector<32x64xf32>
    %cst_90 = arith.constant dense<0.000000e+00> : vector<72x64xf32>
    %154 = tpu.matmul %152, %153, %cst_90 {dimension_numbers = #tpu.dot_dimension_numbers<[1], [0], [0], [1], [0, 0, 1, 1], [], []>} : vector<72x32xf32>, vector<32x64xf32>, vector<72x64xf32> -> vector<72x64xf32>
    %155 = arith.addf %146, %154 : vector<72x64xf32>
    %c1224 = arith.constant 1224 : index
    %c0_91 = arith.constant 0 : index
    %156 = vector.load %arg0[%c1224, %c0_91] : memref<1800x100xf32, #tpu.memory_space<vmem>>, vector<72x100xf32>
    %cst_92 = arith.constant dense<0.000000e+00> : vector<72x32xf32>
    %157 = tpu.matmul %156, %0, %cst_92 {dimension_numbers = #tpu.dot_dimension_numbers<[1], [0], [0], [1], [0, 0, 1, 1], [], []>} : vector<72x100xf32>, vector<100x32xf32>, vector<72x32xf32> -> vector<72x32xf32>
    %158 = vector.broadcast %1 : vector<1x32xf32> to vector<72x32xf32>
    %159 = arith.addf %157, %158 : vector<72x32xf32>
    %cst_93 = arith.constant 0.000000e+00 : f32
    %160 = vector.broadcast %cst_93 : f32 to vector<72x32xf32>
    %161 = arith.maximumf %159, %160 : vector<72x32xf32>
    %c544 = arith.constant 544 : index
    %c0_94 = arith.constant 0 : index
    %162 = vector.load %arg3[%c544, %c0_94] : memref<800x64xf32, #tpu.memory_space<vmem>>, vector<32x64xf32>
    %cst_95 = arith.constant dense<0.000000e+00> : vector<72x64xf32>
    %163 = tpu.matmul %161, %162, %cst_95 {dimension_numbers = #tpu.dot_dimension_numbers<[1], [0], [0], [1], [0, 0, 1, 1], [], []>} : vector<72x32xf32>, vector<32x64xf32>, vector<72x64xf32> -> vector<72x64xf32>
    %164 = arith.addf %155, %163 : vector<72x64xf32>
    %c1296 = arith.constant 1296 : index
    %c0_96 = arith.constant 0 : index
    %165 = vector.load %arg0[%c1296, %c0_96] : memref<1800x100xf32, #tpu.memory_space<vmem>>, vector<72x100xf32>
    %cst_97 = arith.constant dense<0.000000e+00> : vector<72x32xf32>
    %166 = tpu.matmul %165, %0, %cst_97 {dimension_numbers = #tpu.dot_dimension_numbers<[1], [0], [0], [1], [0, 0, 1, 1], [], []>} : vector<72x100xf32>, vector<100x32xf32>, vector<72x32xf32> -> vector<72x32xf32>
    %167 = vector.broadcast %1 : vector<1x32xf32> to vector<72x32xf32>
    %168 = arith.addf %166, %167 : vector<72x32xf32>
    %cst_98 = arith.constant 0.000000e+00 : f32
    %169 = vector.broadcast %cst_98 : f32 to vector<72x32xf32>
    %170 = arith.maximumf %168, %169 : vector<72x32xf32>
    %c576_99 = arith.constant 576 : index
    %c0_100 = arith.constant 0 : index
    %171 = vector.load %arg3[%c576_99, %c0_100] : memref<800x64xf32, #tpu.memory_space<vmem>>, vector<32x64xf32>
    %cst_101 = arith.constant dense<0.000000e+00> : vector<72x64xf32>
    %172 = tpu.matmul %170, %171, %cst_101 {dimension_numbers = #tpu.dot_dimension_numbers<[1], [0], [0], [1], [0, 0, 1, 1], [], []>} : vector<72x32xf32>, vector<32x64xf32>, vector<72x64xf32> -> vector<72x64xf32>
    %173 = arith.addf %164, %172 : vector<72x64xf32>
    %c1368 = arith.constant 1368 : index
    %c0_102 = arith.constant 0 : index
    %174 = vector.load %arg0[%c1368, %c0_102] : memref<1800x100xf32, #tpu.memory_space<vmem>>, vector<72x100xf32>
    %cst_103 = arith.constant dense<0.000000e+00> : vector<72x32xf32>
    %175 = tpu.matmul %174, %0, %cst_103 {dimension_numbers = #tpu.dot_dimension_numbers<[1], [0], [0], [1], [0, 0, 1, 1], [], []>} : vector<72x100xf32>, vector<100x32xf32>, vector<72x32xf32> -> vector<72x32xf32>
    %176 = vector.broadcast %1 : vector<1x32xf32> to vector<72x32xf32>
    %177 = arith.addf %175, %176 : vector<72x32xf32>
    %cst_104 = arith.constant 0.000000e+00 : f32
    %178 = vector.broadcast %cst_104 : f32 to vector<72x32xf32>
    %179 = arith.maximumf %177, %178 : vector<72x32xf32>
    %c608 = arith.constant 608 : index
    %c0_105 = arith.constant 0 : index
    %180 = vector.load %arg3[%c608, %c0_105] : memref<800x64xf32, #tpu.memory_space<vmem>>, vector<32x64xf32>
    %cst_106 = arith.constant dense<0.000000e+00> : vector<72x64xf32>
    %181 = tpu.matmul %179, %180, %cst_106 {dimension_numbers = #tpu.dot_dimension_numbers<[1], [0], [0], [1], [0, 0, 1, 1], [], []>} : vector<72x32xf32>, vector<32x64xf32>, vector<72x64xf32> -> vector<72x64xf32>
    %182 = arith.addf %173, %181 : vector<72x64xf32>
    %c1440 = arith.constant 1440 : index
    %c0_107 = arith.constant 0 : index
    %183 = vector.load %arg0[%c1440, %c0_107] : memref<1800x100xf32, #tpu.memory_space<vmem>>, vector<72x100xf32>
    %cst_108 = arith.constant dense<0.000000e+00> : vector<72x32xf32>
    %184 = tpu.matmul %183, %0, %cst_108 {dimension_numbers = #tpu.dot_dimension_numbers<[1], [0], [0], [1], [0, 0, 1, 1], [], []>} : vector<72x100xf32>, vector<100x32xf32>, vector<72x32xf32> -> vector<72x32xf32>
    %185 = vector.broadcast %1 : vector<1x32xf32> to vector<72x32xf32>
    %186 = arith.addf %184, %185 : vector<72x32xf32>
    %cst_109 = arith.constant 0.000000e+00 : f32
    %187 = vector.broadcast %cst_109 : f32 to vector<72x32xf32>
    %188 = arith.maximumf %186, %187 : vector<72x32xf32>
    %c640 = arith.constant 640 : index
    %c0_110 = arith.constant 0 : index
    %189 = vector.load %arg3[%c640, %c0_110] : memref<800x64xf32, #tpu.memory_space<vmem>>, vector<32x64xf32>
    %cst_111 = arith.constant dense<0.000000e+00> : vector<72x64xf32>
    %190 = tpu.matmul %188, %189, %cst_111 {dimension_numbers = #tpu.dot_dimension_numbers<[1], [0], [0], [1], [0, 0, 1, 1], [], []>} : vector<72x32xf32>, vector<32x64xf32>, vector<72x64xf32> -> vector<72x64xf32>
    %191 = arith.addf %182, %190 : vector<72x64xf32>
    %c1512 = arith.constant 1512 : index
    %c0_112 = arith.constant 0 : index
    %192 = vector.load %arg0[%c1512, %c0_112] : memref<1800x100xf32, #tpu.memory_space<vmem>>, vector<72x100xf32>
    %cst_113 = arith.constant dense<0.000000e+00> : vector<72x32xf32>
    %193 = tpu.matmul %192, %0, %cst_113 {dimension_numbers = #tpu.dot_dimension_numbers<[1], [0], [0], [1], [0, 0, 1, 1], [], []>} : vector<72x100xf32>, vector<100x32xf32>, vector<72x32xf32> -> vector<72x32xf32>
    %194 = vector.broadcast %1 : vector<1x32xf32> to vector<72x32xf32>
    %195 = arith.addf %193, %194 : vector<72x32xf32>
    %cst_114 = arith.constant 0.000000e+00 : f32
    %196 = vector.broadcast %cst_114 : f32 to vector<72x32xf32>
    %197 = arith.maximumf %195, %196 : vector<72x32xf32>
    %c672 = arith.constant 672 : index
    %c0_115 = arith.constant 0 : index
    %198 = vector.load %arg3[%c672, %c0_115] : memref<800x64xf32, #tpu.memory_space<vmem>>, vector<32x64xf32>
    %cst_116 = arith.constant dense<0.000000e+00> : vector<72x64xf32>
    %199 = tpu.matmul %197, %198, %cst_116 {dimension_numbers = #tpu.dot_dimension_numbers<[1], [0], [0], [1], [0, 0, 1, 1], [], []>} : vector<72x32xf32>, vector<32x64xf32>, vector<72x64xf32> -> vector<72x64xf32>
    %200 = arith.addf %191, %199 : vector<72x64xf32>
    %c1584 = arith.constant 1584 : index
    %c0_117 = arith.constant 0 : index
    %201 = vector.load %arg0[%c1584, %c0_117] : memref<1800x100xf32, #tpu.memory_space<vmem>>, vector<72x100xf32>
    %cst_118 = arith.constant dense<0.000000e+00> : vector<72x32xf32>
    %202 = tpu.matmul %201, %0, %cst_118 {dimension_numbers = #tpu.dot_dimension_numbers<[1], [0], [0], [1], [0, 0, 1, 1], [], []>} : vector<72x100xf32>, vector<100x32xf32>, vector<72x32xf32> -> vector<72x32xf32>
    %203 = vector.broadcast %1 : vector<1x32xf32> to vector<72x32xf32>
    %204 = arith.addf %202, %203 : vector<72x32xf32>
    %cst_119 = arith.constant 0.000000e+00 : f32
    %205 = vector.broadcast %cst_119 : f32 to vector<72x32xf32>
    %206 = arith.maximumf %204, %205 : vector<72x32xf32>
    %c704 = arith.constant 704 : index
    %c0_120 = arith.constant 0 : index
    %207 = vector.load %arg3[%c704, %c0_120] : memref<800x64xf32, #tpu.memory_space<vmem>>, vector<32x64xf32>
    %cst_121 = arith.constant dense<0.000000e+00> : vector<72x64xf32>
    %208 = tpu.matmul %206, %207, %cst_121 {dimension_numbers = #tpu.dot_dimension_numbers<[1], [0], [0], [1], [0, 0, 1, 1], [], []>} : vector<72x32xf32>, vector<32x64xf32>, vector<72x64xf32> -> vector<72x64xf32>
    %209 = arith.addf %200, %208 : vector<72x64xf32>
    %c1656 = arith.constant 1656 : index
    %c0_122 = arith.constant 0 : index
    %210 = vector.load %arg0[%c1656, %c0_122] : memref<1800x100xf32, #tpu.memory_space<vmem>>, vector<72x100xf32>
    %cst_123 = arith.constant dense<0.000000e+00> : vector<72x32xf32>
    %211 = tpu.matmul %210, %0, %cst_123 {dimension_numbers = #tpu.dot_dimension_numbers<[1], [0], [0], [1], [0, 0, 1, 1], [], []>} : vector<72x100xf32>, vector<100x32xf32>, vector<72x32xf32> -> vector<72x32xf32>
    %212 = vector.broadcast %1 : vector<1x32xf32> to vector<72x32xf32>
    %213 = arith.addf %211, %212 : vector<72x32xf32>
    %cst_124 = arith.constant 0.000000e+00 : f32
    %214 = vector.broadcast %cst_124 : f32 to vector<72x32xf32>
    %215 = arith.maximumf %213, %214 : vector<72x32xf32>
    %c736 = arith.constant 736 : index
    %c0_125 = arith.constant 0 : index
    %216 = vector.load %arg3[%c736, %c0_125] : memref<800x64xf32, #tpu.memory_space<vmem>>, vector<32x64xf32>
    %cst_126 = arith.constant dense<0.000000e+00> : vector<72x64xf32>
    %217 = tpu.matmul %215, %216, %cst_126 {dimension_numbers = #tpu.dot_dimension_numbers<[1], [0], [0], [1], [0, 0, 1, 1], [], []>} : vector<72x32xf32>, vector<32x64xf32>, vector<72x64xf32> -> vector<72x64xf32>
    %218 = arith.addf %209, %217 : vector<72x64xf32>
    %c1728 = arith.constant 1728 : index
    %c0_127 = arith.constant 0 : index
    %219 = vector.load %arg0[%c1728, %c0_127] : memref<1800x100xf32, #tpu.memory_space<vmem>>, vector<72x100xf32>
    %cst_128 = arith.constant dense<0.000000e+00> : vector<72x32xf32>
    %220 = tpu.matmul %219, %0, %cst_128 {dimension_numbers = #tpu.dot_dimension_numbers<[1], [0], [0], [1], [0, 0, 1, 1], [], []>} : vector<72x100xf32>, vector<100x32xf32>, vector<72x32xf32> -> vector<72x32xf32>
    %221 = vector.broadcast %1 : vector<1x32xf32> to vector<72x32xf32>
    %222 = arith.addf %220, %221 : vector<72x32xf32>
    %cst_129 = arith.constant 0.000000e+00 : f32
    %223 = vector.broadcast %cst_129 : f32 to vector<72x32xf32>
    %224 = arith.maximumf %222, %223 : vector<72x32xf32>
    %c768 = arith.constant 768 : index
    %c0_130 = arith.constant 0 : index
    %225 = vector.load %arg3[%c768, %c0_130] : memref<800x64xf32, #tpu.memory_space<vmem>>, vector<32x64xf32>
    %cst_131 = arith.constant dense<0.000000e+00> : vector<72x64xf32>
    %226 = tpu.matmul %224, %225, %cst_131 {dimension_numbers = #tpu.dot_dimension_numbers<[1], [0], [0], [1], [0, 0, 1, 1], [], []>} : vector<72x32xf32>, vector<32x64xf32>, vector<72x64xf32> -> vector<72x64xf32>
    %227 = arith.addf %218, %226 : vector<72x64xf32>
    %c0_132 = arith.constant 0 : index
    %c0_133 = arith.constant 0 : index
    %228 = vector.load %arg4[%c0_132, %c0_133] : memref<1x64xf32, #tpu.memory_space<vmem>>, vector<1x64xf32>
    %229 = vector.broadcast %228 : vector<1x64xf32> to vector<72x64xf32>
    %230 = arith.addf %227, %229 : vector<72x64xf32>
    %cst_134 = arith.constant 0.000000e+00 : f32
    %231 = vector.broadcast %cst_134 : f32 to vector<72x64xf32>
    %232 = arith.maximumf %230, %231 : vector<72x64xf32>
    %cst_135 = arith.constant 0.000000e+00 : f32
    %233 = vector.broadcast %cst_135 : f32 to vector<8x512xf32>
    %234 = vector.extract_strided_slice %232 {offsets = [0, 0], sizes = [8, 64], strides = [1, 1]} : vector<72x64xf32> to vector<8x64xf32>
    %c0_136 = arith.constant 0 : index
    %c0_137 = arith.constant 0 : index
    %235 = vector.load %arg5[%c0_136, %c0_137] : memref<576x512xf32, #tpu.memory_space<vmem>>, vector<64x512xf32>
    %cst_138 = arith.constant dense<0.000000e+00> : vector<8x512xf32>
    %236 = tpu.matmul %234, %235, %cst_138 {dimension_numbers = #tpu.dot_dimension_numbers<[1], [0], [0], [1], [0, 0, 1, 1], [], []>} : vector<8x64xf32>, vector<64x512xf32>, vector<8x512xf32> -> vector<8x512xf32>
    %237 = arith.addf %233, %236 : vector<8x512xf32>
    %238 = vector.extract_strided_slice %232 {offsets = [8, 0], sizes = [8, 64], strides = [1, 1]} : vector<72x64xf32> to vector<8x64xf32>
    %c64_139 = arith.constant 64 : index
    %c0_140 = arith.constant 0 : index
    %239 = vector.load %arg5[%c64_139, %c0_140] : memref<576x512xf32, #tpu.memory_space<vmem>>, vector<64x512xf32>
    %cst_141 = arith.constant dense<0.000000e+00> : vector<8x512xf32>
    %240 = tpu.matmul %238, %239, %cst_141 {dimension_numbers = #tpu.dot_dimension_numbers<[1], [0], [0], [1], [0, 0, 1, 1], [], []>} : vector<8x64xf32>, vector<64x512xf32>, vector<8x512xf32> -> vector<8x512xf32>
    %241 = arith.addf %237, %240 : vector<8x512xf32>
    %242 = vector.extract_strided_slice %232 {offsets = [16, 0], sizes = [8, 64], strides = [1, 1]} : vector<72x64xf32> to vector<8x64xf32>
    %c128_142 = arith.constant 128 : index
    %c0_143 = arith.constant 0 : index
    %243 = vector.load %arg5[%c128_142, %c0_143] : memref<576x512xf32, #tpu.memory_space<vmem>>, vector<64x512xf32>
    %cst_144 = arith.constant dense<0.000000e+00> : vector<8x512xf32>
    %244 = tpu.matmul %242, %243, %cst_144 {dimension_numbers = #tpu.dot_dimension_numbers<[1], [0], [0], [1], [0, 0, 1, 1], [], []>} : vector<8x64xf32>, vector<64x512xf32>, vector<8x512xf32> -> vector<8x512xf32>
    %245 = arith.addf %241, %244 : vector<8x512xf32>
    %246 = vector.extract_strided_slice %232 {offsets = [24, 0], sizes = [8, 64], strides = [1, 1]} : vector<72x64xf32> to vector<8x64xf32>
    %c192_145 = arith.constant 192 : index
    %c0_146 = arith.constant 0 : index
    %247 = vector.load %arg5[%c192_145, %c0_146] : memref<576x512xf32, #tpu.memory_space<vmem>>, vector<64x512xf32>
    %cst_147 = arith.constant dense<0.000000e+00> : vector<8x512xf32>
    %248 = tpu.matmul %246, %247, %cst_147 {dimension_numbers = #tpu.dot_dimension_numbers<[1], [0], [0], [1], [0, 0, 1, 1], [], []>} : vector<8x64xf32>, vector<64x512xf32>, vector<8x512xf32> -> vector<8x512xf32>
    %249 = arith.addf %245, %248 : vector<8x512xf32>
    %250 = vector.extract_strided_slice %232 {offsets = [32, 0], sizes = [8, 64], strides = [1, 1]} : vector<72x64xf32> to vector<8x64xf32>
    %c256_148 = arith.constant 256 : index
    %c0_149 = arith.constant 0 : index
    %251 = vector.load %arg5[%c256_148, %c0_149] : memref<576x512xf32, #tpu.memory_space<vmem>>, vector<64x512xf32>
    %cst_150 = arith.constant dense<0.000000e+00> : vector<8x512xf32>
    %252 = tpu.matmul %250, %251, %cst_150 {dimension_numbers = #tpu.dot_dimension_numbers<[1], [0], [0], [1], [0, 0, 1, 1], [], []>} : vector<8x64xf32>, vector<64x512xf32>, vector<8x512xf32> -> vector<8x512xf32>
    %253 = arith.addf %249, %252 : vector<8x512xf32>
    %254 = vector.extract_strided_slice %232 {offsets = [40, 0], sizes = [8, 64], strides = [1, 1]} : vector<72x64xf32> to vector<8x64xf32>
    %c320_151 = arith.constant 320 : index
    %c0_152 = arith.constant 0 : index
    %255 = vector.load %arg5[%c320_151, %c0_152] : memref<576x512xf32, #tpu.memory_space<vmem>>, vector<64x512xf32>
    %cst_153 = arith.constant dense<0.000000e+00> : vector<8x512xf32>
    %256 = tpu.matmul %254, %255, %cst_153 {dimension_numbers = #tpu.dot_dimension_numbers<[1], [0], [0], [1], [0, 0, 1, 1], [], []>} : vector<8x64xf32>, vector<64x512xf32>, vector<8x512xf32> -> vector<8x512xf32>
    %257 = arith.addf %253, %256 : vector<8x512xf32>
    %258 = vector.extract_strided_slice %232 {offsets = [48, 0], sizes = [8, 64], strides = [1, 1]} : vector<72x64xf32> to vector<8x64xf32>
    %c384_154 = arith.constant 384 : index
    %c0_155 = arith.constant 0 : index
    %259 = vector.load %arg5[%c384_154, %c0_155] : memref<576x512xf32, #tpu.memory_space<vmem>>, vector<64x512xf32>
    %cst_156 = arith.constant dense<0.000000e+00> : vector<8x512xf32>
    %260 = tpu.matmul %258, %259, %cst_156 {dimension_numbers = #tpu.dot_dimension_numbers<[1], [0], [0], [1], [0, 0, 1, 1], [], []>} : vector<8x64xf32>, vector<64x512xf32>, vector<8x512xf32> -> vector<8x512xf32>
    %261 = arith.addf %257, %260 : vector<8x512xf32>
    %262 = vector.extract_strided_slice %232 {offsets = [56, 0], sizes = [8, 64], strides = [1, 1]} : vector<72x64xf32> to vector<8x64xf32>
    %c448_157 = arith.constant 448 : index
    %c0_158 = arith.constant 0 : index
    %263 = vector.load %arg5[%c448_157, %c0_158] : memref<576x512xf32, #tpu.memory_space<vmem>>, vector<64x512xf32>
    %cst_159 = arith.constant dense<0.000000e+00> : vector<8x512xf32>
    %264 = tpu.matmul %262, %263, %cst_159 {dimension_numbers = #tpu.dot_dimension_numbers<[1], [0], [0], [1], [0, 0, 1, 1], [], []>} : vector<8x64xf32>, vector<64x512xf32>, vector<8x512xf32> -> vector<8x512xf32>
    %265 = arith.addf %261, %264 : vector<8x512xf32>
    %266 = vector.extract_strided_slice %232 {offsets = [64, 0], sizes = [8, 64], strides = [1, 1]} : vector<72x64xf32> to vector<8x64xf32>
    %c512_160 = arith.constant 512 : index
    %c0_161 = arith.constant 0 : index
    %267 = vector.load %arg5[%c512_160, %c0_161] : memref<576x512xf32, #tpu.memory_space<vmem>>, vector<64x512xf32>
    %cst_162 = arith.constant dense<0.000000e+00> : vector<8x512xf32>
    %268 = tpu.matmul %266, %267, %cst_162 {dimension_numbers = #tpu.dot_dimension_numbers<[1], [0], [0], [1], [0, 0, 1, 1], [], []>} : vector<8x64xf32>, vector<64x512xf32>, vector<8x512xf32> -> vector<8x512xf32>
    %269 = arith.addf %265, %268 : vector<8x512xf32>
    %c0_163 = arith.constant 0 : index
    %c0_164 = arith.constant 0 : index
    %270 = vector.load %arg6[%c0_163, %c0_164] : memref<1x512xf32, #tpu.memory_space<vmem>>, vector<1x512xf32>
    %271 = vector.broadcast %270 : vector<1x512xf32> to vector<8x512xf32>
    %272 = arith.addf %269, %271 : vector<8x512xf32>
    %cst_165 = arith.constant 0.000000e+00 : f32
    %273 = vector.broadcast %cst_165 : f32 to vector<8x512xf32>
    %274 = arith.maximumf %272, %273 : vector<8x512xf32>
    %c0_166 = arith.constant 0 : index
    %c0_167 = arith.constant 0 : index
    %275 = vector.load %arg7[%c0_166, %c0_167] : memref<512x306xf32, #tpu.memory_space<vmem>>, vector<512x306xf32>
    %cst_168 = arith.constant dense<0.000000e+00> : vector<8x306xf32>
    %276 = tpu.matmul %274, %275, %cst_168 {dimension_numbers = #tpu.dot_dimension_numbers<[1], [0], [0], [1], [0, 0, 1, 1], [], []>} : vector<8x512xf32>, vector<512x306xf32>, vector<8x306xf32> -> vector<8x306xf32>
    %c0_169 = arith.constant 0 : index
    %c0_170 = arith.constant 0 : index
    %277 = vector.load %arg8[%c0_169, %c0_170] : memref<1x306xf32, #tpu.memory_space<vmem>>, vector<1x306xf32>
    %278 = vector.broadcast %277 : vector<1x306xf32> to vector<8x306xf32>
    %279 = arith.addf %276, %278 : vector<8x306xf32>
    %c0_171 = arith.constant 0 : index
    %c0_172 = arith.constant 0 : index
    %280 = vector.load %arg9[%c0_171, %c0_172] : memref<8x306xf32, #tpu.memory_space<vmem>>, vector<8x306xf32>
    tpu.vector_store %arg9[%c0_171, %c0_172], %279 {strides = array<i32>} : memref<8x306xf32, #tpu.memory_space<vmem>>, vector<8x306xf32>,
    return
  }
}

</mosaic_0001>

<llo_original>
// kernel: dueling_dqn_forward.1
$region0: #{dueling_dqn_forward.1}
  #allocation0 [shape = 'u32[]', space=smem, size = 0x4, offset = 0x4, fixed_abs, tag = 'smem constant byte address 0x4 - core index']
  #allocation1 [shape = 'u32[144,128]{1,0:T(1,128)}', space=vmem, size = 0x12000, scoped, tag = 'internal scratch']
  %s0 = inlined_call_operand.vmem [shape: f32[1800,100], index: 0, kind: input, shape index: {}]
  %s1 = inlined_call_operand.vmem [shape: f32[100,32], index: 1, kind: input, shape index: {}]
  %s2 = inlined_call_operand.vmem [shape: f32[1,32], index: 2, kind: input, shape index: {}]
  %s3 = inlined_call_operand.vmem [shape: f32[800,64], index: 3, kind: input, shape index: {}]
  %s4 = inlined_call_operand.vmem [shape: f32[1,64], index: 4, kind: input, shape index: {}]
  %s5 = inlined_call_operand.vmem [shape: f32[576,512], index: 5, kind: input, shape index: {}]
  %s6 = inlined_call_operand.vmem [shape: f32[1,512], index: 6, kind: input, shape index: {}]
  %s7 = inlined_call_operand.vmem [shape: f32[512,306], index: 7, kind: input, shape index: {}]
  %s8 = inlined_call_operand.vmem [shape: f32[1,306], index: 8, kind: input, shape index: {}]
  %s9 = inlined_call_operand.vmem [shape: f32[8,306], index: 9, kind: output, shape index: {}]
  %s10 = sld [smem:[#allocation0]]
  $region46: #{dueling_dqn_forward.1} parent=0
    _
  %s12 = ssub.s32 1, %s10
  %s13 = scalar_select 0, %s12, %s10
  // Predicated region
  $region2: #{dueling_dqn_forward.1} parent=0 // pred_check
    _
  $region3: #{dueling_dqn_forward.1} parent=0 // pred_check_branch
    %15 = sbr.rel (0) target = $region5
  $region4: #{dueling_dqn_forward.1} parent=0 // pred_region
    _
  $region5: #{dueling_dqn_forward.1} parent=0 // pred_fallthru
    _
  // Predicated region
  $region6: #{dueling_dqn_forward.1} parent=0 // pred_check
    _
  $region7: #{dueling_dqn_forward.1} parent=0 // pred_check_branch
    %17 = sbr.rel (0) target = $region9
  $region8: #{dueling_dqn_forward.1} parent=0 // pred_region
    _
  $region9: #{dueling_dqn_forward.1} parent=0 // pred_fallthru
    _
  // Predicated region
  $region10: #{dueling_dqn_forward.1} parent=0 // pred_check
    _
  $region11: #{dueling_dqn_forward.1} parent=0 // pred_check_branch
    %19 = sbr.rel (0) target = $region13
  $region12: #{dueling_dqn_forward.1} parent=0 // pred_region
    _
  $region13: #{dueling_dqn_forward.1} parent=0 // pred_fallthru
    _
  // Predicated region
  $region14: #{dueling_dqn_forward.1} parent=0 // pred_check
    _
  $region15: #{dueling_dqn_forward.1} parent=0 // pred_check_branch
    %21 = sbr.rel (0) target = $region17
  $region16: #{dueling_dqn_forward.1} parent=0 // pred_region
    _
  $region17: #{dueling_dqn_forward.1} parent=0 // pred_fallthru
    _
  // Predicated region
  $region18: #{dueling_dqn_forward.1} parent=0 // pred_check
    _
  $region19: #{dueling_dqn_forward.1} parent=0 // pred_check_branch
    %23 = sbr.rel (0) target = $region21
  $region20: #{dueling_dqn_forward.1} parent=0 // pred_region
    _
  $region21: #{dueling_dqn_forward.1} parent=0 // pred_fallthru
    _
  // Predicated region
  $region22: #{dueling_dqn_forward.1} parent=0 // pred_check
    _
  $region23: #{dueling_dqn_forward.1} parent=0 // pred_check_branch
    %25 = sbr.rel (0) target = $region25
  $region24: #{dueling_dqn_forward.1} parent=0 // pred_region
    _
  $region25: #{dueling_dqn_forward.1} parent=0 // pred_fallthru
    _
  // Predicated region
  $region26: #{dueling_dqn_forward.1} parent=0 // pred_check
    _
  $region27: #{dueling_dqn_forward.1} parent=0 // pred_check_branch
    %27 = sbr.rel (0) target = $region29
  $region28: #{dueling_dqn_forward.1} parent=0 // pred_region
    _
  $region29: #{dueling_dqn_forward.1} parent=0 // pred_fallthru
    _
  // Predicated region
  $region30: #{dueling_dqn_forward.1} parent=0 // pred_check
    _
  $region31: #{dueling_dqn_forward.1} parent=0 // pred_check_branch
    %29 = sbr.rel (0) target = $region33
  $region32: #{dueling_dqn_forward.1} parent=0 // pred_region
    _
  $region33: #{dueling_dqn_forward.1} parent=0 // pred_fallthru
    _
  // Predicated region
  $region34: #{dueling_dqn_forward.1} parent=0 // pred_check
    _
  $region35: #{dueling_dqn_forward.1} parent=0 // pred_check_branch
    %31 = sbr.rel (0) target = $region37
  $region36: #{dueling_dqn_forward.1} parent=0 // pred_region
    _
  $region37: #{dueling_dqn_forward.1} parent=0 // pred_fallthru
    _
  %v32 = vld [vmem:[%s1] sm:$0xff]
  %v33 = vld [vmem:[%s1 + $0x8] sm:$0xff]
  %v34 = vld [vmem:[%s1 + $0x10] sm:$0xff]
  %v35 = vld [vmem:[%s1 + $0x18] sm:$0xff]
  %v36 = vld [vmem:[%s1 + $0x20] sm:$0xff]
  %v37 = vld [vmem:[%s1 + $0x28] sm:$0xff]
  %v38 = vld [vmem:[%s1 + $0x30] sm:$0xff]
  %v39 = vld [vmem:[%s1 + $0x38] sm:$0xff]
  %v40 = vld [vmem:[%s1 + $0x40] sm:$0xff]
  %v41 = vld [vmem:[%s1 + $0x48] sm:$0xff]
  %v42 = vld [vmem:[%s1 + $0x50] sm:$0xff]
  %v43 = vld [vmem:[%s1 + $0x58] sm:$0xff]
  %v44 = vld [vmem:[%s1 + $0x60] sm:$0xf]
  %v45 = vld [vmem:[%s2] sm:$0x1]
  %v46 = vld [vmem:[%s0] sm:$0xff]
  %v47 = vld [vmem:[%s0 + $0x8] sm:$0xff]
  %v48 = vld [vmem:[%s0 + $0x10] sm:$0xff]
  %v49 = vld [vmem:[%s0 + $0x18] sm:$0xff]
  %v50 = vld [vmem:[%s0 + $0x20] sm:$0xff]
  %v51 = vld [vmem:[%s0 + $0x28] sm:$0xff]
  %v52 = vld [vmem:[%s0 + $0x30] sm:$0xff]
  %v53 = vld [vmem:[%s0 + $0x38] sm:$0xff]
  %v54 = vld [vmem:[%s0 + $0x40] sm:$0xff]
  %v56 = vlaneseq
  %v57 = vshrl.u32 %v56, 7
  %v58 = vsub.s32 0, %v57
  %v59 = vrot.slane %v45, %v58
  %vm61 = vcmask 818176
  %v63 = vsel %vm61, %v46, 0
  %v66 = vsel %vm61, %v47, 0
  %v69 = vsel %vm61, %v48, 0
  %v72 = vsel %vm61, %v49, 0
  %v75 = vsel %vm61, %v50, 0
  %v78 = vsel %vm61, %v51, 0
  %v81 = vsel %vm61, %v52, 0
  %v84 = vsel %vm61, %v53, 0
  %v87 = vsel %vm61, %v54, 0
  %vm89 = vcmask 1043456
  %v91 = vsel %vm89, %v44, 0
  %93 = vmatprep.subr.mxu0 0.0
  %94 = vmatpush1.msra.mxu0 %v32
  %95 = vmatprep.subr.mxu0 0.0
  %96 = vmatpush1.msra.mxu0 %v33
  %97 = vmatprep.subr.mxu0 0.0
  %98 = vmatpush1.msra.mxu0 %v34
  %99 = vmatprep.subr.mxu0 0.0
  %100 = vmatpush1.msra.mxu0 %v35
  %101 = vmatprep.subr.mxu0 0.0
  %102 = vmatpush1.msra.mxu0 %v36
  %103 = vmatprep.subr.mxu0 0.0
  %104 = vmatpush1.msra.mxu0 %v37
  %105 = vmatprep.subr.mxu0 0.0
  %106 = vmatpush1.msra.mxu0 %v38
  %107 = vmatprep.subr.mxu0 0.0
  %108 = vmatpush1.msra.mxu0 %v39
  %109 = vmatprep.subr.mxu0 0.0
  %110 = vmatpush1.msra.mxu0 %v40
  %111 = vmatprep.subr.mxu0 0.0
  %112 = vmatpush1.msra.mxu0 %v41
  %113 = vmatprep.subr.mxu0 0.0
  %114 = vmatpush1.msra.mxu0 %v42
  %115 = vmatprep.subr.mxu0 0.0
  %116 = vmatpush1.msra.mxu0 %v43
  %117 = vmatprep.subr.mxu0 0.0
  %118 = vmatpush1.msra.mxu0 %v91
  %119 = vmatprep.subr.mxu0 0.0
  %120 = vmatpush1.msra.mxu0 0.0
  %121 = vmatprep.subr.mxu0 0.0
  %122 = vmatpush1.msra.mxu0 0.0
  %123 = vmatprep.subr.mxu0 0.0
  %124 = vmatpush1.msra.mxu0 0.0
  %125 = vmatprep.subr.mxu0 0.0
  %126 = vmatpush1.msra.mxu0 0.0
  %127 = vmatprep.subr.mxu0 0.0
  %128 = vmatpush1.msra.mxu0 0.0
  %129 = vmatprep.subr.mxu0 0.0
  %130 = vmatpush1.msra.mxu0 0.0
  %131 = vmatprep.subr.mxu0 0.0
  %132 = vmatpush1.msra.mxu0 0.0
  %133 = vmatprep.subr.mxu0 0.0
  %134 = vmatpush1.msra.mxu0 0.0
  %135 = vmatprep.subr.mxu0 0.0
  %136 = vmatpush1.msra.mxu0 0.0
  %137 = vmatprep.subr.mxu0 0.0
  %138 = vmatpush1.msra.mxu0 0.0
  %139 = vmatprep.subr.mxu0 0.0
  %140 = vmatpush1.msra.mxu0 0.0
  %141 = vmatprep.subr.mxu0 0.0
  %142 = vmatpush1.msra.mxu0 0.0
  %143 = vmatprep.subr.mxu0 0.0
  %144 = vmatpush1.msra.mxu0 0.0
  %145 = vmatprep.subr.mxu0 0.0
  %146 = vmatpush1.msra.mxu0 0.0
  %147 = vmatprep.subr.mxu0 0.0
  %148 = vmatpush1.msra.mxu0 0.0
  %149 = vmatprep.subr.mxu0 0.0
  %150 = vmatpush1.msra.mxu0 0.0
  %151 = vmatprep.subr.mxu0 0.0
  %152 = vmatpush1.msra.mxu0 0.0
  %153 = vmatprep.subr.mxu0 0.0
  %154 = vmatpush1.msra.mxu0 0.0
  %155 = vmatprep.subr.mxu0 0.0
  %156 = vmatpush1.msra.mxu0 0.0
  %157 = vmatprep.mubr.f32.mxu0 0.0
  %158 = vmatmul.mubr.f32.gmra.mrb[0].mxu0 %v63
  %v159 = vpop.f32.mrb[0].mxu0
  %v160 = vadd.f32 %v59, %v159
  %v161 = vpop.f32.mrb[0].mxu0
  %162 = vmatprep.mubr.f32.mxu0 0.0
  %163 = vmatmul.mubr.f32.gmra.mrb[0].mxu0 %v66
  %v164 = vpop.f32.mrb[0].mxu0
  %v165 = vadd.f32 %v59, %v164
  %v166 = vpop.f32.mrb[0].mxu0
  %167 = vmatprep.mubr.f32.mxu0 0.0
  %168 = vmatmul.mubr.f32.gmra.mrb[0].mxu0 %v69
  %v169 = vpop.f32.mrb[0].mxu0
  %v170 = vadd.f32 %v59, %v169
  %v171 = vpop.f32.mrb[0].mxu0
  %172 = vmatprep.mubr.f32.mxu0 0.0
  %173 = vmatmul.mubr.f32.gmra.mrb[0].mxu0 %v72
  %v174 = vpop.f32.mrb[0].mxu0
  %v175 = vadd.f32 %v59, %v174
  %v176 = vpop.f32.mrb[0].mxu0
  %177 = vmatprep.mubr.f32.mxu0 0.0
  %178 = vmatmul.mubr.f32.gmra.mrb[0].mxu0 %v75
  %v179 = vpop.f32.mrb[0].mxu0
  %v180 = vadd.f32 %v59, %v179
  %v181 = vpop.f32.mrb[0].mxu0
  %182 = vmatprep.mubr.f32.mxu0 0.0
  %183 = vmatmul.mubr.f32.gmra.mrb[0].mxu0 %v78
  %v184 = vpop.f32.mrb[0].mxu0
  %v185 = vadd.f32 %v59, %v184
  %v186 = vpop.f32.mrb[0].mxu0
  %187 = vmatprep.mubr.f32.mxu0 0.0
  %188 = vmatmul.mubr.f32.gmra.mrb[0].mxu0 %v81
  %v189 = vpop.f32.mrb[0].mxu0
  %v190 = vadd.f32 %v59, %v189
  %v191 = vpop.f32.mrb[0].mxu0
  %192 = vmatprep.mubr.f32.mxu0 0.0
  %193 = vmatmul.mubr.f32.gmra.mrb[0].mxu0 %v84
  %v194 = vpop.f32.mrb[0].mxu0
  %v195 = vadd.f32 %v59, %v194
  %v196 = vpop.f32.mrb[0].mxu0
  %197 = vmatprep.mubr.f32.mxu0 0.0
  %198 = vmatmul.mubr.f32.gmra.mrb[0].mxu0 %v87
  %v199 = vpop.f32.mrb[0].mxu0
  %v200 = vadd.f32 %v59, %v199
  %v201 = vpop.f32.mrb[0].mxu0
  %202 = vdwg.mxu0
  %v203 = vmax.f32 %v160, 0.0
  %v204 = vmax.f32 %v165, 0.0
  %v205 = vmax.f32 %v170, 0.0
  %v206 = vmax.f32 %v175, 0.0
  %v207 = vmax.f32 %v180, 0.0
  %v208 = vmax.f32 %v185, 0.0
  %v209 = vmax.f32 %v190, 0.0
  %v210 = vmax.f32 %v195, 0.0
  %v211 = vmax.f32 %v200, 0.0
  %v212 = vld [vmem:[%s3] sm:$0xff]
  %v213 = vld [vmem:[%s3 + $0x8] sm:$0xff]
  %v214 = vld [vmem:[%s3 + $0x10] sm:$0xff]
  %v215 = vld [vmem:[%s3 + $0x18] sm:$0xff]
  %v216 = vld [vmem:[%s0 + $0x48] sm:$0xff]
  %v217 = vld [vmem:[%s0 + $0x50] sm:$0xff]
  %v218 = vld [vmem:[%s0 + $0x58] sm:$0xff]
  %v219 = vld [vmem:[%s0 + $0x60] sm:$0xff]
  %v220 = vld [vmem:[%s0 + $0x68] sm:$0xff]
  %v221 = vld [vmem:[%s0 + $0x70] sm:$0xff]
  %v222 = vld [vmem:[%s0 + $0x78] sm:$0xff]
  %v223 = vld [vmem:[%s0 + $0x80] sm:$0xff]
  %v224 = vld [vmem:[%s0 + $0x88] sm:$0xff]
  %v226 = vsel %vm61, %v216, 0
  %v229 = vsel %vm61, %v217, 0
  %v232 = vsel %vm61, %v218, 0
  %v235 = vsel %vm61, %v219, 0
  %v238 = vsel %vm61, %v220, 0
  %v241 = vsel %vm61, %v221, 0
  %v244 = vsel %vm61, %v222, 0
  %v247 = vsel %vm61, %v223, 0
  %v250 = vsel %vm61, %v224, 0
  %252 = vmatprep.subr.mxu0 0.0
  %253 = vmatpush1.msra.mxu0 %v32
  %254 = vmatprep.subr.mxu0 0.0
  %255 = vmatpush1.msra.mxu0 %v33
  %256 = vmatprep.subr.mxu0 0.0
  %257 = vmatpush1.msra.mxu0 %v34
  %258 = vmatprep.subr.mxu0 0.0
  %259 = vmatpush1.msra.mxu0 %v35
  %260 = vmatprep.subr.mxu0 0.0
  %261 = vmatpush1.msra.mxu0 %v36
  %262 = vmatprep.subr.mxu0 0.0
  %263 = vmatpush1.msra.mxu0 %v37
  %264 = vmatprep.subr.mxu0 0.0
  %265 = vmatpush1.msra.mxu0 %v38
  %266 = vmatprep.subr.mxu0 0.0
  %267 = vmatpush1.msra.mxu0 %v39
  %268 = vmatprep.subr.mxu0 0.0
  %269 = vmatpush1.msra.mxu0 %v40
  %270 = vmatprep.subr.mxu0 0.0
  %271 = vmatpush1.msra.mxu0 %v41
  %272 = vmatprep.subr.mxu0 0.0
  %273 = vmatpush1.msra.mxu0 %v42
  %274 = vmatprep.subr.mxu0 0.0
  %275 = vmatpush1.msra.mxu0 %v43
  %276 = vmatprep.subr.mxu0 0.0
  %277 = vmatpush1.msra.mxu0 %v91
  %278 = vmatprep.subr.mxu0 0.0
  %279 = vmatpush1.msra.mxu0 0.0
  %280 = vmatprep.subr.mxu0 0.0
  %281 = vmatpush1.msra.mxu0 0.0
  %282 = vmatprep.subr.mxu0 0.0
  %283 = vmatpush1.msra.mxu0 0.0
  %284 = vmatprep.subr.mxu0 0.0
  %285 = vmatpush1.msra.mxu0 0.0
  %286 = vmatprep.subr.mxu0 0.0
  %287 = vmatpush1.msra.mxu0 0.0
  %288 = vmatprep.subr.mxu0 0.0
  %289 = vmatpush1.msra.mxu0 0.0
  %290 = vmatprep.subr.mxu0 0.0
  %291 = vmatpush1.msra.mxu0 0.0
  %292 = vmatprep.subr.mxu0 0.0
  %293 = vmatpush1.msra.mxu0 0.0
  %294 = vmatprep.subr.mxu0 0.0
  %295 = vmatpush1.msra.mxu0 0.0
  %296 = vmatprep.subr.mxu0 0.0
  %297 = vmatpush1.msra.mxu0 0.0
  %298 = vmatprep.subr.mxu0 0.0
  %299 = vmatpush1.msra.mxu0 0.0
  %300 = vmatprep.subr.mxu0 0.0
  %301 = vmatpush1.msra.mxu0 0.0
  %302 = vmatprep.subr.mxu0 0.0
  %303 = vmatpush1.msra.mxu0 0.0
  %304 = vmatprep.subr.mxu0 0.0
  %305 = vmatpush1.msra.mxu0 0.0
  %306 = vmatprep.subr.mxu0 0.0
  %307 = vmatpush1.msra.mxu0 0.0
  %308 = vmatprep.subr.mxu0 0.0
  %309 = vmatpush1.msra.mxu0 0.0
  %310 = vmatprep.subr.mxu0 0.0
  %311 = vmatpush1.msra.mxu0 0.0
  %312 = vmatprep.subr.mxu0 0.0
  %313 = vmatpush1.msra.mxu0 0.0
  %314 = vmatprep.subr.mxu0 0.0
  %315 = vmatpush1.msra.mxu0 0.0
  %316 = vmatprep.mubr.f32.mxu0 0.0
  %317 = vmatmul.mubr.f32.gmra.mrb[0].mxu0 %v226
  %v318 = vpop.f32.mrb[0].mxu0
  %v319 = vadd.f32 %v59, %v318
  %v320 = vpop.f32.mrb[0].mxu0
  %321 = vmatprep.mubr.f32.mxu0 0.0
  %322 = vmatmul.mubr.f32.gmra.mrb[0].mxu0 %v229
  %v323 = vpop.f32.mrb[0].mxu0
  %v324 = vadd.f32 %v59, %v323
  %v325 = vpop.f32.mrb[0].mxu0
  %326 = vmatprep.mubr.f32.mxu0 0.0
  %327 = vmatmul.mubr.f32.gmra.mrb[0].mxu0 %v232
  %v328 = vpop.f32.mrb[0].mxu0
  %v329 = vadd.f32 %v59, %v328
  %v330 = vpop.f32.mrb[0].mxu0
  %331 = vmatprep.mubr.f32.mxu0 0.0
  %332 = vmatmul.mubr.f32.gmra.mrb[0].mxu0 %v235
  %v333 = vpop.f32.mrb[0].mxu0
  %v334 = vadd.f32 %v59, %v333
  %v335 = vpop.f32.mrb[0].mxu0
  %336 = vmatprep.mubr.f32.mxu0 0.0
  %337 = vmatmul.mubr.f32.gmra.mrb[0].mxu0 %v238
  %v338 = vpop.f32.mrb[0].mxu0
  %v339 = vadd.f32 %v59, %v338
  %v340 = vpop.f32.mrb[0].mxu0
  %341 = vmatprep.mubr.f32.mxu0 0.0
  %342 = vmatmul.mubr.f32.gmra.mrb[0].mxu0 %v241
  %v343 = vpop.f32.mrb[0].mxu0
  %v344 = vadd.f32 %v59, %v343
  %v345 = vpop.f32.mrb[0].mxu0
  %346 = vmatprep.mubr.f32.mxu0 0.0
  %347 = vmatmul.mubr.f32.gmra.mrb[0].mxu0 %v244
  %v348 = vpop.f32.mrb[0].mxu0
  %v349 = vadd.f32 %v59, %v348
  %v350 = vpop.f32.mrb[0].mxu0
  %351 = vmatprep.mubr.f32.mxu0 0.0
  %352 = vmatmul.mubr.f32.gmra.mrb[0].mxu0 %v247
  %v353 = vpop.f32.mrb[0].mxu0
  %v354 = vadd.f32 %v59, %v353
  %v355 = vpop.f32.mrb[0].mxu0
  %356 = vmatprep.mubr.f32.mxu0 0.0
  %357 = vmatmul.mubr.f32.gmra.mrb[0].mxu0 %v250
  %v358 = vpop.f32.mrb[0].mxu0
  %v359 = vadd.f32 %v59, %v358
  %v360 = vpop.f32.mrb[0].mxu0
  %361 = vdwg.mxu0
  %v362 = vmax.f32 %v319, 0.0
  %v363 = vmax.f32 %v324, 0.0
  %v364 = vmax.f32 %v329, 0.0
  %v365 = vmax.f32 %v334, 0.0
  %v366 = vmax.f32 %v339, 0.0
  %v367 = vmax.f32 %v344, 0.0
  %v368 = vmax.f32 %v349, 0.0
  %v369 = vmax.f32 %v354, 0.0
  %v370 = vmax.f32 %v359, 0.0
  %v371 = vld [vmem:[%s3 + $0x20] sm:$0xff]
  %v372 = vld [vmem:[%s3 + $0x28] sm:$0xff]
  %v373 = vld [vmem:[%s3 + $0x30] sm:$0xff]
  %v374 = vld [vmem:[%s3 + $0x38] sm:$0xff]
  %vm375 = vcmask 261120
  %v377 = vsel %vm375, %v362, 0
  %v380 = vsel %vm375, %v363, 0
  %v383 = vsel %vm375, %v364, 0
  %v386 = vsel %vm375, %v365, 0
  %v389 = vsel %vm375, %v366, 0
  %v392 = vsel %vm375, %v367, 0
  %v395 = vsel %vm375, %v368, 0
  %v398 = vsel %vm375, %v369, 0
  %v401 = vsel %vm375, %v370, 0
  %403 = vmatprep.subr.mxu0 0.0
  %404 = vmatpush1.msra.mxu0 %v371
  %405 = vmatprep.subr.mxu0 0.0
  %406 = vmatpush1.msra.mxu0 %v372
  %407 = vmatprep.subr.mxu0 0.0
  %408 = vmatpush1.msra.mxu0 %v373
  %409 = vmatprep.subr.mxu0 0.0
  %410 = vmatpush1.msra.mxu0 %v374
  %411 = vmatprep.subr.mxu0 0.0
  %412 = vmatpush1.msra.mxu0 0.0
  %413 = vmatprep.subr.mxu0 0.0
  %414 = vmatpush1.msra.mxu0 0.0
  %415 = vmatprep.subr.mxu0 0.0
  %416 = vmatpush1.msra.mxu0 0.0
  %417 = vmatprep.subr.mxu0 0.0
  %418 = vmatpush1.msra.mxu0 0.0
  %419 = vmatprep.subr.mxu0 0.0
  %420 = vmatpush1.msra.mxu0 0.0
  %421 = vmatprep.subr.mxu0 0.0
  %422 = vmatpush1.msra.mxu0 0.0
  %423 = vmatprep.subr.mxu0 0.0
  %424 = vmatpush1.msra.mxu0 0.0
  %425 = vmatprep.subr.mxu0 0.0
  %426 = vmatpush1.msra.mxu0 0.0
  %427 = vmatprep.subr.mxu0 0.0
  %428 = vmatpush1.msra.mxu0 0.0
  %429 = vmatprep.subr.mxu0 0.0
  %430 = vmatpush1.msra.mxu0 0.0
  %431 = vmatprep.subr.mxu0 0.0
  %432 = vmatpush1.msra.mxu0 0.0
  %433 = vmatprep.subr.mxu0 0.0
  %434 = vmatpush1.msra.mxu0 0.0
  %435 = vmatprep.subr.mxu0 0.0
  %436 = vmatpush1.msra.mxu0 0.0
  %437 = vmatprep.subr.mxu0 0.0
  %438 = vmatpush1.msra.mxu0 0.0
  %439 = vmatprep.subr.mxu0 0.0
  %440 = vmatpush1.msra.mxu0 0.0
  %441 = vmatprep.subr.mxu0 0.0
  %442 = vmatpush1.msra.mxu0 0.0
  %443 = vmatprep.subr.mxu0 0.0
  %444 = vmatpush1.msra.mxu0 0.0
  %445 = vmatprep.subr.mxu0 0.0
  %446 = vmatpush1.msra.mxu0 0.0
  %447 = vmatprep.subr.mxu0 0.0
  %448 = vmatpush1.msra.mxu0 0.0
  %449 = vmatprep.subr.mxu0 0.0
  %450 = vmatpush1.msra.mxu0 0.0
  %451 = vmatprep.subr.mxu0 0.0
  %452 = vmatpush1.msra.mxu0 0.0
  %453 = vmatprep.subr.mxu0 0.0
  %454 = vmatpush1.msra.mxu0 0.0
  %455 = vmatprep.subr.mxu0 0.0
  %456 = vmatpush1.msra.mxu0 0.0
  %457 = vmatprep.subr.mxu0 0.0
  %458 = vmatpush1.msra.mxu0 0.0
  %459 = vmatprep.subr.mxu0 0.0
  %460 = vmatpush1.msra.mxu0 0.0
  %461 = vmatprep.subr.mxu0 0.0
  %462 = vmatpush1.msra.mxu0 0.0
  %463 = vmatprep.subr.mxu0 0.0
  %464 = vmatpush1.msra.mxu0 0.0
  %465 = vmatprep.subr.mxu0 0.0
  %466 = vmatpush1.msra.mxu0 0.0
  %467 = vmatprep.mubr.f32.mxu0 0.0
  %468 = vmatmul.mubr.f32.gmra.mrb[0].mxu0 %v377
  %v469 = vpop.f32.mrb[0].mxu0
  %v470 = vadd.f32 0.0, %v469
  %v471 = vpop.f32.mrb[0].mxu0
  %472 = vmatprep.mubr.f32.mxu0 0.0
  %473 = vmatmul.mubr.f32.gmra.mrb[0].mxu0 %v380
  %v474 = vpop.f32.mrb[0].mxu0
  %v475 = vadd.f32 0.0, %v474
  %v476 = vpop.f32.mrb[0].mxu0
  %477 = vmatprep.mubr.f32.mxu0 0.0
  %478 = vmatmul.mubr.f32.gmra.mrb[0].mxu0 %v383
  %v479 = vpop.f32.mrb[0].mxu0
  %v480 = vadd.f32 0.0, %v479
  %v481 = vpop.f32.mrb[0].mxu0
  %482 = vmatprep.mubr.f32.mxu0 0.0
  %483 = vmatmul.mubr.f32.gmra.mrb[0].mxu0 %v386
  %v484 = vpop.f32.mrb[0].mxu0
  %v485 = vadd.f32 0.0, %v484
  %v486 = vpop.f32.mrb[0].mxu0
  %487 = vmatprep.mubr.f32.mxu0 0.0
  %488 = vmatmul.mubr.f32.gmra.mrb[0].mxu0 %v389
  %v489 = vpop.f32.mrb[0].mxu0
  %v490 = vadd.f32 0.0, %v489
  %v491 = vpop.f32.mrb[0].mxu0
  %492 = vmatprep.mubr.f32.mxu0 0.0
  %493 = vmatmul.mubr.f32.gmra.mrb[0].mxu0 %v392
  %v494 = vpop.f32.mrb[0].mxu0
  %v495 = vadd.f32 0.0, %v494
  %v496 = vpop.f32.mrb[0].mxu0
  %497 = vmatprep.mubr.f32.mxu0 0.0
  %498 = vmatmul.mubr.f32.gmra.mrb[0].mxu0 %v395
  %v499 = vpop.f32.mrb[0].mxu0
  %v500 = vadd.f32 0.0, %v499
  %v501 = vpop.f32.mrb[0].mxu0
  %502 = vmatprep.mubr.f32.mxu0 0.0
  %503 = vmatmul.mubr.f32.gmra.mrb[0].mxu0 %v398
  %v504 = vpop.f32.mrb[0].mxu0
  %v505 = vadd.f32 0.0, %v504
  %v506 = vpop.f32.mrb[0].mxu0
  %507 = vmatprep.mubr.f32.mxu0 0.0
  %508 = vmatmul.mubr.f32.gmra.mrb[0].mxu0 %v401
  %v509 = vpop.f32.mrb[0].mxu0
  %v510 = vadd.f32 0.0, %v509
  %v511 = vpop.f32.mrb[0].mxu0
  %512 = vdwg.mxu0
  %v514 = vsel %vm375, %v203, 0
  %v517 = vsel %vm375, %v204, 0
  %v520 = vsel %vm375, %v205, 0
  %v523 = vsel %vm375, %v206, 0
  %v526 = vsel %vm375, %v207, 0
  %v529 = vsel %vm375, %v208, 0
  %v532 = vsel %vm375, %v209, 0
  %v535 = vsel %vm375, %v210, 0
  %v538 = vsel %vm375, %v211, 0
  %540 = vmatprep.subr.mxu0 0.0
  %541 = vmatpush1.msra.mxu0 %v212
  %542 = vmatprep.subr.mxu0 0.0
  %543 = vmatpush1.msra.mxu0 %v213
  %544 = vmatprep.subr.mxu0 0.0
  %545 = vmatpush1.msra.mxu0 %v214
  %546 = vmatprep.subr.mxu0 0.0
  %547 = vmatpush1.msra.mxu0 %v215
  %548 = vmatprep.subr.mxu0 0.0
  %549 = vmatpush1.msra.mxu0 0.0
  %550 = vmatprep.subr.mxu0 0.0
  %551 = vmatpush1.msra.mxu0 0.0
  %552 = vmatprep.subr.mxu0 0.0
  %553 = vmatpush1.msra.mxu0 0.0
  %554 = vmatprep.subr.mxu0 0.0
  %555 = vmatpush1.msra.mxu0 0.0
  %556 = vmatprep.subr.mxu0 0.0
  %557 = vmatpush1.msra.mxu0 0.0
  %558 = vmatprep.subr.mxu0 0.0
  %559 = vmatpush1.msra.mxu0 0.0
  %560 = vmatprep.subr.mxu0 0.0
  %561 = vmatpush1.msra.mxu0 0.0
  %562 = vmatprep.subr.mxu0 0.0
  %563 = vmatpush1.msra.mxu0 0.0
  %564 = vmatprep.subr.mxu0 0.0
  %565 = vmatpush1.msra.mxu0 0.0
  %566 = vmatprep.subr.mxu0 0.0
  %567 = vmatpush1.msra.mxu0 0.0
  %568 = vmatprep.subr.mxu0 0.0
  %569 = vmatpush1.msra.mxu0 0.0
  %570 = vmatprep.subr.mxu0 0.0
  %571 = vmatpush1.msra.mxu0 0.0
  %572 = vmatprep.subr.mxu0 0.0
  %573 = vmatpush1.msra.mxu0 0.0
  %574 = vmatprep.subr.mxu0 0.0
  %575 = vmatpush1.msra.mxu0 0.0
  %576 = vmatprep.subr.mxu0 0.0
  %577 = vmatpush1.msra.mxu0 0.0
  %578 = vmatprep.subr.mxu0 0.0
  %579 = vmatpush1.msra.mxu0 0.0
  %580 = vmatprep.subr.mxu0 0.0
  %581 = vmatpush1.msra.mxu0 0.0
  %582 = vmatprep.subr.mxu0 0.0
  %583 = vmatpush1.msra.mxu0 0.0
  %584 = vmatprep.subr.mxu0 0.0
  %585 = vmatpush1.msra.mxu0 0.0
  %586 = vmatprep.subr.mxu0 0.0
  %587 = vmatpush1.msra.mxu0 0.0
  %588 = vmatprep.subr.mxu0 0.0
  %589 = vmatpush1.msra.mxu0 0.0
  %590 = vmatprep.subr.mxu0 0.0
  %591 = vmatpush1.msra.mxu0 0.0
  %592 = vmatprep.subr.mxu0 0.0
  %593 = vmatpush1.msra.mxu0 0.0
  %594 = vmatprep.subr.mxu0 0.0
  %595 = vmatpush1.msra.mxu0 0.0
  %596 = vmatprep.subr.mxu0 0.0
  %597 = vmatpush1.msra.mxu0 0.0
  %598 = vmatprep.subr.mxu0 0.0
  %599 = vmatpush1.msra.mxu0 0.0
  %600 = vmatprep.subr.mxu0 0.0
  %601 = vmatpush1.msra.mxu0 0.0
  %602 = vmatprep.subr.mxu0 0.0
  %603 = vmatpush1.msra.mxu0 0.0
  %604 = vmatprep.mubr.f32.mxu0 0.0
  %605 = vmatmul.mubr.f32.gmra.mrb[0].mxu0 %v514
  %v606 = vpop.f32.mrb[0].mxu0
  %v607 = vadd.f32 %v470, %v606
  %v608 = vpop.f32.mrb[0].mxu0
  %609 = vmatprep.mubr.f32.mxu0 0.0
  %610 = vmatmul.mubr.f32.gmra.mrb[0].mxu0 %v517
  %v611 = vpop.f32.mrb[0].mxu0
  %v612 = vadd.f32 %v475, %v611
  %v613 = vpop.f32.mrb[0].mxu0
  %614 = vmatprep.mubr.f32.mxu0 0.0
  %615 = vmatmul.mubr.f32.gmra.mrb[0].mxu0 %v520
  %v616 = vpop.f32.mrb[0].mxu0
  %v617 = vadd.f32 %v480, %v616
  %v618 = vpop.f32.mrb[0].mxu0
  %619 = vmatprep.mubr.f32.mxu0 0.0
  %620 = vmatmul.mubr.f32.gmra.mrb[0].mxu0 %v523
  %v621 = vpop.f32.mrb[0].mxu0
  %v622 = vadd.f32 %v485, %v621
  %v623 = vpop.f32.mrb[0].mxu0
  %624 = vmatprep.mubr.f32.mxu0 0.0
  %625 = vmatmul.mubr.f32.gmra.mrb[0].mxu0 %v526
  %v626 = vpop.f32.mrb[0].mxu0
  %v627 = vadd.f32 %v490, %v626
  %v628 = vpop.f32.mrb[0].mxu0
  %629 = vmatprep.mubr.f32.mxu0 0.0
  %630 = vmatmul.mubr.f32.gmra.mrb[0].mxu0 %v529
  %v631 = vpop.f32.mrb[0].mxu0
  %v632 = vadd.f32 %v495, %v631
  %v633 = vpop.f32.mrb[0].mxu0
  %634 = vmatprep.mubr.f32.mxu0 0.0
  %635 = vmatmul.mubr.f32.gmra.mrb[0].mxu0 %v532
  %v636 = vpop.f32.mrb[0].mxu0
  %v637 = vadd.f32 %v500, %v636
  %v638 = vpop.f32.mrb[0].mxu0
  %639 = vmatprep.mubr.f32.mxu0 0.0
  %640 = vmatmul.mubr.f32.gmra.mrb[0].mxu0 %v535
  %v641 = vpop.f32.mrb[0].mxu0
  %v642 = vadd.f32 %v505, %v641
  %v643 = vpop.f32.mrb[0].mxu0
  %644 = vmatprep.mubr.f32.mxu0 0.0
  %645 = vmatmul.mubr.f32.gmra.mrb[0].mxu0 %v538
  %v646 = vpop.f32.mrb[0].mxu0
  %v647 = vadd.f32 %v510, %v646
  %v648 = vpop.f32.mrb[0].mxu0
  %649 = vdwg.mxu0
  %v650 = vld [vmem:[%s0 + $0x90] sm:$0xff]
  %v651 = vld [vmem:[%s0 + $0x98] sm:$0xff]
  %v652 = vld [vmem:[%s0 + $0xa0] sm:$0xff]
  %v653 = vld [vmem:[%s0 + $0xa8] sm:$0xff]
  %v654 = vld [vmem:[%s0 + $0xb0] sm:$0xff]
  %v655 = vld [vmem:[%s0 + $0xb8] sm:$0xff]
  %v656 = vld [vmem:[%s0 + $0xc0] sm:$0xff]
  %v657 = vld [vmem:[%s0 + $0xc8] sm:$0xff]
  %v658 = vld [vmem:[%s0 + $0xd0] sm:$0xff]
  %v660 = vsel %vm61, %v650, 0
  %v663 = vsel %vm61, %v651, 0
  %v666 = vsel %vm61, %v652, 0
  %v669 = vsel %vm61, %v653, 0
  %v672 = vsel %vm61, %v654, 0
  %v675 = vsel %vm61, %v655, 0
  %v678 = vsel %vm61, %v656, 0
  %v681 = vsel %vm61, %v657, 0
  %v684 = vsel %vm61, %v658, 0
  %686 = vmatprep.subr.mxu0 0.0
  %687 = vmatpush1.msra.mxu0 %v32
  %688 = vmatprep.subr.mxu0 0.0
  %689 = vmatpush1.msra.mxu0 %v33
  %690 = vmatprep.subr.mxu0 0.0
  %691 = vmatpush1.msra.mxu0 %v34
  %692 = vmatprep.subr.mxu0 0.0
  %693 = vmatpush1.msra.mxu0 %v35
  %694 = vmatprep.subr.mxu0 0.0
  %695 = vmatpush1.msra.mxu0 %v36
  %696 = vmatprep.subr.mxu0 0.0
  %697 = vmatpush1.msra.mxu0 %v37
  %698 = vmatprep.subr.mxu0 0.0
  %699 = vmatpush1.msra.mxu0 %v38
  %700 = vmatprep.subr.mxu0 0.0
  %701 = vmatpush1.msra.mxu0 %v39
  %702 = vmatprep.subr.mxu0 0.0
  %703 = vmatpush1.msra.mxu0 %v40
  %704 = vmatprep.subr.mxu0 0.0
  %705 = vmatpush1.msra.mxu0 %v41
  %706 = vmatprep.subr.mxu0 0.0
  %707 = vmatpush1.msra.mxu0 %v42
  %708 = vmatprep.subr.mxu0 0.0
  %709 = vmatpush1.msra.mxu0 %v43
  %710 = vmatprep.subr.mxu0 0.0
  %711 = vmatpush1.msra.mxu0 %v91
  %712 = vmatprep.subr.mxu0 0.0
  %713 = vmatpush1.msra.mxu0 0.0
  %714 = vmatprep.subr.mxu0 0.0
  %715 = vmatpush1.msra.mxu0 0.0
  %716 = vmatprep.subr.mxu0 0.0
  %717 = vmatpush1.msra.mxu0 0.0
  %718 = vmatprep.subr.mxu0 0.0
  %719 = vmatpush1.msra.mxu0 0.0
  %720 = vmatprep.subr.mxu0 0.0
  %721 = vmatpush1.msra.mxu0 0.0
  %722 = vmatprep.subr.mxu0 0.0
  %723 = vmatpush1.msra.mxu0 0.0
  %724 = vmatprep.subr.mxu0 0.0
  %725 = vmatpush1.msra.mxu0 0.0
  %726 = vmatprep.subr.mxu0 0.0
  %727 = vmatpush1.msra.mxu0 0.0
  %728 = vmatprep.subr.mxu0 0.0
  %729 = vmatpush1.msra.mxu0 0.0
  %730 = vmatprep.subr.mxu0 0.0
  %731 = vmatpush1.msra.mxu0 0.0
  %732 = vmatprep.subr.mxu0 0.0
  %733 = vmatpush1.msra.mxu0 0.0
  %734 = vmatprep.subr.mxu0 0.0
  %735 = vmatpush1.msra.mxu0 0.0
  %736 = vmatprep.subr.mxu0 0.0
  %737 = vmatpush1.msra.mxu0 0.0
  %738 = vmatprep.subr.mxu0 0.0
  %739 = vmatpush1.msra.mxu0 0.0
  %740 = vmatprep.subr.mxu0 0.0
  %741 = vmatpush1.msra.mxu0 0.0
  %742 = vmatprep.subr.mxu0 0.0
  %743 = vmatpush1.msra.mxu0 0.0
  %744 = vmatprep.subr.mxu0 0.0
  %745 = vmatpush1.msra.mxu0 0.0
  %746 = vmatprep.subr.mxu0 0.0
  %747 = vmatpush1.msra.mxu0 0.0
  %748 = vmatprep.subr.mxu0 0.0
  %749 = vmatpush1.msra.mxu0 0.0
  %750 = vmatprep.mubr.f32.mxu0 0.0
  %751 = vmatmul.mubr.f32.gmra.mrb[0].mxu0 %v660
  %v752 = vpop.f32.mrb[0].mxu0
  %v753 = vadd.f32 %v59, %v752
  %v754 = vpop.f32.mrb[0].mxu0
  %755 = vmatprep.mubr.f32.mxu0 0.0
  %756 = vmatmul.mubr.f32.gmra.mrb[0].mxu0 %v663
  %v757 = vpop.f32.mrb[0].mxu0
  %v758 = vadd.f32 %v59, %v757
  %v759 = vpop.f32.mrb[0].mxu0
  %760 = vmatprep.mubr.f32.mxu0 0.0
  %761 = vmatmul.mubr.f32.gmra.mrb[0].mxu0 %v666
  %v762 = vpop.f32.mrb[0].mxu0
  %v763 = vadd.f32 %v59, %v762
  %v764 = vpop.f32.mrb[0].mxu0
  %765 = vmatprep.mubr.f32.mxu0 0.0
  %766 = vmatmul.mubr.f32.gmra.mrb[0].mxu0 %v669
  %v767 = vpop.f32.mrb[0].mxu0
  %v768 = vadd.f32 %v59, %v767
  %v769 = vpop.f32.mrb[0].mxu0
  %770 = vmatprep.mubr.f32.mxu0 0.0
  %771 = vmatmul.mubr.f32.gmra.mrb[0].mxu0 %v672
  %v772 = vpop.f32.mrb[0].mxu0
  %v773 = vadd.f32 %v59, %v772
  %v774 = vpop.f32.mrb[0].mxu0
  %775 = vmatprep.mubr.f32.mxu0 0.0
  %776 = vmatmul.mubr.f32.gmra.mrb[0].mxu0 %v675
  %v777 = vpop.f32.mrb[0].mxu0
  %v778 = vadd.f32 %v59, %v777
  %v779 = vpop.f32.mrb[0].mxu0
  %780 = vmatprep.mubr.f32.mxu0 0.0
  %781 = vmatmul.mubr.f32.gmra.mrb[0].mxu0 %v678
  %v782 = vpop.f32.mrb[0].mxu0
  %v783 = vadd.f32 %v59, %v782
  %v784 = vpop.f32.mrb[0].mxu0
  %785 = vmatprep.mubr.f32.mxu0 0.0
  %786 = vmatmul.mubr.f32.gmra.mrb[0].mxu0 %v681
  %v787 = vpop.f32.mrb[0].mxu0
  %v788 = vadd.f32 %v59, %v787
  %v789 = vpop.f32.mrb[0].mxu0
  %790 = vmatprep.mubr.f32.mxu0 0.0
  %791 = vmatmul.mubr.f32.gmra.mrb[0].mxu0 %v684
  %v792 = vpop.f32.mrb[0].mxu0
  %v793 = vadd.f32 %v59, %v792
  %v794 = vpop.f32.mrb[0].mxu0
  %795 = vdwg.mxu0
  %v796 = vmax.f32 %v753, 0.0
  %v797 = vmax.f32 %v758, 0.0
  %v798 = vmax.f32 %v763, 0.0
  %v799 = vmax.f32 %v768, 0.0
  %v800 = vmax.f32 %v773, 0.0
  %v801 = vmax.f32 %v778, 0.0
  %v802 = vmax.f32 %v783, 0.0
  %v803 = vmax.f32 %v788, 0.0
  %v804 = vmax.f32 %v793, 0.0
  %v805 = vld [vmem:[%s3 + $0x40] sm:$0xff]
  %v806 = vld [vmem:[%s3 + $0x48] sm:$0xff]
  %v807 = vld [vmem:[%s3 + $0x50] sm:$0xff]
  %v808 = vld [vmem:[%s3 + $0x58] sm:$0xff]
  %v810 = vsel %vm375, %v796, 0
  %v813 = vsel %vm375, %v797, 0
  %v816 = vsel %vm375, %v798, 0
  %v819 = vsel %vm375, %v799, 0
  %v822 = vsel %vm375, %v800, 0
  %v825 = vsel %vm375, %v801, 0
  %v828 = vsel %vm375, %v802, 0
  %v831 = vsel %vm375, %v803, 0
  %v834 = vsel %vm375, %v804, 0
  %836 = vmatprep.subr.mxu0 0.0
  %837 = vmatpush1.msra.mxu0 %v805
  %838 = vmatprep.subr.mxu0 0.0
  %839 = vmatpush1.msra.mxu0 %v806
  %840 = vmatprep.subr.mxu0 0.0
  %841 = vmatpush1.msra.mxu0 %v807
  %842 = vmatprep.subr.mxu0 0.0
  %843 = vmatpush1.msra.mxu0 %v808
  %844 = vmatprep.subr.mxu0 0.0
  %845 = vmatpush1.msra.mxu0 0.0
  %846 = vmatprep.subr.mxu0 0.0
  %847 = vmatpush1.msra.mxu0 0.0
  %848 = vmatprep.subr.mxu0 0.0
  %849 = vmatpush1.msra.mxu0 0.0
  %850 = vmatprep.subr.mxu0 0.0
  %851 = vmatpush1.msra.mxu0 0.0
  %852 = vmatprep.subr.mxu0 0.0
  %853 = vmatpush1.msra.mxu0 0.0
  %854 = vmatprep.subr.mxu0 0.0
  %855 = vmatpush1.msra.mxu0 0.0
  %856 = vmatprep.subr.mxu0 0.0
  %857 = vmatpush1.msra.mxu0 0.0
  %858 = vmatprep.subr.mxu0 0.0
  %859 = vmatpush1.msra.mxu0 0.0
  %860 = vmatprep.subr.mxu0 0.0
  %861 = vmatpush1.msra.mxu0 0.0
  %862 = vmatprep.subr.mxu0 0.0
  %863 = vmatpush1.msra.mxu0 0.0
  %864 = vmatprep.subr.mxu0 0.0
  %865 = vmatpush1.msra.mxu0 0.0
  %866 = vmatprep.subr.mxu0 0.0
  %867 = vmatpush1.msra.mxu0 0.0
  %868 = vmatprep.subr.mxu0 0.0
  %869 = vmatpush1.msra.mxu0 0.0
  %870 = vmatprep.subr.mxu0 0.0
  %871 = vmatpush1.msra.mxu0 0.0
  %872 = vmatprep.subr.mxu0 0.0
  %873 = vmatpush1.msra.mxu0 0.0
  %874 = vmatprep.subr.mxu0 0.0
  %875 = vmatpush1.msra.mxu0 0.0
  %876 = vmatprep.subr.mxu0 0.0
  %877 = vmatpush1.msra.mxu0 0.0
  %878 = vmatprep.subr.mxu0 0.0
  %879 = vmatpush1.msra.mxu0 0.0
  %880 = vmatprep.subr.mxu0 0.0
  %881 = vmatpush1.msra.mxu0 0.0
  %882 = vmatprep.subr.mxu0 0.0
  %883 = vmatpush1.msra.mxu0 0.0
  %884 = vmatprep.subr.mxu0 0.0
  %885 = vmatpush1.msra.mxu0 0.0
  %886 = vmatprep.subr.mxu0 0.0
  %887 = vmatpush1.msra.mxu0 0.0
  %888 = vmatprep.subr.mxu0 0.0
  %889 = vmatpush1.msra.mxu0 0.0
  %890 = vmatprep.subr.mxu0 0.0
  %891 = vmatpush1.msra.mxu0 0.0
  %892 = vmatprep.subr.mxu0 0.0
  %893 = vmatpush1.msra.mxu0 0.0
  %894 = vmatprep.subr.mxu0 0.0
  %895 = vmatpush1.msra.mxu0 0.0
  %896 = vmatprep.subr.mxu0 0.0
  %897 = vmatpush1.msra.mxu0 0.0
  %898 = vmatprep.subr.mxu0 0.0
  %899 = vmatpush1.msra.mxu0 0.0
  %900 = vmatprep.mubr.f32.mxu0 0.0
  %901 = vmatmul.mubr.f32.gmra.mrb[0].mxu0 %v810
  %v902 = vpop.f32.mrb[0].mxu0
  %v903 = vadd.f32 0.0, %v902
  %v904 = vpop.f32.mrb[0].mxu0
  %905 = vmatprep.mubr.f32.mxu0 0.0
  %906 = vmatmul.mubr.f32.gmra.mrb[0].mxu0 %v813
  %v907 = vpop.f32.mrb[0].mxu0
  %v908 = vadd.f32 0.0, %v907
  %v909 = vpop.f32.mrb[0].mxu0
  %910 = vmatprep.mubr.f32.mxu0 0.0
  %911 = vmatmul.mubr.f32.gmra.mrb[0].mxu0 %v816
  %v912 = vpop.f32.mrb[0].mxu0
  %v913 = vadd.f32 0.0, %v912
  %v914 = vpop.f32.mrb[0].mxu0
  %915 = vmatprep.mubr.f32.mxu0 0.0
  %916 = vmatmul.mubr.f32.gmra.mrb[0].mxu0 %v819
  %v917 = vpop.f32.mrb[0].mxu0
  %v918 = vadd.f32 0.0, %v917
  %v919 = vpop.f32.mrb[0].mxu0
  %920 = vmatprep.mubr.f32.mxu0 0.0
  %921 = vmatmul.mubr.f32.gmra.mrb[0].mxu0 %v822
  %v922 = vpop.f32.mrb[0].mxu0
  %v923 = vadd.f32 0.0, %v922
  %v924 = vpop.f32.mrb[0].mxu0
  %925 = vmatprep.mubr.f32.mxu0 0.0
  %926 = vmatmul.mubr.f32.gmra.mrb[0].mxu0 %v825
  %v927 = vpop.f32.mrb[0].mxu0
  %v928 = vadd.f32 0.0, %v927
  %v929 = vpop.f32.mrb[0].mxu0
  %930 = vmatprep.mubr.f32.mxu0 0.0
  %931 = vmatmul.mubr.f32.gmra.mrb[0].mxu0 %v828
  %v932 = vpop.f32.mrb[0].mxu0
  %v933 = vadd.f32 0.0, %v932
  %v934 = vpop.f32.mrb[0].mxu0
  %935 = vmatprep.mubr.f32.mxu0 0.0
  %936 = vmatmul.mubr.f32.gmra.mrb[0].mxu0 %v831
  %v937 = vpop.f32.mrb[0].mxu0
  %v938 = vadd.f32 0.0, %v937
  %v939 = vpop.f32.mrb[0].mxu0
  %940 = vmatprep.mubr.f32.mxu0 0.0
  %941 = vmatmul.mubr.f32.gmra.mrb[0].mxu0 %v834
  %v942 = vpop.f32.mrb[0].mxu0
  %v943 = vadd.f32 0.0, %v942
  %v944 = vpop.f32.mrb[0].mxu0
  %945 = vdwg.mxu0
  %v946 = vadd.f32 %v607, %v903
  %v947 = vadd.f32 %v612, %v908
  %v948 = vadd.f32 %v617, %v913
  %v949 = vadd.f32 %v622, %v918
  %v950 = vadd.f32 %v627, %v923
  %v951 = vadd.f32 %v632, %v928
  %v952 = vadd.f32 %v637, %v933
  %v953 = vadd.f32 %v642, %v938
  %v954 = vadd.f32 %v647, %v943
  %v955 = vld [vmem:[%s0 + $0xd8] sm:$0xff]
  %v956 = vld [vmem:[%s0 + $0xe0] sm:$0xff]
  %v957 = vld [vmem:[%s0 + $0xe8] sm:$0xff]
  %v958 = vld [vmem:[%s0 + $0xf0] sm:$0xff]
  %v959 = vld [vmem:[%s0 + $0xf8] sm:$0xff]
  %v960 = vld [vmem:[%s0 + $0x100] sm:$0xff]
  %v961 = vld [vmem:[%s0 + $0x108] sm:$0xff]
  %v962 = vld [vmem:[%s0 + $0x110] sm:$0xff]
  %v963 = vld [vmem:[%s0 + $0x118] sm:$0xff]
  %v965 = vsel %vm61, %v955, 0
  %v968 = vsel %vm61, %v956, 0
  %v971 = vsel %vm61, %v957, 0
  %v974 = vsel %vm61, %v958, 0
  %v977 = vsel %vm61, %v959, 0
  %v980 = vsel %vm61, %v960, 0
  %v983 = vsel %vm61, %v961, 0
  %v986 = vsel %vm61, %v962, 0
  %v989 = vsel %vm61, %v963, 0
  %991 = vmatprep.subr.mxu0 0.0
  %992 = vmatpush1.msra.mxu0 %v32
  %993 = vmatprep.subr.mxu0 0.0
  %994 = vmatpush1.msra.mxu0 %v33
  %995 = vmatprep.subr.mxu0 0.0
  %996 = vmatpush1.msra.mxu0 %v34
  %997 = vmatprep.subr.mxu0 0.0
  %998 = vmatpush1.msra.mxu0 %v35
  %999 = vmatprep.subr.mxu0 0.0
  %1000 = vmatpush1.msra.mxu0 %v36
  %1001 = vmatprep.subr.mxu0 0.0
  %1002 = vmatpush1.msra.mxu0 %v37
  %1003 = vmatprep.subr.mxu0 0.0
  %1004 = vmatpush1.msra.mxu0 %v38
  %1005 = vmatprep.subr.mxu0 0.0
  %1006 = vmatpush1.msra.mxu0 %v39
  %1007 = vmatprep.subr.mxu0 0.0
  %1008 = vmatpush1.msra.mxu0 %v40
  %1009 = vmatprep.subr.mxu0 0.0
  %1010 = vmatpush1.msra.mxu0 %v41
  %1011 = vmatprep.subr.mxu0 0.0
  %1012 = vmatpush1.msra.mxu0 %v42
  %1013 = vmatprep.subr.mxu0 0.0
  %1014 = vmatpush1.msra.mxu0 %v43
  %1015 = vmatprep.subr.mxu0 0.0
  %1016 = vmatpush1.msra.mxu0 %v91
  %1017 = vmatprep.subr.mxu0 0.0
  %1018 = vmatpush1.msra.mxu0 0.0
  %1019 = vmatprep.subr.mxu0 0.0
  %1020 = vmatpush1.msra.mxu0 0.0
  %1021 = vmatprep.subr.mxu0 0.0
  %1022 = vmatpush1.msra.mxu0 0.0
  %1023 = vmatprep.subr.mxu0 0.0
  %1024 = vmatpush1.msra.mxu0 0.0
  %1025 = vmatprep.subr.mxu0 0.0
  %1026 = vmatpush1.msra.mxu0 0.0
  %1027 = vmatprep.subr.mxu0 0.0
  %1028 = vmatpush1.msra.mxu0 0.0
  %1029 = vmatprep.subr.mxu0 0.0
  %1030 = vmatpush1.msra.mxu0 0.0
  %1031 = vmatprep.subr.mxu0 0.0
  %1032 = vmatpush1.msra.mxu0 0.0
  %1033 = vmatprep.subr.mxu0 0.0
  %1034 = vmatpush1.msra.mxu0 0.0
  %1035 = vmatprep.subr.mxu0 0.0
  %1036 = vmatpush1.msra.mxu0 0.0
  %1037 = vmatprep.subr.mxu0 0.0
  %1038 = vmatpush1.msra.mxu0 0.0
  %1039 = vmatprep.subr.mxu0 0.0
  %1040 = vmatpush1.msra.mxu0 0.0
  %1041 = vmatprep.subr.mxu0 0.0
  %1042 = vmatpush1.msra.mxu0 0.0
  %1043 = vmatprep.subr.mxu0 0.0
  %1044 = vmatpush1.msra.mxu0 0.0
  %1045 = vmatprep.subr.mxu0 0.0
  %1046 = vmatpush1.msra.mxu0 0.0
  %1047 = vmatprep.subr.mxu0 0.0
  %1048 = vmatpush1.msra.mxu0 0.0
  %1049 = vmatprep.subr.mxu0 0.0
  %1050 = vmatpush1.msra.mxu0 0.0
  %1051 = vmatprep.subr.mxu0 0.0
  %1052 = vmatpush1.msra.mxu0 0.0
  %1053 = vmatprep.subr.mxu0 0.0
  %1054 = vmatpush1.msra.mxu0 0.0
  %1055 = vmatprep.mubr.f32.mxu0 0.0
  %1056 = vmatmul.mubr.f32.gmra.mrb[0].mxu0 %v965
  %v1057 = vpop.f32.mrb[0].mxu0
  %v1058 = vadd.f32 %v59, %v1057
  %v1059 = vpop.f32.mrb[0].mxu0
  %1060 = vmatprep.mubr.f32.mxu0 0.0
  %1061 = vmatmul.mubr.f32.gmra.mrb[0].mxu0 %v968
  %v1062 = vpop.f32.mrb[0].mxu0
  %v1063 = vadd.f32 %v59, %v1062
  %v1064 = vpop.f32.mrb[0].mxu0
  %1065 = vmatprep.mubr.f32.mxu0 0.0
  %1066 = vmatmul.mubr.f32.gmra.mrb[0].mxu0 %v971
  %v1067 = vpop.f32.mrb[0].mxu0
  %v1068 = vadd.f32 %v59, %v1067
  %v1069 = vpop.f32.mrb[0].mxu0
  %1070 = vmatprep.mubr.f32.mxu0 0.0
  %1071 = vmatmul.mubr.f32.gmra.mrb[0].mxu0 %v974
  %v1072 = vpop.f32.mrb[0].mxu0
  %v1073 = vadd.f32 %v59, %v1072
  %v1074 = vpop.f32.mrb[0].mxu0
  %1075 = vmatprep.mubr.f32.mxu0 0.0
  %1076 = vmatmul.mubr.f32.gmra.mrb[0].mxu0 %v977
  %v1077 = vpop.f32.mrb[0].mxu0
  %v1078 = vadd.f32 %v59, %v1077
  %v1079 = vpop.f32.mrb[0].mxu0
  %1080 = vmatprep.mubr.f32.mxu0 0.0
  %1081 = vmatmul.mubr.f32.gmra.mrb[0].mxu0 %v980
  %v1082 = vpop.f32.mrb[0].mxu0
  %v1083 = vadd.f32 %v59, %v1082
  %v1084 = vpop.f32.mrb[0].mxu0
  %1085 = vmatprep.mubr.f32.mxu0 0.0
  %1086 = vmatmul.mubr.f32.gmra.mrb[0].mxu0 %v983
  %v1087 = vpop.f32.mrb[0].mxu0
  %v1088 = vadd.f32 %v59, %v1087
  %v1089 = vpop.f32.mrb[0].mxu0
  %1090 = vmatprep.mubr.f32.mxu0 0.0
  %1091 = vmatmul.mubr.f32.gmra.mrb[0].mxu0 %v986
  %v1092 = vpop.f32.mrb[0].mxu0
  %v1093 = vadd.f32 %v59, %v1092
  %v1094 = vpop.f32.mrb[0].mxu0
  %1095 = vmatprep.mubr.f32.mxu0 0.0
  %1096 = vmatmul.mubr.f32.gmra.mrb[0].mxu0 %v989
  %v1097 = vpop.f32.mrb[0].mxu0
  %v1098 = vadd.f32 %v59, %v1097
  %v1099 = vpop.f32.mrb[0].mxu0
  %1100 = vdwg.mxu0
  %v1101 = vmax.f32 %v1058, 0.0
  %v1102 = vmax.f32 %v1063, 0.0
  %v1103 = vmax.f32 %v1068, 0.0
  %v1104 = vmax.f32 %v1073, 0.0
  %v1105 = vmax.f32 %v1078, 0.0
  %v1106 = vmax.f32 %v1083, 0.0
  %v1107 = vmax.f32 %v1088, 0.0
  %v1108 = vmax.f32 %v1093, 0.0
  %v1109 = vmax.f32 %v1098, 0.0
  %v1110 = vld [vmem:[%s3 + $0x60] sm:$0xff]
  %v1111 = vld [vmem:[%s3 + $0x68] sm:$0xff]
  %v1112 = vld [vmem:[%s3 + $0x70] sm:$0xff]
  %v1113 = vld [vmem:[%s3 + $0x78] sm:$0xff]
  %v1115 = vsel %vm375, %v1101, 0
  %v1118 = vsel %vm375, %v1102, 0
  %v1121 = vsel %vm375, %v1103, 0
  %v1124 = vsel %vm375, %v1104, 0
  %v1127 = vsel %vm375, %v1105, 0
  %v1130 = vsel %vm375, %v1106, 0
  %v1133 = vsel %vm375, %v1107, 0
  %v1136 = vsel %vm375, %v1108, 0
  %v1139 = vsel %vm375, %v1109, 0
  %1141 = vmatprep.subr.mxu0 0.0
  %1142 = vmatpush1.msra.mxu0 %v1110
  %1143 = vmatprep.subr.mxu0 0.0
  %1144 = vmatpush1.msra.mxu0 %v1111
  %1145 = vmatprep.subr.mxu0 0.0
  %1146 = vmatpush1.msra.mxu0 %v1112
  %1147 = vmatprep.subr.mxu0 0.0
  %1148 = vmatpush1.msra.mxu0 %v1113
  %1149 = vmatprep.subr.mxu0 0.0
  %1150 = vmatpush1.msra.mxu0 0.0
  %1151 = vmatprep.subr.mxu0 0.0
  %1152 = vmatpush1.msra.mxu0 0.0
  %1153 = vmatprep.subr.mxu0 0.0
  %1154 = vmatpush1.msra.mxu0 0.0
  %1155 = vmatprep.subr.mxu0 0.0
  %1156 = vmatpush1.msra.mxu0 0.0
  %1157 = vmatprep.subr.mxu0 0.0
  %1158 = vmatpush1.msra.mxu0 0.0
  %1159 = vmatprep.subr.mxu0 0.0
  %1160 = vmatpush1.msra.mxu0 0.0
  %1161 = vmatprep.subr.mxu0 0.0
  %1162 = vmatpush1.msra.mxu0 0.0
  %1163 = vmatprep.subr.mxu0 0.0
  %1164 = vmatpush1.msra.mxu0 0.0
  %1165 = vmatprep.subr.mxu0 0.0
  %1166 = vmatpush1.msra.mxu0 0.0
  %1167 = vmatprep.subr.mxu0 0.0
  %1168 = vmatpush1.msra.mxu0 0.0
  %1169 = vmatprep.subr.mxu0 0.0
  %1170 = vmatpush1.msra.mxu0 0.0
  %1171 = vmatprep.subr.mxu0 0.0
  %1172 = vmatpush1.msra.mxu0 0.0
  %1173 = vmatprep.subr.mxu0 0.0
  %1174 = vmatpush1.msra.mxu0 0.0
  %1175 = vmatprep.subr.mxu0 0.0
  %1176 = vmatpush1.msra.mxu0 0.0
  %1177 = vmatprep.subr.mxu0 0.0
  %1178 = vmatpush1.msra.mxu0 0.0
  %1179 = vmatprep.subr.mxu0 0.0
  %1180 = vmatpush1.msra.mxu0 0.0
  %1181 = vmatprep.subr.mxu0 0.0
  %1182 = vmatpush1.msra.mxu0 0.0
  %1183 = vmatprep.subr.mxu0 0.0
  %1184 = vmatpush1.msra.mxu0 0.0
  %1185 = vmatprep.subr.mxu0 0.0
  %1186 = vmatpush1.msra.mxu0 0.0
  %1187 = vmatprep.subr.mxu0 0.0
  %1188 = vmatpush1.msra.mxu0 0.0
  %1189 = vmatprep.subr.mxu0 0.0
  %1190 = vmatpush1.msra.mxu0 0.0
  %1191 = vmatprep.subr.mxu0 0.0
  %1192 = vmatpush1.msra.mxu0 0.0
  %1193 = vmatprep.subr.mxu0 0.0
  %1194 = vmatpush1.msra.mxu0 0.0
  %1195 = vmatprep.subr.mxu0 0.0
  %1196 = vmatpush1.msra.mxu0 0.0
  %1197 = vmatprep.subr.mxu0 0.0
  %1198 = vmatpush1.msra.mxu0 0.0
  %1199 = vmatprep.subr.mxu0 0.0
  %1200 = vmatpush1.msra.mxu0 0.0
  %1201 = vmatprep.subr.mxu0 0.0
  %1202 = vmatpush1.msra.mxu0 0.0
  %1203 = vmatprep.subr.mxu0 0.0
  %1204 = vmatpush1.msra.mxu0 0.0
  %1205 = vmatprep.mubr.f32.mxu0 0.0
  %1206 = vmatmul.mubr.f32.gmra.mrb[0].mxu0 %v1115
  %v1207 = vpop.f32.mrb[0].mxu0
  %v1208 = vadd.f32 0.0, %v1207
  %v1209 = vpop.f32.mrb[0].mxu0
  %1210 = vmatprep.mubr.f32.mxu0 0.0
  %1211 = vmatmul.mubr.f32.gmra.mrb[0].mxu0 %v1118
  %v1212 = vpop.f32.mrb[0].mxu0
  %v1213 = vadd.f32 0.0, %v1212
  %v1214 = vpop.f32.mrb[0].mxu0
  %1215 = vmatprep.mubr.f32.mxu0 0.0
  %1216 = vmatmul.mubr.f32.gmra.mrb[0].mxu0 %v1121
  %v1217 = vpop.f32.mrb[0].mxu0
  %v1218 = vadd.f32 0.0, %v1217
  %v1219 = vpop.f32.mrb[0].mxu0
  %1220 = vmatprep.mubr.f32.mxu0 0.0
  %1221 = vmatmul.mubr.f32.gmra.mrb[0].mxu0 %v1124
  %v1222 = vpop.f32.mrb[0].mxu0
  %v1223 = vadd.f32 0.0, %v1222
  %v1224 = vpop.f32.mrb[0].mxu0
  %1225 = vmatprep.mubr.f32.mxu0 0.0
  %1226 = vmatmul.mubr.f32.gmra.mrb[0].mxu0 %v1127
  %v1227 = vpop.f32.mrb[0].mxu0
  %v1228 = vadd.f32 0.0, %v1227
  %v1229 = vpop.f32.mrb[0].mxu0
  %1230 = vmatprep.mubr.f32.mxu0 0.0
  %1231 = vmatmul.mubr.f32.gmra.mrb[0].mxu0 %v1130
  %v1232 = vpop.f32.mrb[0].mxu0
  %v1233 = vadd.f32 0.0, %v1232
  %v1234 = vpop.f32.mrb[0].mxu0
  %1235 = vmatprep.mubr.f32.mxu0 0.0
  %1236 = vmatmul.mubr.f32.gmra.mrb[0].mxu0 %v1133
  %v1237 = vpop.f32.mrb[0].mxu0
  %v1238 = vadd.f32 0.0, %v1237
  %v1239 = vpop.f32.mrb[0].mxu0
  %1240 = vmatprep.mubr.f32.mxu0 0.0
  %1241 = vmatmul.mubr.f32.gmra.mrb[0].mxu0 %v1136
  %v1242 = vpop.f32.mrb[0].mxu0
  %v1243 = vadd.f32 0.0, %v1242
  %v1244 = vpop.f32.mrb[0].mxu0
  %1245 = vmatprep.mubr.f32.mxu0 0.0
  %1246 = vmatmul.mubr.f32.gmra.mrb[0].mxu0 %v1139
  %v1247 = vpop.f32.mrb[0].mxu0
  %v1248 = vadd.f32 0.0, %v1247
  %v1249 = vpop.f32.mrb[0].mxu0
  %1250 = vdwg.mxu0
  %v1251 = vadd.f32 %v946, %v1208
  %v1252 = vadd.f32 %v947, %v1213
  %v1253 = vadd.f32 %v948, %v1218
  %v1254 = vadd.f32 %v949, %v1223
  %v1255 = vadd.f32 %v950, %v1228
  %v1256 = vadd.f32 %v951, %v1233
  %v1257 = vadd.f32 %v952, %v1238
  %v1258 = vadd.f32 %v953, %v1243
  %v1259 = vadd.f32 %v954, %v1248
  %v1260 = vld [vmem:[%s0 + $0x120] sm:$0xff]
  %v1261 = vld [vmem:[%s0 + $0x128] sm:$0xff]
  %v1262 = vld [vmem:[%s0 + $0x130] sm:$0xff]
  %v1263 = vld [vmem:[%s0 + $0x138] sm:$0xff]
  %v1264 = vld [vmem:[%s0 + $0x140] sm:$0xff]
  %v1265 = vld [vmem:[%s0 + $0x148] sm:$0xff]
  %v1266 = vld [vmem:[%s0 + $0x150] sm:$0xff]
  %v1267 = vld [vmem:[%s0 + $0x158] sm:$0xff]
  %v1268 = vld [vmem:[%s0 + $0x160] sm:$0xff]
  %v1270 = vsel %vm61, %v1260, 0
  %v1273 = vsel %vm61, %v1261, 0
  %v1276 = vsel %vm61, %v1262, 0
  %v1279 = vsel %vm61, %v1263, 0
  %v1282 = vsel %vm61, %v1264, 0
  %v1285 = vsel %vm61, %v1265, 0
  %v1288 = vsel %vm61, %v1266, 0
  %v1291 = vsel %vm61, %v1267, 0
  %v1294 = vsel %vm61, %v1268, 0
  %1296 = vmatprep.subr.mxu0 0.0
  %1297 = vmatpush1.msra.mxu0 %v32
  %1298 = vmatprep.subr.mxu0 0.0
  %1299 = vmatpush1.msra.mxu0 %v33
  %1300 = vmatprep.subr.mxu0 0.0
  %1301 = vmatpush1.msra.mxu0 %v34
  %1302 = vmatprep.subr.mxu0 0.0
  %1303 = vmatpush1.msra.mxu0 %v35
  %1304 = vmatprep.subr.mxu0 0.0
  %1305 = vmatpush1.msra.mxu0 %v36
  %1306 = vmatprep.subr.mxu0 0.0
  %1307 = vmatpush1.msra.mxu0 %v37
  %1308 = vmatprep.subr.mxu0 0.0
  %1309 = vmatpush1.msra.mxu0 %v38
  %1310 = vmatprep.subr.mxu0 0.0
  %1311 = vmatpush1.msra.mxu0 %v39
  %1312 = vmatprep.subr.mxu0 0.0
  %1313 = vmatpush1.msra.mxu0 %v40
  %1314 = vmatprep.subr.mxu0 0.0
  %1315 = vmatpush1.msra.mxu0 %v41
  %1316 = vmatprep.subr.mxu0 0.0
  %1317 = vmatpush1.msra.mxu0 %v42
  %1318 = vmatprep.subr.mxu0 0.0
  %1319 = vmatpush1.msra.mxu0 %v43
  %1320 = vmatprep.subr.mxu0 0.0
  %1321 = vmatpush1.msra.mxu0 %v91
  %1322 = vmatprep.subr.mxu0 0.0
  %1323 = vmatpush1.msra.mxu0 0.0
  %1324 = vmatprep.subr.mxu0 0.0
  %1325 = vmatpush1.msra.mxu0 0.0
  %1326 = vmatprep.subr.mxu0 0.0
  %1327 = vmatpush1.msra.mxu0 0.0
  %1328 = vmatprep.subr.mxu0 0.0
  %1329 = vmatpush1.msra.mxu0 0.0
  %1330 = vmatprep.subr.mxu0 0.0
  %1331 = vmatpush1.msra.mxu0 0.0
  %1332 = vmatprep.subr.mxu0 0.0
  %1333 = vmatpush1.msra.mxu0 0.0
  %1334 = vmatprep.subr.mxu0 0.0
  %1335 = vmatpush1.msra.mxu0 0.0
  %1336 = vmatprep.subr.mxu0 0.0
  %1337 = vmatpush1.msra.mxu0 0.0
  %1338 = vmatprep.subr.mxu0 0.0
  %1339 = vmatpush1.msra.mxu0 0.0
  %1340 = vmatprep.subr.mxu0 0.0
  %1341 = vmatpush1.msra.mxu0 0.0
  %1342 = vmatprep.subr.mxu0 0.0
  %1343 = vmatpush1.msra.mxu0 0.0
  %1344 = vmatprep.subr.mxu0 0.0
  %1345 = vmatpush1.msra.mxu0 0.0
  %1346 = vmatprep.subr.mxu0 0.0
  %1347 = vmatpush1.msra.mxu0 0.0
  %1348 = vmatprep.subr.mxu0 0.0
  %1349 = vmatpush1.msra.mxu0 0.0
  %1350 = vmatprep.subr.mxu0 0.0
  %1351 = vmatpush1.msra.mxu0 0.0
  %1352 = vmatprep.subr.mxu0 0.0
  %1353 = vmatpush1.msra.mxu0 0.0
  %1354 = vmatprep.subr.mxu0 0.0
  %1355 = vmatpush1.msra.mxu0 0.0
  %1356 = vmatprep.subr.mxu0 0.0
  %1357 = vmatpush1.msra.mxu0 0.0
  %1358 = vmatprep.subr.mxu0 0.0
  %1359 = vmatpush1.msra.mxu0 0.0
  %1360 = vmatprep.mubr.f32.mxu0 0.0
  %1361 = vmatmul.mubr.f32.gmra.mrb[0].mxu0 %v1270
  %v1362 = vpop.f32.mrb[0].mxu0
  %v1363 = vadd.f32 %v59, %v1362
  %v1364 = vpop.f32.mrb[0].mxu0
  %1365 = vmatprep.mubr.f32.mxu0 0.0
  %1366 = vmatmul.mubr.f32.gmra.mrb[0].mxu0 %v1273
  %v1367 = vpop.f32.mrb[0].mxu0
  %v1368 = vadd.f32 %v59, %v1367
  %v1369 = vpop.f32.mrb[0].mxu0
  %1370 = vmatprep.mubr.f32.mxu0 0.0
  %1371 = vmatmul.mubr.f32.gmra.mrb[0].mxu0 %v1276
  %v1372 = vpop.f32.mrb[0].mxu0
  %v1373 = vadd.f32 %v59, %v1372
  %v1374 = vpop.f32.mrb[0].mxu0
  %1375 = vmatprep.mubr.f32.mxu0 0.0
  %1376 = vmatmul.mubr.f32.gmra.mrb[0].mxu0 %v1279
  %v1377 = vpop.f32.mrb[0].mxu0
  %v1378 = vadd.f32 %v59, %v1377
  %v1379 = vpop.f32.mrb[0].mxu0
  %1380 = vmatprep.mubr.f32.mxu0 0.0
  %1381 = vmatmul.mubr.f32.gmra.mrb[0].mxu0 %v1282
  %v1382 = vpop.f32.mrb[0].mxu0
  %v1383 = vadd.f32 %v59, %v1382
  %v1384 = vpop.f32.mrb[0].mxu0
  %1385 = vmatprep.mubr.f32.mxu0 0.0
  %1386 = vmatmul.mubr.f32.gmra.mrb[0].mxu0 %v1285
  %v1387 = vpop.f32.mrb[0].mxu0
  %v1388 = vadd.f32 %v59, %v1387
  %v1389 = vpop.f32.mrb[0].mxu0
  %1390 = vmatprep.mubr.f32.mxu0 0.0
  %1391 = vmatmul.mubr.f32.gmra.mrb[0].mxu0 %v1288
  %v1392 = vpop.f32.mrb[0].mxu0
  %v1393 = vadd.f32 %v59, %v1392
  %v1394 = vpop.f32.mrb[0].mxu0
  %1395 = vmatprep.mubr.f32.mxu0 0.0
  %1396 = vmatmul.mubr.f32.gmra.mrb[0].mxu0 %v1291
  %v1397 = vpop.f32.mrb[0].mxu0
  %v1398 = vadd.f32 %v59, %v1397
  %v1399 = vpop.f32.mrb[0].mxu0
  %1400 = vmatprep.mubr.f32.mxu0 0.0
  %1401 = vmatmul.mubr.f32.gmra.mrb[0].mxu0 %v1294
  %v1402 = vpop.f32.mrb[0].mxu0
  %v1403 = vadd.f32 %v59, %v1402
  %v1404 = vpop.f32.mrb[0].mxu0
  %1405 = vdwg.mxu0
  %v1406 = vmax.f32 %v1363, 0.0
  %v1407 = vmax.f32 %v1368, 0.0
  %v1408 = vmax.f32 %v1373, 0.0
  %v1409 = vmax.f32 %v1378, 0.0
  %v1410 = vmax.f32 %v1383, 0.0
  %v1411 = vmax.f32 %v1388, 0.0
  %v1412 = vmax.f32 %v1393, 0.0
  %v1413 = vmax.f32 %v1398, 0.0
  %v1414 = vmax.f32 %v1403, 0.0
  %v1415 = vld [vmem:[%s3 + $0x80] sm:$0xff]
  %v1416 = vld [vmem:[%s3 + $0x88] sm:$0xff]
  %v1417 = vld [vmem:[%s3 + $0x90] sm:$0xff]
  %v1418 = vld [vmem:[%s3 + $0x98] sm:$0xff]
  %v1420 = vsel %vm375, %v1406, 0
  %v1423 = vsel %vm375, %v1407, 0
  %v1426 = vsel %vm375, %v1408, 0
  %v1429 = vsel %vm375, %v1409, 0
  %v1432 = vsel %vm375, %v1410, 0
  %v1435 = vsel %vm375, %v1411, 0
  %v1438 = vsel %vm375, %v1412, 0
  %v1441 = vsel %vm375, %v1413, 0
  %v1444 = vsel %vm375, %v1414, 0
  %1446 = vmatprep.subr.mxu0 0.0
  %1447 = vmatpush1.msra.mxu0 %v1415
  %1448 = vmatprep.subr.mxu0 0.0
  %1449 = vmatpush1.msra.mxu0 %v1416
  %1450 = vmatprep.subr.mxu0 0.0
  %1451 = vmatpush1.msra.mxu0 %v1417
  %1452 = vmatprep.subr.mxu0 0.0
  %1453 = vmatpush1.msra.mxu0 %v1418
  %1454 = vmatprep.subr.mxu0 0.0
  %1455 = vmatpush1.msra.mxu0 0.0
  %1456 = vmatprep.subr.mxu0 0.0
  %1457 = vmatpush1.msra.mxu0 0.0
  %1458 = vmatprep.subr.mxu0 0.0
  %1459 = vmatpush1.msra.mxu0 0.0
  %1460 = vmatprep.subr.mxu0 0.0
  %1461 = vmatpush1.msra.mxu0 0.0
  %1462 = vmatprep.subr.mxu0 0.0
  %1463 = vmatpush1.msra.mxu0 0.0
  %1464 = vmatprep.subr.mxu0 0.0
  %1465 = vmatpush1.msra.mxu0 0.0
  %1466 = vmatprep.subr.mxu0 0.0
  %1467 = vmatpush1.msra.mxu0 0.0
  %1468 = vmatprep.subr.mxu0 0.0
  %1469 = vmatpush1.msra.mxu0 0.0
  %1470 = vmatprep.subr.mxu0 0.0
  %1471 = vmatpush1.msra.mxu0 0.0
  %1472 = vmatprep.subr.mxu0 0.0
  %1473 = vmatpush1.msra.mxu0 0.0
  %1474 = vmatprep.subr.mxu0 0.0
  %1475 = vmatpush1.msra.mxu0 0.0
  %1476 = vmatprep.subr.mxu0 0.0
  %1477 = vmatpush1.msra.mxu0 0.0
  %1478 = vmatprep.subr.mxu0 0.0
  %1479 = vmatpush1.msra.mxu0 0.0
  %1480 = vmatprep.subr.mxu0 0.0
  %1481 = vmatpush1.msra.mxu0 0.0
  %1482 = vmatprep.subr.mxu0 0.0
  %1483 = vmatpush1.msra.mxu0 0.0
  %1484 = vmatprep.subr.mxu0 0.0
  %1485 = vmatpush1.msra.mxu0 0.0
  %1486 = vmatprep.subr.mxu0 0.0
  %1487 = vmatpush1.msra.mxu0 0.0
  %1488 = vmatprep.subr.mxu0 0.0
  %1489 = vmatpush1.msra.mxu0 0.0
  %1490 = vmatprep.subr.mxu0 0.0
  %1491 = vmatpush1.msra.mxu0 0.0
  %1492 = vmatprep.subr.mxu0 0.0
  %1493 = vmatpush1.msra.mxu0 0.0
  %1494 = vmatprep.subr.mxu0 0.0
  %1495 = vmatpush1.msra.mxu0 0.0
  %1496 = vmatprep.subr.mxu0 0.0
  %1497 = vmatpush1.msra.mxu0 0.0
  %1498 = vmatprep.subr.mxu0 0.0
  %1499 = vmatpush1.msra.mxu0 0.0
  %1500 = vmatprep.subr.mxu0 0.0
  %1501 = vmatpush1.msra.mxu0 0.0
  %1502 = vmatprep.subr.mxu0 0.0
  %1503 = vmatpush1.msra.mxu0 0.0
  %1504 = vmatprep.subr.mxu0 0.0
  %1505 = vmatpush1.msra.mxu0 0.0
  %1506 = vmatprep.subr.mxu0 0.0
  %1507 = vmatpush1.msra.mxu0 0.0
  %1508 = vmatprep.subr.mxu0 0.0
  %1509 = vmatpush1.msra.mxu0 0.0
  %1510 = vmatprep.mubr.f32.mxu0 0.0
  %1511 = vmatmul.mubr.f32.gmra.mrb[0].mxu0 %v1420
  %v1512 = vpop.f32.mrb[0].mxu0
  %v1513 = vadd.f32 0.0, %v1512
  %v1514 = vpop.f32.mrb[0].mxu0
  %1515 = vmatprep.mubr.f32.mxu0 0.0
  %1516 = vmatmul.mubr.f32.gmra.mrb[0].mxu0 %v1423
  %v1517 = vpop.f32.mrb[0].mxu0
  %v1518 = vadd.f32 0.0, %v1517
  %v1519 = vpop.f32.mrb[0].mxu0
  %1520 = vmatprep.mubr.f32.mxu0 0.0
  %1521 = vmatmul.mubr.f32.gmra.mrb[0].mxu0 %v1426
  %v1522 = vpop.f32.mrb[0].mxu0
  %v1523 = vadd.f32 0.0, %v1522
  %v1524 = vpop.f32.mrb[0].mxu0
  %1525 = vmatprep.mubr.f32.mxu0 0.0
  %1526 = vmatmul.mubr.f32.gmra.mrb[0].mxu0 %v1429
  %v1527 = vpop.f32.mrb[0].mxu0
  %v1528 = vadd.f32 0.0, %v1527
  %v1529 = vpop.f32.mrb[0].mxu0
  %1530 = vmatprep.mubr.f32.mxu0 0.0
  %1531 = vmatmul.mubr.f32.gmra.mrb[0].mxu0 %v1432
  %v1532 = vpop.f32.mrb[0].mxu0
  %v1533 = vadd.f32 0.0, %v1532
  %v1534 = vpop.f32.mrb[0].mxu0
  %1535 = vmatprep.mubr.f32.mxu0 0.0
  %1536 = vmatmul.mubr.f32.gmra.mrb[0].mxu0 %v1435
  %v1537 = vpop.f32.mrb[0].mxu0
  %v1538 = vadd.f32 0.0, %v1537
  %v1539 = vpop.f32.mrb[0].mxu0
  %1540 = vmatprep.mubr.f32.mxu0 0.0
  %1541 = vmatmul.mubr.f32.gmra.mrb[0].mxu0 %v1438
  %v1542 = vpop.f32.mrb[0].mxu0
  %v1543 = vadd.f32 0.0, %v1542
  %v1544 = vpop.f32.mrb[0].mxu0
  %1545 = vmatprep.mubr.f32.mxu0 0.0
  %1546 = vmatmul.mubr.f32.gmra.mrb[0].mxu0 %v1441
  %v1547 = vpop.f32.mrb[0].mxu0
  %v1548 = vadd.f32 0.0, %v1547
  %v1549 = vpop.f32.mrb[0].mxu0
  %1550 = vmatprep.mubr.f32.mxu0 0.0
  %1551 = vmatmul.mubr.f32.gmra.mrb[0].mxu0 %v1444
  %v1552 = vpop.f32.mrb[0].mxu0
  %v1553 = vadd.f32 0.0, %v1552
  %v1554 = vpop.f32.mrb[0].mxu0
  %1555 = vdwg.mxu0
  %v1556 = vadd.f32 %v1251, %v1513
  %v1557 = vadd.f32 %v1252, %v1518
  %v1558 = vadd.f32 %v1253, %v1523
  %v1559 = vadd.f32 %v1254, %v1528
  %v1560 = vadd.f32 %v1255, %v1533
  %v1561 = vadd.f32 %v1256, %v1538
  %v1562 = vadd.f32 %v1257, %v1543
  %v1563 = vadd.f32 %v1258, %v1548
  %v1564 = vadd.f32 %v1259, %v1553
  %v1565 = vld [vmem:[%s0 + $0x168] sm:$0xff]
  %v1566 = vld [vmem:[%s0 + $0x170] sm:$0xff]
  %v1567 = vld [vmem:[%s0 + $0x178] sm:$0xff]
  %v1568 = vld [vmem:[%s0 + $0x180] sm:$0xff]
  %v1569 = vld [vmem:[%s0 + $0x188] sm:$0xff]
  %v1570 = vld [vmem:[%s0 + $0x190] sm:$0xff]
  %v1571 = vld [vmem:[%s0 + $0x198] sm:$0xff]
  %v1572 = vld [vmem:[%s0 + $0x1a0] sm:$0xff]
  %v1573 = vld [vmem:[%s0 + $0x1a8] sm:$0xff]
  %v1575 = vsel %vm61, %v1565, 0
  %v1578 = vsel %vm61, %v1566, 0
  %v1581 = vsel %vm61, %v1567, 0
  %v1584 = vsel %vm61, %v1568, 0
  %v1587 = vsel %vm61, %v1569, 0
  %v1590 = vsel %vm61, %v1570, 0
  %v1593 = vsel %vm61, %v1571, 0
  %v1596 = vsel %vm61, %v1572, 0
  %v1599 = vsel %vm61, %v1573, 0
  %1601 = vmatprep.subr.mxu0 0.0
  %1602 = vmatpush1.msra.mxu0 %v32
  %1603 = vmatprep.subr.mxu0 0.0
  %1604 = vmatpush1.msra.mxu0 %v33
  %1605 = vmatprep.subr.mxu0 0.0
  %1606 = vmatpush1.msra.mxu0 %v34
  %1607 = vmatprep.subr.mxu0 0.0
  %1608 = vmatpush1.msra.mxu0 %v35
  %1609 = vmatprep.subr.mxu0 0.0
  %1610 = vmatpush1.msra.mxu0 %v36
  %1611 = vmatprep.subr.mxu0 0.0
  %1612 = vmatpush1.msra.mxu0 %v37
  %1613 = vmatprep.subr.mxu0 0.0
  %1614 = vmatpush1.msra.mxu0 %v38
  %1615 = vmatprep.subr.mxu0 0.0
  %1616 = vmatpush1.msra.mxu0 %v39
  %1617 = vmatprep.subr.mxu0 0.0
  %1618 = vmatpush1.msra.mxu0 %v40
  %1619 = vmatprep.subr.mxu0 0.0
  %1620 = vmatpush1.msra.mxu0 %v41
  %1621 = vmatprep.subr.mxu0 0.0
  %1622 = vmatpush1.msra.mxu0 %v42
  %1623 = vmatprep.subr.mxu0 0.0
  %1624 = vmatpush1.msra.mxu0 %v43
  %1625 = vmatprep.subr.mxu0 0.0
  %1626 = vmatpush1.msra.mxu0 %v91
  %1627 = vmatprep.subr.mxu0 0.0
  %1628 = vmatpush1.msra.mxu0 0.0
  %1629 = vmatprep.subr.mxu0 0.0
  %1630 = vmatpush1.msra.mxu0 0.0
  %1631 = vmatprep.subr.mxu0 0.0
  %1632 = vmatpush1.msra.mxu0 0.0
  %1633 = vmatprep.subr.mxu0 0.0
  %1634 = vmatpush1.msra.mxu0 0.0
  %1635 = vmatprep.subr.mxu0 0.0
  %1636 = vmatpush1.msra.mxu0 0.0
  %1637 = vmatprep.subr.mxu0 0.0
  %1638 = vmatpush1.msra.mxu0 0.0
  %1639 = vmatprep.subr.mxu0 0.0
  %1640 = vmatpush1.msra.mxu0 0.0
  %1641 = vmatprep.subr.mxu0 0.0
  %1642 = vmatpush1.msra.mxu0 0.0
  %1643 = vmatprep.subr.mxu0 0.0
  %1644 = vmatpush1.msra.mxu0 0.0
  %1645 = vmatprep.subr.mxu0 0.0
  %1646 = vmatpush1.msra.mxu0 0.0
  %1647 = vmatprep.subr.mxu0 0.0
  %1648 = vmatpush1.msra.mxu0 0.0
  %1649 = vmatprep.subr.mxu0 0.0
  %1650 = vmatpush1.msra.mxu0 0.0
  %1651 = vmatprep.subr.mxu0 0.0
  %1652 = vmatpush1.msra.mxu0 0.0
  %1653 = vmatprep.subr.mxu0 0.0
  %1654 = vmatpush1.msra.mxu0 0.0
  %1655 = vmatprep.subr.mxu0 0.0
  %1656 = vmatpush1.msra.mxu0 0.0
  %1657 = vmatprep.subr.mxu0 0.0
  %1658 = vmatpush1.msra.mxu0 0.0
  %1659 = vmatprep.subr.mxu0 0.0
  %1660 = vmatpush1.msra.mxu0 0.0
  %1661 = vmatprep.subr.mxu0 0.0
  %1662 = vmatpush1.msra.mxu0 0.0
  %1663 = vmatprep.subr.mxu0 0.0
  %1664 = vmatpush1.msra.mxu0 0.0
  %1665 = vmatprep.mubr.f32.mxu0 0.0
  %1666 = vmatmul.mubr.f32.gmra.mrb[0].mxu0 %v1575
  %v1667 = vpop.f32.mrb[0].mxu0
  %v1668 = vadd.f32 %v59, %v1667
  %v1669 = vpop.f32.mrb[0].mxu0
  %1670 = vmatprep.mubr.f32.mxu0 0.0
  %1671 = vmatmul.mubr.f32.gmra.mrb[0].mxu0 %v1578
  %v1672 = vpop.f32.mrb[0].mxu0
  %v1673 = vadd.f32 %v59, %v1672
  %v1674 = vpop.f32.mrb[0].mxu0
  %1675 = vmatprep.mubr.f32.mxu0 0.0
  %1676 = vmatmul.mubr.f32.gmra.mrb[0].mxu0 %v1581
  %v1677 = vpop.f32.mrb[0].mxu0
  %v1678 = vadd.f32 %v59, %v1677
  %v1679 = vpop.f32.mrb[0].mxu0
  %1680 = vmatprep.mubr.f32.mxu0 0.0
  %1681 = vmatmul.mubr.f32.gmra.mrb[0].mxu0 %v1584
  %v1682 = vpop.f32.mrb[0].mxu0
  %v1683 = vadd.f32 %v59, %v1682
  %v1684 = vpop.f32.mrb[0].mxu0
  %1685 = vmatprep.mubr.f32.mxu0 0.0
  %1686 = vmatmul.mubr.f32.gmra.mrb[0].mxu0 %v1587
  %v1687 = vpop.f32.mrb[0].mxu0
  %v1688 = vadd.f32 %v59, %v1687
  %v1689 = vpop.f32.mrb[0].mxu0
  %1690 = vmatprep.mubr.f32.mxu0 0.0
  %1691 = vmatmul.mubr.f32.gmra.mrb[0].mxu0 %v1590
  %v1692 = vpop.f32.mrb[0].mxu0
  %v1693 = vadd.f32 %v59, %v1692
  %v1694 = vpop.f32.mrb[0].mxu0
  %1695 = vmatprep.mubr.f32.mxu0 0.0
  %1696 = vmatmul.mubr.f32.gmra.mrb[0].mxu0 %v1593
  %v1697 = vpop.f32.mrb[0].mxu0
  %v1698 = vadd.f32 %v59, %v1697
  %v1699 = vpop.f32.mrb[0].mxu0
  %1700 = vmatprep.mubr.f32.mxu0 0.0
  %1701 = vmatmul.mubr.f32.gmra.mrb[0].mxu0 %v1596
  %v1702 = vpop.f32.mrb[0].mxu0
  %v1703 = vadd.f32 %v59, %v1702
  %v1704 = vpop.f32.mrb[0].mxu0
  %1705 = vmatprep.mubr.f32.mxu0 0.0
  %1706 = vmatmul.mubr.f32.gmra.mrb[0].mxu0 %v1599
  %v1707 = vpop.f32.mrb[0].mxu0
  %v1708 = vadd.f32 %v59, %v1707
  %v1709 = vpop.f32.mrb[0].mxu0
  %1710 = vdwg.mxu0
  %v1711 = vmax.f32 %v1668, 0.0
  %v1712 = vmax.f32 %v1673, 0.0
  %v1713 = vmax.f32 %v1678, 0.0
  %v1714 = vmax.f32 %v1683, 0.0
  %v1715 = vmax.f32 %v1688, 0.0
  %v1716 = vmax.f32 %v1693, 0.0
  %v1717 = vmax.f32 %v1698, 0.0
  %v1718 = vmax.f32 %v1703, 0.0
  %v1719 = vmax.f32 %v1708, 0.0
  %v1720 = vld [vmem:[%s3 + $0xa0] sm:$0xff]
  %v1721 = vld [vmem:[%s3 + $0xa8] sm:$0xff]
  %v1722 = vld [vmem:[%s3 + $0xb0] sm:$0xff]
  %v1723 = vld [vmem:[%s3 + $0xb8] sm:$0xff]
  %v1725 = vsel %vm375, %v1711, 0
  %v1728 = vsel %vm375, %v1712, 0
  %v1731 = vsel %vm375, %v1713, 0
  %v1734 = vsel %vm375, %v1714, 0
  %v1737 = vsel %vm375, %v1715, 0
  %v1740 = vsel %vm375, %v1716, 0
  %v1743 = vsel %vm375, %v1717, 0
  %v1746 = vsel %vm375, %v1718, 0
  %v1749 = vsel %vm375, %v1719, 0
  %1751 = vmatprep.subr.mxu0 0.0
  %1752 = vmatpush1.msra.mxu0 %v1720
  %1753 = vmatprep.subr.mxu0 0.0
  %1754 = vmatpush1.msra.mxu0 %v1721
  %1755 = vmatprep.subr.mxu0 0.0
  %1756 = vmatpush1.msra.mxu0 %v1722
  %1757 = vmatprep.subr.mxu0 0.0
  %1758 = vmatpush1.msra.mxu0 %v1723
  %1759 = vmatprep.subr.mxu0 0.0
  %1760 = vmatpush1.msra.mxu0 0.0
  %1761 = vmatprep.subr.mxu0 0.0
  %1762 = vmatpush1.msra.mxu0 0.0
  %1763 = vmatprep.subr.mxu0 0.0
  %1764 = vmatpush1.msra.mxu0 0.0
  %1765 = vmatprep.subr.mxu0 0.0
  %1766 = vmatpush1.msra.mxu0 0.0
  %1767 = vmatprep.subr.mxu0 0.0
  %1768 = vmatpush1.msra.mxu0 0.0
  %1769 = vmatprep.subr.mxu0 0.0
  %1770 = vmatpush1.msra.mxu0 0.0
  %1771 = vmatprep.subr.mxu0 0.0
  %1772 = vmatpush1.msra.mxu0 0.0
  %1773 = vmatprep.subr.mxu0 0.0
  %1774 = vmatpush1.msra.mxu0 0.0
  %1775 = vmatprep.subr.mxu0 0.0
  %1776 = vmatpush1.msra.mxu0 0.0
  %1777 = vmatprep.subr.mxu0 0.0
  %1778 = vmatpush1.msra.mxu0 0.0
  %1779 = vmatprep.subr.mxu0 0.0
  %1780 = vmatpush1.msra.mxu0 0.0
  %1781 = vmatprep.subr.mxu0 0.0
  %1782 = vmatpush1.msra.mxu0 0.0
  %1783 = vmatprep.subr.mxu0 0.0
  %1784 = vmatpush1.msra.mxu0 0.0
  %1785 = vmatprep.subr.mxu0 0.0
  %1786 = vmatpush1.msra.mxu0 0.0
  %1787 = vmatprep.subr.mxu0 0.0
  %1788 = vmatpush1.msra.mxu0 0.0
  %1789 = vmatprep.subr.mxu0 0.0
  %1790 = vmatpush1.msra.mxu0 0.0
  %1791 = vmatprep.subr.mxu0 0.0
  %1792 = vmatpush1.msra.mxu0 0.0
  %1793 = vmatprep.subr.mxu0 0.0
  %1794 = vmatpush1.msra.mxu0 0.0
  %1795 = vmatprep.subr.mxu0 0.0
  %1796 = vmatpush1.msra.mxu0 0.0
  %1797 = vmatprep.subr.mxu0 0.0
  %1798 = vmatpush1.msra.mxu0 0.0
  %1799 = vmatprep.subr.mxu0 0.0
  %1800 = vmatpush1.msra.mxu0 0.0
  %1801 = vmatprep.subr.mxu0 0.0
  %1802 = vmatpush1.msra.mxu0 0.0
  %1803 = vmatprep.subr.mxu0 0.0
  %1804 = vmatpush1.msra.mxu0 0.0
  %1805 = vmatprep.subr.mxu0 0.0
  %1806 = vmatpush1.msra.mxu0 0.0
  %1807 = vmatprep.subr.mxu0 0.0
  %1808 = vmatpush1.msra.mxu0 0.0
  %1809 = vmatprep.subr.mxu0 0.0
  %1810 = vmatpush1.msra.mxu0 0.0
  %1811 = vmatprep.subr.mxu0 0.0
  %1812 = vmatpush1.msra.mxu0 0.0
  %1813 = vmatprep.subr.mxu0 0.0
  %1814 = vmatpush1.msra.mxu0 0.0
  %1815 = vmatprep.mubr.f32.mxu0 0.0
  %1816 = vmatmul.mubr.f32.gmra.mrb[0].mxu0 %v1725
  %v1817 = vpop.f32.mrb[0].mxu0
  %v1818 = vadd.f32 0.0, %v1817
  %v1819 = vpop.f32.mrb[0].mxu0
  %1820 = vmatprep.mubr.f32.mxu0 0.0
  %1821 = vmatmul.mubr.f32.gmra.mrb[0].mxu0 %v1728
  %v1822 = vpop.f32.mrb[0].mxu0
  %v1823 = vadd.f32 0.0, %v1822
  %v1824 = vpop.f32.mrb[0].mxu0
  %1825 = vmatprep.mubr.f32.mxu0 0.0
  %1826 = vmatmul.mubr.f32.gmra.mrb[0].mxu0 %v1731
  %v1827 = vpop.f32.mrb[0].mxu0
  %v1828 = vadd.f32 0.0, %v1827
  %v1829 = vpop.f32.mrb[0].mxu0
  %1830 = vmatprep.mubr.f32.mxu0 0.0
  %1831 = vmatmul.mubr.f32.gmra.mrb[0].mxu0 %v1734
  %v1832 = vpop.f32.mrb[0].mxu0
  %v1833 = vadd.f32 0.0, %v1832
  %v1834 = vpop.f32.mrb[0].mxu0
  %1835 = vmatprep.mubr.f32.mxu0 0.0
  %1836 = vmatmul.mubr.f32.gmra.mrb[0].mxu0 %v1737
  %v1837 = vpop.f32.mrb[0].mxu0
  %v1838 = vadd.f32 0.0, %v1837
  %v1839 = vpop.f32.mrb[0].mxu0
  %1840 = vmatprep.mubr.f32.mxu0 0.0
  %1841 = vmatmul.mubr.f32.gmra.mrb[0].mxu0 %v1740
  %v1842 = vpop.f32.mrb[0].mxu0
  %v1843 = vadd.f32 0.0, %v1842
  %v1844 = vpop.f32.mrb[0].mxu0
  %1845 = vmatprep.mubr.f32.mxu0 0.0
  %1846 = vmatmul.mubr.f32.gmra.mrb[0].mxu0 %v1743
  %v1847 = vpop.f32.mrb[0].mxu0
  %v1848 = vadd.f32 0.0, %v1847
  %v1849 = vpop.f32.mrb[0].mxu0
  %1850 = vmatprep.mubr.f32.mxu0 0.0
  %1851 = vmatmul.mubr.f32.gmra.mrb[0].mxu0 %v1746
  %v1852 = vpop.f32.mrb[0].mxu0
  %v1853 = vadd.f32 0.0, %v1852
  %v1854 = vpop.f32.mrb[0].mxu0
  %1855 = vmatprep.mubr.f32.mxu0 0.0
  %1856 = vmatmul.mubr.f32.gmra.mrb[0].mxu0 %v1749
  %v1857 = vpop.f32.mrb[0].mxu0
  %v1858 = vadd.f32 0.0, %v1857
  %v1859 = vpop.f32.mrb[0].mxu0
  %1860 = vdwg.mxu0
  %v1861 = vadd.f32 %v1556, %v1818
  %v1862 = vadd.f32 %v1557, %v1823
  %v1863 = vadd.f32 %v1558, %v1828
  %v1864 = vadd.f32 %v1559, %v1833
  %v1865 = vadd.f32 %v1560, %v1838
  %v1866 = vadd.f32 %v1561, %v1843
  %v1867 = vadd.f32 %v1562, %v1848
  %v1868 = vadd.f32 %v1563, %v1853
  %v1869 = vadd.f32 %v1564, %v1858
  %v1870 = vld [vmem:[%s0 + $0x1b0] sm:$0xff]
  %v1871 = vld [vmem:[%s0 + $0x1b8] sm:$0xff]
  %v1872 = vld [vmem:[%s0 + $0x1c0] sm:$0xff]
  %v1873 = vld [vmem:[%s0 + $0x1c8] sm:$0xff]
  %v1874 = vld [vmem:[%s0 + $0x1d0] sm:$0xff]
  %v1875 = vld [vmem:[%s0 + $0x1d8] sm:$0xff]
  %v1876 = vld [vmem:[%s0 + $0x1e0] sm:$0xff]
  %v1877 = vld [vmem:[%s0 + $0x1e8] sm:$0xff]
  %v1878 = vld [vmem:[%s0 + $0x1f0] sm:$0xff]
  %v1880 = vsel %vm61, %v1870, 0
  %v1883 = vsel %vm61, %v1871, 0
  %v1886 = vsel %vm61, %v1872, 0
  %v1889 = vsel %vm61, %v1873, 0
  %v1892 = vsel %vm61, %v1874, 0
  %v1895 = vsel %vm61, %v1875, 0
  %v1898 = vsel %vm61, %v1876, 0
  %v1901 = vsel %vm61, %v1877, 0
  %v1904 = vsel %vm61, %v1878, 0
  %1906 = vmatprep.subr.mxu0 0.0
  %1907 = vmatpush1.msra.mxu0 %v32
  %1908 = vmatprep.subr.mxu0 0.0
  %1909 = vmatpush1.msra.mxu0 %v33
  %1910 = vmatprep.subr.mxu0 0.0
  %1911 = vmatpush1.msra.mxu0 %v34
  %1912 = vmatprep.subr.mxu0 0.0
  %1913 = vmatpush1.msra.mxu0 %v35
  %1914 = vmatprep.subr.mxu0 0.0
  %1915 = vmatpush1.msra.mxu0 %v36
  %1916 = vmatprep.subr.mxu0 0.0
  %1917 = vmatpush1.msra.mxu0 %v37
  %1918 = vmatprep.subr.mxu0 0.0
  %1919 = vmatpush1.msra.mxu0 %v38
  %1920 = vmatprep.subr.mxu0 0.0
  %1921 = vmatpush1.msra.mxu0 %v39
  %1922 = vmatprep.subr.mxu0 0.0
  %1923 = vmatpush1.msra.mxu0 %v40
  %1924 = vmatprep.subr.mxu0 0.0
  %1925 = vmatpush1.msra.mxu0 %v41
  %1926 = vmatprep.subr.mxu0 0.0
  %1927 = vmatpush1.msra.mxu0 %v42
  %1928 = vmatprep.subr.mxu0 0.0
  %1929 = vmatpush1.msra.mxu0 %v43
  %1930 = vmatprep.subr.mxu0 0.0
  %1931 = vmatpush1.msra.mxu0 %v91
  %1932 = vmatprep.subr.mxu0 0.0
  %1933 = vmatpush1.msra.mxu0 0.0
  %1934 = vmatprep.subr.mxu0 0.0
  %1935 = vmatpush1.msra.mxu0 0.0
  %1936 = vmatprep.subr.mxu0 0.0
  %1937 = vmatpush1.msra.mxu0 0.0
  %1938 = vmatprep.subr.mxu0 0.0
  %1939 = vmatpush1.msra.mxu0 0.0
  %1940 = vmatprep.subr.mxu0 0.0
  %1941 = vmatpush1.msra.mxu0 0.0
  %1942 = vmatprep.subr.mxu0 0.0
  %1943 = vmatpush1.msra.mxu0 0.0
  %1944 = vmatprep.subr.mxu0 0.0
  %1945 = vmatpush1.msra.mxu0 0.0
  %1946 = vmatprep.subr.mxu0 0.0
  %1947 = vmatpush1.msra.mxu0 0.0
  %1948 = vmatprep.subr.mxu0 0.0
  %1949 = vmatpush1.msra.mxu0 0.0
  %1950 = vmatprep.subr.mxu0 0.0
  %1951 = vmatpush1.msra.mxu0 0.0
  %1952 = vmatprep.subr.mxu0 0.0
  %1953 = vmatpush1.msra.mxu0 0.0
  %1954 = vmatprep.subr.mxu0 0.0
  %1955 = vmatpush1.msra.mxu0 0.0
  %1956 = vmatprep.subr.mxu0 0.0
  %1957 = vmatpush1.msra.mxu0 0.0
  %1958 = vmatprep.subr.mxu0 0.0
  %1959 = vmatpush1.msra.mxu0 0.0
  %1960 = vmatprep.subr.mxu0 0.0
  %1961 = vmatpush1.msra.mxu0 0.0
  %1962 = vmatprep.subr.mxu0 0.0
  %1963 = vmatpush1.msra.mxu0 0.0
  %1964 = vmatprep.subr.mxu0 0.0
  %1965 = vmatpush1.msra.mxu0 0.0
  %1966 = vmatprep.subr.mxu0 0.0
  %1967 = vmatpush1.msra.mxu0 0.0
  %1968 = vmatprep.subr.mxu0 0.0
  %1969 = vmatpush1.msra.mxu0 0.0
  %1970 = vmatprep.mubr.f32.mxu0 0.0
  %1971 = vmatmul.mubr.f32.gmra.mrb[0].mxu0 %v1880
  %v1972 = vpop.f32.mrb[0].mxu0
  %v1973 = vadd.f32 %v59, %v1972
  %v1974 = vpop.f32.mrb[0].mxu0
  %1975 = vmatprep.mubr.f32.mxu0 0.0
  %1976 = vmatmul.mubr.f32.gmra.mrb[0].mxu0 %v1883
  %v1977 = vpop.f32.mrb[0].mxu0
  %v1978 = vadd.f32 %v59, %v1977
  %v1979 = vpop.f32.mrb[0].mxu0
  %1980 = vmatprep.mubr.f32.mxu0 0.0
  %1981 = vmatmul.mubr.f32.gmra.mrb[0].mxu0 %v1886
  %v1982 = vpop.f32.mrb[0].mxu0
  %v1983 = vadd.f32 %v59, %v1982
  %v1984 = vpop.f32.mrb[0].mxu0
  %1985 = vmatprep.mubr.f32.mxu0 0.0
  %1986 = vmatmul.mubr.f32.gmra.mrb[0].mxu0 %v1889
  %v1987 = vpop.f32.mrb[0].mxu0
  %v1988 = vadd.f32 %v59, %v1987
  %v1989 = vpop.f32.mrb[0].mxu0
  %1990 = vmatprep.mubr.f32.mxu0 0.0
  %1991 = vmatmul.mubr.f32.gmra.mrb[0].mxu0 %v1892
  %v1992 = vpop.f32.mrb[0].mxu0
  %v1993 = vadd.f32 %v59, %v1992
  %v1994 = vpop.f32.mrb[0].mxu0
  %1995 = vmatprep.mubr.f32.mxu0 0.0
  %1996 = vmatmul.mubr.f32.gmra.mrb[0].mxu0 %v1895
  %v1997 = vpop.f32.mrb[0].mxu0
  %v1998 = vadd.f32 %v59, %v1997
  %v1999 = vpop.f32.mrb[0].mxu0
  %2000 = vmatprep.mubr.f32.mxu0 0.0
  %2001 = vmatmul.mubr.f32.gmra.mrb[0].mxu0 %v1898
  %v2002 = vpop.f32.mrb[0].mxu0
  %v2003 = vadd.f32 %v59, %v2002
  %v2004 = vpop.f32.mrb[0].mxu0
  %2005 = vmatprep.mubr.f32.mxu0 0.0
  %2006 = vmatmul.mubr.f32.gmra.mrb[0].mxu0 %v1901
  %v2007 = vpop.f32.mrb[0].mxu0
  %v2008 = vadd.f32 %v59, %v2007
  %v2009 = vpop.f32.mrb[0].mxu0
  %2010 = vmatprep.mubr.f32.mxu0 0.0
  %2011 = vmatmul.mubr.f32.gmra.mrb[0].mxu0 %v1904
  %v2012 = vpop.f32.mrb[0].mxu0
  %v2013 = vadd.f32 %v59, %v2012
  %v2014 = vpop.f32.mrb[0].mxu0
  %2015 = vdwg.mxu0
  %v2016 = vmax.f32 %v1973, 0.0
  %v2017 = vmax.f32 %v1978, 0.0
  %v2018 = vmax.f32 %v1983, 0.0
  %v2019 = vmax.f32 %v1988, 0.0
  %v2020 = vmax.f32 %v1993, 0.0
  %v2021 = vmax.f32 %v1998, 0.0
  %v2022 = vmax.f32 %v2003, 0.0
  %v2023 = vmax.f32 %v2008, 0.0
  %v2024 = vmax.f32 %v2013, 0.0
  %v2025 = vld [vmem:[%s3 + $0xc0] sm:$0xff]
  %v2026 = vld [vmem:[%s3 + $0xc8] sm:$0xff]
  %v2027 = vld [vmem:[%s3 + $0xd0] sm:$0xff]
  %v2028 = vld [vmem:[%s3 + $0xd8] sm:$0xff]
  %v2030 = vsel %vm375, %v2016, 0
  %v2033 = vsel %vm375, %v2017, 0
  %v2036 = vsel %vm375, %v2018, 0
  %v2039 = vsel %vm375, %v2019, 0
  %v2042 = vsel %vm375, %v2020, 0
  %v2045 = vsel %vm375, %v2021, 0
  %v2048 = vsel %vm375, %v2022, 0
  %v2051 = vsel %vm375, %v2023, 0
  %v2054 = vsel %vm375, %v2024, 0
  %2056 = vmatprep.subr.mxu0 0.0
  %2057 = vmatpush1.msra.mxu0 %v2025
  %2058 = vmatprep.subr.mxu0 0.0
  %2059 = vmatpush1.msra.mxu0 %v2026
  %2060 = vmatprep.subr.mxu0 0.0
  %2061 = vmatpush1.msra.mxu0 %v2027
  %2062 = vmatprep.subr.mxu0 0.0
  %2063 = vmatpush1.msra.mxu0 %v2028
  %2064 = vmatprep.subr.mxu0 0.0
  %2065 = vmatpush1.msra.mxu0 0.0
  %2066 = vmatprep.subr.mxu0 0.0
  %2067 = vmatpush1.msra.mxu0 0.0
  %2068 = vmatprep.subr.mxu0 0.0
  %2069 = vmatpush1.msra.mxu0 0.0
  %2070 = vmatprep.subr.mxu0 0.0
  %2071 = vmatpush1.msra.mxu0 0.0
  %2072 = vmatprep.subr.mxu0 0.0
  %2073 = vmatpush1.msra.mxu0 0.0
  %2074 = vmatprep.subr.mxu0 0.0
  %2075 = vmatpush1.msra.mxu0 0.0
  %2076 = vmatprep.subr.mxu0 0.0
  %2077 = vmatpush1.msra.mxu0 0.0
  %2078 = vmatprep.subr.mxu0 0.0
  %2079 = vmatpush1.msra.mxu0 0.0
  %2080 = vmatprep.subr.mxu0 0.0
  %2081 = vmatpush1.msra.mxu0 0.0
  %2082 = vmatprep.subr.mxu0 0.0
  %2083 = vmatpush1.msra.mxu0 0.0
  %2084 = vmatprep.subr.mxu0 0.0
  %2085 = vmatpush1.msra.mxu0 0.0
  %2086 = vmatprep.subr.mxu0 0.0
  %2087 = vmatpush1.msra.mxu0 0.0
  %2088 = vmatprep.subr.mxu0 0.0
  %2089 = vmatpush1.msra.mxu0 0.0
  %2090 = vmatprep.subr.mxu0 0.0
  %2091 = vmatpush1.msra.mxu0 0.0
  %2092 = vmatprep.subr.mxu0 0.0
  %2093 = vmatpush1.msra.mxu0 0.0
  %2094 = vmatprep.subr.mxu0 0.0
  %2095 = vmatpush1.msra.mxu0 0.0
  %2096 = vmatprep.subr.mxu0 0.0
  %2097 = vmatpush1.msra.mxu0 0.0
  %2098 = vmatprep.subr.mxu0 0.0
  %2099 = vmatpush1.msra.mxu0 0.0
  %2100 = vmatprep.subr.mxu0 0.0
  %2101 = vmatpush1.msra.mxu0 0.0
  %2102 = vmatprep.subr.mxu0 0.0
  %2103 = vmatpush1.msra.mxu0 0.0
  %2104 = vmatprep.subr.mxu0 0.0
  %2105 = vmatpush1.msra.mxu0 0.0
  %2106 = vmatprep.subr.mxu0 0.0
  %2107 = vmatpush1.msra.mxu0 0.0
  %2108 = vmatprep.subr.mxu0 0.0
  %2109 = vmatpush1.msra.mxu0 0.0
  %2110 = vmatprep.subr.mxu0 0.0
  %2111 = vmatpush1.msra.mxu0 0.0
  %2112 = vmatprep.subr.mxu0 0.0
  %2113 = vmatpush1.msra.mxu0 0.0
  %2114 = vmatprep.subr.mxu0 0.0
  %2115 = vmatpush1.msra.mxu0 0.0
  %2116 = vmatprep.subr.mxu0 0.0
  %2117 = vmatpush1.msra.mxu0 0.0
  %2118 = vmatprep.subr.mxu0 0.0
  %2119 = vmatpush1.msra.mxu0 0.0
  %2120 = vmatprep.mubr.f32.mxu0 0.0
  %2121 = vmatmul.mubr.f32.gmra.mrb[0].mxu0 %v2030
  %v2122 = vpop.f32.mrb[0].mxu0
  %v2123 = vadd.f32 0.0, %v2122
  %v2124 = vpop.f32.mrb[0].mxu0
  %2125 = vmatprep.mubr.f32.mxu0 0.0
  %2126 = vmatmul.mubr.f32.gmra.mrb[0].mxu0 %v2033
  %v2127 = vpop.f32.mrb[0].mxu0
  %v2128 = vadd.f32 0.0, %v2127
  %v2129 = vpop.f32.mrb[0].mxu0
  %2130 = vmatprep.mubr.f32.mxu0 0.0
  %2131 = vmatmul.mubr.f32.gmra.mrb[0].mxu0 %v2036
  %v2132 = vpop.f32.mrb[0].mxu0
  %v2133 = vadd.f32 0.0, %v2132
  %v2134 = vpop.f32.mrb[0].mxu0
  %2135 = vmatprep.mubr.f32.mxu0 0.0
  %2136 = vmatmul.mubr.f32.gmra.mrb[0].mxu0 %v2039
  %v2137 = vpop.f32.mrb[0].mxu0
  %v2138 = vadd.f32 0.0, %v2137
  %v2139 = vpop.f32.mrb[0].mxu0
  %2140 = vmatprep.mubr.f32.mxu0 0.0
  %2141 = vmatmul.mubr.f32.gmra.mrb[0].mxu0 %v2042
  %v2142 = vpop.f32.mrb[0].mxu0
  %v2143 = vadd.f32 0.0, %v2142
  %v2144 = vpop.f32.mrb[0].mxu0
  %2145 = vmatprep.mubr.f32.mxu0 0.0
  %2146 = vmatmul.mubr.f32.gmra.mrb[0].mxu0 %v2045
  %v2147 = vpop.f32.mrb[0].mxu0
  %v2148 = vadd.f32 0.0, %v2147
  %v2149 = vpop.f32.mrb[0].mxu0
  %2150 = vmatprep.mubr.f32.mxu0 0.0
  %2151 = vmatmul.mubr.f32.gmra.mrb[0].mxu0 %v2048
  %v2152 = vpop.f32.mrb[0].mxu0
  %v2153 = vadd.f32 0.0, %v2152
  %v2154 = vpop.f32.mrb[0].mxu0
  %2155 = vmatprep.mubr.f32.mxu0 0.0
  %2156 = vmatmul.mubr.f32.gmra.mrb[0].mxu0 %v2051
  %v2157 = vpop.f32.mrb[0].mxu0
  %v2158 = vadd.f32 0.0, %v2157
  %v2159 = vpop.f32.mrb[0].mxu0
  %2160 = vmatprep.mubr.f32.mxu0 0.0
  %2161 = vmatmul.mubr.f32.gmra.mrb[0].mxu0 %v2054
  %v2162 = vpop.f32.mrb[0].mxu0
  %v2163 = vadd.f32 0.0, %v2162
  %v2164 = vpop.f32.mrb[0].mxu0
  %2165 = vdwg.mxu0
  %v2166 = vadd.f32 %v1861, %v2123
  %v2167 = vadd.f32 %v1862, %v2128
  %v2168 = vadd.f32 %v1863, %v2133
  %v2169 = vadd.f32 %v1864, %v2138
  %v2170 = vadd.f32 %v1865, %v2143
  %v2171 = vadd.f32 %v1866, %v2148
  %v2172 = vadd.f32 %v1867, %v2153
  %v2173 = vadd.f32 %v1868, %v2158
  %v2174 = vadd.f32 %v1869, %v2163
  %v2175 = vld [vmem:[%s0 + $0x1f8] sm:$0xff]
  %v2176 = vld [vmem:[%s0 + $0x200] sm:$0xff]
  %v2177 = vld [vmem:[%s0 + $0x208] sm:$0xff]
  %v2178 = vld [vmem:[%s0 + $0x210] sm:$0xff]
  %v2179 = vld [vmem:[%s0 + $0x218] sm:$0xff]
  %v2180 = vld [vmem:[%s0 + $0x220] sm:$0xff]
  %v2181 = vld [vmem:[%s0 + $0x228] sm:$0xff]
  %v2182 = vld [vmem:[%s0 + $0x230] sm:$0xff]
  %v2183 = vld [vmem:[%s0 + $0x238] sm:$0xff]
  %v2185 = vsel %vm61, %v2175, 0
  %v2188 = vsel %vm61, %v2176, 0
  %v2191 = vsel %vm61, %v2177, 0
  %v2194 = vsel %vm61, %v2178, 0
  %v2197 = vsel %vm61, %v2179, 0
  %v2200 = vsel %vm61, %v2180, 0
  %v2203 = vsel %vm61, %v2181, 0
  %v2206 = vsel %vm61, %v2182, 0
  %v2209 = vsel %vm61, %v2183, 0
  %2211 = vmatprep.subr.mxu0 0.0
  %2212 = vmatpush1.msra.mxu0 %v32
  %2213 = vmatprep.subr.mxu0 0.0
  %2214 = vmatpush1.msra.mxu0 %v33
  %2215 = vmatprep.subr.mxu0 0.0
  %2216 = vmatpush1.msra.mxu0 %v34
  %2217 = vmatprep.subr.mxu0 0.0
  %2218 = vmatpush1.msra.mxu0 %v35
  %2219 = vmatprep.subr.mxu0 0.0
  %2220 = vmatpush1.msra.mxu0 %v36
  %2221 = vmatprep.subr.mxu0 0.0
  %2222 = vmatpush1.msra.mxu0 %v37
  %2223 = vmatprep.subr.mxu0 0.0
  %2224 = vmatpush1.msra.mxu0 %v38
  %2225 = vmatprep.subr.mxu0 0.0
  %2226 = vmatpush1.msra.mxu0 %v39
  %2227 = vmatprep.subr.mxu0 0.0
  %2228 = vmatpush1.msra.mxu0 %v40
  %2229 = vmatprep.subr.mxu0 0.0
  %2230 = vmatpush1.msra.mxu0 %v41
  %2231 = vmatprep.subr.mxu0 0.0
  %2232 = vmatpush1.msra.mxu0 %v42
  %2233 = vmatprep.subr.mxu0 0.0
  %2234 = vmatpush1.msra.mxu0 %v43
  %2235 = vmatprep.subr.mxu0 0.0
  %2236 = vmatpush1.msra.mxu0 %v91
  %2237 = vmatprep.subr.mxu0 0.0
  %2238 = vmatpush1.msra.mxu0 0.0
  %2239 = vmatprep.subr.mxu0 0.0
  %2240 = vmatpush1.msra.mxu0 0.0
  %2241 = vmatprep.subr.mxu0 0.0
  %2242 = vmatpush1.msra.mxu0 0.0
  %2243 = vmatprep.subr.mxu0 0.0
  %2244 = vmatpush1.msra.mxu0 0.0
  %2245 = vmatprep.subr.mxu0 0.0
  %2246 = vmatpush1.msra.mxu0 0.0
  %2247 = vmatprep.subr.mxu0 0.0
  %2248 = vmatpush1.msra.mxu0 0.0
  %2249 = vmatprep.subr.mxu0 0.0
  %2250 = vmatpush1.msra.mxu0 0.0
  %2251 = vmatprep.subr.mxu0 0.0
  %2252 = vmatpush1.msra.mxu0 0.0
  %2253 = vmatprep.subr.mxu0 0.0
  %2254 = vmatpush1.msra.mxu0 0.0
  %2255 = vmatprep.subr.mxu0 0.0
  %2256 = vmatpush1.msra.mxu0 0.0
  %2257 = vmatprep.subr.mxu0 0.0
  %2258 = vmatpush1.msra.mxu0 0.0
  %2259 = vmatprep.subr.mxu0 0.0
  %2260 = vmatpush1.msra.mxu0 0.0
  %2261 = vmatprep.subr.mxu0 0.0
  %2262 = vmatpush1.msra.mxu0 0.0
  %2263 = vmatprep.subr.mxu0 0.0
  %2264 = vmatpush1.msra.mxu0 0.0
  %2265 = vmatprep.subr.mxu0 0.0
  %2266 = vmatpush1.msra.mxu0 0.0
  %2267 = vmatprep.subr.mxu0 0.0
  %2268 = vmatpush1.msra.mxu0 0.0
  %2269 = vmatprep.subr.mxu0 0.0
  %2270 = vmatpush1.msra.mxu0 0.0
  %2271 = vmatprep.subr.mxu0 0.0
  %2272 = vmatpush1.msra.mxu0 0.0
  %2273 = vmatprep.subr.mxu0 0.0
  %2274 = vmatpush1.msra.mxu0 0.0
  %2275 = vmatprep.mubr.f32.mxu0 0.0
  %2276 = vmatmul.mubr.f32.gmra.mrb[0].mxu0 %v2185
  %v2277 = vpop.f32.mrb[0].mxu0
  %v2278 = vadd.f32 %v59, %v2277
  %v2279 = vpop.f32.mrb[0].mxu0
  %2280 = vmatprep.mubr.f32.mxu0 0.0
  %2281 = vmatmul.mubr.f32.gmra.mrb[0].mxu0 %v2188
  %v2282 = vpop.f32.mrb[0].mxu0
  %v2283 = vadd.f32 %v59, %v2282
  %v2284 = vpop.f32.mrb[0].mxu0
  %2285 = vmatprep.mubr.f32.mxu0 0.0
  %2286 = vmatmul.mubr.f32.gmra.mrb[0].mxu0 %v2191
  %v2287 = vpop.f32.mrb[0].mxu0
  %v2288 = vadd.f32 %v59, %v2287
  %v2289 = vpop.f32.mrb[0].mxu0
  %2290 = vmatprep.mubr.f32.mxu0 0.0
  %2291 = vmatmul.mubr.f32.gmra.mrb[0].mxu0 %v2194
  %v2292 = vpop.f32.mrb[0].mxu0
  %v2293 = vadd.f32 %v59, %v2292
  %v2294 = vpop.f32.mrb[0].mxu0
  %2295 = vmatprep.mubr.f32.mxu0 0.0
  %2296 = vmatmul.mubr.f32.gmra.mrb[0].mxu0 %v2197
  %v2297 = vpop.f32.mrb[0].mxu0
  %v2298 = vadd.f32 %v59, %v2297
  %v2299 = vpop.f32.mrb[0].mxu0
  %2300 = vmatprep.mubr.f32.mxu0 0.0
  %2301 = vmatmul.mubr.f32.gmra.mrb[0].mxu0 %v2200
  %v2302 = vpop.f32.mrb[0].mxu0
  %v2303 = vadd.f32 %v59, %v2302
  %v2304 = vpop.f32.mrb[0].mxu0
  %2305 = vmatprep.mubr.f32.mxu0 0.0
  %2306 = vmatmul.mubr.f32.gmra.mrb[0].mxu0 %v2203
  %v2307 = vpop.f32.mrb[0].mxu0
  %v2308 = vadd.f32 %v59, %v2307
  %v2309 = vpop.f32.mrb[0].mxu0
  %2310 = vmatprep.mubr.f32.mxu0 0.0
  %2311 = vmatmul.mubr.f32.gmra.mrb[0].mxu0 %v2206
  %v2312 = vpop.f32.mrb[0].mxu0
  %v2313 = vadd.f32 %v59, %v2312
  %v2314 = vpop.f32.mrb[0].mxu0
  %2315 = vmatprep.mubr.f32.mxu0 0.0
  %2316 = vmatmul.mubr.f32.gmra.mrb[0].mxu0 %v2209
  %v2317 = vpop.f32.mrb[0].mxu0
  %v2318 = vadd.f32 %v59, %v2317
  %v2319 = vpop.f32.mrb[0].mxu0
  %2320 = vdwg.mxu0
  %v2321 = vmax.f32 %v2278, 0.0
  %v2322 = vmax.f32 %v2283, 0.0
  %v2323 = vmax.f32 %v2288, 0.0
  %v2324 = vmax.f32 %v2293, 0.0
  %v2325 = vmax.f32 %v2298, 0.0
  %v2326 = vmax.f32 %v2303, 0.0
  %v2327 = vmax.f32 %v2308, 0.0
  %v2328 = vmax.f32 %v2313, 0.0
  %v2329 = vmax.f32 %v2318, 0.0
  %v2330 = vld [vmem:[%s3 + $0xe0] sm:$0xff]
  %v2331 = vld [vmem:[%s3 + $0xe8] sm:$0xff]
  %v2332 = vld [vmem:[%s3 + $0xf0] sm:$0xff]
  %v2333 = vld [vmem:[%s3 + $0xf8] sm:$0xff]
  %v2335 = vsel %vm375, %v2321, 0
  %v2338 = vsel %vm375, %v2322, 0
  %v2341 = vsel %vm375, %v2323, 0
  %v2344 = vsel %vm375, %v2324, 0
  %v2347 = vsel %vm375, %v2325, 0
  %v2350 = vsel %vm375, %v2326, 0
  %v2353 = vsel %vm375, %v2327, 0
  %v2356 = vsel %vm375, %v2328, 0
  %v2359 = vsel %vm375, %v2329, 0
  %2361 = vmatprep.subr.mxu0 0.0
  %2362 = vmatpush1.msra.mxu0 %v2330
  %2363 = vmatprep.subr.mxu0 0.0
  %2364 = vmatpush1.msra.mxu0 %v2331
  %2365 = vmatprep.subr.mxu0 0.0
  %2366 = vmatpush1.msra.mxu0 %v2332
  %2367 = vmatprep.subr.mxu0 0.0
  %2368 = vmatpush1.msra.mxu0 %v2333
  %2369 = vmatprep.subr.mxu0 0.0
  %2370 = vmatpush1.msra.mxu0 0.0
  %2371 = vmatprep.subr.mxu0 0.0
  %2372 = vmatpush1.msra.mxu0 0.0
  %2373 = vmatprep.subr.mxu0 0.0
  %2374 = vmatpush1.msra.mxu0 0.0
  %2375 = vmatprep.subr.mxu0 0.0
  %2376 = vmatpush1.msra.mxu0 0.0
  %2377 = vmatprep.subr.mxu0 0.0
  %2378 = vmatpush1.msra.mxu0 0.0
  %2379 = vmatprep.subr.mxu0 0.0
  %2380 = vmatpush1.msra.mxu0 0.0
  %2381 = vmatprep.subr.mxu0 0.0
  %2382 = vmatpush1.msra.mxu0 0.0
  %2383 = vmatprep.subr.mxu0 0.0
  %2384 = vmatpush1.msra.mxu0 0.0
  %2385 = vmatprep.subr.mxu0 0.0
  %2386 = vmatpush1.msra.mxu0 0.0
  %2387 = vmatprep.subr.mxu0 0.0
  %2388 = vmatpush1.msra.mxu0 0.0
  %2389 = vmatprep.subr.mxu0 0.0
  %2390 = vmatpush1.msra.mxu0 0.0
  %2391 = vmatprep.subr.mxu0 0.0
  %2392 = vmatpush1.msra.mxu0 0.0
  %2393 = vmatprep.subr.mxu0 0.0
  %2394 = vmatpush1.msra.mxu0 0.0
  %2395 = vmatprep.subr.mxu0 0.0
  %2396 = vmatpush1.msra.mxu0 0.0
  %2397 = vmatprep.subr.mxu0 0.0
  %2398 = vmatpush1.msra.mxu0 0.0
  %2399 = vmatprep.subr.mxu0 0.0
  %2400 = vmatpush1.msra.mxu0 0.0
  %2401 = vmatprep.subr.mxu0 0.0
  %2402 = vmatpush1.msra.mxu0 0.0
  %2403 = vmatprep.subr.mxu0 0.0
  %2404 = vmatpush1.msra.mxu0 0.0
  %2405 = vmatprep.subr.mxu0 0.0
  %2406 = vmatpush1.msra.mxu0 0.0
  %2407 = vmatprep.subr.mxu0 0.0
  %2408 = vmatpush1.msra.mxu0 0.0
  %2409 = vmatprep.subr.mxu0 0.0
  %2410 = vmatpush1.msra.mxu0 0.0
  %2411 = vmatprep.subr.mxu0 0.0
  %2412 = vmatpush1.msra.mxu0 0.0
  %2413 = vmatprep.subr.mxu0 0.0
  %2414 = vmatpush1.msra.mxu0 0.0
  %2415 = vmatprep.subr.mxu0 0.0
  %2416 = vmatpush1.msra.mxu0 0.0
  %2417 = vmatprep.subr.mxu0 0.0
  %2418 = vmatpush1.msra.mxu0 0.0
  %2419 = vmatprep.subr.mxu0 0.0
  %2420 = vmatpush1.msra.mxu0 0.0
  %2421 = vmatprep.subr.mxu0 0.0
  %2422 = vmatpush1.msra.mxu0 0.0
  %2423 = vmatprep.subr.mxu0 0.0
  %2424 = vmatpush1.msra.mxu0 0.0
  %2425 = vmatprep.mubr.f32.mxu0 0.0
  %2426 = vmatmul.mubr.f32.gmra.mrb[0].mxu0 %v2335
  %v2427 = vpop.f32.mrb[0].mxu0
  %v2428 = vadd.f32 0.0, %v2427
  %v2429 = vpop.f32.mrb[0].mxu0
  %2430 = vmatprep.mubr.f32.mxu0 0.0
  %2431 = vmatmul.mubr.f32.gmra.mrb[0].mxu0 %v2338
  %v2432 = vpop.f32.mrb[0].mxu0
  %v2433 = vadd.f32 0.0, %v2432
  %v2434 = vpop.f32.mrb[0].mxu0
  %2435 = vmatprep.mubr.f32.mxu0 0.0
  %2436 = vmatmul.mubr.f32.gmra.mrb[0].mxu0 %v2341
  %v2437 = vpop.f32.mrb[0].mxu0
  %v2438 = vadd.f32 0.0, %v2437
  %v2439 = vpop.f32.mrb[0].mxu0
  %2440 = vmatprep.mubr.f32.mxu0 0.0
  %2441 = vmatmul.mubr.f32.gmra.mrb[0].mxu0 %v2344
  %v2442 = vpop.f32.mrb[0].mxu0
  %v2443 = vadd.f32 0.0, %v2442
  %v2444 = vpop.f32.mrb[0].mxu0
  %2445 = vmatprep.mubr.f32.mxu0 0.0
  %2446 = vmatmul.mubr.f32.gmra.mrb[0].mxu0 %v2347
  %v2447 = vpop.f32.mrb[0].mxu0
  %v2448 = vadd.f32 0.0, %v2447
  %v2449 = vpop.f32.mrb[0].mxu0
  %2450 = vmatprep.mubr.f32.mxu0 0.0
  %2451 = vmatmul.mubr.f32.gmra.mrb[0].mxu0 %v2350
  %v2452 = vpop.f32.mrb[0].mxu0
  %v2453 = vadd.f32 0.0, %v2452
  %v2454 = vpop.f32.mrb[0].mxu0
  %2455 = vmatprep.mubr.f32.mxu0 0.0
  %2456 = vmatmul.mubr.f32.gmra.mrb[0].mxu0 %v2353
  %v2457 = vpop.f32.mrb[0].mxu0
  %v2458 = vadd.f32 0.0, %v2457
  %v2459 = vpop.f32.mrb[0].mxu0
  %2460 = vmatprep.mubr.f32.mxu0 0.0
  %2461 = vmatmul.mubr.f32.gmra.mrb[0].mxu0 %v2356
  %v2462 = vpop.f32.mrb[0].mxu0
  %v2463 = vadd.f32 0.0, %v2462
  %v2464 = vpop.f32.mrb[0].mxu0
  %2465 = vmatprep.mubr.f32.mxu0 0.0
  %2466 = vmatmul.mubr.f32.gmra.mrb[0].mxu0 %v2359
  %v2467 = vpop.f32.mrb[0].mxu0
  %v2468 = vadd.f32 0.0, %v2467
  %v2469 = vpop.f32.mrb[0].mxu0
  %2470 = vdwg.mxu0
  %v2471 = vadd.f32 %v2166, %v2428
  %v2472 = vadd.f32 %v2167, %v2433
  %v2473 = vadd.f32 %v2168, %v2438
  %v2474 = vadd.f32 %v2169, %v2443
  %v2475 = vadd.f32 %v2170, %v2448
  %v2476 = vadd.f32 %v2171, %v2453
  %v2477 = vadd.f32 %v2172, %v2458
  %v2478 = vadd.f32 %v2173, %v2463
  %v2479 = vadd.f32 %v2174, %v2468
  %v2480 = vld [vmem:[%s0 + $0x240] sm:$0xff]
  %v2481 = vld [vmem:[%s0 + $0x248] sm:$0xff]
  %v2482 = vld [vmem:[%s0 + $0x250] sm:$0xff]
  %v2483 = vld [vmem:[%s0 + $0x258] sm:$0xff]
  %v2484 = vld [vmem:[%s0 + $0x260] sm:$0xff]
  %v2485 = vld [vmem:[%s0 + $0x268] sm:$0xff]
  %v2486 = vld [vmem:[%s0 + $0x270] sm:$0xff]
  %v2487 = vld [vmem:[%s0 + $0x278] sm:$0xff]
  %v2488 = vld [vmem:[%s0 + $0x280] sm:$0xff]
  %v2490 = vsel %vm61, %v2480, 0
  %v2493 = vsel %vm61, %v2481, 0
  %v2496 = vsel %vm61, %v2482, 0
  %v2499 = vsel %vm61, %v2483, 0
  %v2502 = vsel %vm61, %v2484, 0
  %v2505 = vsel %vm61, %v2485, 0
  %v2508 = vsel %vm61, %v2486, 0
  %v2511 = vsel %vm61, %v2487, 0
  %v2514 = vsel %vm61, %v2488, 0
  %2516 = vmatprep.subr.mxu0 0.0
  %2517 = vmatpush1.msra.mxu0 %v32
  %2518 = vmatprep.subr.mxu0 0.0
  %2519 = vmatpush1.msra.mxu0 %v33
  %2520 = vmatprep.subr.mxu0 0.0
  %2521 = vmatpush1.msra.mxu0 %v34
  %2522 = vmatprep.subr.mxu0 0.0
  %2523 = vmatpush1.msra.mxu0 %v35
  %2524 = vmatprep.subr.mxu0 0.0
  %2525 = vmatpush1.msra.mxu0 %v36
  %2526 = vmatprep.subr.mxu0 0.0
  %2527 = vmatpush1.msra.mxu0 %v37
  %2528 = vmatprep.subr.mxu0 0.0
  %2529 = vmatpush1.msra.mxu0 %v38
  %2530 = vmatprep.subr.mxu0 0.0
  %2531 = vmatpush1.msra.mxu0 %v39
  %2532 = vmatprep.subr.mxu0 0.0
  %2533 = vmatpush1.msra.mxu0 %v40
  %2534 = vmatprep.subr.mxu0 0.0
  %2535 = vmatpush1.msra.mxu0 %v41
  %2536 = vmatprep.subr.mxu0 0.0
  %2537 = vmatpush1.msra.mxu0 %v42
  %2538 = vmatprep.subr.mxu0 0.0
  %2539 = vmatpush1.msra.mxu0 %v43
  %2540 = vmatprep.subr.mxu0 0.0
  %2541 = vmatpush1.msra.mxu0 %v91
  %2542 = vmatprep.subr.mxu0 0.0
  %2543 = vmatpush1.msra.mxu0 0.0
  %2544 = vmatprep.subr.mxu0 0.0
  %2545 = vmatpush1.msra.mxu0 0.0
  %2546 = vmatprep.subr.mxu0 0.0
  %2547 = vmatpush1.msra.mxu0 0.0
  %2548 = vmatprep.subr.mxu0 0.0
  %2549 = vmatpush1.msra.mxu0 0.0
  %2550 = vmatprep.subr.mxu0 0.0
  %2551 = vmatpush1.msra.mxu0 0.0
  %2552 = vmatprep.subr.mxu0 0.0
  %2553 = vmatpush1.msra.mxu0 0.0
  %2554 = vmatprep.subr.mxu0 0.0
  %2555 = vmatpush1.msra.mxu0 0.0
  %2556 = vmatprep.subr.mxu0 0.0
  %2557 = vmatpush1.msra.mxu0 0.0
  %2558 = vmatprep.subr.mxu0 0.0
  %2559 = vmatpush1.msra.mxu0 0.0
  %2560 = vmatprep.subr.mxu0 0.0
  %2561 = vmatpush1.msra.mxu0 0.0
  %2562 = vmatprep.subr.mxu0 0.0
  %2563 = vmatpush1.msra.mxu0 0.0
  %2564 = vmatprep.subr.mxu0 0.0
  %2565 = vmatpush1.msra.mxu0 0.0
  %2566 = vmatprep.subr.mxu0 0.0
  %2567 = vmatpush1.msra.mxu0 0.0
  %2568 = vmatprep.subr.mxu0 0.0
  %2569 = vmatpush1.msra.mxu0 0.0
  %2570 = vmatprep.subr.mxu0 0.0
  %2571 = vmatpush1.msra.mxu0 0.0
  %2572 = vmatprep.subr.mxu0 0.0
  %2573 = vmatpush1.msra.mxu0 0.0
  %2574 = vmatprep.subr.mxu0 0.0
  %2575 = vmatpush1.msra.mxu0 0.0
  %2576 = vmatprep.subr.mxu0 0.0
  %2577 = vmatpush1.msra.mxu0 0.0
  %2578 = vmatprep.subr.mxu0 0.0
  %2579 = vmatpush1.msra.mxu0 0.0
  %2580 = vmatprep.mubr.f32.mxu0 0.0
  %2581 = vmatmul.mubr.f32.gmra.mrb[0].mxu0 %v2490
  %v2582 = vpop.f32.mrb[0].mxu0
  %v2583 = vadd.f32 %v59, %v2582
  %v2584 = vpop.f32.mrb[0].mxu0
  %2585 = vmatprep.mubr.f32.mxu0 0.0
  %2586 = vmatmul.mubr.f32.gmra.mrb[0].mxu0 %v2493
  %v2587 = vpop.f32.mrb[0].mxu0
  %v2588 = vadd.f32 %v59, %v2587
  %v2589 = vpop.f32.mrb[0].mxu0
  %2590 = vmatprep.mubr.f32.mxu0 0.0
  %2591 = vmatmul.mubr.f32.gmra.mrb[0].mxu0 %v2496
  %v2592 = vpop.f32.mrb[0].mxu0
  %v2593 = vadd.f32 %v59, %v2592
  %v2594 = vpop.f32.mrb[0].mxu0
  %2595 = vmatprep.mubr.f32.mxu0 0.0
  %2596 = vmatmul.mubr.f32.gmra.mrb[0].mxu0 %v2499
  %v2597 = vpop.f32.mrb[0].mxu0
  %v2598 = vadd.f32 %v59, %v2597
  %v2599 = vpop.f32.mrb[0].mxu0
  %2600 = vmatprep.mubr.f32.mxu0 0.0
  %2601 = vmatmul.mubr.f32.gmra.mrb[0].mxu0 %v2502
  %v2602 = vpop.f32.mrb[0].mxu0
  %v2603 = vadd.f32 %v59, %v2602
  %v2604 = vpop.f32.mrb[0].mxu0
  %2605 = vmatprep.mubr.f32.mxu0 0.0
  %2606 = vmatmul.mubr.f32.gmra.mrb[0].mxu0 %v2505
  %v2607 = vpop.f32.mrb[0].mxu0
  %v2608 = vadd.f32 %v59, %v2607
  %v2609 = vpop.f32.mrb[0].mxu0
  %2610 = vmatprep.mubr.f32.mxu0 0.0
  %2611 = vmatmul.mubr.f32.gmra.mrb[0].mxu0 %v2508
  %v2612 = vpop.f32.mrb[0].mxu0
  %v2613 = vadd.f32 %v59, %v2612
  %v2614 = vpop.f32.mrb[0].mxu0
  %2615 = vmatprep.mubr.f32.mxu0 0.0
  %2616 = vmatmul.mubr.f32.gmra.mrb[0].mxu0 %v2511
  %v2617 = vpop.f32.mrb[0].mxu0
  %v2618 = vadd.f32 %v59, %v2617
  %v2619 = vpop.f32.mrb[0].mxu0
  %2620 = vmatprep.mubr.f32.mxu0 0.0
  %2621 = vmatmul.mubr.f32.gmra.mrb[0].mxu0 %v2514
  %v2622 = vpop.f32.mrb[0].mxu0
  %v2623 = vadd.f32 %v59, %v2622
  %v2624 = vpop.f32.mrb[0].mxu0
  %2625 = vdwg.mxu0
  %v2626 = vmax.f32 %v2583, 0.0
  %v2627 = vmax.f32 %v2588, 0.0
  %v2628 = vmax.f32 %v2593, 0.0
  %v2629 = vmax.f32 %v2598, 0.0
  %v2630 = vmax.f32 %v2603, 0.0
  %v2631 = vmax.f32 %v2608, 0.0
  %v2632 = vmax.f32 %v2613, 0.0
  %v2633 = vmax.f32 %v2618, 0.0
  %v2634 = vmax.f32 %v2623, 0.0
  %v2635 = vld [vmem:[%s3 + $0x100] sm:$0xff]
  %v2636 = vld [vmem:[%s3 + $0x108] sm:$0xff]
  %v2637 = vld [vmem:[%s3 + $0x110] sm:$0xff]
  %v2638 = vld [vmem:[%s3 + $0x118] sm:$0xff]
  %v2640 = vsel %vm375, %v2626, 0
  %v2643 = vsel %vm375, %v2627, 0
  %v2646 = vsel %vm375, %v2628, 0
  %v2649 = vsel %vm375, %v2629, 0
  %v2652 = vsel %vm375, %v2630, 0
  %v2655 = vsel %vm375, %v2631, 0
  %v2658 = vsel %vm375, %v2632, 0
  %v2661 = vsel %vm375, %v2633, 0
  %v2664 = vsel %vm375, %v2634, 0
  %2666 = vmatprep.subr.mxu0 0.0
  %2667 = vmatpush1.msra.mxu0 %v2635
  %2668 = vmatprep.subr.mxu0 0.0
  %2669 = vmatpush1.msra.mxu0 %v2636
  %2670 = vmatprep.subr.mxu0 0.0
  %2671 = vmatpush1.msra.mxu0 %v2637
  %2672 = vmatprep.subr.mxu0 0.0
  %2673 = vmatpush1.msra.mxu0 %v2638
  %2674 = vmatprep.subr.mxu0 0.0
  %2675 = vmatpush1.msra.mxu0 0.0
  %2676 = vmatprep.subr.mxu0 0.0
  %2677 = vmatpush1.msra.mxu0 0.0
  %2678 = vmatprep.subr.mxu0 0.0
  %2679 = vmatpush1.msra.mxu0 0.0
  %2680 = vmatprep.subr.mxu0 0.0
  %2681 = vmatpush1.msra.mxu0 0.0
  %2682 = vmatprep.subr.mxu0 0.0
  %2683 = vmatpush1.msra.mxu0 0.0
  %2684 = vmatprep.subr.mxu0 0.0
  %2685 = vmatpush1.msra.mxu0 0.0
  %2686 = vmatprep.subr.mxu0 0.0
  %2687 = vmatpush1.msra.mxu0 0.0
  %2688 = vmatprep.subr.mxu0 0.0
  %2689 = vmatpush1.msra.mxu0 0.0
  %2690 = vmatprep.subr.mxu0 0.0
  %2691 = vmatpush1.msra.mxu0 0.0
  %2692 = vmatprep.subr.mxu0 0.0
  %2693 = vmatpush1.msra.mxu0 0.0
  %2694 = vmatprep.subr.mxu0 0.0
  %2695 = vmatpush1.msra.mxu0 0.0
  %2696 = vmatprep.subr.mxu0 0.0
  %2697 = vmatpush1.msra.mxu0 0.0
  %2698 = vmatprep.subr.mxu0 0.0
  %2699 = vmatpush1.msra.mxu0 0.0
  %2700 = vmatprep.subr.mxu0 0.0
  %2701 = vmatpush1.msra.mxu0 0.0
  %2702 = vmatprep.subr.mxu0 0.0
  %2703 = vmatpush1.msra.mxu0 0.0
  %2704 = vmatprep.subr.mxu0 0.0
  %2705 = vmatpush1.msra.mxu0 0.0
  %2706 = vmatprep.subr.mxu0 0.0
  %2707 = vmatpush1.msra.mxu0 0.0
  %2708 = vmatprep.subr.mxu0 0.0
  %2709 = vmatpush1.msra.mxu0 0.0
  %2710 = vmatprep.subr.mxu0 0.0
  %2711 = vmatpush1.msra.mxu0 0.0
  %2712 = vmatprep.subr.mxu0 0.0
  %2713 = vmatpush1.msra.mxu0 0.0
  %2714 = vmatprep.subr.mxu0 0.0
  %2715 = vmatpush1.msra.mxu0 0.0
  %2716 = vmatprep.subr.mxu0 0.0
  %2717 = vmatpush1.msra.mxu0 0.0
  %2718 = vmatprep.subr.mxu0 0.0
  %2719 = vmatpush1.msra.mxu0 0.0
  %2720 = vmatprep.subr.mxu0 0.0
  %2721 = vmatpush1.msra.mxu0 0.0
  %2722 = vmatprep.subr.mxu0 0.0
  %2723 = vmatpush1.msra.mxu0 0.0
  %2724 = vmatprep.subr.mxu0 0.0
  %2725 = vmatpush1.msra.mxu0 0.0
  %2726 = vmatprep.subr.mxu0 0.0
  %2727 = vmatpush1.msra.mxu0 0.0
  %2728 = vmatprep.subr.mxu0 0.0
  %2729 = vmatpush1.msra.mxu0 0.0
  %2730 = vmatprep.mubr.f32.mxu0 0.0
  %2731 = vmatmul.mubr.f32.gmra.mrb[0].mxu0 %v2640
  %v2732 = vpop.f32.mrb[0].mxu0
  %v2733 = vadd.f32 0.0, %v2732
  %v2734 = vpop.f32.mrb[0].mxu0
  %2735 = vmatprep.mubr.f32.mxu0 0.0
  %2736 = vmatmul.mubr.f32.gmra.mrb[0].mxu0 %v2643
  %v2737 = vpop.f32.mrb[0].mxu0
  %v2738 = vadd.f32 0.0, %v2737
  %v2739 = vpop.f32.mrb[0].mxu0
  %2740 = vmatprep.mubr.f32.mxu0 0.0
  %2741 = vmatmul.mubr.f32.gmra.mrb[0].mxu0 %v2646
  %v2742 = vpop.f32.mrb[0].mxu0
  %v2743 = vadd.f32 0.0, %v2742
  %v2744 = vpop.f32.mrb[0].mxu0
  %2745 = vmatprep.mubr.f32.mxu0 0.0
  %2746 = vmatmul.mubr.f32.gmra.mrb[0].mxu0 %v2649
  %v2747 = vpop.f32.mrb[0].mxu0
  %v2748 = vadd.f32 0.0, %v2747
  %v2749 = vpop.f32.mrb[0].mxu0
  %2750 = vmatprep.mubr.f32.mxu0 0.0
  %2751 = vmatmul.mubr.f32.gmra.mrb[0].mxu0 %v2652
  %v2752 = vpop.f32.mrb[0].mxu0
  %v2753 = vadd.f32 0.0, %v2752
  %v2754 = vpop.f32.mrb[0].mxu0
  %2755 = vmatprep.mubr.f32.mxu0 0.0
  %2756 = vmatmul.mubr.f32.gmra.mrb[0].mxu0 %v2655
  %v2757 = vpop.f32.mrb[0].mxu0
  %v2758 = vadd.f32 0.0, %v2757
  %v2759 = vpop.f32.mrb[0].mxu0
  %2760 = vmatprep.mubr.f32.mxu0 0.0
  %2761 = vmatmul.mubr.f32.gmra.mrb[0].mxu0 %v2658
  %v2762 = vpop.f32.mrb[0].mxu0
  %v2763 = vadd.f32 0.0, %v2762
  %v2764 = vpop.f32.mrb[0].mxu0
  %2765 = vmatprep.mubr.f32.mxu0 0.0
  %2766 = vmatmul.mubr.f32.gmra.mrb[0].mxu0 %v2661
  %v2767 = vpop.f32.mrb[0].mxu0
  %v2768 = vadd.f32 0.0, %v2767
  %v2769 = vpop.f32.mrb[0].mxu0
  %2770 = vmatprep.mubr.f32.mxu0 0.0
  %2771 = vmatmul.mubr.f32.gmra.mrb[0].mxu0 %v2664
  %v2772 = vpop.f32.mrb[0].mxu0
  %v2773 = vadd.f32 0.0, %v2772
  %v2774 = vpop.f32.mrb[0].mxu0
  %2775 = vdwg.mxu0
  %v2776 = vadd.f32 %v2471, %v2733
  %v2777 = vadd.f32 %v2472, %v2738
  %v2778 = vadd.f32 %v2473, %v2743
  %v2779 = vadd.f32 %v2474, %v2748
  %v2780 = vadd.f32 %v2475, %v2753
  %v2781 = vadd.f32 %v2476, %v2758
  %v2782 = vadd.f32 %v2477, %v2763
  %v2783 = vadd.f32 %v2478, %v2768
  %v2784 = vadd.f32 %v2479, %v2773
  %v2785 = vld [vmem:[%s0 + $0x288] sm:$0xff]
  %v2786 = vld [vmem:[%s0 + $0x290] sm:$0xff]
  %v2787 = vld [vmem:[%s0 + $0x298] sm:$0xff]
  %v2788 = vld [vmem:[%s0 + $0x2a0] sm:$0xff]
  %v2789 = vld [vmem:[%s0 + $0x2a8] sm:$0xff]
  %v2790 = vld [vmem:[%s0 + $0x2b0] sm:$0xff]
  %v2791 = vld [vmem:[%s0 + $0x2b8] sm:$0xff]
  %v2792 = vld [vmem:[%s0 + $0x2c0] sm:$0xff]
  %v2793 = vld [vmem:[%s0 + $0x2c8] sm:$0xff]
  %v2795 = vsel %vm61, %v2785, 0
  %v2798 = vsel %vm61, %v2786, 0
  %v2801 = vsel %vm61, %v2787, 0
  %v2804 = vsel %vm61, %v2788, 0
  %v2807 = vsel %vm61, %v2789, 0
  %v2810 = vsel %vm61, %v2790, 0
  %v2813 = vsel %vm61, %v2791, 0
  %v2816 = vsel %vm61, %v2792, 0
  %v2819 = vsel %vm61, %v2793, 0
  %2821 = vmatprep.subr.mxu0 0.0
  %2822 = vmatpush1.msra.mxu0 %v32
  %2823 = vmatprep.subr.mxu0 0.0
  %2824 = vmatpush1.msra.mxu0 %v33
  %2825 = vmatprep.subr.mxu0 0.0
  %2826 = vmatpush1.msra.mxu0 %v34
  %2827 = vmatprep.subr.mxu0 0.0
  %2828 = vmatpush1.msra.mxu0 %v35
  %2829 = vmatprep.subr.mxu0 0.0
  %2830 = vmatpush1.msra.mxu0 %v36
  %2831 = vmatprep.subr.mxu0 0.0
  %2832 = vmatpush1.msra.mxu0 %v37
  %2833 = vmatprep.subr.mxu0 0.0
  %2834 = vmatpush1.msra.mxu0 %v38
  %2835 = vmatprep.subr.mxu0 0.0
  %2836 = vmatpush1.msra.mxu0 %v39
  %2837 = vmatprep.subr.mxu0 0.0
  %2838 = vmatpush1.msra.mxu0 %v40
  %2839 = vmatprep.subr.mxu0 0.0
  %2840 = vmatpush1.msra.mxu0 %v41
  %2841 = vmatprep.subr.mxu0 0.0
  %2842 = vmatpush1.msra.mxu0 %v42
  %2843 = vmatprep.subr.mxu0 0.0
  %2844 = vmatpush1.msra.mxu0 %v43
  %2845 = vmatprep.subr.mxu0 0.0
  %2846 = vmatpush1.msra.mxu0 %v91
  %2847 = vmatprep.subr.mxu0 0.0
  %2848 = vmatpush1.msra.mxu0 0.0
  %2849 = vmatprep.subr.mxu0 0.0
  %2850 = vmatpush1.msra.mxu0 0.0
  %2851 = vmatprep.subr.mxu0 0.0
  %2852 = vmatpush1.msra.mxu0 0.0
  %2853 = vmatprep.subr.mxu0 0.0
  %2854 = vmatpush1.msra.mxu0 0.0
  %2855 = vmatprep.subr.mxu0 0.0
  %2856 = vmatpush1.msra.mxu0 0.0
  %2857 = vmatprep.subr.mxu0 0.0
  %2858 = vmatpush1.msra.mxu0 0.0
  %2859 = vmatprep.subr.mxu0 0.0
  %2860 = vmatpush1.msra.mxu0 0.0
  %2861 = vmatprep.subr.mxu0 0.0
  %2862 = vmatpush1.msra.mxu0 0.0
  %2863 = vmatprep.subr.mxu0 0.0
  %2864 = vmatpush1.msra.mxu0 0.0
  %2865 = vmatprep.subr.mxu0 0.0
  %2866 = vmatpush1.msra.mxu0 0.0
  %2867 = vmatprep.subr.mxu0 0.0
  %2868 = vmatpush1.msra.mxu0 0.0
  %2869 = vmatprep.subr.mxu0 0.0
  %2870 = vmatpush1.msra.mxu0 0.0
  %2871 = vmatprep.subr.mxu0 0.0
  %2872 = vmatpush1.msra.mxu0 0.0
  %2873 = vmatprep.subr.mxu0 0.0
  %2874 = vmatpush1.msra.mxu0 0.0
  %2875 = vmatprep.subr.mxu0 0.0
  %2876 = vmatpush1.msra.mxu0 0.0
  %2877 = vmatprep.subr.mxu0 0.0
  %2878 = vmatpush1.msra.mxu0 0.0
  %2879 = vmatprep.subr.mxu0 0.0
  %2880 = vmatpush1.msra.mxu0 0.0
  %2881 = vmatprep.subr.mxu0 0.0
  %2882 = vmatpush1.msra.mxu0 0.0
  %2883 = vmatprep.subr.mxu0 0.0
  %2884 = vmatpush1.msra.mxu0 0.0
  %2885 = vmatprep.mubr.f32.mxu0 0.0
  %2886 = vmatmul.mubr.f32.gmra.mrb[0].mxu0 %v2795
  %v2887 = vpop.f32.mrb[0].mxu0
  %v2888 = vadd.f32 %v59, %v2887
  %v2889 = vpop.f32.mrb[0].mxu0
  %2890 = vmatprep.mubr.f32.mxu0 0.0
  %2891 = vmatmul.mubr.f32.gmra.mrb[0].mxu0 %v2798
  %v2892 = vpop.f32.mrb[0].mxu0
  %v2893 = vadd.f32 %v59, %v2892
  %v2894 = vpop.f32.mrb[0].mxu0
  %2895 = vmatprep.mubr.f32.mxu0 0.0
  %2896 = vmatmul.mubr.f32.gmra.mrb[0].mxu0 %v2801
  %v2897 = vpop.f32.mrb[0].mxu0
  %v2898 = vadd.f32 %v59, %v2897
  %v2899 = vpop.f32.mrb[0].mxu0
  %2900 = vmatprep.mubr.f32.mxu0 0.0
  %2901 = vmatmul.mubr.f32.gmra.mrb[0].mxu0 %v2804
  %v2902 = vpop.f32.mrb[0].mxu0
  %v2903 = vadd.f32 %v59, %v2902
  %v2904 = vpop.f32.mrb[0].mxu0
  %2905 = vmatprep.mubr.f32.mxu0 0.0
  %2906 = vmatmul.mubr.f32.gmra.mrb[0].mxu0 %v2807
  %v2907 = vpop.f32.mrb[0].mxu0
  %v2908 = vadd.f32 %v59, %v2907
  %v2909 = vpop.f32.mrb[0].mxu0
  %2910 = vmatprep.mubr.f32.mxu0 0.0
  %2911 = vmatmul.mubr.f32.gmra.mrb[0].mxu0 %v2810
  %v2912 = vpop.f32.mrb[0].mxu0
  %v2913 = vadd.f32 %v59, %v2912
  %v2914 = vpop.f32.mrb[0].mxu0
  %2915 = vmatprep.mubr.f32.mxu0 0.0
  %2916 = vmatmul.mubr.f32.gmra.mrb[0].mxu0 %v2813
  %v2917 = vpop.f32.mrb[0].mxu0
  %v2918 = vadd.f32 %v59, %v2917
  %v2919 = vpop.f32.mrb[0].mxu0
  %2920 = vmatprep.mubr.f32.mxu0 0.0
  %2921 = vmatmul.mubr.f32.gmra.mrb[0].mxu0 %v2816
  %v2922 = vpop.f32.mrb[0].mxu0
  %v2923 = vadd.f32 %v59, %v2922
  %v2924 = vpop.f32.mrb[0].mxu0
  %2925 = vmatprep.mubr.f32.mxu0 0.0
  %2926 = vmatmul.mubr.f32.gmra.mrb[0].mxu0 %v2819
  %v2927 = vpop.f32.mrb[0].mxu0
  %v2928 = vadd.f32 %v59, %v2927
  %v2929 = vpop.f32.mrb[0].mxu0
  %2930 = vdwg.mxu0
  %v2931 = vmax.f32 %v2888, 0.0
  %v2932 = vmax.f32 %v2893, 0.0
  %v2933 = vmax.f32 %v2898, 0.0
  %v2934 = vmax.f32 %v2903, 0.0
  %v2935 = vmax.f32 %v2908, 0.0
  %v2936 = vmax.f32 %v2913, 0.0
  %v2937 = vmax.f32 %v2918, 0.0
  %v2938 = vmax.f32 %v2923, 0.0
  %v2939 = vmax.f32 %v2928, 0.0
  %v2940 = vld [vmem:[%s3 + $0x120] sm:$0xff]
  %v2941 = vld [vmem:[%s3 + $0x128] sm:$0xff]
  %v2942 = vld [vmem:[%s3 + $0x130] sm:$0xff]
  %v2943 = vld [vmem:[%s3 + $0x138] sm:$0xff]
  %v2945 = vsel %vm375, %v2931, 0
  %v2948 = vsel %vm375, %v2932, 0
  %v2951 = vsel %vm375, %v2933, 0
  %v2954 = vsel %vm375, %v2934, 0
  %v2957 = vsel %vm375, %v2935, 0
  %v2960 = vsel %vm375, %v2936, 0
  %v2963 = vsel %vm375, %v2937, 0
  %v2966 = vsel %vm375, %v2938, 0
  %v2969 = vsel %vm375, %v2939, 0
  %2971 = vmatprep.subr.mxu0 0.0
  %2972 = vmatpush1.msra.mxu0 %v2940
  %2973 = vmatprep.subr.mxu0 0.0
  %2974 = vmatpush1.msra.mxu0 %v2941
  %2975 = vmatprep.subr.mxu0 0.0
  %2976 = vmatpush1.msra.mxu0 %v2942
  %2977 = vmatprep.subr.mxu0 0.0
  %2978 = vmatpush1.msra.mxu0 %v2943
  %2979 = vmatprep.subr.mxu0 0.0
  %2980 = vmatpush1.msra.mxu0 0.0
  %2981 = vmatprep.subr.mxu0 0.0
  %2982 = vmatpush1.msra.mxu0 0.0
  %2983 = vmatprep.subr.mxu0 0.0
  %2984 = vmatpush1.msra.mxu0 0.0
  %2985 = vmatprep.subr.mxu0 0.0
  %2986 = vmatpush1.msra.mxu0 0.0
  %2987 = vmatprep.subr.mxu0 0.0
  %2988 = vmatpush1.msra.mxu0 0.0
  %2989 = vmatprep.subr.mxu0 0.0
  %2990 = vmatpush1.msra.mxu0 0.0
  %2991 = vmatprep.subr.mxu0 0.0
  %2992 = vmatpush1.msra.mxu0 0.0
  %2993 = vmatprep.subr.mxu0 0.0
  %2994 = vmatpush1.msra.mxu0 0.0
  %2995 = vmatprep.subr.mxu0 0.0
  %2996 = vmatpush1.msra.mxu0 0.0
  %2997 = vmatprep.subr.mxu0 0.0
  %2998 = vmatpush1.msra.mxu0 0.0
  %2999 = vmatprep.subr.mxu0 0.0
  %3000 = vmatpush1.msra.mxu0 0.0
  %3001 = vmatprep.subr.mxu0 0.0
  %3002 = vmatpush1.msra.mxu0 0.0
  %3003 = vmatprep.subr.mxu0 0.0
  %3004 = vmatpush1.msra.mxu0 0.0
  %3005 = vmatprep.subr.mxu0 0.0
  %3006 = vmatpush1.msra.mxu0 0.0
  %3007 = vmatprep.subr.mxu0 0.0
  %3008 = vmatpush1.msra.mxu0 0.0
  %3009 = vmatprep.subr.mxu0 0.0
  %3010 = vmatpush1.msra.mxu0 0.0
  %3011 = vmatprep.subr.mxu0 0.0
  %3012 = vmatpush1.msra.mxu0 0.0
  %3013 = vmatprep.subr.mxu0 0.0
  %3014 = vmatpush1.msra.mxu0 0.0
  %3015 = vmatprep.subr.mxu0 0.0
  %3016 = vmatpush1.msra.mxu0 0.0
  %3017 = vmatprep.subr.mxu0 0.0
  %3018 = vmatpush1.msra.mxu0 0.0
  %3019 = vmatprep.subr.mxu0 0.0
  %3020 = vmatpush1.msra.mxu0 0.0
  %3021 = vmatprep.subr.mxu0 0.0
  %3022 = vmatpush1.msra.mxu0 0.0
  %3023 = vmatprep.subr.mxu0 0.0
  %3024 = vmatpush1.msra.mxu0 0.0
  %3025 = vmatprep.subr.mxu0 0.0
  %3026 = vmatpush1.msra.mxu0 0.0
  %3027 = vmatprep.subr.mxu0 0.0
  %3028 = vmatpush1.msra.mxu0 0.0
  %3029 = vmatprep.subr.mxu0 0.0
  %3030 = vmatpush1.msra.mxu0 0.0
  %3031 = vmatprep.subr.mxu0 0.0
  %3032 = vmatpush1.msra.mxu0 0.0
  %3033 = vmatprep.subr.mxu0 0.0
  %3034 = vmatpush1.msra.mxu0 0.0
  %3035 = vmatprep.mubr.f32.mxu0 0.0
  %3036 = vmatmul.mubr.f32.gmra.mrb[0].mxu0 %v2945
  %v3037 = vpop.f32.mrb[0].mxu0
  %v3038 = vadd.f32 0.0, %v3037
  %v3039 = vpop.f32.mrb[0].mxu0
  %3040 = vmatprep.mubr.f32.mxu0 0.0
  %3041 = vmatmul.mubr.f32.gmra.mrb[0].mxu0 %v2948
  %v3042 = vpop.f32.mrb[0].mxu0
  %v3043 = vadd.f32 0.0, %v3042
  %v3044 = vpop.f32.mrb[0].mxu0
  %3045 = vmatprep.mubr.f32.mxu0 0.0
  %3046 = vmatmul.mubr.f32.gmra.mrb[0].mxu0 %v2951
  %v3047 = vpop.f32.mrb[0].mxu0
  %v3048 = vadd.f32 0.0, %v3047
  %v3049 = vpop.f32.mrb[0].mxu0
  %3050 = vmatprep.mubr.f32.mxu0 0.0
  %3051 = vmatmul.mubr.f32.gmra.mrb[0].mxu0 %v2954
  %v3052 = vpop.f32.mrb[0].mxu0
  %v3053 = vadd.f32 0.0, %v3052
  %v3054 = vpop.f32.mrb[0].mxu0
  %3055 = vmatprep.mubr.f32.mxu0 0.0
  %3056 = vmatmul.mubr.f32.gmra.mrb[0].mxu0 %v2957
  %v3057 = vpop.f32.mrb[0].mxu0
  %v3058 = vadd.f32 0.0, %v3057
  %v3059 = vpop.f32.mrb[0].mxu0
  %3060 = vmatprep.mubr.f32.mxu0 0.0
  %3061 = vmatmul.mubr.f32.gmra.mrb[0].mxu0 %v2960
  %v3062 = vpop.f32.mrb[0].mxu0
  %v3063 = vadd.f32 0.0, %v3062
  %v3064 = vpop.f32.mrb[0].mxu0
  %3065 = vmatprep.mubr.f32.mxu0 0.0
  %3066 = vmatmul.mubr.f32.gmra.mrb[0].mxu0 %v2963
  %v3067 = vpop.f32.mrb[0].mxu0
  %v3068 = vadd.f32 0.0, %v3067
  %v3069 = vpop.f32.mrb[0].mxu0
  %3070 = vmatprep.mubr.f32.mxu0 0.0
  %3071 = vmatmul.mubr.f32.gmra.mrb[0].mxu0 %v2966
  %v3072 = vpop.f32.mrb[0].mxu0
  %v3073 = vadd.f32 0.0, %v3072
  %v3074 = vpop.f32.mrb[0].mxu0
  %3075 = vmatprep.mubr.f32.mxu0 0.0
  %3076 = vmatmul.mubr.f32.gmra.mrb[0].mxu0 %v2969
  %v3077 = vpop.f32.mrb[0].mxu0
  %v3078 = vadd.f32 0.0, %v3077
  %v3079 = vpop.f32.mrb[0].mxu0
  %3080 = vdwg.mxu0
  %v3081 = vadd.f32 %v2776, %v3038
  %v3082 = vadd.f32 %v2777, %v3043
  %v3083 = vadd.f32 %v2778, %v3048
  %v3084 = vadd.f32 %v2779, %v3053
  %v3085 = vadd.f32 %v2780, %v3058
  %v3086 = vadd.f32 %v2781, %v3063
  %v3087 = vadd.f32 %v2782, %v3068
  %v3088 = vadd.f32 %v2783, %v3073
  %v3089 = vadd.f32 %v2784, %v3078
  %v3090 = vld [vmem:[%s0 + $0x2d0] sm:$0xff]
  %v3091 = vld [vmem:[%s0 + $0x2d8] sm:$0xff]
  %v3092 = vld [vmem:[%s0 + $0x2e0] sm:$0xff]
  %v3093 = vld [vmem:[%s0 + $0x2e8] sm:$0xff]
  %v3094 = vld [vmem:[%s0 + $0x2f0] sm:$0xff]
  %v3095 = vld [vmem:[%s0 + $0x2f8] sm:$0xff]
  %v3096 = vld [vmem:[%s0 + $0x300] sm:$0xff]
  %v3097 = vld [vmem:[%s0 + $0x308] sm:$0xff]
  %v3098 = vld [vmem:[%s0 + $0x310] sm:$0xff]
  %v3100 = vsel %vm61, %v3090, 0
  %v3103 = vsel %vm61, %v3091, 0
  %v3106 = vsel %vm61, %v3092, 0
  %v3109 = vsel %vm61, %v3093, 0
  %v3112 = vsel %vm61, %v3094, 0
  %v3115 = vsel %vm61, %v3095, 0
  %v3118 = vsel %vm61, %v3096, 0
  %v3121 = vsel %vm61, %v3097, 0
  %v3124 = vsel %vm61, %v3098, 0
  %3126 = vmatprep.subr.mxu0 0.0
  %3127 = vmatpush1.msra.mxu0 %v32
  %3128 = vmatprep.subr.mxu0 0.0
  %3129 = vmatpush1.msra.mxu0 %v33
  %3130 = vmatprep.subr.mxu0 0.0
  %3131 = vmatpush1.msra.mxu0 %v34
  %3132 = vmatprep.subr.mxu0 0.0
  %3133 = vmatpush1.msra.mxu0 %v35
  %3134 = vmatprep.subr.mxu0 0.0
  %3135 = vmatpush1.msra.mxu0 %v36
  %3136 = vmatprep.subr.mxu0 0.0
  %3137 = vmatpush1.msra.mxu0 %v37
  %3138 = vmatprep.subr.mxu0 0.0
  %3139 = vmatpush1.msra.mxu0 %v38
  %3140 = vmatprep.subr.mxu0 0.0
  %3141 = vmatpush1.msra.mxu0 %v39
  %3142 = vmatprep.subr.mxu0 0.0
  %3143 = vmatpush1.msra.mxu0 %v40
  %3144 = vmatprep.subr.mxu0 0.0
  %3145 = vmatpush1.msra.mxu0 %v41
  %3146 = vmatprep.subr.mxu0 0.0
  %3147 = vmatpush1.msra.mxu0 %v42
  %3148 = vmatprep.subr.mxu0 0.0
  %3149 = vmatpush1.msra.mxu0 %v43
  %3150 = vmatprep.subr.mxu0 0.0
  %3151 = vmatpush1.msra.mxu0 %v91
  %3152 = vmatprep.subr.mxu0 0.0
  %3153 = vmatpush1.msra.mxu0 0.0
  %3154 = vmatprep.subr.mxu0 0.0
  %3155 = vmatpush1.msra.mxu0 0.0
  %3156 = vmatprep.subr.mxu0 0.0
  %3157 = vmatpush1.msra.mxu0 0.0
  %3158 = vmatprep.subr.mxu0 0.0
  %3159 = vmatpush1.msra.mxu0 0.0
  %3160 = vmatprep.subr.mxu0 0.0
  %3161 = vmatpush1.msra.mxu0 0.0
  %3162 = vmatprep.subr.mxu0 0.0
  %3163 = vmatpush1.msra.mxu0 0.0
  %3164 = vmatprep.subr.mxu0 0.0
  %3165 = vmatpush1.msra.mxu0 0.0
  %3166 = vmatprep.subr.mxu0 0.0
  %3167 = vmatpush1.msra.mxu0 0.0
  %3168 = vmatprep.subr.mxu0 0.0
  %3169 = vmatpush1.msra.mxu0 0.0
  %3170 = vmatprep.subr.mxu0 0.0
  %3171 = vmatpush1.msra.mxu0 0.0
  %3172 = vmatprep.subr.mxu0 0.0
  %3173 = vmatpush1.msra.mxu0 0.0
  %3174 = vmatprep.subr.mxu0 0.0
  %3175 = vmatpush1.msra.mxu0 0.0
  %3176 = vmatprep.subr.mxu0 0.0
  %3177 = vmatpush1.msra.mxu0 0.0
  %3178 = vmatprep.subr.mxu0 0.0
  %3179 = vmatpush1.msra.mxu0 0.0
  %3180 = vmatprep.subr.mxu0 0.0
  %3181 = vmatpush1.msra.mxu0 0.0
  %3182 = vmatprep.subr.mxu0 0.0
  %3183 = vmatpush1.msra.mxu0 0.0
  %3184 = vmatprep.subr.mxu0 0.0
  %3185 = vmatpush1.msra.mxu0 0.0
  %3186 = vmatprep.subr.mxu0 0.0
  %3187 = vmatpush1.msra.mxu0 0.0
  %3188 = vmatprep.subr.mxu0 0.0
  %3189 = vmatpush1.msra.mxu0 0.0
  %3190 = vmatprep.mubr.f32.mxu0 0.0
  %3191 = vmatmul.mubr.f32.gmra.mrb[0].mxu0 %v3100
  %v3192 = vpop.f32.mrb[0].mxu0
  %v3193 = vadd.f32 %v59, %v3192
  %v3194 = vpop.f32.mrb[0].mxu0
  %3195 = vmatprep.mubr.f32.mxu0 0.0
  %3196 = vmatmul.mubr.f32.gmra.mrb[0].mxu0 %v3103
  %v3197 = vpop.f32.mrb[0].mxu0
  %v3198 = vadd.f32 %v59, %v3197
  %v3199 = vpop.f32.mrb[0].mxu0
  %3200 = vmatprep.mubr.f32.mxu0 0.0
  %3201 = vmatmul.mubr.f32.gmra.mrb[0].mxu0 %v3106
  %v3202 = vpop.f32.mrb[0].mxu0
  %v3203 = vadd.f32 %v59, %v3202
  %v3204 = vpop.f32.mrb[0].mxu0
  %3205 = vmatprep.mubr.f32.mxu0 0.0
  %3206 = vmatmul.mubr.f32.gmra.mrb[0].mxu0 %v3109
  %v3207 = vpop.f32.mrb[0].mxu0
  %v3208 = vadd.f32 %v59, %v3207
  %v3209 = vpop.f32.mrb[0].mxu0
  %3210 = vmatprep.mubr.f32.mxu0 0.0
  %3211 = vmatmul.mubr.f32.gmra.mrb[0].mxu0 %v3112
  %v3212 = vpop.f32.mrb[0].mxu0
  %v3213 = vadd.f32 %v59, %v3212
  %v3214 = vpop.f32.mrb[0].mxu0
  %3215 = vmatprep.mubr.f32.mxu0 0.0
  %3216 = vmatmul.mubr.f32.gmra.mrb[0].mxu0 %v3115
  %v3217 = vpop.f32.mrb[0].mxu0
  %v3218 = vadd.f32 %v59, %v3217
  %v3219 = vpop.f32.mrb[0].mxu0
  %3220 = vmatprep.mubr.f32.mxu0 0.0
  %3221 = vmatmul.mubr.f32.gmra.mrb[0].mxu0 %v3118
  %v3222 = vpop.f32.mrb[0].mxu0
  %v3223 = vadd.f32 %v59, %v3222
  %v3224 = vpop.f32.mrb[0].mxu0
  %3225 = vmatprep.mubr.f32.mxu0 0.0
  %3226 = vmatmul.mubr.f32.gmra.mrb[0].mxu0 %v3121
  %v3227 = vpop.f32.mrb[0].mxu0
  %v3228 = vadd.f32 %v59, %v3227
  %v3229 = vpop.f32.mrb[0].mxu0
  %3230 = vmatprep.mubr.f32.mxu0 0.0
  %3231 = vmatmul.mubr.f32.gmra.mrb[0].mxu0 %v3124
  %v3232 = vpop.f32.mrb[0].mxu0
  %v3233 = vadd.f32 %v59, %v3232
  %v3234 = vpop.f32.mrb[0].mxu0
  %3235 = vdwg.mxu0
  %v3236 = vmax.f32 %v3193, 0.0
  %v3237 = vmax.f32 %v3198, 0.0
  %v3238 = vmax.f32 %v3203, 0.0
  %v3239 = vmax.f32 %v3208, 0.0
  %v3240 = vmax.f32 %v3213, 0.0
  %v3241 = vmax.f32 %v3218, 0.0
  %v3242 = vmax.f32 %v3223, 0.0
  %v3243 = vmax.f32 %v3228, 0.0
  %v3244 = vmax.f32 %v3233, 0.0
  %v3245 = vld [vmem:[%s3 + $0x140] sm:$0xff]
  %v3246 = vld [vmem:[%s3 + $0x148] sm:$0xff]
  %v3247 = vld [vmem:[%s3 + $0x150] sm:$0xff]
  %v3248 = vld [vmem:[%s3 + $0x158] sm:$0xff]
  %v3250 = vsel %vm375, %v3236, 0
  %v3253 = vsel %vm375, %v3237, 0
  %v3256 = vsel %vm375, %v3238, 0
  %v3259 = vsel %vm375, %v3239, 0
  %v3262 = vsel %vm375, %v3240, 0
  %v3265 = vsel %vm375, %v3241, 0
  %v3268 = vsel %vm375, %v3242, 0
  %v3271 = vsel %vm375, %v3243, 0
  %v3274 = vsel %vm375, %v3244, 0
  %3276 = vmatprep.subr.mxu0 0.0
  %3277 = vmatpush1.msra.mxu0 %v3245
  %3278 = vmatprep.subr.mxu0 0.0
  %3279 = vmatpush1.msra.mxu0 %v3246
  %3280 = vmatprep.subr.mxu0 0.0
  %3281 = vmatpush1.msra.mxu0 %v3247
  %3282 = vmatprep.subr.mxu0 0.0
  %3283 = vmatpush1.msra.mxu0 %v3248
  %3284 = vmatprep.subr.mxu0 0.0
  %3285 = vmatpush1.msra.mxu0 0.0
  %3286 = vmatprep.subr.mxu0 0.0
  %3287 = vmatpush1.msra.mxu0 0.0
  %3288 = vmatprep.subr.mxu0 0.0
  %3289 = vmatpush1.msra.mxu0 0.0
  %3290 = vmatprep.subr.mxu0 0.0
  %3291 = vmatpush1.msra.mxu0 0.0
  %3292 = vmatprep.subr.mxu0 0.0
  %3293 = vmatpush1.msra.mxu0 0.0
  %3294 = vmatprep.subr.mxu0 0.0
  %3295 = vmatpush1.msra.mxu0 0.0
  %3296 = vmatprep.subr.mxu0 0.0
  %3297 = vmatpush1.msra.mxu0 0.0
  %3298 = vmatprep.subr.mxu0 0.0
  %3299 = vmatpush1.msra.mxu0 0.0
  %3300 = vmatprep.subr.mxu0 0.0
  %3301 = vmatpush1.msra.mxu0 0.0
  %3302 = vmatprep.subr.mxu0 0.0
  %3303 = vmatpush1.msra.mxu0 0.0
  %3304 = vmatprep.subr.mxu0 0.0
  %3305 = vmatpush1.msra.mxu0 0.0
  %3306 = vmatprep.subr.mxu0 0.0
  %3307 = vmatpush1.msra.mxu0 0.0
  %3308 = vmatprep.subr.mxu0 0.0
  %3309 = vmatpush1.msra.mxu0 0.0
  %3310 = vmatprep.subr.mxu0 0.0
  %3311 = vmatpush1.msra.mxu0 0.0
  %3312 = vmatprep.subr.mxu0 0.0
  %3313 = vmatpush1.msra.mxu0 0.0
  %3314 = vmatprep.subr.mxu0 0.0
  %3315 = vmatpush1.msra.mxu0 0.0
  %3316 = vmatprep.subr.mxu0 0.0
  %3317 = vmatpush1.msra.mxu0 0.0
  %3318 = vmatprep.subr.mxu0 0.0
  %3319 = vmatpush1.msra.mxu0 0.0
  %3320 = vmatprep.subr.mxu0 0.0
  %3321 = vmatpush1.msra.mxu0 0.0
  %3322 = vmatprep.subr.mxu0 0.0
  %3323 = vmatpush1.msra.mxu0 0.0
  %3324 = vmatprep.subr.mxu0 0.0
  %3325 = vmatpush1.msra.mxu0 0.0
  %3326 = vmatprep.subr.mxu0 0.0
  %3327 = vmatpush1.msra.mxu0 0.0
  %3328 = vmatprep.subr.mxu0 0.0
  %3329 = vmatpush1.msra.mxu0 0.0
  %3330 = vmatprep.subr.mxu0 0.0
  %3331 = vmatpush1.msra.mxu0 0.0
  %3332 = vmatprep.subr.mxu0 0.0
  %3333 = vmatpush1.msra.mxu0 0.0
  %3334 = vmatprep.subr.mxu0 0.0
  %3335 = vmatpush1.msra.mxu0 0.0
  %3336 = vmatprep.subr.mxu0 0.0
  %3337 = vmatpush1.msra.mxu0 0.0
  %3338 = vmatprep.subr.mxu0 0.0
  %3339 = vmatpush1.msra.mxu0 0.0
  %3340 = vmatprep.mubr.f32.mxu0 0.0
  %3341 = vmatmul.mubr.f32.gmra.mrb[0].mxu0 %v3250
  %v3342 = vpop.f32.mrb[0].mxu0
  %v3343 = vadd.f32 0.0, %v3342
  %v3344 = vpop.f32.mrb[0].mxu0
  %3345 = vmatprep.mubr.f32.mxu0 0.0
  %3346 = vmatmul.mubr.f32.gmra.mrb[0].mxu0 %v3253
  %v3347 = vpop.f32.mrb[0].mxu0
  %v3348 = vadd.f32 0.0, %v3347
  %v3349 = vpop.f32.mrb[0].mxu0
  %3350 = vmatprep.mubr.f32.mxu0 0.0
  %3351 = vmatmul.mubr.f32.gmra.mrb[0].mxu0 %v3256
  %v3352 = vpop.f32.mrb[0].mxu0
  %v3353 = vadd.f32 0.0, %v3352
  %v3354 = vpop.f32.mrb[0].mxu0
  %3355 = vmatprep.mubr.f32.mxu0 0.0
  %3356 = vmatmul.mubr.f32.gmra.mrb[0].mxu0 %v3259
  %v3357 = vpop.f32.mrb[0].mxu0
  %v3358 = vadd.f32 0.0, %v3357
  %v3359 = vpop.f32.mrb[0].mxu0
  %3360 = vmatprep.mubr.f32.mxu0 0.0
  %3361 = vmatmul.mubr.f32.gmra.mrb[0].mxu0 %v3262
  %v3362 = vpop.f32.mrb[0].mxu0
  %v3363 = vadd.f32 0.0, %v3362
  %v3364 = vpop.f32.mrb[0].mxu0
  %3365 = vmatprep.mubr.f32.mxu0 0.0
  %3366 = vmatmul.mubr.f32.gmra.mrb[0].mxu0 %v3265
  %v3367 = vpop.f32.mrb[0].mxu0
  %v3368 = vadd.f32 0.0, %v3367
  %v3369 = vpop.f32.mrb[0].mxu0
  %3370 = vmatprep.mubr.f32.mxu0 0.0
  %3371 = vmatmul.mubr.f32.gmra.mrb[0].mxu0 %v3268
  %v3372 = vpop.f32.mrb[0].mxu0
  %v3373 = vadd.f32 0.0, %v3372
  %v3374 = vpop.f32.mrb[0].mxu0
  %3375 = vmatprep.mubr.f32.mxu0 0.0
  %3376 = vmatmul.mubr.f32.gmra.mrb[0].mxu0 %v3271
  %v3377 = vpop.f32.mrb[0].mxu0
  %v3378 = vadd.f32 0.0, %v3377
  %v3379 = vpop.f32.mrb[0].mxu0
  %3380 = vmatprep.mubr.f32.mxu0 0.0
  %3381 = vmatmul.mubr.f32.gmra.mrb[0].mxu0 %v3274
  %v3382 = vpop.f32.mrb[0].mxu0
  %v3383 = vadd.f32 0.0, %v3382
  %v3384 = vpop.f32.mrb[0].mxu0
  %3385 = vdwg.mxu0
  %v3386 = vadd.f32 %v3081, %v3343
  %v3387 = vadd.f32 %v3082, %v3348
  %v3388 = vadd.f32 %v3083, %v3353
  %v3389 = vadd.f32 %v3084, %v3358
  %v3390 = vadd.f32 %v3085, %v3363
  %v3391 = vadd.f32 %v3086, %v3368
  %v3392 = vadd.f32 %v3087, %v3373
  %v3393 = vadd.f32 %v3088, %v3378
  %v3394 = vadd.f32 %v3089, %v3383
  %v3395 = vld [vmem:[%s0 + $0x318] sm:$0xff]
  %v3396 = vld [vmem:[%s0 + $0x320] sm:$0xff]
  %v3397 = vld [vmem:[%s0 + $0x328] sm:$0xff]
  %v3398 = vld [vmem:[%s0 + $0x330] sm:$0xff]
  %v3399 = vld [vmem:[%s0 + $0x338] sm:$0xff]
  %v3400 = vld [vmem:[%s0 + $0x340] sm:$0xff]
  %v3401 = vld [vmem:[%s0 + $0x348] sm:$0xff]
  %v3402 = vld [vmem:[%s0 + $0x350] sm:$0xff]
  %v3403 = vld [vmem:[%s0 + $0x358] sm:$0xff]
  %v3405 = vsel %vm61, %v3395, 0
  %v3408 = vsel %vm61, %v3396, 0
  %v3411 = vsel %vm61, %v3397, 0
  %v3414 = vsel %vm61, %v3398, 0
  %v3417 = vsel %vm61, %v3399, 0
  %v3420 = vsel %vm61, %v3400, 0
  %v3423 = vsel %vm61, %v3401, 0
  %v3426 = vsel %vm61, %v3402, 0
  %v3429 = vsel %vm61, %v3403, 0
  %3431 = vmatprep.subr.mxu0 0.0
  %3432 = vmatpush1.msra.mxu0 %v32
  %3433 = vmatprep.subr.mxu0 0.0
  %3434 = vmatpush1.msra.mxu0 %v33
  %3435 = vmatprep.subr.mxu0 0.0
  %3436 = vmatpush1.msra.mxu0 %v34
  %3437 = vmatprep.subr.mxu0 0.0
  %3438 = vmatpush1.msra.mxu0 %v35
  %3439 = vmatprep.subr.mxu0 0.0
  %3440 = vmatpush1.msra.mxu0 %v36
  %3441 = vmatprep.subr.mxu0 0.0
  %3442 = vmatpush1.msra.mxu0 %v37
  %3443 = vmatprep.subr.mxu0 0.0
  %3444 = vmatpush1.msra.mxu0 %v38
  %3445 = vmatprep.subr.mxu0 0.0
  %3446 = vmatpush1.msra.mxu0 %v39
  %3447 = vmatprep.subr.mxu0 0.0
  %3448 = vmatpush1.msra.mxu0 %v40
  %3449 = vmatprep.subr.mxu0 0.0
  %3450 = vmatpush1.msra.mxu0 %v41
  %3451 = vmatprep.subr.mxu0 0.0
  %3452 = vmatpush1.msra.mxu0 %v42
  %3453 = vmatprep.subr.mxu0 0.0
  %3454 = vmatpush1.msra.mxu0 %v43
  %3455 = vmatprep.subr.mxu0 0.0
  %3456 = vmatpush1.msra.mxu0 %v91
  %3457 = vmatprep.subr.mxu0 0.0
  %3458 = vmatpush1.msra.mxu0 0.0
  %3459 = vmatprep.subr.mxu0 0.0
  %3460 = vmatpush1.msra.mxu0 0.0
  %3461 = vmatprep.subr.mxu0 0.0
  %3462 = vmatpush1.msra.mxu0 0.0
  %3463 = vmatprep.subr.mxu0 0.0
  %3464 = vmatpush1.msra.mxu0 0.0
  %3465 = vmatprep.subr.mxu0 0.0
  %3466 = vmatpush1.msra.mxu0 0.0
  %3467 = vmatprep.subr.mxu0 0.0
  %3468 = vmatpush1.msra.mxu0 0.0
  %3469 = vmatprep.subr.mxu0 0.0
  %3470 = vmatpush1.msra.mxu0 0.0
  %3471 = vmatprep.subr.mxu0 0.0
  %3472 = vmatpush1.msra.mxu0 0.0
  %3473 = vmatprep.subr.mxu0 0.0
  %3474 = vmatpush1.msra.mxu0 0.0
  %3475 = vmatprep.subr.mxu0 0.0
  %3476 = vmatpush1.msra.mxu0 0.0
  %3477 = vmatprep.subr.mxu0 0.0
  %3478 = vmatpush1.msra.mxu0 0.0
  %3479 = vmatprep.subr.mxu0 0.0
  %3480 = vmatpush1.msra.mxu0 0.0
  %3481 = vmatprep.subr.mxu0 0.0
  %3482 = vmatpush1.msra.mxu0 0.0
  %3483 = vmatprep.subr.mxu0 0.0
  %3484 = vmatpush1.msra.mxu0 0.0
  %3485 = vmatprep.subr.mxu0 0.0
  %3486 = vmatpush1.msra.mxu0 0.0
  %3487 = vmatprep.subr.mxu0 0.0
  %3488 = vmatpush1.msra.mxu0 0.0
  %3489 = vmatprep.subr.mxu0 0.0
  %3490 = vmatpush1.msra.mxu0 0.0
  %3491 = vmatprep.subr.mxu0 0.0
  %3492 = vmatpush1.msra.mxu0 0.0
  %3493 = vmatprep.subr.mxu0 0.0
  %3494 = vmatpush1.msra.mxu0 0.0
  %3495 = vmatprep.mubr.f32.mxu0 0.0
  %3496 = vmatmul.mubr.f32.gmra.mrb[0].mxu0 %v3405
  %v3497 = vpop.f32.mrb[0].mxu0
  %v3498 = vadd.f32 %v59, %v3497
  %v3499 = vpop.f32.mrb[0].mxu0
  %3500 = vmatprep.mubr.f32.mxu0 0.0
  %3501 = vmatmul.mubr.f32.gmra.mrb[0].mxu0 %v3408
  %v3502 = vpop.f32.mrb[0].mxu0
  %v3503 = vadd.f32 %v59, %v3502
  %v3504 = vpop.f32.mrb[0].mxu0
  %3505 = vmatprep.mubr.f32.mxu0 0.0
  %3506 = vmatmul.mubr.f32.gmra.mrb[0].mxu0 %v3411
  %v3507 = vpop.f32.mrb[0].mxu0
  %v3508 = vadd.f32 %v59, %v3507
  %v3509 = vpop.f32.mrb[0].mxu0
  %3510 = vmatprep.mubr.f32.mxu0 0.0
  %3511 = vmatmul.mubr.f32.gmra.mrb[0].mxu0 %v3414
  %v3512 = vpop.f32.mrb[0].mxu0
  %v3513 = vadd.f32 %v59, %v3512
  %v3514 = vpop.f32.mrb[0].mxu0
  %3515 = vmatprep.mubr.f32.mxu0 0.0
  %3516 = vmatmul.mubr.f32.gmra.mrb[0].mxu0 %v3417
  %v3517 = vpop.f32.mrb[0].mxu0
  %v3518 = vadd.f32 %v59, %v3517
  %v3519 = vpop.f32.mrb[0].mxu0
  %3520 = vmatprep.mubr.f32.mxu0 0.0
  %3521 = vmatmul.mubr.f32.gmra.mrb[0].mxu0 %v3420
  %v3522 = vpop.f32.mrb[0].mxu0
  %v3523 = vadd.f32 %v59, %v3522
  %v3524 = vpop.f32.mrb[0].mxu0
  %3525 = vmatprep.mubr.f32.mxu0 0.0
  %3526 = vmatmul.mubr.f32.gmra.mrb[0].mxu0 %v3423
  %v3527 = vpop.f32.mrb[0].mxu0
  %v3528 = vadd.f32 %v59, %v3527
  %v3529 = vpop.f32.mrb[0].mxu0
  %3530 = vmatprep.mubr.f32.mxu0 0.0
  %3531 = vmatmul.mubr.f32.gmra.mrb[0].mxu0 %v3426
  %v3532 = vpop.f32.mrb[0].mxu0
  %v3533 = vadd.f32 %v59, %v3532
  %v3534 = vpop.f32.mrb[0].mxu0
  %3535 = vmatprep.mubr.f32.mxu0 0.0
  %3536 = vmatmul.mubr.f32.gmra.mrb[0].mxu0 %v3429
  %v3537 = vpop.f32.mrb[0].mxu0
  %v3538 = vadd.f32 %v59, %v3537
  %v3539 = vpop.f32.mrb[0].mxu0
  %3540 = vdwg.mxu0
  %v3541 = vmax.f32 %v3498, 0.0
  %v3542 = vmax.f32 %v3503, 0.0
  %v3543 = vmax.f32 %v3508, 0.0
  %v3544 = vmax.f32 %v3513, 0.0
  %v3545 = vmax.f32 %v3518, 0.0
  %v3546 = vmax.f32 %v3523, 0.0
  %v3547 = vmax.f32 %v3528, 0.0
  %v3548 = vmax.f32 %v3533, 0.0
  %v3549 = vmax.f32 %v3538, 0.0
  %v3550 = vld [vmem:[%s3 + $0x160] sm:$0xff]
  %v3551 = vld [vmem:[%s3 + $0x168] sm:$0xff]
  %v3552 = vld [vmem:[%s3 + $0x170] sm:$0xff]
  %v3553 = vld [vmem:[%s3 + $0x178] sm:$0xff]
  %v3555 = vsel %vm375, %v3541, 0
  %v3558 = vsel %vm375, %v3542, 0
  %v3561 = vsel %vm375, %v3543, 0
  %v3564 = vsel %vm375, %v3544, 0
  %v3567 = vsel %vm375, %v3545, 0
  %v3570 = vsel %vm375, %v3546, 0
  %v3573 = vsel %vm375, %v3547, 0
  %v3576 = vsel %vm375, %v3548, 0
  %v3579 = vsel %vm375, %v3549, 0
  %3581 = vmatprep.subr.mxu0 0.0
  %3582 = vmatpush1.msra.mxu0 %v3550
  %3583 = vmatprep.subr.mxu0 0.0
  %3584 = vmatpush1.msra.mxu0 %v3551
  %3585 = vmatprep.subr.mxu0 0.0
  %3586 = vmatpush1.msra.mxu0 %v3552
  %3587 = vmatprep.subr.mxu0 0.0
  %3588 = vmatpush1.msra.mxu0 %v3553
  %3589 = vmatprep.subr.mxu0 0.0
  %3590 = vmatpush1.msra.mxu0 0.0
  %3591 = vmatprep.subr.mxu0 0.0
  %3592 = vmatpush1.msra.mxu0 0.0
  %3593 = vmatprep.subr.mxu0 0.0
  %3594 = vmatpush1.msra.mxu0 0.0
  %3595 = vmatprep.subr.mxu0 0.0
  %3596 = vmatpush1.msra.mxu0 0.0
  %3597 = vmatprep.subr.mxu0 0.0
  %3598 = vmatpush1.msra.mxu0 0.0
  %3599 = vmatprep.subr.mxu0 0.0
  %3600 = vmatpush1.msra.mxu0 0.0
  %3601 = vmatprep.subr.mxu0 0.0
  %3602 = vmatpush1.msra.mxu0 0.0
  %3603 = vmatprep.subr.mxu0 0.0
  %3604 = vmatpush1.msra.mxu0 0.0
  %3605 = vmatprep.subr.mxu0 0.0
  %3606 = vmatpush1.msra.mxu0 0.0
  %3607 = vmatprep.subr.mxu0 0.0
  %3608 = vmatpush1.msra.mxu0 0.0
  %3609 = vmatprep.subr.mxu0 0.0
  %3610 = vmatpush1.msra.mxu0 0.0
  %3611 = vmatprep.subr.mxu0 0.0
  %3612 = vmatpush1.msra.mxu0 0.0
  %3613 = vmatprep.subr.mxu0 0.0
  %3614 = vmatpush1.msra.mxu0 0.0
  %3615 = vmatprep.subr.mxu0 0.0
  %3616 = vmatpush1.msra.mxu0 0.0
  %3617 = vmatprep.subr.mxu0 0.0
  %3618 = vmatpush1.msra.mxu0 0.0
  %3619 = vmatprep.subr.mxu0 0.0
  %3620 = vmatpush1.msra.mxu0 0.0
  %3621 = vmatprep.subr.mxu0 0.0
  %3622 = vmatpush1.msra.mxu0 0.0
  %3623 = vmatprep.subr.mxu0 0.0
  %3624 = vmatpush1.msra.mxu0 0.0
  %3625 = vmatprep.subr.mxu0 0.0
  %3626 = vmatpush1.msra.mxu0 0.0
  %3627 = vmatprep.subr.mxu0 0.0
  %3628 = vmatpush1.msra.mxu0 0.0
  %3629 = vmatprep.subr.mxu0 0.0
  %3630 = vmatpush1.msra.mxu0 0.0
  %3631 = vmatprep.subr.mxu0 0.0
  %3632 = vmatpush1.msra.mxu0 0.0
  %3633 = vmatprep.subr.mxu0 0.0
  %3634 = vmatpush1.msra.mxu0 0.0
  %3635 = vmatprep.subr.mxu0 0.0
  %3636 = vmatpush1.msra.mxu0 0.0
  %3637 = vmatprep.subr.mxu0 0.0
  %3638 = vmatpush1.msra.mxu0 0.0
  %3639 = vmatprep.subr.mxu0 0.0
  %3640 = vmatpush1.msra.mxu0 0.0
  %3641 = vmatprep.subr.mxu0 0.0
  %3642 = vmatpush1.msra.mxu0 0.0
  %3643 = vmatprep.subr.mxu0 0.0
  %3644 = vmatpush1.msra.mxu0 0.0
  %3645 = vmatprep.mubr.f32.mxu0 0.0
  %3646 = vmatmul.mubr.f32.gmra.mrb[0].mxu0 %v3555
  %v3647 = vpop.f32.mrb[0].mxu0
  %v3648 = vadd.f32 0.0, %v3647
  %v3649 = vpop.f32.mrb[0].mxu0
  %3650 = vmatprep.mubr.f32.mxu0 0.0
  %3651 = vmatmul.mubr.f32.gmra.mrb[0].mxu0 %v3558
  %v3652 = vpop.f32.mrb[0].mxu0
  %v3653 = vadd.f32 0.0, %v3652
  %v3654 = vpop.f32.mrb[0].mxu0
  %3655 = vmatprep.mubr.f32.mxu0 0.0
  %3656 = vmatmul.mubr.f32.gmra.mrb[0].mxu0 %v3561
  %v3657 = vpop.f32.mrb[0].mxu0
  %v3658 = vadd.f32 0.0, %v3657
  %v3659 = vpop.f32.mrb[0].mxu0
  %3660 = vmatprep.mubr.f32.mxu0 0.0
  %3661 = vmatmul.mubr.f32.gmra.mrb[0].mxu0 %v3564
  %v3662 = vpop.f32.mrb[0].mxu0
  %v3663 = vadd.f32 0.0, %v3662
  %v3664 = vpop.f32.mrb[0].mxu0
  %3665 = vmatprep.mubr.f32.mxu0 0.0
  %3666 = vmatmul.mubr.f32.gmra.mrb[0].mxu0 %v3567
  %v3667 = vpop.f32.mrb[0].mxu0
  %v3668 = vadd.f32 0.0, %v3667
  %v3669 = vpop.f32.mrb[0].mxu0
  %3670 = vmatprep.mubr.f32.mxu0 0.0
  %3671 = vmatmul.mubr.f32.gmra.mrb[0].mxu0 %v3570
  %v3672 = vpop.f32.mrb[0].mxu0
  %v3673 = vadd.f32 0.0, %v3672
  %v3674 = vpop.f32.mrb[0].mxu0
  %3675 = vmatprep.mubr.f32.mxu0 0.0
  %3676 = vmatmul.mubr.f32.gmra.mrb[0].mxu0 %v3573
  %v3677 = vpop.f32.mrb[0].mxu0
  %v3678 = vadd.f32 0.0, %v3677
  %v3679 = vpop.f32.mrb[0].mxu0
  %3680 = vmatprep.mubr.f32.mxu0 0.0
  %3681 = vmatmul.mubr.f32.gmra.mrb[0].mxu0 %v3576
  %v3682 = vpop.f32.mrb[0].mxu0
  %v3683 = vadd.f32 0.0, %v3682
  %v3684 = vpop.f32.mrb[0].mxu0
  %3685 = vmatprep.mubr.f32.mxu0 0.0
  %3686 = vmatmul.mubr.f32.gmra.mrb[0].mxu0 %v3579
  %v3687 = vpop.f32.mrb[0].mxu0
  %v3688 = vadd.f32 0.0, %v3687
  %v3689 = vpop.f32.mrb[0].mxu0
  %3690 = vdwg.mxu0
  %v3691 = vadd.f32 %v3386, %v3648
  %v3692 = vadd.f32 %v3387, %v3653
  %v3693 = vadd.f32 %v3388, %v3658
  %v3694 = vadd.f32 %v3389, %v3663
  %v3695 = vadd.f32 %v3390, %v3668
  %v3696 = vadd.f32 %v3391, %v3673
  %v3697 = vadd.f32 %v3392, %v3678
  %v3698 = vadd.f32 %v3393, %v3683
  %v3699 = vadd.f32 %v3394, %v3688
  %v3700 = vld [vmem:[%s0 + $0x360] sm:$0xff]
  %v3701 = vld [vmem:[%s0 + $0x368] sm:$0xff]
  %v3702 = vld [vmem:[%s0 + $0x370] sm:$0xff]
  %v3703 = vld [vmem:[%s0 + $0x378] sm:$0xff]
  %v3704 = vld [vmem:[%s0 + $0x380] sm:$0xff]
  %v3705 = vld [vmem:[%s0 + $0x388] sm:$0xff]
  %v3706 = vld [vmem:[%s0 + $0x390] sm:$0xff]
  %v3707 = vld [vmem:[%s0 + $0x398] sm:$0xff]
  %v3708 = vld [vmem:[%s0 + $0x3a0] sm:$0xff]
  %v3710 = vsel %vm61, %v3700, 0
  %v3713 = vsel %vm61, %v3701, 0
  %v3716 = vsel %vm61, %v3702, 0
  %v3719 = vsel %vm61, %v3703, 0
  %v3722 = vsel %vm61, %v3704, 0
  %v3725 = vsel %vm61, %v3705, 0
  %v3728 = vsel %vm61, %v3706, 0
  %v3731 = vsel %vm61, %v3707, 0
  %v3734 = vsel %vm61, %v3708, 0
  %3736 = vmatprep.subr.mxu0 0.0
  %3737 = vmatpush1.msra.mxu0 %v32
  %3738 = vmatprep.subr.mxu0 0.0
  %3739 = vmatpush1.msra.mxu0 %v33
  %3740 = vmatprep.subr.mxu0 0.0
  %3741 = vmatpush1.msra.mxu0 %v34
  %3742 = vmatprep.subr.mxu0 0.0
  %3743 = vmatpush1.msra.mxu0 %v35
  %3744 = vmatprep.subr.mxu0 0.0
  %3745 = vmatpush1.msra.mxu0 %v36
  %3746 = vmatprep.subr.mxu0 0.0
  %3747 = vmatpush1.msra.mxu0 %v37
  %3748 = vmatprep.subr.mxu0 0.0
  %3749 = vmatpush1.msra.mxu0 %v38
  %3750 = vmatprep.subr.mxu0 0.0
  %3751 = vmatpush1.msra.mxu0 %v39
  %3752 = vmatprep.subr.mxu0 0.0
  %3753 = vmatpush1.msra.mxu0 %v40
  %3754 = vmatprep.subr.mxu0 0.0
  %3755 = vmatpush1.msra.mxu0 %v41
  %3756 = vmatprep.subr.mxu0 0.0
  %3757 = vmatpush1.msra.mxu0 %v42
  %3758 = vmatprep.subr.mxu0 0.0
  %3759 = vmatpush1.msra.mxu0 %v43
  %3760 = vmatprep.subr.mxu0 0.0
  %3761 = vmatpush1.msra.mxu0 %v91
  %3762 = vmatprep.subr.mxu0 0.0
  %3763 = vmatpush1.msra.mxu0 0.0
  %3764 = vmatprep.subr.mxu0 0.0
  %3765 = vmatpush1.msra.mxu0 0.0
  %3766 = vmatprep.subr.mxu0 0.0
  %3767 = vmatpush1.msra.mxu0 0.0
  %3768 = vmatprep.subr.mxu0 0.0
  %3769 = vmatpush1.msra.mxu0 0.0
  %3770 = vmatprep.subr.mxu0 0.0
  %3771 = vmatpush1.msra.mxu0 0.0
  %3772 = vmatprep.subr.mxu0 0.0
  %3773 = vmatpush1.msra.mxu0 0.0
  %3774 = vmatprep.subr.mxu0 0.0
  %3775 = vmatpush1.msra.mxu0 0.0
  %3776 = vmatprep.subr.mxu0 0.0
  %3777 = vmatpush1.msra.mxu0 0.0
  %3778 = vmatprep.subr.mxu0 0.0
  %3779 = vmatpush1.msra.mxu0 0.0
  %3780 = vmatprep.subr.mxu0 0.0
  %3781 = vmatpush1.msra.mxu0 0.0
  %3782 = vmatprep.subr.mxu0 0.0
  %3783 = vmatpush1.msra.mxu0 0.0
  %3784 = vmatprep.subr.mxu0 0.0
  %3785 = vmatpush1.msra.mxu0 0.0
  %3786 = vmatprep.subr.mxu0 0.0
  %3787 = vmatpush1.msra.mxu0 0.0
  %3788 = vmatprep.subr.mxu0 0.0
  %3789 = vmatpush1.msra.mxu0 0.0
  %3790 = vmatprep.subr.mxu0 0.0
  %3791 = vmatpush1.msra.mxu0 0.0
  %3792 = vmatprep.subr.mxu0 0.0
  %3793 = vmatpush1.msra.mxu0 0.0
  %3794 = vmatprep.subr.mxu0 0.0
  %3795 = vmatpush1.msra.mxu0 0.0
  %3796 = vmatprep.subr.mxu0 0.0
  %3797 = vmatpush1.msra.mxu0 0.0
  %3798 = vmatprep.subr.mxu0 0.0
  %3799 = vmatpush1.msra.mxu0 0.0
  %3800 = vmatprep.mubr.f32.mxu0 0.0
  %3801 = vmatmul.mubr.f32.gmra.mrb[0].mxu0 %v3710
  %v3802 = vpop.f32.mrb[0].mxu0
  %v3803 = vadd.f32 %v59, %v3802
  %v3804 = vpop.f32.mrb[0].mxu0
  %3805 = vmatprep.mubr.f32.mxu0 0.0
  %3806 = vmatmul.mubr.f32.gmra.mrb[0].mxu0 %v3713
  %v3807 = vpop.f32.mrb[0].mxu0
  %v3808 = vadd.f32 %v59, %v3807
  %v3809 = vpop.f32.mrb[0].mxu0
  %3810 = vmatprep.mubr.f32.mxu0 0.0
  %3811 = vmatmul.mubr.f32.gmra.mrb[0].mxu0 %v3716
  %v3812 = vpop.f32.mrb[0].mxu0
  %v3813 = vadd.f32 %v59, %v3812
  %v3814 = vpop.f32.mrb[0].mxu0
  %3815 = vmatprep.mubr.f32.mxu0 0.0
  %3816 = vmatmul.mubr.f32.gmra.mrb[0].mxu0 %v3719
  %v3817 = vpop.f32.mrb[0].mxu0
  %v3818 = vadd.f32 %v59, %v3817
  %v3819 = vpop.f32.mrb[0].mxu0
  %3820 = vmatprep.mubr.f32.mxu0 0.0
  %3821 = vmatmul.mubr.f32.gmra.mrb[0].mxu0 %v3722
  %v3822 = vpop.f32.mrb[0].mxu0
  %v3823 = vadd.f32 %v59, %v3822
  %v3824 = vpop.f32.mrb[0].mxu0
  %3825 = vmatprep.mubr.f32.mxu0 0.0
  %3826 = vmatmul.mubr.f32.gmra.mrb[0].mxu0 %v3725
  %v3827 = vpop.f32.mrb[0].mxu0
  %v3828 = vadd.f32 %v59, %v3827
  %v3829 = vpop.f32.mrb[0].mxu0
  %3830 = vmatprep.mubr.f32.mxu0 0.0
  %3831 = vmatmul.mubr.f32.gmra.mrb[0].mxu0 %v3728
  %v3832 = vpop.f32.mrb[0].mxu0
  %v3833 = vadd.f32 %v59, %v3832
  %v3834 = vpop.f32.mrb[0].mxu0
  %3835 = vmatprep.mubr.f32.mxu0 0.0
  %3836 = vmatmul.mubr.f32.gmra.mrb[0].mxu0 %v3731
  %v3837 = vpop.f32.mrb[0].mxu0
  %v3838 = vadd.f32 %v59, %v3837
  %v3839 = vpop.f32.mrb[0].mxu0
  %3840 = vmatprep.mubr.f32.mxu0 0.0
  %3841 = vmatmul.mubr.f32.gmra.mrb[0].mxu0 %v3734
  %v3842 = vpop.f32.mrb[0].mxu0
  %v3843 = vadd.f32 %v59, %v3842
  %v3844 = vpop.f32.mrb[0].mxu0
  %3845 = vdwg.mxu0
  %v3846 = vmax.f32 %v3803, 0.0
  %v3847 = vmax.f32 %v3808, 0.0
  %v3848 = vmax.f32 %v3813, 0.0
  %v3849 = vmax.f32 %v3818, 0.0
  %v3850 = vmax.f32 %v3823, 0.0
  %v3851 = vmax.f32 %v3828, 0.0
  %v3852 = vmax.f32 %v3833, 0.0
  %v3853 = vmax.f32 %v3838, 0.0
  %v3854 = vmax.f32 %v3843, 0.0
  %v3855 = vld [vmem:[%s3 + $0x180] sm:$0xff]
  %v3856 = vld [vmem:[%s3 + $0x188] sm:$0xff]
  %v3857 = vld [vmem:[%s3 + $0x190] sm:$0xff]
  %v3858 = vld [vmem:[%s3 + $0x198] sm:$0xff]
  %v3860 = vsel %vm375, %v3846, 0
  %v3863 = vsel %vm375, %v3847, 0
  %v3866 = vsel %vm375, %v3848, 0
  %v3869 = vsel %vm375, %v3849, 0
  %v3872 = vsel %vm375, %v3850, 0
  %v3875 = vsel %vm375, %v3851, 0
  %v3878 = vsel %vm375, %v3852, 0
  %v3881 = vsel %vm375, %v3853, 0
  %v3884 = vsel %vm375, %v3854, 0
  %3886 = vmatprep.subr.mxu0 0.0
  %3887 = vmatpush1.msra.mxu0 %v3855
  %3888 = vmatprep.subr.mxu0 0.0
  %3889 = vmatpush1.msra.mxu0 %v3856
  %3890 = vmatprep.subr.mxu0 0.0
  %3891 = vmatpush1.msra.mxu0 %v3857
  %3892 = vmatprep.subr.mxu0 0.0
  %3893 = vmatpush1.msra.mxu0 %v3858
  %3894 = vmatprep.subr.mxu0 0.0
  %3895 = vmatpush1.msra.mxu0 0.0
  %3896 = vmatprep.subr.mxu0 0.0
  %3897 = vmatpush1.msra.mxu0 0.0
  %3898 = vmatprep.subr.mxu0 0.0
  %3899 = vmatpush1.msra.mxu0 0.0
  %3900 = vmatprep.subr.mxu0 0.0
  %3901 = vmatpush1.msra.mxu0 0.0
  %3902 = vmatprep.subr.mxu0 0.0
  %3903 = vmatpush1.msra.mxu0 0.0
  %3904 = vmatprep.subr.mxu0 0.0
  %3905 = vmatpush1.msra.mxu0 0.0
  %3906 = vmatprep.subr.mxu0 0.0
  %3907 = vmatpush1.msra.mxu0 0.0
  %3908 = vmatprep.subr.mxu0 0.0
  %3909 = vmatpush1.msra.mxu0 0.0
  %3910 = vmatprep.subr.mxu0 0.0
  %3911 = vmatpush1.msra.mxu0 0.0
  %3912 = vmatprep.subr.mxu0 0.0
  %3913 = vmatpush1.msra.mxu0 0.0
  %3914 = vmatprep.subr.mxu0 0.0
  %3915 = vmatpush1.msra.mxu0 0.0
  %3916 = vmatprep.subr.mxu0 0.0
  %3917 = vmatpush1.msra.mxu0 0.0
  %3918 = vmatprep.subr.mxu0 0.0
  %3919 = vmatpush1.msra.mxu0 0.0
  %3920 = vmatprep.subr.mxu0 0.0
  %3921 = vmatpush1.msra.mxu0 0.0
  %3922 = vmatprep.subr.mxu0 0.0
  %3923 = vmatpush1.msra.mxu0 0.0
  %3924 = vmatprep.subr.mxu0 0.0
  %3925 = vmatpush1.msra.mxu0 0.0
  %3926 = vmatprep.subr.mxu0 0.0
  %3927 = vmatpush1.msra.mxu0 0.0
  %3928 = vmatprep.subr.mxu0 0.0
  %3929 = vmatpush1.msra.mxu0 0.0
  %3930 = vmatprep.subr.mxu0 0.0
  %3931 = vmatpush1.msra.mxu0 0.0
  %3932 = vmatprep.subr.mxu0 0.0
  %3933 = vmatpush1.msra.mxu0 0.0
  %3934 = vmatprep.subr.mxu0 0.0
  %3935 = vmatpush1.msra.mxu0 0.0
  %3936 = vmatprep.subr.mxu0 0.0
  %3937 = vmatpush1.msra.mxu0 0.0
  %3938 = vmatprep.subr.mxu0 0.0
  %3939 = vmatpush1.msra.mxu0 0.0
  %3940 = vmatprep.subr.mxu0 0.0
  %3941 = vmatpush1.msra.mxu0 0.0
  %3942 = vmatprep.subr.mxu0 0.0
  %3943 = vmatpush1.msra.mxu0 0.0
  %3944 = vmatprep.subr.mxu0 0.0
  %3945 = vmatpush1.msra.mxu0 0.0
  %3946 = vmatprep.subr.mxu0 0.0
  %3947 = vmatpush1.msra.mxu0 0.0
  %3948 = vmatprep.subr.mxu0 0.0
  %3949 = vmatpush1.msra.mxu0 0.0
  %3950 = vmatprep.mubr.f32.mxu0 0.0
  %3951 = vmatmul.mubr.f32.gmra.mrb[0].mxu0 %v3860
  %v3952 = vpop.f32.mrb[0].mxu0
  %v3953 = vadd.f32 0.0, %v3952
  %v3954 = vpop.f32.mrb[0].mxu0
  %3955 = vmatprep.mubr.f32.mxu0 0.0
  %3956 = vmatmul.mubr.f32.gmra.mrb[0].mxu0 %v3863
  %v3957 = vpop.f32.mrb[0].mxu0
  %v3958 = vadd.f32 0.0, %v3957
  %v3959 = vpop.f32.mrb[0].mxu0
  %3960 = vmatprep.mubr.f32.mxu0 0.0
  %3961 = vmatmul.mubr.f32.gmra.mrb[0].mxu0 %v3866
  %v3962 = vpop.f32.mrb[0].mxu0
  %v3963 = vadd.f32 0.0, %v3962
  %v3964 = vpop.f32.mrb[0].mxu0
  %3965 = vmatprep.mubr.f32.mxu0 0.0
  %3966 = vmatmul.mubr.f32.gmra.mrb[0].mxu0 %v3869
  %v3967 = vpop.f32.mrb[0].mxu0
  %v3968 = vadd.f32 0.0, %v3967
  %v3969 = vpop.f32.mrb[0].mxu0
  %3970 = vmatprep.mubr.f32.mxu0 0.0
  %3971 = vmatmul.mubr.f32.gmra.mrb[0].mxu0 %v3872
  %v3972 = vpop.f32.mrb[0].mxu0
  %v3973 = vadd.f32 0.0, %v3972
  %v3974 = vpop.f32.mrb[0].mxu0
  %3975 = vmatprep.mubr.f32.mxu0 0.0
  %3976 = vmatmul.mubr.f32.gmra.mrb[0].mxu0 %v3875
  %v3977 = vpop.f32.mrb[0].mxu0
  %v3978 = vadd.f32 0.0, %v3977
  %v3979 = vpop.f32.mrb[0].mxu0
  %3980 = vmatprep.mubr.f32.mxu0 0.0
  %3981 = vmatmul.mubr.f32.gmra.mrb[0].mxu0 %v3878
  %v3982 = vpop.f32.mrb[0].mxu0
  %v3983 = vadd.f32 0.0, %v3982
  %v3984 = vpop.f32.mrb[0].mxu0
  %3985 = vmatprep.mubr.f32.mxu0 0.0
  %3986 = vmatmul.mubr.f32.gmra.mrb[0].mxu0 %v3881
  %v3987 = vpop.f32.mrb[0].mxu0
  %v3988 = vadd.f32 0.0, %v3987
  %v3989 = vpop.f32.mrb[0].mxu0
  %3990 = vmatprep.mubr.f32.mxu0 0.0
  %3991 = vmatmul.mubr.f32.gmra.mrb[0].mxu0 %v3884
  %v3992 = vpop.f32.mrb[0].mxu0
  %v3993 = vadd.f32 0.0, %v3992
  %v3994 = vpop.f32.mrb[0].mxu0
  %3995 = vdwg.mxu0
  %v3996 = vadd.f32 %v3691, %v3953
  %v3997 = vadd.f32 %v3692, %v3958
  %v3998 = vadd.f32 %v3693, %v3963
  %v3999 = vadd.f32 %v3694, %v3968
  %v4000 = vadd.f32 %v3695, %v3973
  %v4001 = vadd.f32 %v3696, %v3978
  %v4002 = vadd.f32 %v3697, %v3983
  %v4003 = vadd.f32 %v3698, %v3988
  %v4004 = vadd.f32 %v3699, %v3993
  %v4005 = vld [vmem:[%s0 + $0x3a8] sm:$0xff]
  %v4006 = vld [vmem:[%s0 + $0x3b0] sm:$0xff]
  %v4007 = vld [vmem:[%s0 + $0x3b8] sm:$0xff]
  %v4008 = vld [vmem:[%s0 + $0x3c0] sm:$0xff]
  %v4009 = vld [vmem:[%s0 + $0x3c8] sm:$0xff]
  %v4010 = vld [vmem:[%s0 + $0x3d0] sm:$0xff]
  %v4011 = vld [vmem:[%s0 + $0x3d8] sm:$0xff]
  %v4012 = vld [vmem:[%s0 + $0x3e0] sm:$0xff]
  %v4013 = vld [vmem:[%s0 + $0x3e8] sm:$0xff]
  %v4015 = vsel %vm61, %v4005, 0
  %v4018 = vsel %vm61, %v4006, 0
  %v4021 = vsel %vm61, %v4007, 0
  %v4024 = vsel %vm61, %v4008, 0
  %v4027 = vsel %vm61, %v4009, 0
  %v4030 = vsel %vm61, %v4010, 0
  %v4033 = vsel %vm61, %v4011, 0
  %v4036 = vsel %vm61, %v4012, 0
  %v4039 = vsel %vm61, %v4013, 0
  %4041 = vmatprep.subr.mxu0 0.0
  %4042 = vmatpush1.msra.mxu0 %v32
  %4043 = vmatprep.subr.mxu0 0.0
  %4044 = vmatpush1.msra.mxu0 %v33
  %4045 = vmatprep.subr.mxu0 0.0
  %4046 = vmatpush1.msra.mxu0 %v34
  %4047 = vmatprep.subr.mxu0 0.0
  %4048 = vmatpush1.msra.mxu0 %v35
  %4049 = vmatprep.subr.mxu0 0.0
  %4050 = vmatpush1.msra.mxu0 %v36
  %4051 = vmatprep.subr.mxu0 0.0
  %4052 = vmatpush1.msra.mxu0 %v37
  %4053 = vmatprep.subr.mxu0 0.0
  %4054 = vmatpush1.msra.mxu0 %v38
  %4055 = vmatprep.subr.mxu0 0.0
  %4056 = vmatpush1.msra.mxu0 %v39
  %4057 = vmatprep.subr.mxu0 0.0
  %4058 = vmatpush1.msra.mxu0 %v40
  %4059 = vmatprep.subr.mxu0 0.0
  %4060 = vmatpush1.msra.mxu0 %v41
  %4061 = vmatprep.subr.mxu0 0.0
  %4062 = vmatpush1.msra.mxu0 %v42
  %4063 = vmatprep.subr.mxu0 0.0
  %4064 = vmatpush1.msra.mxu0 %v43
  %4065 = vmatprep.subr.mxu0 0.0
  %4066 = vmatpush1.msra.mxu0 %v91
  %4067 = vmatprep.subr.mxu0 0.0
  %4068 = vmatpush1.msra.mxu0 0.0
  %4069 = vmatprep.subr.mxu0 0.0
  %4070 = vmatpush1.msra.mxu0 0.0
  %4071 = vmatprep.subr.mxu0 0.0
  %4072 = vmatpush1.msra.mxu0 0.0
  %4073 = vmatprep.subr.mxu0 0.0
  %4074 = vmatpush1.msra.mxu0 0.0
  %4075 = vmatprep.subr.mxu0 0.0
  %4076 = vmatpush1.msra.mxu0 0.0
  %4077 = vmatprep.subr.mxu0 0.0
  %4078 = vmatpush1.msra.mxu0 0.0
  %4079 = vmatprep.subr.mxu0 0.0
  %4080 = vmatpush1.msra.mxu0 0.0
  %4081 = vmatprep.subr.mxu0 0.0
  %4082 = vmatpush1.msra.mxu0 0.0
  %4083 = vmatprep.subr.mxu0 0.0
  %4084 = vmatpush1.msra.mxu0 0.0
  %4085 = vmatprep.subr.mxu0 0.0
  %4086 = vmatpush1.msra.mxu0 0.0
  %4087 = vmatprep.subr.mxu0 0.0
  %4088 = vmatpush1.msra.mxu0 0.0
  %4089 = vmatprep.subr.mxu0 0.0
  %4090 = vmatpush1.msra.mxu0 0.0
  %4091 = vmatprep.subr.mxu0 0.0
  %4092 = vmatpush1.msra.mxu0 0.0
  %4093 = vmatprep.subr.mxu0 0.0
  %4094 = vmatpush1.msra.mxu0 0.0
  %4095 = vmatprep.subr.mxu0 0.0
  %4096 = vmatpush1.msra.mxu0 0.0
  %4097 = vmatprep.subr.mxu0 0.0
  %4098 = vmatpush1.msra.mxu0 0.0
  %4099 = vmatprep.subr.mxu0 0.0
  %4100 = vmatpush1.msra.mxu0 0.0
  %4101 = vmatprep.subr.mxu0 0.0
  %4102 = vmatpush1.msra.mxu0 0.0
  %4103 = vmatprep.subr.mxu0 0.0
  %4104 = vmatpush1.msra.mxu0 0.0
  %4105 = vmatprep.mubr.f32.mxu0 0.0
  %4106 = vmatmul.mubr.f32.gmra.mrb[0].mxu0 %v4015
  %v4107 = vpop.f32.mrb[0].mxu0
  %v4108 = vadd.f32 %v59, %v4107
  %v4109 = vpop.f32.mrb[0].mxu0
  %4110 = vmatprep.mubr.f32.mxu0 0.0
  %4111 = vmatmul.mubr.f32.gmra.mrb[0].mxu0 %v4018
  %v4112 = vpop.f32.mrb[0].mxu0
  %v4113 = vadd.f32 %v59, %v4112
  %v4114 = vpop.f32.mrb[0].mxu0
  %4115 = vmatprep.mubr.f32.mxu0 0.0
  %4116 = vmatmul.mubr.f32.gmra.mrb[0].mxu0 %v4021
  %v4117 = vpop.f32.mrb[0].mxu0
  %v4118 = vadd.f32 %v59, %v4117
  %v4119 = vpop.f32.mrb[0].mxu0
  %4120 = vmatprep.mubr.f32.mxu0 0.0
  %4121 = vmatmul.mubr.f32.gmra.mrb[0].mxu0 %v4024
  %v4122 = vpop.f32.mrb[0].mxu0
  %v4123 = vadd.f32 %v59, %v4122
  %v4124 = vpop.f32.mrb[0].mxu0
  %4125 = vmatprep.mubr.f32.mxu0 0.0
  %4126 = vmatmul.mubr.f32.gmra.mrb[0].mxu0 %v4027
  %v4127 = vpop.f32.mrb[0].mxu0
  %v4128 = vadd.f32 %v59, %v4127
  %v4129 = vpop.f32.mrb[0].mxu0
  %4130 = vmatprep.mubr.f32.mxu0 0.0
  %4131 = vmatmul.mubr.f32.gmra.mrb[0].mxu0 %v4030
  %v4132 = vpop.f32.mrb[0].mxu0
  %v4133 = vadd.f32 %v59, %v4132
  %v4134 = vpop.f32.mrb[0].mxu0
  %4135 = vmatprep.mubr.f32.mxu0 0.0
  %4136 = vmatmul.mubr.f32.gmra.mrb[0].mxu0 %v4033
  %v4137 = vpop.f32.mrb[0].mxu0
  %v4138 = vadd.f32 %v59, %v4137
  %v4139 = vpop.f32.mrb[0].mxu0
  %4140 = vmatprep.mubr.f32.mxu0 0.0
  %4141 = vmatmul.mubr.f32.gmra.mrb[0].mxu0 %v4036
  %v4142 = vpop.f32.mrb[0].mxu0
  %v4143 = vadd.f32 %v59, %v4142
  %v4144 = vpop.f32.mrb[0].mxu0
  %4145 = vmatprep.mubr.f32.mxu0 0.0
  %4146 = vmatmul.mubr.f32.gmra.mrb[0].mxu0 %v4039
  %v4147 = vpop.f32.mrb[0].mxu0
  %v4148 = vadd.f32 %v59, %v4147
  %v4149 = vpop.f32.mrb[0].mxu0
  %4150 = vdwg.mxu0
  %v4151 = vmax.f32 %v4108, 0.0
  %v4152 = vmax.f32 %v4113, 0.0
  %v4153 = vmax.f32 %v4118, 0.0
  %v4154 = vmax.f32 %v4123, 0.0
  %v4155 = vmax.f32 %v4128, 0.0
  %v4156 = vmax.f32 %v4133, 0.0
  %v4157 = vmax.f32 %v4138, 0.0
  %v4158 = vmax.f32 %v4143, 0.0
  %v4159 = vmax.f32 %v4148, 0.0
  %v4160 = vld [vmem:[%s3 + $0x1a0] sm:$0xff]
  %v4161 = vld [vmem:[%s3 + $0x1a8] sm:$0xff]
  %v4162 = vld [vmem:[%s3 + $0x1b0] sm:$0xff]
  %v4163 = vld [vmem:[%s3 + $0x1b8] sm:$0xff]
  %v4165 = vsel %vm375, %v4151, 0
  %v4168 = vsel %vm375, %v4152, 0
  %v4171 = vsel %vm375, %v4153, 0
  %v4174 = vsel %vm375, %v4154, 0
  %v4177 = vsel %vm375, %v4155, 0
  %v4180 = vsel %vm375, %v4156, 0
  %v4183 = vsel %vm375, %v4157, 0
  %v4186 = vsel %vm375, %v4158, 0
  %v4189 = vsel %vm375, %v4159, 0
  %4191 = vmatprep.subr.mxu0 0.0
  %4192 = vmatpush1.msra.mxu0 %v4160
  %4193 = vmatprep.subr.mxu0 0.0
  %4194 = vmatpush1.msra.mxu0 %v4161
  %4195 = vmatprep.subr.mxu0 0.0
  %4196 = vmatpush1.msra.mxu0 %v4162
  %4197 = vmatprep.subr.mxu0 0.0
  %4198 = vmatpush1.msra.mxu0 %v4163
  %4199 = vmatprep.subr.mxu0 0.0
  %4200 = vmatpush1.msra.mxu0 0.0
  %4201 = vmatprep.subr.mxu0 0.0
  %4202 = vmatpush1.msra.mxu0 0.0
  %4203 = vmatprep.subr.mxu0 0.0
  %4204 = vmatpush1.msra.mxu0 0.0
  %4205 = vmatprep.subr.mxu0 0.0
  %4206 = vmatpush1.msra.mxu0 0.0
  %4207 = vmatprep.subr.mxu0 0.0
  %4208 = vmatpush1.msra.mxu0 0.0
  %4209 = vmatprep.subr.mxu0 0.0
  %4210 = vmatpush1.msra.mxu0 0.0
  %4211 = vmatprep.subr.mxu0 0.0
  %4212 = vmatpush1.msra.mxu0 0.0
  %4213 = vmatprep.subr.mxu0 0.0
  %4214 = vmatpush1.msra.mxu0 0.0
  %4215 = vmatprep.subr.mxu0 0.0
  %4216 = vmatpush1.msra.mxu0 0.0
  %4217 = vmatprep.subr.mxu0 0.0
  %4218 = vmatpush1.msra.mxu0 0.0
  %4219 = vmatprep.subr.mxu0 0.0
  %4220 = vmatpush1.msra.mxu0 0.0
  %4221 = vmatprep.subr.mxu0 0.0
  %4222 = vmatpush1.msra.mxu0 0.0
  %4223 = vmatprep.subr.mxu0 0.0
  %4224 = vmatpush1.msra.mxu0 0.0
  %4225 = vmatprep.subr.mxu0 0.0
  %4226 = vmatpush1.msra.mxu0 0.0
  %4227 = vmatprep.subr.mxu0 0.0
  %4228 = vmatpush1.msra.mxu0 0.0
  %4229 = vmatprep.subr.mxu0 0.0
  %4230 = vmatpush1.msra.mxu0 0.0
  %4231 = vmatprep.subr.mxu0 0.0
  %4232 = vmatpush1.msra.mxu0 0.0
  %4233 = vmatprep.subr.mxu0 0.0
  %4234 = vmatpush1.msra.mxu0 0.0
  %4235 = vmatprep.subr.mxu0 0.0
  %4236 = vmatpush1.msra.mxu0 0.0
  %4237 = vmatprep.subr.mxu0 0.0
  %4238 = vmatpush1.msra.mxu0 0.0
  %4239 = vmatprep.subr.mxu0 0.0
  %4240 = vmatpush1.msra.mxu0 0.0
  %4241 = vmatprep.subr.mxu0 0.0
  %4242 = vmatpush1.msra.mxu0 0.0
  %4243 = vmatprep.subr.mxu0 0.0
  %4244 = vmatpush1.msra.mxu0 0.0
  %4245 = vmatprep.subr.mxu0 0.0
  %4246 = vmatpush1.msra.mxu0 0.0
  %4247 = vmatprep.subr.mxu0 0.0
  %4248 = vmatpush1.msra.mxu0 0.0
  %4249 = vmatprep.subr.mxu0 0.0
  %4250 = vmatpush1.msra.mxu0 0.0
  %4251 = vmatprep.subr.mxu0 0.0
  %4252 = vmatpush1.msra.mxu0 0.0
  %4253 = vmatprep.subr.mxu0 0.0
  %4254 = vmatpush1.msra.mxu0 0.0
  %4255 = vmatprep.mubr.f32.mxu0 0.0
  %4256 = vmatmul.mubr.f32.gmra.mrb[0].mxu0 %v4165
  %v4257 = vpop.f32.mrb[0].mxu0
  %v4258 = vadd.f32 0.0, %v4257
  %v4259 = vpop.f32.mrb[0].mxu0
  %4260 = vmatprep.mubr.f32.mxu0 0.0
  %4261 = vmatmul.mubr.f32.gmra.mrb[0].mxu0 %v4168
  %v4262 = vpop.f32.mrb[0].mxu0
  %v4263 = vadd.f32 0.0, %v4262
  %v4264 = vpop.f32.mrb[0].mxu0
  %4265 = vmatprep.mubr.f32.mxu0 0.0
  %4266 = vmatmul.mubr.f32.gmra.mrb[0].mxu0 %v4171
  %v4267 = vpop.f32.mrb[0].mxu0
  %v4268 = vadd.f32 0.0, %v4267
  %v4269 = vpop.f32.mrb[0].mxu0
  %4270 = vmatprep.mubr.f32.mxu0 0.0
  %4271 = vmatmul.mubr.f32.gmra.mrb[0].mxu0 %v4174
  %v4272 = vpop.f32.mrb[0].mxu0
  %v4273 = vadd.f32 0.0, %v4272
  %v4274 = vpop.f32.mrb[0].mxu0
  %4275 = vmatprep.mubr.f32.mxu0 0.0
  %4276 = vmatmul.mubr.f32.gmra.mrb[0].mxu0 %v4177
  %v4277 = vpop.f32.mrb[0].mxu0
  %v4278 = vadd.f32 0.0, %v4277
  %v4279 = vpop.f32.mrb[0].mxu0
  %4280 = vmatprep.mubr.f32.mxu0 0.0
  %4281 = vmatmul.mubr.f32.gmra.mrb[0].mxu0 %v4180
  %v4282 = vpop.f32.mrb[0].mxu0
  %v4283 = vadd.f32 0.0, %v4282
  %v4284 = vpop.f32.mrb[0].mxu0
  %4285 = vmatprep.mubr.f32.mxu0 0.0
  %4286 = vmatmul.mubr.f32.gmra.mrb[0].mxu0 %v4183
  %v4287 = vpop.f32.mrb[0].mxu0
  %v4288 = vadd.f32 0.0, %v4287
  %v4289 = vpop.f32.mrb[0].mxu0
  %4290 = vmatprep.mubr.f32.mxu0 0.0
  %4291 = vmatmul.mubr.f32.gmra.mrb[0].mxu0 %v4186
  %v4292 = vpop.f32.mrb[0].mxu0
  %v4293 = vadd.f32 0.0, %v4292
  %v4294 = vpop.f32.mrb[0].mxu0
  %4295 = vmatprep.mubr.f32.mxu0 0.0
  %4296 = vmatmul.mubr.f32.gmra.mrb[0].mxu0 %v4189
  %v4297 = vpop.f32.mrb[0].mxu0
  %v4298 = vadd.f32 0.0, %v4297
  %v4299 = vpop.f32.mrb[0].mxu0
  %4300 = vdwg.mxu0
  %v4301 = vadd.f32 %v3996, %v4258
  %v4302 = vadd.f32 %v3997, %v4263
  %v4303 = vadd.f32 %v3998, %v4268
  %v4304 = vadd.f32 %v3999, %v4273
  %v4305 = vadd.f32 %v4000, %v4278
  %v4306 = vadd.f32 %v4001, %v4283
  %v4307 = vadd.f32 %v4002, %v4288
  %v4308 = vadd.f32 %v4003, %v4293
  %v4309 = vadd.f32 %v4004, %v4298
  %v4310 = vld [vmem:[%s0 + $0x3f0] sm:$0xff]
  %v4311 = vld [vmem:[%s0 + $0x3f8] sm:$0xff]
  %v4312 = vld [vmem:[%s0 + $0x400] sm:$0xff]
  %v4313 = vld [vmem:[%s0 + $0x408] sm:$0xff]
  %v4314 = vld [vmem:[%s0 + $0x410] sm:$0xff]
  %v4315 = vld [vmem:[%s0 + $0x418] sm:$0xff]
  %v4316 = vld [vmem:[%s0 + $0x420] sm:$0xff]
  %v4317 = vld [vmem:[%s0 + $0x428] sm:$0xff]
  %v4318 = vld [vmem:[%s0 + $0x430] sm:$0xff]
  %v4320 = vsel %vm61, %v4310, 0
  %v4323 = vsel %vm61, %v4311, 0
  %v4326 = vsel %vm61, %v4312, 0
  %v4329 = vsel %vm61, %v4313, 0
  %v4332 = vsel %vm61, %v4314, 0
  %v4335 = vsel %vm61, %v4315, 0
  %v4338 = vsel %vm61, %v4316, 0
  %v4341 = vsel %vm61, %v4317, 0
  %v4344 = vsel %vm61, %v4318, 0
  %4346 = vmatprep.subr.mxu0 0.0
  %4347 = vmatpush1.msra.mxu0 %v32
  %4348 = vmatprep.subr.mxu0 0.0
  %4349 = vmatpush1.msra.mxu0 %v33
  %4350 = vmatprep.subr.mxu0 0.0
  %4351 = vmatpush1.msra.mxu0 %v34
  %4352 = vmatprep.subr.mxu0 0.0
  %4353 = vmatpush1.msra.mxu0 %v35
  %4354 = vmatprep.subr.mxu0 0.0
  %4355 = vmatpush1.msra.mxu0 %v36
  %4356 = vmatprep.subr.mxu0 0.0
  %4357 = vmatpush1.msra.mxu0 %v37
  %4358 = vmatprep.subr.mxu0 0.0
  %4359 = vmatpush1.msra.mxu0 %v38
  %4360 = vmatprep.subr.mxu0 0.0
  %4361 = vmatpush1.msra.mxu0 %v39
  %4362 = vmatprep.subr.mxu0 0.0
  %4363 = vmatpush1.msra.mxu0 %v40
  %4364 = vmatprep.subr.mxu0 0.0
  %4365 = vmatpush1.msra.mxu0 %v41
  %4366 = vmatprep.subr.mxu0 0.0
  %4367 = vmatpush1.msra.mxu0 %v42
  %4368 = vmatprep.subr.mxu0 0.0
  %4369 = vmatpush1.msra.mxu0 %v43
  %4370 = vmatprep.subr.mxu0 0.0
  %4371 = vmatpush1.msra.mxu0 %v91
  %4372 = vmatprep.subr.mxu0 0.0
  %4373 = vmatpush1.msra.mxu0 0.0
  %4374 = vmatprep.subr.mxu0 0.0
  %4375 = vmatpush1.msra.mxu0 0.0
  %4376 = vmatprep.subr.mxu0 0.0
  %4377 = vmatpush1.msra.mxu0 0.0
  %4378 = vmatprep.subr.mxu0 0.0
  %4379 = vmatpush1.msra.mxu0 0.0
  %4380 = vmatprep.subr.mxu0 0.0
  %4381 = vmatpush1.msra.mxu0 0.0
  %4382 = vmatprep.subr.mxu0 0.0
  %4383 = vmatpush1.msra.mxu0 0.0
  %4384 = vmatprep.subr.mxu0 0.0
  %4385 = vmatpush1.msra.mxu0 0.0
  %4386 = vmatprep.subr.mxu0 0.0
  %4387 = vmatpush1.msra.mxu0 0.0
  %4388 = vmatprep.subr.mxu0 0.0
  %4389 = vmatpush1.msra.mxu0 0.0
  %4390 = vmatprep.subr.mxu0 0.0
  %4391 = vmatpush1.msra.mxu0 0.0
  %4392 = vmatprep.subr.mxu0 0.0
  %4393 = vmatpush1.msra.mxu0 0.0
  %4394 = vmatprep.subr.mxu0 0.0
  %4395 = vmatpush1.msra.mxu0 0.0
  %4396 = vmatprep.subr.mxu0 0.0
  %4397 = vmatpush1.msra.mxu0 0.0
  %4398 = vmatprep.subr.mxu0 0.0
  %4399 = vmatpush1.msra.mxu0 0.0
  %4400 = vmatprep.subr.mxu0 0.0
  %4401 = vmatpush1.msra.mxu0 0.0
  %4402 = vmatprep.subr.mxu0 0.0
  %4403 = vmatpush1.msra.mxu0 0.0
  %4404 = vmatprep.subr.mxu0 0.0
  %4405 = vmatpush1.msra.mxu0 0.0
  %4406 = vmatprep.subr.mxu0 0.0
  %4407 = vmatpush1.msra.mxu0 0.0
  %4408 = vmatprep.subr.mxu0 0.0
  %4409 = vmatpush1.msra.mxu0 0.0
  %4410 = vmatprep.mubr.f32.mxu0 0.0
  %4411 = vmatmul.mubr.f32.gmra.mrb[0].mxu0 %v4320
  %v4412 = vpop.f32.mrb[0].mxu0
  %v4413 = vadd.f32 %v59, %v4412
  %v4414 = vpop.f32.mrb[0].mxu0
  %4415 = vmatprep.mubr.f32.mxu0 0.0
  %4416 = vmatmul.mubr.f32.gmra.mrb[0].mxu0 %v4323
  %v4417 = vpop.f32.mrb[0].mxu0
  %v4418 = vadd.f32 %v59, %v4417
  %v4419 = vpop.f32.mrb[0].mxu0
  %4420 = vmatprep.mubr.f32.mxu0 0.0
  %4421 = vmatmul.mubr.f32.gmra.mrb[0].mxu0 %v4326
  %v4422 = vpop.f32.mrb[0].mxu0
  %v4423 = vadd.f32 %v59, %v4422
  %v4424 = vpop.f32.mrb[0].mxu0
  %4425 = vmatprep.mubr.f32.mxu0 0.0
  %4426 = vmatmul.mubr.f32.gmra.mrb[0].mxu0 %v4329
  %v4427 = vpop.f32.mrb[0].mxu0
  %v4428 = vadd.f32 %v59, %v4427
  %v4429 = vpop.f32.mrb[0].mxu0
  %4430 = vmatprep.mubr.f32.mxu0 0.0
  %4431 = vmatmul.mubr.f32.gmra.mrb[0].mxu0 %v4332
  %v4432 = vpop.f32.mrb[0].mxu0
  %v4433 = vadd.f32 %v59, %v4432
  %v4434 = vpop.f32.mrb[0].mxu0
  %4435 = vmatprep.mubr.f32.mxu0 0.0
  %4436 = vmatmul.mubr.f32.gmra.mrb[0].mxu0 %v4335
  %v4437 = vpop.f32.mrb[0].mxu0
  %v4438 = vadd.f32 %v59, %v4437
  %v4439 = vpop.f32.mrb[0].mxu0
  %4440 = vmatprep.mubr.f32.mxu0 0.0
  %4441 = vmatmul.mubr.f32.gmra.mrb[0].mxu0 %v4338
  %v4442 = vpop.f32.mrb[0].mxu0
  %v4443 = vadd.f32 %v59, %v4442
  %v4444 = vpop.f32.mrb[0].mxu0
  %4445 = vmatprep.mubr.f32.mxu0 0.0
  %4446 = vmatmul.mubr.f32.gmra.mrb[0].mxu0 %v4341
  %v4447 = vpop.f32.mrb[0].mxu0
  %v4448 = vadd.f32 %v59, %v4447
  %v4449 = vpop.f32.mrb[0].mxu0
  %4450 = vmatprep.mubr.f32.mxu0 0.0
  %4451 = vmatmul.mubr.f32.gmra.mrb[0].mxu0 %v4344
  %v4452 = vpop.f32.mrb[0].mxu0
  %v4453 = vadd.f32 %v59, %v4452
  %v4454 = vpop.f32.mrb[0].mxu0
  %4455 = vdwg.mxu0
  %v4456 = vmax.f32 %v4413, 0.0
  %v4457 = vmax.f32 %v4418, 0.0
  %v4458 = vmax.f32 %v4423, 0.0
  %v4459 = vmax.f32 %v4428, 0.0
  %v4460 = vmax.f32 %v4433, 0.0
  %v4461 = vmax.f32 %v4438, 0.0
  %v4462 = vmax.f32 %v4443, 0.0
  %v4463 = vmax.f32 %v4448, 0.0
  %v4464 = vmax.f32 %v4453, 0.0
  %v4465 = vld [vmem:[%s3 + $0x1c0] sm:$0xff]
  %v4466 = vld [vmem:[%s3 + $0x1c8] sm:$0xff]
  %v4467 = vld [vmem:[%s3 + $0x1d0] sm:$0xff]
  %v4468 = vld [vmem:[%s3 + $0x1d8] sm:$0xff]
  %v4470 = vsel %vm375, %v4456, 0
  %v4473 = vsel %vm375, %v4457, 0
  %v4476 = vsel %vm375, %v4458, 0
  %v4479 = vsel %vm375, %v4459, 0
  %v4482 = vsel %vm375, %v4460, 0
  %v4485 = vsel %vm375, %v4461, 0
  %v4488 = vsel %vm375, %v4462, 0
  %v4491 = vsel %vm375, %v4463, 0
  %v4494 = vsel %vm375, %v4464, 0
  %4496 = vmatprep.subr.mxu0 0.0
  %4497 = vmatpush1.msra.mxu0 %v4465
  %4498 = vmatprep.subr.mxu0 0.0
  %4499 = vmatpush1.msra.mxu0 %v4466
  %4500 = vmatprep.subr.mxu0 0.0
  %4501 = vmatpush1.msra.mxu0 %v4467
  %4502 = vmatprep.subr.mxu0 0.0
  %4503 = vmatpush1.msra.mxu0 %v4468
  %4504 = vmatprep.subr.mxu0 0.0
  %4505 = vmatpush1.msra.mxu0 0.0
  %4506 = vmatprep.subr.mxu0 0.0
  %4507 = vmatpush1.msra.mxu0 0.0
  %4508 = vmatprep.subr.mxu0 0.0
  %4509 = vmatpush1.msra.mxu0 0.0
  %4510 = vmatprep.subr.mxu0 0.0
  %4511 = vmatpush1.msra.mxu0 0.0
  %4512 = vmatprep.subr.mxu0 0.0
  %4513 = vmatpush1.msra.mxu0 0.0
  %4514 = vmatprep.subr.mxu0 0.0
  %4515 = vmatpush1.msra.mxu0 0.0
  %4516 = vmatprep.subr.mxu0 0.0
  %4517 = vmatpush1.msra.mxu0 0.0
  %4518 = vmatprep.subr.mxu0 0.0
  %4519 = vmatpush1.msra.mxu0 0.0
  %4520 = vmatprep.subr.mxu0 0.0
  %4521 = vmatpush1.msra.mxu0 0.0
  %4522 = vmatprep.subr.mxu0 0.0
  %4523 = vmatpush1.msra.mxu0 0.0
  %4524 = vmatprep.subr.mxu0 0.0
  %4525 = vmatpush1.msra.mxu0 0.0
  %4526 = vmatprep.subr.mxu0 0.0
  %4527 = vmatpush1.msra.mxu0 0.0
  %4528 = vmatprep.subr.mxu0 0.0
  %4529 = vmatpush1.msra.mxu0 0.0
  %4530 = vmatprep.subr.mxu0 0.0
  %4531 = vmatpush1.msra.mxu0 0.0
  %4532 = vmatprep.subr.mxu0 0.0
  %4533 = vmatpush1.msra.mxu0 0.0
  %4534 = vmatprep.subr.mxu0 0.0
  %4535 = vmatpush1.msra.mxu0 0.0
  %4536 = vmatprep.subr.mxu0 0.0
  %4537 = vmatpush1.msra.mxu0 0.0
  %4538 = vmatprep.subr.mxu0 0.0
  %4539 = vmatpush1.msra.mxu0 0.0
  %4540 = vmatprep.subr.mxu0 0.0
  %4541 = vmatpush1.msra.mxu0 0.0
  %4542 = vmatprep.subr.mxu0 0.0
  %4543 = vmatpush1.msra.mxu0 0.0
  %4544 = vmatprep.subr.mxu0 0.0
  %4545 = vmatpush1.msra.mxu0 0.0
  %4546 = vmatprep.subr.mxu0 0.0
  %4547 = vmatpush1.msra.mxu0 0.0
  %4548 = vmatprep.subr.mxu0 0.0
  %4549 = vmatpush1.msra.mxu0 0.0
  %4550 = vmatprep.subr.mxu0 0.0
  %4551 = vmatpush1.msra.mxu0 0.0
  %4552 = vmatprep.subr.mxu0 0.0
  %4553 = vmatpush1.msra.mxu0 0.0
  %4554 = vmatprep.subr.mxu0 0.0
  %4555 = vmatpush1.msra.mxu0 0.0
  %4556 = vmatprep.subr.mxu0 0.0
  %4557 = vmatpush1.msra.mxu0 0.0
  %4558 = vmatprep.subr.mxu0 0.0
  %4559 = vmatpush1.msra.mxu0 0.0
  %4560 = vmatprep.mubr.f32.mxu0 0.0
  %4561 = vmatmul.mubr.f32.gmra.mrb[0].mxu0 %v4470
  %v4562 = vpop.f32.mrb[0].mxu0
  %v4563 = vadd.f32 0.0, %v4562
  %v4564 = vpop.f32.mrb[0].mxu0
  %4565 = vmatprep.mubr.f32.mxu0 0.0
  %4566 = vmatmul.mubr.f32.gmra.mrb[0].mxu0 %v4473
  %v4567 = vpop.f32.mrb[0].mxu0
  %v4568 = vadd.f32 0.0, %v4567
  %v4569 = vpop.f32.mrb[0].mxu0
  %4570 = vmatprep.mubr.f32.mxu0 0.0
  %4571 = vmatmul.mubr.f32.gmra.mrb[0].mxu0 %v4476
  %v4572 = vpop.f32.mrb[0].mxu0
  %v4573 = vadd.f32 0.0, %v4572
  %v4574 = vpop.f32.mrb[0].mxu0
  %4575 = vmatprep.mubr.f32.mxu0 0.0
  %4576 = vmatmul.mubr.f32.gmra.mrb[0].mxu0 %v4479
  %v4577 = vpop.f32.mrb[0].mxu0
  %v4578 = vadd.f32 0.0, %v4577
  %v4579 = vpop.f32.mrb[0].mxu0
  %4580 = vmatprep.mubr.f32.mxu0 0.0
  %4581 = vmatmul.mubr.f32.gmra.mrb[0].mxu0 %v4482
  %v4582 = vpop.f32.mrb[0].mxu0
  %v4583 = vadd.f32 0.0, %v4582
  %v4584 = vpop.f32.mrb[0].mxu0
  %4585 = vmatprep.mubr.f32.mxu0 0.0
  %4586 = vmatmul.mubr.f32.gmra.mrb[0].mxu0 %v4485
  %v4587 = vpop.f32.mrb[0].mxu0
  %v4588 = vadd.f32 0.0, %v4587
  %v4589 = vpop.f32.mrb[0].mxu0
  %4590 = vmatprep.mubr.f32.mxu0 0.0
  %4591 = vmatmul.mubr.f32.gmra.mrb[0].mxu0 %v4488
  %v4592 = vpop.f32.mrb[0].mxu0
  %v4593 = vadd.f32 0.0, %v4592
  %v4594 = vpop.f32.mrb[0].mxu0
  %4595 = vmatprep.mubr.f32.mxu0 0.0
  %4596 = vmatmul.mubr.f32.gmra.mrb[0].mxu0 %v4491
  %v4597 = vpop.f32.mrb[0].mxu0
  %v4598 = vadd.f32 0.0, %v4597
  %v4599 = vpop.f32.mrb[0].mxu0
  %4600 = vmatprep.mubr.f32.mxu0 0.0
  %4601 = vmatmul.mubr.f32.gmra.mrb[0].mxu0 %v4494
  %v4602 = vpop.f32.mrb[0].mxu0
  %v4603 = vadd.f32 0.0, %v4602
  %v4604 = vpop.f32.mrb[0].mxu0
  %4605 = vdwg.mxu0
  %v4606 = vadd.f32 %v4301, %v4563
  %v4607 = vadd.f32 %v4302, %v4568
  %v4608 = vadd.f32 %v4303, %v4573
  %v4609 = vadd.f32 %v4304, %v4578
  %v4610 = vadd.f32 %v4305, %v4583
  %v4611 = vadd.f32 %v4306, %v4588
  %v4612 = vadd.f32 %v4307, %v4593
  %v4613 = vadd.f32 %v4308, %v4598
  %v4614 = vadd.f32 %v4309, %v4603
  %v4615 = vld [vmem:[%s0 + $0x438] sm:$0xff]
  %v4616 = vld [vmem:[%s0 + $0x440] sm:$0xff]
  %v4617 = vld [vmem:[%s0 + $0x448] sm:$0xff]
  %v4618 = vld [vmem:[%s0 + $0x450] sm:$0xff]
  %v4619 = vld [vmem:[%s0 + $0x458] sm:$0xff]
  %v4620 = vld [vmem:[%s0 + $0x460] sm:$0xff]
  %v4621 = vld [vmem:[%s0 + $0x468] sm:$0xff]
  %v4622 = vld [vmem:[%s0 + $0x470] sm:$0xff]
  %v4623 = vld [vmem:[%s0 + $0x478] sm:$0xff]
  %v4625 = vsel %vm61, %v4615, 0
  %v4628 = vsel %vm61, %v4616, 0
  %v4631 = vsel %vm61, %v4617, 0
  %v4634 = vsel %vm61, %v4618, 0
  %v4637 = vsel %vm61, %v4619, 0
  %v4640 = vsel %vm61, %v4620, 0
  %v4643 = vsel %vm61, %v4621, 0
  %v4646 = vsel %vm61, %v4622, 0
  %v4649 = vsel %vm61, %v4623, 0
  %4651 = vmatprep.subr.mxu0 0.0
  %4652 = vmatpush1.msra.mxu0 %v32
  %4653 = vmatprep.subr.mxu0 0.0
  %4654 = vmatpush1.msra.mxu0 %v33
  %4655 = vmatprep.subr.mxu0 0.0
  %4656 = vmatpush1.msra.mxu0 %v34
  %4657 = vmatprep.subr.mxu0 0.0
  %4658 = vmatpush1.msra.mxu0 %v35
  %4659 = vmatprep.subr.mxu0 0.0
  %4660 = vmatpush1.msra.mxu0 %v36
  %4661 = vmatprep.subr.mxu0 0.0
  %4662 = vmatpush1.msra.mxu0 %v37
  %4663 = vmatprep.subr.mxu0 0.0
  %4664 = vmatpush1.msra.mxu0 %v38
  %4665 = vmatprep.subr.mxu0 0.0
  %4666 = vmatpush1.msra.mxu0 %v39
  %4667 = vmatprep.subr.mxu0 0.0
  %4668 = vmatpush1.msra.mxu0 %v40
  %4669 = vmatprep.subr.mxu0 0.0
  %4670 = vmatpush1.msra.mxu0 %v41
  %4671 = vmatprep.subr.mxu0 0.0
  %4672 = vmatpush1.msra.mxu0 %v42
  %4673 = vmatprep.subr.mxu0 0.0
  %4674 = vmatpush1.msra.mxu0 %v43
  %4675 = vmatprep.subr.mxu0 0.0
  %4676 = vmatpush1.msra.mxu0 %v91
  %4677 = vmatprep.subr.mxu0 0.0
  %4678 = vmatpush1.msra.mxu0 0.0
  %4679 = vmatprep.subr.mxu0 0.0
  %4680 = vmatpush1.msra.mxu0 0.0
  %4681 = vmatprep.subr.mxu0 0.0
  %4682 = vmatpush1.msra.mxu0 0.0
  %4683 = vmatprep.subr.mxu0 0.0
  %4684 = vmatpush1.msra.mxu0 0.0
  %4685 = vmatprep.subr.mxu0 0.0
  %4686 = vmatpush1.msra.mxu0 0.0
  %4687 = vmatprep.subr.mxu0 0.0
  %4688 = vmatpush1.msra.mxu0 0.0
  %4689 = vmatprep.subr.mxu0 0.0
  %4690 = vmatpush1.msra.mxu0 0.0
  %4691 = vmatprep.subr.mxu0 0.0
  %4692 = vmatpush1.msra.mxu0 0.0
  %4693 = vmatprep.subr.mxu0 0.0
  %4694 = vmatpush1.msra.mxu0 0.0
  %4695 = vmatprep.subr.mxu0 0.0
  %4696 = vmatpush1.msra.mxu0 0.0
  %4697 = vmatprep.subr.mxu0 0.0
  %4698 = vmatpush1.msra.mxu0 0.0
  %4699 = vmatprep.subr.mxu0 0.0
  %4700 = vmatpush1.msra.mxu0 0.0
  %4701 = vmatprep.subr.mxu0 0.0
  %4702 = vmatpush1.msra.mxu0 0.0
  %4703 = vmatprep.subr.mxu0 0.0
  %4704 = vmatpush1.msra.mxu0 0.0
  %4705 = vmatprep.subr.mxu0 0.0
  %4706 = vmatpush1.msra.mxu0 0.0
  %4707 = vmatprep.subr.mxu0 0.0
  %4708 = vmatpush1.msra.mxu0 0.0
  %4709 = vmatprep.subr.mxu0 0.0
  %4710 = vmatpush1.msra.mxu0 0.0
  %4711 = vmatprep.subr.mxu0 0.0
  %4712 = vmatpush1.msra.mxu0 0.0
  %4713 = vmatprep.subr.mxu0 0.0
  %4714 = vmatpush1.msra.mxu0 0.0
  %4715 = vmatprep.mubr.f32.mxu0 0.0
  %4716 = vmatmul.mubr.f32.gmra.mrb[0].mxu0 %v4625
  %v4717 = vpop.f32.mrb[0].mxu0
  %v4718 = vadd.f32 %v59, %v4717
  %v4719 = vpop.f32.mrb[0].mxu0
  %4720 = vmatprep.mubr.f32.mxu0 0.0
  %4721 = vmatmul.mubr.f32.gmra.mrb[0].mxu0 %v4628
  %v4722 = vpop.f32.mrb[0].mxu0
  %v4723 = vadd.f32 %v59, %v4722
  %v4724 = vpop.f32.mrb[0].mxu0
  %4725 = vmatprep.mubr.f32.mxu0 0.0
  %4726 = vmatmul.mubr.f32.gmra.mrb[0].mxu0 %v4631
  %v4727 = vpop.f32.mrb[0].mxu0
  %v4728 = vadd.f32 %v59, %v4727
  %v4729 = vpop.f32.mrb[0].mxu0
  %4730 = vmatprep.mubr.f32.mxu0 0.0
  %4731 = vmatmul.mubr.f32.gmra.mrb[0].mxu0 %v4634
  %v4732 = vpop.f32.mrb[0].mxu0
  %v4733 = vadd.f32 %v59, %v4732
  %v4734 = vpop.f32.mrb[0].mxu0
  %4735 = vmatprep.mubr.f32.mxu0 0.0
  %4736 = vmatmul.mubr.f32.gmra.mrb[0].mxu0 %v4637
  %v4737 = vpop.f32.mrb[0].mxu0
  %v4738 = vadd.f32 %v59, %v4737
  %v4739 = vpop.f32.mrb[0].mxu0
  %4740 = vmatprep.mubr.f32.mxu0 0.0
  %4741 = vmatmul.mubr.f32.gmra.mrb[0].mxu0 %v4640
  %v4742 = vpop.f32.mrb[0].mxu0
  %v4743 = vadd.f32 %v59, %v4742
  %v4744 = vpop.f32.mrb[0].mxu0
  %4745 = vmatprep.mubr.f32.mxu0 0.0
  %4746 = vmatmul.mubr.f32.gmra.mrb[0].mxu0 %v4643
  %v4747 = vpop.f32.mrb[0].mxu0
  %v4748 = vadd.f32 %v59, %v4747
  %v4749 = vpop.f32.mrb[0].mxu0
  %4750 = vmatprep.mubr.f32.mxu0 0.0
  %4751 = vmatmul.mubr.f32.gmra.mrb[0].mxu0 %v4646
  %v4752 = vpop.f32.mrb[0].mxu0
  %v4753 = vadd.f32 %v59, %v4752
  %v4754 = vpop.f32.mrb[0].mxu0
  %4755 = vmatprep.mubr.f32.mxu0 0.0
  %4756 = vmatmul.mubr.f32.gmra.mrb[0].mxu0 %v4649
  %v4757 = vpop.f32.mrb[0].mxu0
  %v4758 = vadd.f32 %v59, %v4757
  %v4759 = vpop.f32.mrb[0].mxu0
  %4760 = vdwg.mxu0
  %v4761 = vmax.f32 %v4718, 0.0
  %v4762 = vmax.f32 %v4723, 0.0
  %v4763 = vmax.f32 %v4728, 0.0
  %v4764 = vmax.f32 %v4733, 0.0
  %v4765 = vmax.f32 %v4738, 0.0
  %v4766 = vmax.f32 %v4743, 0.0
  %v4767 = vmax.f32 %v4748, 0.0
  %v4768 = vmax.f32 %v4753, 0.0
  %v4769 = vmax.f32 %v4758, 0.0
  %v4770 = vld [vmem:[%s3 + $0x1e0] sm:$0xff]
  %v4771 = vld [vmem:[%s3 + $0x1e8] sm:$0xff]
  %v4772 = vld [vmem:[%s3 + $0x1f0] sm:$0xff]
  %v4773 = vld [vmem:[%s3 + $0x1f8] sm:$0xff]
  %v4775 = vsel %vm375, %v4761, 0
  %v4778 = vsel %vm375, %v4762, 0
  %v4781 = vsel %vm375, %v4763, 0
  %v4784 = vsel %vm375, %v4764, 0
  %v4787 = vsel %vm375, %v4765, 0
  %v4790 = vsel %vm375, %v4766, 0
  %v4793 = vsel %vm375, %v4767, 0
  %v4796 = vsel %vm375, %v4768, 0
  %v4799 = vsel %vm375, %v4769, 0
  %4801 = vmatprep.subr.mxu0 0.0
  %4802 = vmatpush1.msra.mxu0 %v4770
  %4803 = vmatprep.subr.mxu0 0.0
  %4804 = vmatpush1.msra.mxu0 %v4771
  %4805 = vmatprep.subr.mxu0 0.0
  %4806 = vmatpush1.msra.mxu0 %v4772
  %4807 = vmatprep.subr.mxu0 0.0
  %4808 = vmatpush1.msra.mxu0 %v4773
  %4809 = vmatprep.subr.mxu0 0.0
  %4810 = vmatpush1.msra.mxu0 0.0
  %4811 = vmatprep.subr.mxu0 0.0
  %4812 = vmatpush1.msra.mxu0 0.0
  %4813 = vmatprep.subr.mxu0 0.0
  %4814 = vmatpush1.msra.mxu0 0.0
  %4815 = vmatprep.subr.mxu0 0.0
  %4816 = vmatpush1.msra.mxu0 0.0
  %4817 = vmatprep.subr.mxu0 0.0
  %4818 = vmatpush1.msra.mxu0 0.0
  %4819 = vmatprep.subr.mxu0 0.0
  %4820 = vmatpush1.msra.mxu0 0.0
  %4821 = vmatprep.subr.mxu0 0.0
  %4822 = vmatpush1.msra.mxu0 0.0
  %4823 = vmatprep.subr.mxu0 0.0
  %4824 = vmatpush1.msra.mxu0 0.0
  %4825 = vmatprep.subr.mxu0 0.0
  %4826 = vmatpush1.msra.mxu0 0.0
  %4827 = vmatprep.subr.mxu0 0.0
  %4828 = vmatpush1.msra.mxu0 0.0
  %4829 = vmatprep.subr.mxu0 0.0
  %4830 = vmatpush1.msra.mxu0 0.0
  %4831 = vmatprep.subr.mxu0 0.0
  %4832 = vmatpush1.msra.mxu0 0.0
  %4833 = vmatprep.subr.mxu0 0.0
  %4834 = vmatpush1.msra.mxu0 0.0
  %4835 = vmatprep.subr.mxu0 0.0
  %4836 = vmatpush1.msra.mxu0 0.0
  %4837 = vmatprep.subr.mxu0 0.0
  %4838 = vmatpush1.msra.mxu0 0.0
  %4839 = vmatprep.subr.mxu0 0.0
  %4840 = vmatpush1.msra.mxu0 0.0
  %4841 = vmatprep.subr.mxu0 0.0
  %4842 = vmatpush1.msra.mxu0 0.0
  %4843 = vmatprep.subr.mxu0 0.0
  %4844 = vmatpush1.msra.mxu0 0.0
  %4845 = vmatprep.subr.mxu0 0.0
  %4846 = vmatpush1.msra.mxu0 0.0
  %4847 = vmatprep.subr.mxu0 0.0
  %4848 = vmatpush1.msra.mxu0 0.0
  %4849 = vmatprep.subr.mxu0 0.0
  %4850 = vmatpush1.msra.mxu0 0.0
  %4851 = vmatprep.subr.mxu0 0.0
  %4852 = vmatpush1.msra.mxu0 0.0
  %4853 = vmatprep.subr.mxu0 0.0
  %4854 = vmatpush1.msra.mxu0 0.0
  %4855 = vmatprep.subr.mxu0 0.0
  %4856 = vmatpush1.msra.mxu0 0.0
  %4857 = vmatprep.subr.mxu0 0.0
  %4858 = vmatpush1.msra.mxu0 0.0
  %4859 = vmatprep.subr.mxu0 0.0
  %4860 = vmatpush1.msra.mxu0 0.0
  %4861 = vmatprep.subr.mxu0 0.0
  %4862 = vmatpush1.msra.mxu0 0.0
  %4863 = vmatprep.subr.mxu0 0.0
  %4864 = vmatpush1.msra.mxu0 0.0
  %4865 = vmatprep.mubr.f32.mxu0 0.0
  %4866 = vmatmul.mubr.f32.gmra.mrb[0].mxu0 %v4775
  %v4867 = vpop.f32.mrb[0].mxu0
  %v4868 = vadd.f32 0.0, %v4867
  %v4869 = vpop.f32.mrb[0].mxu0
  %4870 = vmatprep.mubr.f32.mxu0 0.0
  %4871 = vmatmul.mubr.f32.gmra.mrb[0].mxu0 %v4778
  %v4872 = vpop.f32.mrb[0].mxu0
  %v4873 = vadd.f32 0.0, %v4872
  %v4874 = vpop.f32.mrb[0].mxu0
  %4875 = vmatprep.mubr.f32.mxu0 0.0
  %4876 = vmatmul.mubr.f32.gmra.mrb[0].mxu0 %v4781
  %v4877 = vpop.f32.mrb[0].mxu0
  %v4878 = vadd.f32 0.0, %v4877
  %v4879 = vpop.f32.mrb[0].mxu0
  %4880 = vmatprep.mubr.f32.mxu0 0.0
  %4881 = vmatmul.mubr.f32.gmra.mrb[0].mxu0 %v4784
  %v4882 = vpop.f32.mrb[0].mxu0
  %v4883 = vadd.f32 0.0, %v4882
  %v4884 = vpop.f32.mrb[0].mxu0
  %4885 = vmatprep.mubr.f32.mxu0 0.0
  %4886 = vmatmul.mubr.f32.gmra.mrb[0].mxu0 %v4787
  %v4887 = vpop.f32.mrb[0].mxu0
  %v4888 = vadd.f32 0.0, %v4887
  %v4889 = vpop.f32.mrb[0].mxu0
  %4890 = vmatprep.mubr.f32.mxu0 0.0
  %4891 = vmatmul.mubr.f32.gmra.mrb[0].mxu0 %v4790
  %v4892 = vpop.f32.mrb[0].mxu0
  %v4893 = vadd.f32 0.0, %v4892
  %v4894 = vpop.f32.mrb[0].mxu0
  %4895 = vmatprep.mubr.f32.mxu0 0.0
  %4896 = vmatmul.mubr.f32.gmra.mrb[0].mxu0 %v4793
  %v4897 = vpop.f32.mrb[0].mxu0
  %v4898 = vadd.f32 0.0, %v4897
  %v4899 = vpop.f32.mrb[0].mxu0
  %4900 = vmatprep.mubr.f32.mxu0 0.0
  %4901 = vmatmul.mubr.f32.gmra.mrb[0].mxu0 %v4796
  %v4902 = vpop.f32.mrb[0].mxu0
  %v4903 = vadd.f32 0.0, %v4902
  %v4904 = vpop.f32.mrb[0].mxu0
  %4905 = vmatprep.mubr.f32.mxu0 0.0
  %4906 = vmatmul.mubr.f32.gmra.mrb[0].mxu0 %v4799
  %v4907 = vpop.f32.mrb[0].mxu0
  %v4908 = vadd.f32 0.0, %v4907
  %v4909 = vpop.f32.mrb[0].mxu0
  %4910 = vdwg.mxu0
  %v4911 = vadd.f32 %v4606, %v4868
  %v4912 = vadd.f32 %v4607, %v4873
  %v4913 = vadd.f32 %v4608, %v4878
  %v4914 = vadd.f32 %v4609, %v4883
  %v4915 = vadd.f32 %v4610, %v4888
  %v4916 = vadd.f32 %v4611, %v4893
  %v4917 = vadd.f32 %v4612, %v4898
  %v4918 = vadd.f32 %v4613, %v4903
  %v4919 = vadd.f32 %v4614, %v4908
  %v4920 = vld [vmem:[%s0 + $0x480] sm:$0xff]
  %v4921 = vld [vmem:[%s0 + $0x488] sm:$0xff]
  %v4922 = vld [vmem:[%s0 + $0x490] sm:$0xff]
  %v4923 = vld [vmem:[%s0 + $0x498] sm:$0xff]
  %v4924 = vld [vmem:[%s0 + $0x4a0] sm:$0xff]
  %v4925 = vld [vmem:[%s0 + $0x4a8] sm:$0xff]
  %v4926 = vld [vmem:[%s0 + $0x4b0] sm:$0xff]
  %v4927 = vld [vmem:[%s0 + $0x4b8] sm:$0xff]
  %v4928 = vld [vmem:[%s0 + $0x4c0] sm:$0xff]
  %v4930 = vsel %vm61, %v4920, 0
  %v4933 = vsel %vm61, %v4921, 0
  %v4936 = vsel %vm61, %v4922, 0
  %v4939 = vsel %vm61, %v4923, 0
  %v4942 = vsel %vm61, %v4924, 0
  %v4945 = vsel %vm61, %v4925, 0
  %v4948 = vsel %vm61, %v4926, 0
  %v4951 = vsel %vm61, %v4927, 0
  %v4954 = vsel %vm61, %v4928, 0
  %4956 = vmatprep.subr.mxu0 0.0
  %4957 = vmatpush1.msra.mxu0 %v32
  %4958 = vmatprep.subr.mxu0 0.0
  %4959 = vmatpush1.msra.mxu0 %v33
  %4960 = vmatprep.subr.mxu0 0.0
  %4961 = vmatpush1.msra.mxu0 %v34
  %4962 = vmatprep.subr.mxu0 0.0
  %4963 = vmatpush1.msra.mxu0 %v35
  %4964 = vmatprep.subr.mxu0 0.0
  %4965 = vmatpush1.msra.mxu0 %v36
  %4966 = vmatprep.subr.mxu0 0.0
  %4967 = vmatpush1.msra.mxu0 %v37
  %4968 = vmatprep.subr.mxu0 0.0
  %4969 = vmatpush1.msra.mxu0 %v38
  %4970 = vmatprep.subr.mxu0 0.0
  %4971 = vmatpush1.msra.mxu0 %v39
  %4972 = vmatprep.subr.mxu0 0.0
  %4973 = vmatpush1.msra.mxu0 %v40
  %4974 = vmatprep.subr.mxu0 0.0
  %4975 = vmatpush1.msra.mxu0 %v41
  %4976 = vmatprep.subr.mxu0 0.0
  %4977 = vmatpush1.msra.mxu0 %v42
  %4978 = vmatprep.subr.mxu0 0.0
  %4979 = vmatpush1.msra.mxu0 %v43
  %4980 = vmatprep.subr.mxu0 0.0
  %4981 = vmatpush1.msra.mxu0 %v91
  %4982 = vmatprep.subr.mxu0 0.0
  %4983 = vmatpush1.msra.mxu0 0.0
  %4984 = vmatprep.subr.mxu0 0.0
  %4985 = vmatpush1.msra.mxu0 0.0
  %4986 = vmatprep.subr.mxu0 0.0
  %4987 = vmatpush1.msra.mxu0 0.0
  %4988 = vmatprep.subr.mxu0 0.0
  %4989 = vmatpush1.msra.mxu0 0.0
  %4990 = vmatprep.subr.mxu0 0.0
  %4991 = vmatpush1.msra.mxu0 0.0
  %4992 = vmatprep.subr.mxu0 0.0
  %4993 = vmatpush1.msra.mxu0 0.0
  %4994 = vmatprep.subr.mxu0 0.0
  %4995 = vmatpush1.msra.mxu0 0.0
  %4996 = vmatprep.subr.mxu0 0.0
  %4997 = vmatpush1.msra.mxu0 0.0
  %4998 = vmatprep.subr.mxu0 0.0
  %4999 = vmatpush1.msra.mxu0 0.0
  %5000 = vmatprep.subr.mxu0 0.0
  %5001 = vmatpush1.msra.mxu0 0.0
  %5002 = vmatprep.subr.mxu0 0.0
  %5003 = vmatpush1.msra.mxu0 0.0
  %5004 = vmatprep.subr.mxu0 0.0
  %5005 = vmatpush1.msra.mxu0 0.0
  %5006 = vmatprep.subr.mxu0 0.0
  %5007 = vmatpush1.msra.mxu0 0.0
  %5008 = vmatprep.subr.mxu0 0.0
  %5009 = vmatpush1.msra.mxu0 0.0
  %5010 = vmatprep.subr.mxu0 0.0
  %5011 = vmatpush1.msra.mxu0 0.0
  %5012 = vmatprep.subr.mxu0 0.0
  %5013 = vmatpush1.msra.mxu0 0.0
  %5014 = vmatprep.subr.mxu0 0.0
  %5015 = vmatpush1.msra.mxu0 0.0
  %5016 = vmatprep.subr.mxu0 0.0
  %5017 = vmatpush1.msra.mxu0 0.0
  %5018 = vmatprep.subr.mxu0 0.0
  %5019 = vmatpush1.msra.mxu0 0.0
  %5020 = vmatprep.mubr.f32.mxu0 0.0
  %5021 = vmatmul.mubr.f32.gmra.mrb[0].mxu0 %v4930
  %v5022 = vpop.f32.mrb[0].mxu0
  %v5023 = vadd.f32 %v59, %v5022
  %v5024 = vpop.f32.mrb[0].mxu0
  %5025 = vmatprep.mubr.f32.mxu0 0.0
  %5026 = vmatmul.mubr.f32.gmra.mrb[0].mxu0 %v4933
  %v5027 = vpop.f32.mrb[0].mxu0
  %v5028 = vadd.f32 %v59, %v5027
  %v5029 = vpop.f32.mrb[0].mxu0
  %5030 = vmatprep.mubr.f32.mxu0 0.0
  %5031 = vmatmul.mubr.f32.gmra.mrb[0].mxu0 %v4936
  %v5032 = vpop.f32.mrb[0].mxu0
  %v5033 = vadd.f32 %v59, %v5032
  %v5034 = vpop.f32.mrb[0].mxu0
  %5035 = vmatprep.mubr.f32.mxu0 0.0
  %5036 = vmatmul.mubr.f32.gmra.mrb[0].mxu0 %v4939
  %v5037 = vpop.f32.mrb[0].mxu0
  %v5038 = vadd.f32 %v59, %v5037
  %v5039 = vpop.f32.mrb[0].mxu0
  %5040 = vmatprep.mubr.f32.mxu0 0.0
  %5041 = vmatmul.mubr.f32.gmra.mrb[0].mxu0 %v4942
  %v5042 = vpop.f32.mrb[0].mxu0
  %v5043 = vadd.f32 %v59, %v5042
  %v5044 = vpop.f32.mrb[0].mxu0
  %5045 = vmatprep.mubr.f32.mxu0 0.0
  %5046 = vmatmul.mubr.f32.gmra.mrb[0].mxu0 %v4945
  %v5047 = vpop.f32.mrb[0].mxu0
  %v5048 = vadd.f32 %v59, %v5047
  %v5049 = vpop.f32.mrb[0].mxu0
  %5050 = vmatprep.mubr.f32.mxu0 0.0
  %5051 = vmatmul.mubr.f32.gmra.mrb[0].mxu0 %v4948
  %v5052 = vpop.f32.mrb[0].mxu0
  %v5053 = vadd.f32 %v59, %v5052
  %v5054 = vpop.f32.mrb[0].mxu0
  %5055 = vmatprep.mubr.f32.mxu0 0.0
  %5056 = vmatmul.mubr.f32.gmra.mrb[0].mxu0 %v4951
  %v5057 = vpop.f32.mrb[0].mxu0
  %v5058 = vadd.f32 %v59, %v5057
  %v5059 = vpop.f32.mrb[0].mxu0
  %5060 = vmatprep.mubr.f32.mxu0 0.0
  %5061 = vmatmul.mubr.f32.gmra.mrb[0].mxu0 %v4954
  %v5062 = vpop.f32.mrb[0].mxu0
  %v5063 = vadd.f32 %v59, %v5062
  %v5064 = vpop.f32.mrb[0].mxu0
  %5065 = vdwg.mxu0
  %v5066 = vmax.f32 %v5023, 0.0
  %v5067 = vmax.f32 %v5028, 0.0
  %v5068 = vmax.f32 %v5033, 0.0
  %v5069 = vmax.f32 %v5038, 0.0
  %v5070 = vmax.f32 %v5043, 0.0
  %v5071 = vmax.f32 %v5048, 0.0
  %v5072 = vmax.f32 %v5053, 0.0
  %v5073 = vmax.f32 %v5058, 0.0
  %v5074 = vmax.f32 %v5063, 0.0
  %v5075 = vld [vmem:[%s3 + $0x200] sm:$0xff]
  %v5076 = vld [vmem:[%s3 + $0x208] sm:$0xff]
  %v5077 = vld [vmem:[%s3 + $0x210] sm:$0xff]
  %v5078 = vld [vmem:[%s3 + $0x218] sm:$0xff]
  %v5080 = vsel %vm375, %v5066, 0
  %v5083 = vsel %vm375, %v5067, 0
  %v5086 = vsel %vm375, %v5068, 0
  %v5089 = vsel %vm375, %v5069, 0
  %v5092 = vsel %vm375, %v5070, 0
  %v5095 = vsel %vm375, %v5071, 0
  %v5098 = vsel %vm375, %v5072, 0
  %v5101 = vsel %vm375, %v5073, 0
  %v5104 = vsel %vm375, %v5074, 0
  %5106 = vmatprep.subr.mxu0 0.0
  %5107 = vmatpush1.msra.mxu0 %v5075
  %5108 = vmatprep.subr.mxu0 0.0
  %5109 = vmatpush1.msra.mxu0 %v5076
  %5110 = vmatprep.subr.mxu0 0.0
  %5111 = vmatpush1.msra.mxu0 %v5077
  %5112 = vmatprep.subr.mxu0 0.0
  %5113 = vmatpush1.msra.mxu0 %v5078
  %5114 = vmatprep.subr.mxu0 0.0
  %5115 = vmatpush1.msra.mxu0 0.0
  %5116 = vmatprep.subr.mxu0 0.0
  %5117 = vmatpush1.msra.mxu0 0.0
  %5118 = vmatprep.subr.mxu0 0.0
  %5119 = vmatpush1.msra.mxu0 0.0
  %5120 = vmatprep.subr.mxu0 0.0
  %5121 = vmatpush1.msra.mxu0 0.0
  %5122 = vmatprep.subr.mxu0 0.0
  %5123 = vmatpush1.msra.mxu0 0.0
  %5124 = vmatprep.subr.mxu0 0.0
  %5125 = vmatpush1.msra.mxu0 0.0
  %5126 = vmatprep.subr.mxu0 0.0
  %5127 = vmatpush1.msra.mxu0 0.0
  %5128 = vmatprep.subr.mxu0 0.0
  %5129 = vmatpush1.msra.mxu0 0.0
  %5130 = vmatprep.subr.mxu0 0.0
  %5131 = vmatpush1.msra.mxu0 0.0
  %5132 = vmatprep.subr.mxu0 0.0
  %5133 = vmatpush1.msra.mxu0 0.0
  %5134 = vmatprep.subr.mxu0 0.0
  %5135 = vmatpush1.msra.mxu0 0.0
  %5136 = vmatprep.subr.mxu0 0.0
  %5137 = vmatpush1.msra.mxu0 0.0
  %5138 = vmatprep.subr.mxu0 0.0
  %5139 = vmatpush1.msra.mxu0 0.0
  %5140 = vmatprep.subr.mxu0 0.0
  %5141 = vmatpush1.msra.mxu0 0.0
  %5142 = vmatprep.subr.mxu0 0.0
  %5143 = vmatpush1.msra.mxu0 0.0
  %5144 = vmatprep.subr.mxu0 0.0
  %5145 = vmatpush1.msra.mxu0 0.0
  %5146 = vmatprep.subr.mxu0 0.0
  %5147 = vmatpush1.msra.mxu0 0.0
  %5148 = vmatprep.subr.mxu0 0.0
  %5149 = vmatpush1.msra.mxu0 0.0
  %5150 = vmatprep.subr.mxu0 0.0
  %5151 = vmatpush1.msra.mxu0 0.0
  %5152 = vmatprep.subr.mxu0 0.0
  %5153 = vmatpush1.msra.mxu0 0.0
  %5154 = vmatprep.subr.mxu0 0.0
  %5155 = vmatpush1.msra.mxu0 0.0
  %5156 = vmatprep.subr.mxu0 0.0
  %5157 = vmatpush1.msra.mxu0 0.0
  %5158 = vmatprep.subr.mxu0 0.0
  %5159 = vmatpush1.msra.mxu0 0.0
  %5160 = vmatprep.subr.mxu0 0.0
  %5161 = vmatpush1.msra.mxu0 0.0
  %5162 = vmatprep.subr.mxu0 0.0
  %5163 = vmatpush1.msra.mxu0 0.0
  %5164 = vmatprep.subr.mxu0 0.0
  %5165 = vmatpush1.msra.mxu0 0.0
  %5166 = vmatprep.subr.mxu0 0.0
  %5167 = vmatpush1.msra.mxu0 0.0
  %5168 = vmatprep.subr.mxu0 0.0
  %5169 = vmatpush1.msra.mxu0 0.0
  %5170 = vmatprep.mubr.f32.mxu0 0.0
  %5171 = vmatmul.mubr.f32.gmra.mrb[0].mxu0 %v5080
  %v5172 = vpop.f32.mrb[0].mxu0
  %v5173 = vadd.f32 0.0, %v5172
  %v5174 = vpop.f32.mrb[0].mxu0
  %5175 = vmatprep.mubr.f32.mxu0 0.0
  %5176 = vmatmul.mubr.f32.gmra.mrb[0].mxu0 %v5083
  %v5177 = vpop.f32.mrb[0].mxu0
  %v5178 = vadd.f32 0.0, %v5177
  %v5179 = vpop.f32.mrb[0].mxu0
  %5180 = vmatprep.mubr.f32.mxu0 0.0
  %5181 = vmatmul.mubr.f32.gmra.mrb[0].mxu0 %v5086
  %v5182 = vpop.f32.mrb[0].mxu0
  %v5183 = vadd.f32 0.0, %v5182
  %v5184 = vpop.f32.mrb[0].mxu0
  %5185 = vmatprep.mubr.f32.mxu0 0.0
  %5186 = vmatmul.mubr.f32.gmra.mrb[0].mxu0 %v5089
  %v5187 = vpop.f32.mrb[0].mxu0
  %v5188 = vadd.f32 0.0, %v5187
  %v5189 = vpop.f32.mrb[0].mxu0
  %5190 = vmatprep.mubr.f32.mxu0 0.0
  %5191 = vmatmul.mubr.f32.gmra.mrb[0].mxu0 %v5092
  %v5192 = vpop.f32.mrb[0].mxu0
  %v5193 = vadd.f32 0.0, %v5192
  %v5194 = vpop.f32.mrb[0].mxu0
  %5195 = vmatprep.mubr.f32.mxu0 0.0
  %5196 = vmatmul.mubr.f32.gmra.mrb[0].mxu0 %v5095
  %v5197 = vpop.f32.mrb[0].mxu0
  %v5198 = vadd.f32 0.0, %v5197
  %v5199 = vpop.f32.mrb[0].mxu0
  %5200 = vmatprep.mubr.f32.mxu0 0.0
  %5201 = vmatmul.mubr.f32.gmra.mrb[0].mxu0 %v5098
  %v5202 = vpop.f32.mrb[0].mxu0
  %v5203 = vadd.f32 0.0, %v5202
  %v5204 = vpop.f32.mrb[0].mxu0
  %5205 = vmatprep.mubr.f32.mxu0 0.0
  %5206 = vmatmul.mubr.f32.gmra.mrb[0].mxu0 %v5101
  %v5207 = vpop.f32.mrb[0].mxu0
  %v5208 = vadd.f32 0.0, %v5207
  %v5209 = vpop.f32.mrb[0].mxu0
  %5210 = vmatprep.mubr.f32.mxu0 0.0
  %5211 = vmatmul.mubr.f32.gmra.mrb[0].mxu0 %v5104
  %v5212 = vpop.f32.mrb[0].mxu0
  %v5213 = vadd.f32 0.0, %v5212
  %v5214 = vpop.f32.mrb[0].mxu0
  %5215 = vdwg.mxu0
  %v5216 = vadd.f32 %v4911, %v5173
  %v5217 = vadd.f32 %v4912, %v5178
  %v5218 = vadd.f32 %v4913, %v5183
  %v5219 = vadd.f32 %v4914, %v5188
  %v5220 = vadd.f32 %v4915, %v5193
  %v5221 = vadd.f32 %v4916, %v5198
  %v5222 = vadd.f32 %v4917, %v5203
  %v5223 = vadd.f32 %v4918, %v5208
  %v5224 = vadd.f32 %v4919, %v5213
  %v5225 = vld [vmem:[%s0 + $0x4c8] sm:$0xff]
  %v5226 = vld [vmem:[%s0 + $0x4d0] sm:$0xff]
  %v5227 = vld [vmem:[%s0 + $0x4d8] sm:$0xff]
  %v5228 = vld [vmem:[%s0 + $0x4e0] sm:$0xff]
  %v5229 = vld [vmem:[%s0 + $0x4e8] sm:$0xff]
  %v5230 = vld [vmem:[%s0 + $0x4f0] sm:$0xff]
  %v5231 = vld [vmem:[%s0 + $0x4f8] sm:$0xff]
  %v5232 = vld [vmem:[%s0 + $0x500] sm:$0xff]
  %v5233 = vld [vmem:[%s0 + $0x508] sm:$0xff]
  %v5235 = vsel %vm61, %v5225, 0
  %v5238 = vsel %vm61, %v5226, 0
  %v5241 = vsel %vm61, %v5227, 0
  %v5244 = vsel %vm61, %v5228, 0
  %v5247 = vsel %vm61, %v5229, 0
  %v5250 = vsel %vm61, %v5230, 0
  %v5253 = vsel %vm61, %v5231, 0
  %v5256 = vsel %vm61, %v5232, 0
  %v5259 = vsel %vm61, %v5233, 0
  %5261 = vmatprep.subr.mxu0 0.0
  %5262 = vmatpush1.msra.mxu0 %v32
  %5263 = vmatprep.subr.mxu0 0.0
  %5264 = vmatpush1.msra.mxu0 %v33
  %5265 = vmatprep.subr.mxu0 0.0
  %5266 = vmatpush1.msra.mxu0 %v34
  %5267 = vmatprep.subr.mxu0 0.0
  %5268 = vmatpush1.msra.mxu0 %v35
  %5269 = vmatprep.subr.mxu0 0.0
  %5270 = vmatpush1.msra.mxu0 %v36
  %5271 = vmatprep.subr.mxu0 0.0
  %5272 = vmatpush1.msra.mxu0 %v37
  %5273 = vmatprep.subr.mxu0 0.0
  %5274 = vmatpush1.msra.mxu0 %v38
  %5275 = vmatprep.subr.mxu0 0.0
  %5276 = vmatpush1.msra.mxu0 %v39
  %5277 = vmatprep.subr.mxu0 0.0
  %5278 = vmatpush1.msra.mxu0 %v40
  %5279 = vmatprep.subr.mxu0 0.0
  %5280 = vmatpush1.msra.mxu0 %v41
  %5281 = vmatprep.subr.mxu0 0.0
  %5282 = vmatpush1.msra.mxu0 %v42
  %5283 = vmatprep.subr.mxu0 0.0
  %5284 = vmatpush1.msra.mxu0 %v43
  %5285 = vmatprep.subr.mxu0 0.0
  %5286 = vmatpush1.msra.mxu0 %v91
  %5287 = vmatprep.subr.mxu0 0.0
  %5288 = vmatpush1.msra.mxu0 0.0
  %5289 = vmatprep.subr.mxu0 0.0
  %5290 = vmatpush1.msra.mxu0 0.0
  %5291 = vmatprep.subr.mxu0 0.0
  %5292 = vmatpush1.msra.mxu0 0.0
  %5293 = vmatprep.subr.mxu0 0.0
  %5294 = vmatpush1.msra.mxu0 0.0
  %5295 = vmatprep.subr.mxu0 0.0
  %5296 = vmatpush1.msra.mxu0 0.0
  %5297 = vmatprep.subr.mxu0 0.0
  %5298 = vmatpush1.msra.mxu0 0.0
  %5299 = vmatprep.subr.mxu0 0.0
  %5300 = vmatpush1.msra.mxu0 0.0
  %5301 = vmatprep.subr.mxu0 0.0
  %5302 = vmatpush1.msra.mxu0 0.0
  %5303 = vmatprep.subr.mxu0 0.0
  %5304 = vmatpush1.msra.mxu0 0.0
  %5305 = vmatprep.subr.mxu0 0.0
  %5306 = vmatpush1.msra.mxu0 0.0
  %5307 = vmatprep.subr.mxu0 0.0
  %5308 = vmatpush1.msra.mxu0 0.0
  %5309 = vmatprep.subr.mxu0 0.0
  %5310 = vmatpush1.msra.mxu0 0.0
  %5311 = vmatprep.subr.mxu0 0.0
  %5312 = vmatpush1.msra.mxu0 0.0
  %5313 = vmatprep.subr.mxu0 0.0
  %5314 = vmatpush1.msra.mxu0 0.0
  %5315 = vmatprep.subr.mxu0 0.0
  %5316 = vmatpush1.msra.mxu0 0.0
  %5317 = vmatprep.subr.mxu0 0.0
  %5318 = vmatpush1.msra.mxu0 0.0
  %5319 = vmatprep.subr.mxu0 0.0
  %5320 = vmatpush1.msra.mxu0 0.0
  %5321 = vmatprep.subr.mxu0 0.0
  %5322 = vmatpush1.msra.mxu0 0.0
  %5323 = vmatprep.subr.mxu0 0.0
  %5324 = vmatpush1.msra.mxu0 0.0
  %5325 = vmatprep.mubr.f32.mxu0 0.0
  %5326 = vmatmul.mubr.f32.gmra.mrb[0].mxu0 %v5235
  %v5327 = vpop.f32.mrb[0].mxu0
  %v5328 = vadd.f32 %v59, %v5327
  %v5329 = vpop.f32.mrb[0].mxu0
  %5330 = vmatprep.mubr.f32.mxu0 0.0
  %5331 = vmatmul.mubr.f32.gmra.mrb[0].mxu0 %v5238
  %v5332 = vpop.f32.mrb[0].mxu0
  %v5333 = vadd.f32 %v59, %v5332
  %v5334 = vpop.f32.mrb[0].mxu0
  %5335 = vmatprep.mubr.f32.mxu0 0.0
  %5336 = vmatmul.mubr.f32.gmra.mrb[0].mxu0 %v5241
  %v5337 = vpop.f32.mrb[0].mxu0
  %v5338 = vadd.f32 %v59, %v5337
  %v5339 = vpop.f32.mrb[0].mxu0
  %5340 = vmatprep.mubr.f32.mxu0 0.0
  %5341 = vmatmul.mubr.f32.gmra.mrb[0].mxu0 %v5244
  %v5342 = vpop.f32.mrb[0].mxu0
  %v5343 = vadd.f32 %v59, %v5342
  %v5344 = vpop.f32.mrb[0].mxu0
  %5345 = vmatprep.mubr.f32.mxu0 0.0
  %5346 = vmatmul.mubr.f32.gmra.mrb[0].mxu0 %v5247
  %v5347 = vpop.f32.mrb[0].mxu0
  %v5348 = vadd.f32 %v59, %v5347
  %v5349 = vpop.f32.mrb[0].mxu0
  %5350 = vmatprep.mubr.f32.mxu0 0.0
  %5351 = vmatmul.mubr.f32.gmra.mrb[0].mxu0 %v5250
  %v5352 = vpop.f32.mrb[0].mxu0
  %v5353 = vadd.f32 %v59, %v5352
  %v5354 = vpop.f32.mrb[0].mxu0
  %5355 = vmatprep.mubr.f32.mxu0 0.0
  %5356 = vmatmul.mubr.f32.gmra.mrb[0].mxu0 %v5253
  %v5357 = vpop.f32.mrb[0].mxu0
  %v5358 = vadd.f32 %v59, %v5357
  %v5359 = vpop.f32.mrb[0].mxu0
  %5360 = vmatprep.mubr.f32.mxu0 0.0
  %5361 = vmatmul.mubr.f32.gmra.mrb[0].mxu0 %v5256
  %v5362 = vpop.f32.mrb[0].mxu0
  %v5363 = vadd.f32 %v59, %v5362
  %v5364 = vpop.f32.mrb[0].mxu0
  %5365 = vmatprep.mubr.f32.mxu0 0.0
  %5366 = vmatmul.mubr.f32.gmra.mrb[0].mxu0 %v5259
  %v5367 = vpop.f32.mrb[0].mxu0
  %v5368 = vadd.f32 %v59, %v5367
  %v5369 = vpop.f32.mrb[0].mxu0
  %5370 = vdwg.mxu0
  %v5371 = vmax.f32 %v5328, 0.0
  %v5372 = vmax.f32 %v5333, 0.0
  %v5373 = vmax.f32 %v5338, 0.0
  %v5374 = vmax.f32 %v5343, 0.0
  %v5375 = vmax.f32 %v5348, 0.0
  %v5376 = vmax.f32 %v5353, 0.0
  %v5377 = vmax.f32 %v5358, 0.0
  %v5378 = vmax.f32 %v5363, 0.0
  %v5379 = vmax.f32 %v5368, 0.0
  %v5380 = vld [vmem:[%s3 + $0x220] sm:$0xff]
  %v5381 = vld [vmem:[%s3 + $0x228] sm:$0xff]
  %v5382 = vld [vmem:[%s3 + $0x230] sm:$0xff]
  %v5383 = vld [vmem:[%s3 + $0x238] sm:$0xff]
  %v5385 = vsel %vm375, %v5371, 0
  %v5388 = vsel %vm375, %v5372, 0
  %v5391 = vsel %vm375, %v5373, 0
  %v5394 = vsel %vm375, %v5374, 0
  %v5397 = vsel %vm375, %v5375, 0
  %v5400 = vsel %vm375, %v5376, 0
  %v5403 = vsel %vm375, %v5377, 0
  %v5406 = vsel %vm375, %v5378, 0
  %v5409 = vsel %vm375, %v5379, 0
  %5411 = vmatprep.subr.mxu0 0.0
  %5412 = vmatpush1.msra.mxu0 %v5380
  %5413 = vmatprep.subr.mxu0 0.0
  %5414 = vmatpush1.msra.mxu0 %v5381
  %5415 = vmatprep.subr.mxu0 0.0
  %5416 = vmatpush1.msra.mxu0 %v5382
  %5417 = vmatprep.subr.mxu0 0.0
  %5418 = vmatpush1.msra.mxu0 %v5383
  %5419 = vmatprep.subr.mxu0 0.0
  %5420 = vmatpush1.msra.mxu0 0.0
  %5421 = vmatprep.subr.mxu0 0.0
  %5422 = vmatpush1.msra.mxu0 0.0
  %5423 = vmatprep.subr.mxu0 0.0
  %5424 = vmatpush1.msra.mxu0 0.0
  %5425 = vmatprep.subr.mxu0 0.0
  %5426 = vmatpush1.msra.mxu0 0.0
  %5427 = vmatprep.subr.mxu0 0.0
  %5428 = vmatpush1.msra.mxu0 0.0
  %5429 = vmatprep.subr.mxu0 0.0
  %5430 = vmatpush1.msra.mxu0 0.0
  %5431 = vmatprep.subr.mxu0 0.0
  %5432 = vmatpush1.msra.mxu0 0.0
  %5433 = vmatprep.subr.mxu0 0.0
  %5434 = vmatpush1.msra.mxu0 0.0
  %5435 = vmatprep.subr.mxu0 0.0
  %5436 = vmatpush1.msra.mxu0 0.0
  %5437 = vmatprep.subr.mxu0 0.0
  %5438 = vmatpush1.msra.mxu0 0.0
  %5439 = vmatprep.subr.mxu0 0.0
  %5440 = vmatpush1.msra.mxu0 0.0
  %5441 = vmatprep.subr.mxu0 0.0
  %5442 = vmatpush1.msra.mxu0 0.0
  %5443 = vmatprep.subr.mxu0 0.0
  %5444 = vmatpush1.msra.mxu0 0.0
  %5445 = vmatprep.subr.mxu0 0.0
  %5446 = vmatpush1.msra.mxu0 0.0
  %5447 = vmatprep.subr.mxu0 0.0
  %5448 = vmatpush1.msra.mxu0 0.0
  %5449 = vmatprep.subr.mxu0 0.0
  %5450 = vmatpush1.msra.mxu0 0.0
  %5451 = vmatprep.subr.mxu0 0.0
  %5452 = vmatpush1.msra.mxu0 0.0
  %5453 = vmatprep.subr.mxu0 0.0
  %5454 = vmatpush1.msra.mxu0 0.0
  %5455 = vmatprep.subr.mxu0 0.0
  %5456 = vmatpush1.msra.mxu0 0.0
  %5457 = vmatprep.subr.mxu0 0.0
  %5458 = vmatpush1.msra.mxu0 0.0
  %5459 = vmatprep.subr.mxu0 0.0
  %5460 = vmatpush1.msra.mxu0 0.0
  %5461 = vmatprep.subr.mxu0 0.0
  %5462 = vmatpush1.msra.mxu0 0.0
  %5463 = vmatprep.subr.mxu0 0.0
  %5464 = vmatpush1.msra.mxu0 0.0
  %5465 = vmatprep.subr.mxu0 0.0
  %5466 = vmatpush1.msra.mxu0 0.0
  %5467 = vmatprep.subr.mxu0 0.0
  %5468 = vmatpush1.msra.mxu0 0.0
  %5469 = vmatprep.subr.mxu0 0.0
  %5470 = vmatpush1.msra.mxu0 0.0
  %5471 = vmatprep.subr.mxu0 0.0
  %5472 = vmatpush1.msra.mxu0 0.0
  %5473 = vmatprep.subr.mxu0 0.0
  %5474 = vmatpush1.msra.mxu0 0.0
  %5475 = vmatprep.mubr.f32.mxu0 0.0
  %5476 = vmatmul.mubr.f32.gmra.mrb[0].mxu0 %v5385
  %v5477 = vpop.f32.mrb[0].mxu0
  %v5478 = vadd.f32 0.0, %v5477
  %v5479 = vpop.f32.mrb[0].mxu0
  %5480 = vmatprep.mubr.f32.mxu0 0.0
  %5481 = vmatmul.mubr.f32.gmra.mrb[0].mxu0 %v5388
  %v5482 = vpop.f32.mrb[0].mxu0
  %v5483 = vadd.f32 0.0, %v5482
  %v5484 = vpop.f32.mrb[0].mxu0
  %5485 = vmatprep.mubr.f32.mxu0 0.0
  %5486 = vmatmul.mubr.f32.gmra.mrb[0].mxu0 %v5391
  %v5487 = vpop.f32.mrb[0].mxu0
  %v5488 = vadd.f32 0.0, %v5487
  %v5489 = vpop.f32.mrb[0].mxu0
  %5490 = vmatprep.mubr.f32.mxu0 0.0
  %5491 = vmatmul.mubr.f32.gmra.mrb[0].mxu0 %v5394
  %v5492 = vpop.f32.mrb[0].mxu0
  %v5493 = vadd.f32 0.0, %v5492
  %v5494 = vpop.f32.mrb[0].mxu0
  %5495 = vmatprep.mubr.f32.mxu0 0.0
  %5496 = vmatmul.mubr.f32.gmra.mrb[0].mxu0 %v5397
  %v5497 = vpop.f32.mrb[0].mxu0
  %v5498 = vadd.f32 0.0, %v5497
  %v5499 = vpop.f32.mrb[0].mxu0
  %5500 = vmatprep.mubr.f32.mxu0 0.0
  %5501 = vmatmul.mubr.f32.gmra.mrb[0].mxu0 %v5400
  %v5502 = vpop.f32.mrb[0].mxu0
  %v5503 = vadd.f32 0.0, %v5502
  %v5504 = vpop.f32.mrb[0].mxu0
  %5505 = vmatprep.mubr.f32.mxu0 0.0
  %5506 = vmatmul.mubr.f32.gmra.mrb[0].mxu0 %v5403
  %v5507 = vpop.f32.mrb[0].mxu0
  %v5508 = vadd.f32 0.0, %v5507
  %v5509 = vpop.f32.mrb[0].mxu0
  %5510 = vmatprep.mubr.f32.mxu0 0.0
  %5511 = vmatmul.mubr.f32.gmra.mrb[0].mxu0 %v5406
  %v5512 = vpop.f32.mrb[0].mxu0
  %v5513 = vadd.f32 0.0, %v5512
  %v5514 = vpop.f32.mrb[0].mxu0
  %5515 = vmatprep.mubr.f32.mxu0 0.0
  %5516 = vmatmul.mubr.f32.gmra.mrb[0].mxu0 %v5409
  %v5517 = vpop.f32.mrb[0].mxu0
  %v5518 = vadd.f32 0.0, %v5517
  %v5519 = vpop.f32.mrb[0].mxu0
  %5520 = vdwg.mxu0
  %v5521 = vadd.f32 %v5216, %v5478
  %v5522 = vadd.f32 %v5217, %v5483
  %v5523 = vadd.f32 %v5218, %v5488
  %v5524 = vadd.f32 %v5219, %v5493
  %v5525 = vadd.f32 %v5220, %v5498
  %v5526 = vadd.f32 %v5221, %v5503
  %v5527 = vadd.f32 %v5222, %v5508
  %v5528 = vadd.f32 %v5223, %v5513
  %v5529 = vadd.f32 %v5224, %v5518
  %v5530 = vld [vmem:[%s0 + $0x510] sm:$0xff]
  %v5531 = vld [vmem:[%s0 + $0x518] sm:$0xff]
  %v5532 = vld [vmem:[%s0 + $0x520] sm:$0xff]
  %v5533 = vld [vmem:[%s0 + $0x528] sm:$0xff]
  %v5534 = vld [vmem:[%s0 + $0x530] sm:$0xff]
  %v5535 = vld [vmem:[%s0 + $0x538] sm:$0xff]
  %v5536 = vld [vmem:[%s0 + $0x540] sm:$0xff]
  %v5537 = vld [vmem:[%s0 + $0x548] sm:$0xff]
  %v5538 = vld [vmem:[%s0 + $0x550] sm:$0xff]
  %v5540 = vsel %vm61, %v5530, 0
  %v5543 = vsel %vm61, %v5531, 0
  %v5546 = vsel %vm61, %v5532, 0
  %v5549 = vsel %vm61, %v5533, 0
  %v5552 = vsel %vm61, %v5534, 0
  %v5555 = vsel %vm61, %v5535, 0
  %v5558 = vsel %vm61, %v5536, 0
  %v5561 = vsel %vm61, %v5537, 0
  %v5564 = vsel %vm61, %v5538, 0
  %5566 = vmatprep.subr.mxu0 0.0
  %5567 = vmatpush1.msra.mxu0 %v32
  %5568 = vmatprep.subr.mxu0 0.0
  %5569 = vmatpush1.msra.mxu0 %v33
  %5570 = vmatprep.subr.mxu0 0.0
  %5571 = vmatpush1.msra.mxu0 %v34
  %5572 = vmatprep.subr.mxu0 0.0
  %5573 = vmatpush1.msra.mxu0 %v35
  %5574 = vmatprep.subr.mxu0 0.0
  %5575 = vmatpush1.msra.mxu0 %v36
  %5576 = vmatprep.subr.mxu0 0.0
  %5577 = vmatpush1.msra.mxu0 %v37
  %5578 = vmatprep.subr.mxu0 0.0
  %5579 = vmatpush1.msra.mxu0 %v38
  %5580 = vmatprep.subr.mxu0 0.0
  %5581 = vmatpush1.msra.mxu0 %v39
  %5582 = vmatprep.subr.mxu0 0.0
  %5583 = vmatpush1.msra.mxu0 %v40
  %5584 = vmatprep.subr.mxu0 0.0
  %5585 = vmatpush1.msra.mxu0 %v41
  %5586 = vmatprep.subr.mxu0 0.0
  %5587 = vmatpush1.msra.mxu0 %v42
  %5588 = vmatprep.subr.mxu0 0.0
  %5589 = vmatpush1.msra.mxu0 %v43
  %5590 = vmatprep.subr.mxu0 0.0
  %5591 = vmatpush1.msra.mxu0 %v91
  %5592 = vmatprep.subr.mxu0 0.0
  %5593 = vmatpush1.msra.mxu0 0.0
  %5594 = vmatprep.subr.mxu0 0.0
  %5595 = vmatpush1.msra.mxu0 0.0
  %5596 = vmatprep.subr.mxu0 0.0
  %5597 = vmatpush1.msra.mxu0 0.0
  %5598 = vmatprep.subr.mxu0 0.0
  %5599 = vmatpush1.msra.mxu0 0.0
  %5600 = vmatprep.subr.mxu0 0.0
  %5601 = vmatpush1.msra.mxu0 0.0
  %5602 = vmatprep.subr.mxu0 0.0
  %5603 = vmatpush1.msra.mxu0 0.0
  %5604 = vmatprep.subr.mxu0 0.0
  %5605 = vmatpush1.msra.mxu0 0.0
  %5606 = vmatprep.subr.mxu0 0.0
  %5607 = vmatpush1.msra.mxu0 0.0
  %5608 = vmatprep.subr.mxu0 0.0
  %5609 = vmatpush1.msra.mxu0 0.0
  %5610 = vmatprep.subr.mxu0 0.0
  %5611 = vmatpush1.msra.mxu0 0.0
  %5612 = vmatprep.subr.mxu0 0.0
  %5613 = vmatpush1.msra.mxu0 0.0
  %5614 = vmatprep.subr.mxu0 0.0
  %5615 = vmatpush1.msra.mxu0 0.0
  %5616 = vmatprep.subr.mxu0 0.0
  %5617 = vmatpush1.msra.mxu0 0.0
  %5618 = vmatprep.subr.mxu0 0.0
  %5619 = vmatpush1.msra.mxu0 0.0
  %5620 = vmatprep.subr.mxu0 0.0
  %5621 = vmatpush1.msra.mxu0 0.0
  %5622 = vmatprep.subr.mxu0 0.0
  %5623 = vmatpush1.msra.mxu0 0.0
  %5624 = vmatprep.subr.mxu0 0.0
  %5625 = vmatpush1.msra.mxu0 0.0
  %5626 = vmatprep.subr.mxu0 0.0
  %5627 = vmatpush1.msra.mxu0 0.0
  %5628 = vmatprep.subr.mxu0 0.0
  %5629 = vmatpush1.msra.mxu0 0.0
  %5630 = vmatprep.mubr.f32.mxu0 0.0
  %5631 = vmatmul.mubr.f32.gmra.mrb[0].mxu0 %v5540
  %v5632 = vpop.f32.mrb[0].mxu0
  %v5633 = vadd.f32 %v59, %v5632
  %v5634 = vpop.f32.mrb[0].mxu0
  %5635 = vmatprep.mubr.f32.mxu0 0.0
  %5636 = vmatmul.mubr.f32.gmra.mrb[0].mxu0 %v5543
  %v5637 = vpop.f32.mrb[0].mxu0
  %v5638 = vadd.f32 %v59, %v5637
  %v5639 = vpop.f32.mrb[0].mxu0
  %5640 = vmatprep.mubr.f32.mxu0 0.0
  %5641 = vmatmul.mubr.f32.gmra.mrb[0].mxu0 %v5546
  %v5642 = vpop.f32.mrb[0].mxu0
  %v5643 = vadd.f32 %v59, %v5642
  %v5644 = vpop.f32.mrb[0].mxu0
  %5645 = vmatprep.mubr.f32.mxu0 0.0
  %5646 = vmatmul.mubr.f32.gmra.mrb[0].mxu0 %v5549
  %v5647 = vpop.f32.mrb[0].mxu0
  %v5648 = vadd.f32 %v59, %v5647
  %v5649 = vpop.f32.mrb[0].mxu0
  %5650 = vmatprep.mubr.f32.mxu0 0.0
  %5651 = vmatmul.mubr.f32.gmra.mrb[0].mxu0 %v5552
  %v5652 = vpop.f32.mrb[0].mxu0
  %v5653 = vadd.f32 %v59, %v5652
  %v5654 = vpop.f32.mrb[0].mxu0
  %5655 = vmatprep.mubr.f32.mxu0 0.0
  %5656 = vmatmul.mubr.f32.gmra.mrb[0].mxu0 %v5555
  %v5657 = vpop.f32.mrb[0].mxu0
  %v5658 = vadd.f32 %v59, %v5657
  %v5659 = vpop.f32.mrb[0].mxu0
  %5660 = vmatprep.mubr.f32.mxu0 0.0
  %5661 = vmatmul.mubr.f32.gmra.mrb[0].mxu0 %v5558
  %v5662 = vpop.f32.mrb[0].mxu0
  %v5663 = vadd.f32 %v59, %v5662
  %v5664 = vpop.f32.mrb[0].mxu0
  %5665 = vmatprep.mubr.f32.mxu0 0.0
  %5666 = vmatmul.mubr.f32.gmra.mrb[0].mxu0 %v5561
  %v5667 = vpop.f32.mrb[0].mxu0
  %v5668 = vadd.f32 %v59, %v5667
  %v5669 = vpop.f32.mrb[0].mxu0
  %5670 = vmatprep.mubr.f32.mxu0 0.0
  %5671 = vmatmul.mubr.f32.gmra.mrb[0].mxu0 %v5564
  %v5672 = vpop.f32.mrb[0].mxu0
  %v5673 = vadd.f32 %v59, %v5672
  %v5674 = vpop.f32.mrb[0].mxu0
  %5675 = vdwg.mxu0
  %v5676 = vmax.f32 %v5633, 0.0
  %v5677 = vmax.f32 %v5638, 0.0
  %v5678 = vmax.f32 %v5643, 0.0
  %v5679 = vmax.f32 %v5648, 0.0
  %v5680 = vmax.f32 %v5653, 0.0
  %v5681 = vmax.f32 %v5658, 0.0
  %v5682 = vmax.f32 %v5663, 0.0
  %v5683 = vmax.f32 %v5668, 0.0
  %v5684 = vmax.f32 %v5673, 0.0
  %v5685 = vld [vmem:[%s3 + $0x240] sm:$0xff]
  %v5686 = vld [vmem:[%s3 + $0x248] sm:$0xff]
  %v5687 = vld [vmem:[%s3 + $0x250] sm:$0xff]
  %v5688 = vld [vmem:[%s3 + $0x258] sm:$0xff]
  %v5690 = vsel %vm375, %v5676, 0
  %v5693 = vsel %vm375, %v5677, 0
  %v5696 = vsel %vm375, %v5678, 0
  %v5699 = vsel %vm375, %v5679, 0
  %v5702 = vsel %vm375, %v5680, 0
  %v5705 = vsel %vm375, %v5681, 0
  %v5708 = vsel %vm375, %v5682, 0
  %v5711 = vsel %vm375, %v5683, 0
  %v5714 = vsel %vm375, %v5684, 0
  %5716 = vmatprep.subr.mxu0 0.0
  %5717 = vmatpush1.msra.mxu0 %v5685
  %5718 = vmatprep.subr.mxu0 0.0
  %5719 = vmatpush1.msra.mxu0 %v5686
  %5720 = vmatprep.subr.mxu0 0.0
  %5721 = vmatpush1.msra.mxu0 %v5687
  %5722 = vmatprep.subr.mxu0 0.0
  %5723 = vmatpush1.msra.mxu0 %v5688
  %5724 = vmatprep.subr.mxu0 0.0
  %5725 = vmatpush1.msra.mxu0 0.0
  %5726 = vmatprep.subr.mxu0 0.0
  %5727 = vmatpush1.msra.mxu0 0.0
  %5728 = vmatprep.subr.mxu0 0.0
  %5729 = vmatpush1.msra.mxu0 0.0
  %5730 = vmatprep.subr.mxu0 0.0
  %5731 = vmatpush1.msra.mxu0 0.0
  %5732 = vmatprep.subr.mxu0 0.0
  %5733 = vmatpush1.msra.mxu0 0.0
  %5734 = vmatprep.subr.mxu0 0.0
  %5735 = vmatpush1.msra.mxu0 0.0
  %5736 = vmatprep.subr.mxu0 0.0
  %5737 = vmatpush1.msra.mxu0 0.0
  %5738 = vmatprep.subr.mxu0 0.0
  %5739 = vmatpush1.msra.mxu0 0.0
  %5740 = vmatprep.subr.mxu0 0.0
  %5741 = vmatpush1.msra.mxu0 0.0
  %5742 = vmatprep.subr.mxu0 0.0
  %5743 = vmatpush1.msra.mxu0 0.0
  %5744 = vmatprep.subr.mxu0 0.0
  %5745 = vmatpush1.msra.mxu0 0.0
  %5746 = vmatprep.subr.mxu0 0.0
  %5747 = vmatpush1.msra.mxu0 0.0
  %5748 = vmatprep.subr.mxu0 0.0
  %5749 = vmatpush1.msra.mxu0 0.0
  %5750 = vmatprep.subr.mxu0 0.0
  %5751 = vmatpush1.msra.mxu0 0.0
  %5752 = vmatprep.subr.mxu0 0.0
  %5753 = vmatpush1.msra.mxu0 0.0
  %5754 = vmatprep.subr.mxu0 0.0
  %5755 = vmatpush1.msra.mxu0 0.0
  %5756 = vmatprep.subr.mxu0 0.0
  %5757 = vmatpush1.msra.mxu0 0.0
  %5758 = vmatprep.subr.mxu0 0.0
  %5759 = vmatpush1.msra.mxu0 0.0
  %5760 = vmatprep.subr.mxu0 0.0
  %5761 = vmatpush1.msra.mxu0 0.0
  %5762 = vmatprep.subr.mxu0 0.0
  %5763 = vmatpush1.msra.mxu0 0.0
  %5764 = vmatprep.subr.mxu0 0.0
  %5765 = vmatpush1.msra.mxu0 0.0
  %5766 = vmatprep.subr.mxu0 0.0
  %5767 = vmatpush1.msra.mxu0 0.0
  %5768 = vmatprep.subr.mxu0 0.0
  %5769 = vmatpush1.msra.mxu0 0.0
  %5770 = vmatprep.subr.mxu0 0.0
  %5771 = vmatpush1.msra.mxu0 0.0
  %5772 = vmatprep.subr.mxu0 0.0
  %5773 = vmatpush1.msra.mxu0 0.0
  %5774 = vmatprep.subr.mxu0 0.0
  %5775 = vmatpush1.msra.mxu0 0.0
  %5776 = vmatprep.subr.mxu0 0.0
  %5777 = vmatpush1.msra.mxu0 0.0
  %5778 = vmatprep.subr.mxu0 0.0
  %5779 = vmatpush1.msra.mxu0 0.0
  %5780 = vmatprep.mubr.f32.mxu0 0.0
  %5781 = vmatmul.mubr.f32.gmra.mrb[0].mxu0 %v5690
  %v5782 = vpop.f32.mrb[0].mxu0
  %v5783 = vadd.f32 0.0, %v5782
  %v5784 = vpop.f32.mrb[0].mxu0
  %5785 = vmatprep.mubr.f32.mxu0 0.0
  %5786 = vmatmul.mubr.f32.gmra.mrb[0].mxu0 %v5693
  %v5787 = vpop.f32.mrb[0].mxu0
  %v5788 = vadd.f32 0.0, %v5787
  %v5789 = vpop.f32.mrb[0].mxu0
  %5790 = vmatprep.mubr.f32.mxu0 0.0
  %5791 = vmatmul.mubr.f32.gmra.mrb[0].mxu0 %v5696
  %v5792 = vpop.f32.mrb[0].mxu0
  %v5793 = vadd.f32 0.0, %v5792
  %v5794 = vpop.f32.mrb[0].mxu0
  %5795 = vmatprep.mubr.f32.mxu0 0.0
  %5796 = vmatmul.mubr.f32.gmra.mrb[0].mxu0 %v5699
  %v5797 = vpop.f32.mrb[0].mxu0
  %v5798 = vadd.f32 0.0, %v5797
  %v5799 = vpop.f32.mrb[0].mxu0
  %5800 = vmatprep.mubr.f32.mxu0 0.0
  %5801 = vmatmul.mubr.f32.gmra.mrb[0].mxu0 %v5702
  %v5802 = vpop.f32.mrb[0].mxu0
  %v5803 = vadd.f32 0.0, %v5802
  %v5804 = vpop.f32.mrb[0].mxu0
  %5805 = vmatprep.mubr.f32.mxu0 0.0
  %5806 = vmatmul.mubr.f32.gmra.mrb[0].mxu0 %v5705
  %v5807 = vpop.f32.mrb[0].mxu0
  %v5808 = vadd.f32 0.0, %v5807
  %v5809 = vpop.f32.mrb[0].mxu0
  %5810 = vmatprep.mubr.f32.mxu0 0.0
  %5811 = vmatmul.mubr.f32.gmra.mrb[0].mxu0 %v5708
  %v5812 = vpop.f32.mrb[0].mxu0
  %v5813 = vadd.f32 0.0, %v5812
  %v5814 = vpop.f32.mrb[0].mxu0
  %5815 = vmatprep.mubr.f32.mxu0 0.0
  %5816 = vmatmul.mubr.f32.gmra.mrb[0].mxu0 %v5711
  %v5817 = vpop.f32.mrb[0].mxu0
  %v5818 = vadd.f32 0.0, %v5817
  %v5819 = vpop.f32.mrb[0].mxu0
  %5820 = vmatprep.mubr.f32.mxu0 0.0
  %5821 = vmatmul.mubr.f32.gmra.mrb[0].mxu0 %v5714
  %v5822 = vpop.f32.mrb[0].mxu0
  %v5823 = vadd.f32 0.0, %v5822
  %v5824 = vpop.f32.mrb[0].mxu0
  %5825 = vdwg.mxu0
  %v5826 = vadd.f32 %v5521, %v5783
  %v5827 = vadd.f32 %v5522, %v5788
  %v5828 = vadd.f32 %v5523, %v5793
  %v5829 = vadd.f32 %v5524, %v5798
  %v5830 = vadd.f32 %v5525, %v5803
  %v5831 = vadd.f32 %v5526, %v5808
  %v5832 = vadd.f32 %v5527, %v5813
  %v5833 = vadd.f32 %v5528, %v5818
  %v5834 = vadd.f32 %v5529, %v5823
  %v5835 = vld [vmem:[%s0 + $0x558] sm:$0xff]
  %v5836 = vld [vmem:[%s0 + $0x560] sm:$0xff]
  %v5837 = vld [vmem:[%s0 + $0x568] sm:$0xff]
  %v5838 = vld [vmem:[%s0 + $0x570] sm:$0xff]
  %v5839 = vld [vmem:[%s0 + $0x578] sm:$0xff]
  %v5840 = vld [vmem:[%s0 + $0x580] sm:$0xff]
  %v5841 = vld [vmem:[%s0 + $0x588] sm:$0xff]
  %v5842 = vld [vmem:[%s0 + $0x590] sm:$0xff]
  %v5843 = vld [vmem:[%s0 + $0x598] sm:$0xff]
  %v5845 = vsel %vm61, %v5835, 0
  %v5848 = vsel %vm61, %v5836, 0
  %v5851 = vsel %vm61, %v5837, 0
  %v5854 = vsel %vm61, %v5838, 0
  %v5857 = vsel %vm61, %v5839, 0
  %v5860 = vsel %vm61, %v5840, 0
  %v5863 = vsel %vm61, %v5841, 0
  %v5866 = vsel %vm61, %v5842, 0
  %v5869 = vsel %vm61, %v5843, 0
  %5871 = vmatprep.subr.mxu0 0.0
  %5872 = vmatpush1.msra.mxu0 %v32
  %5873 = vmatprep.subr.mxu0 0.0
  %5874 = vmatpush1.msra.mxu0 %v33
  %5875 = vmatprep.subr.mxu0 0.0
  %5876 = vmatpush1.msra.mxu0 %v34
  %5877 = vmatprep.subr.mxu0 0.0
  %5878 = vmatpush1.msra.mxu0 %v35
  %5879 = vmatprep.subr.mxu0 0.0
  %5880 = vmatpush1.msra.mxu0 %v36
  %5881 = vmatprep.subr.mxu0 0.0
  %5882 = vmatpush1.msra.mxu0 %v37
  %5883 = vmatprep.subr.mxu0 0.0
  %5884 = vmatpush1.msra.mxu0 %v38
  %5885 = vmatprep.subr.mxu0 0.0
  %5886 = vmatpush1.msra.mxu0 %v39
  %5887 = vmatprep.subr.mxu0 0.0
  %5888 = vmatpush1.msra.mxu0 %v40
  %5889 = vmatprep.subr.mxu0 0.0
  %5890 = vmatpush1.msra.mxu0 %v41
  %5891 = vmatprep.subr.mxu0 0.0
  %5892 = vmatpush1.msra.mxu0 %v42
  %5893 = vmatprep.subr.mxu0 0.0
  %5894 = vmatpush1.msra.mxu0 %v43
  %5895 = vmatprep.subr.mxu0 0.0
  %5896 = vmatpush1.msra.mxu0 %v91
  %5897 = vmatprep.subr.mxu0 0.0
  %5898 = vmatpush1.msra.mxu0 0.0
  %5899 = vmatprep.subr.mxu0 0.0
  %5900 = vmatpush1.msra.mxu0 0.0
  %5901 = vmatprep.subr.mxu0 0.0
  %5902 = vmatpush1.msra.mxu0 0.0
  %5903 = vmatprep.subr.mxu0 0.0
  %5904 = vmatpush1.msra.mxu0 0.0
  %5905 = vmatprep.subr.mxu0 0.0
  %5906 = vmatpush1.msra.mxu0 0.0
  %5907 = vmatprep.subr.mxu0 0.0
  %5908 = vmatpush1.msra.mxu0 0.0
  %5909 = vmatprep.subr.mxu0 0.0
  %5910 = vmatpush1.msra.mxu0 0.0
  %5911 = vmatprep.subr.mxu0 0.0
  %5912 = vmatpush1.msra.mxu0 0.0
  %5913 = vmatprep.subr.mxu0 0.0
  %5914 = vmatpush1.msra.mxu0 0.0
  %5915 = vmatprep.subr.mxu0 0.0
  %5916 = vmatpush1.msra.mxu0 0.0
  %5917 = vmatprep.subr.mxu0 0.0
  %5918 = vmatpush1.msra.mxu0 0.0
  %5919 = vmatprep.subr.mxu0 0.0
  %5920 = vmatpush1.msra.mxu0 0.0
  %5921 = vmatprep.subr.mxu0 0.0
  %5922 = vmatpush1.msra.mxu0 0.0
  %5923 = vmatprep.subr.mxu0 0.0
  %5924 = vmatpush1.msra.mxu0 0.0
  %5925 = vmatprep.subr.mxu0 0.0
  %5926 = vmatpush1.msra.mxu0 0.0
  %5927 = vmatprep.subr.mxu0 0.0
  %5928 = vmatpush1.msra.mxu0 0.0
  %5929 = vmatprep.subr.mxu0 0.0
  %5930 = vmatpush1.msra.mxu0 0.0
  %5931 = vmatprep.subr.mxu0 0.0
  %5932 = vmatpush1.msra.mxu0 0.0
  %5933 = vmatprep.subr.mxu0 0.0
  %5934 = vmatpush1.msra.mxu0 0.0
  %5935 = vmatprep.mubr.f32.mxu0 0.0
  %5936 = vmatmul.mubr.f32.gmra.mrb[0].mxu0 %v5845
  %v5937 = vpop.f32.mrb[0].mxu0
  %v5938 = vadd.f32 %v59, %v5937
  %v5939 = vpop.f32.mrb[0].mxu0
  %5940 = vmatprep.mubr.f32.mxu0 0.0
  %5941 = vmatmul.mubr.f32.gmra.mrb[0].mxu0 %v5848
  %v5942 = vpop.f32.mrb[0].mxu0
  %v5943 = vadd.f32 %v59, %v5942
  %v5944 = vpop.f32.mrb[0].mxu0
  %5945 = vmatprep.mubr.f32.mxu0 0.0
  %5946 = vmatmul.mubr.f32.gmra.mrb[0].mxu0 %v5851
  %v5947 = vpop.f32.mrb[0].mxu0
  %v5948 = vadd.f32 %v59, %v5947
  %v5949 = vpop.f32.mrb[0].mxu0
  %5950 = vmatprep.mubr.f32.mxu0 0.0
  %5951 = vmatmul.mubr.f32.gmra.mrb[0].mxu0 %v5854
  %v5952 = vpop.f32.mrb[0].mxu0
  %v5953 = vadd.f32 %v59, %v5952
  %v5954 = vpop.f32.mrb[0].mxu0
  %5955 = vmatprep.mubr.f32.mxu0 0.0
  %5956 = vmatmul.mubr.f32.gmra.mrb[0].mxu0 %v5857
  %v5957 = vpop.f32.mrb[0].mxu0
  %v5958 = vadd.f32 %v59, %v5957
  %v5959 = vpop.f32.mrb[0].mxu0
  %5960 = vmatprep.mubr.f32.mxu0 0.0
  %5961 = vmatmul.mubr.f32.gmra.mrb[0].mxu0 %v5860
  %v5962 = vpop.f32.mrb[0].mxu0
  %v5963 = vadd.f32 %v59, %v5962
  %v5964 = vpop.f32.mrb[0].mxu0
  %5965 = vmatprep.mubr.f32.mxu0 0.0
  %5966 = vmatmul.mubr.f32.gmra.mrb[0].mxu0 %v5863
  %v5967 = vpop.f32.mrb[0].mxu0
  %v5968 = vadd.f32 %v59, %v5967
  %v5969 = vpop.f32.mrb[0].mxu0
  %5970 = vmatprep.mubr.f32.mxu0 0.0
  %5971 = vmatmul.mubr.f32.gmra.mrb[0].mxu0 %v5866
  %v5972 = vpop.f32.mrb[0].mxu0
  %v5973 = vadd.f32 %v59, %v5972
  %v5974 = vpop.f32.mrb[0].mxu0
  %5975 = vmatprep.mubr.f32.mxu0 0.0
  %5976 = vmatmul.mubr.f32.gmra.mrb[0].mxu0 %v5869
  %v5977 = vpop.f32.mrb[0].mxu0
  %v5978 = vadd.f32 %v59, %v5977
  %v5979 = vpop.f32.mrb[0].mxu0
  %5980 = vdwg.mxu0
  %v5981 = vmax.f32 %v5938, 0.0
  %v5982 = vmax.f32 %v5943, 0.0
  %v5983 = vmax.f32 %v5948, 0.0
  %v5984 = vmax.f32 %v5953, 0.0
  %v5985 = vmax.f32 %v5958, 0.0
  %v5986 = vmax.f32 %v5963, 0.0
  %v5987 = vmax.f32 %v5968, 0.0
  %v5988 = vmax.f32 %v5973, 0.0
  %v5989 = vmax.f32 %v5978, 0.0
  %v5990 = vld [vmem:[%s3 + $0x260] sm:$0xff]
  %v5991 = vld [vmem:[%s3 + $0x268] sm:$0xff]
  %v5992 = vld [vmem:[%s3 + $0x270] sm:$0xff]
  %v5993 = vld [vmem:[%s3 + $0x278] sm:$0xff]
  %v5995 = vsel %vm375, %v5981, 0
  %v5998 = vsel %vm375, %v5982, 0
  %v6001 = vsel %vm375, %v5983, 0
  %v6004 = vsel %vm375, %v5984, 0
  %v6007 = vsel %vm375, %v5985, 0
  %v6010 = vsel %vm375, %v5986, 0
  %v6013 = vsel %vm375, %v5987, 0
  %v6016 = vsel %vm375, %v5988, 0
  %v6019 = vsel %vm375, %v5989, 0
  %6021 = vmatprep.subr.mxu0 0.0
  %6022 = vmatpush1.msra.mxu0 %v5990
  %6023 = vmatprep.subr.mxu0 0.0
  %6024 = vmatpush1.msra.mxu0 %v5991
  %6025 = vmatprep.subr.mxu0 0.0
  %6026 = vmatpush1.msra.mxu0 %v5992
  %6027 = vmatprep.subr.mxu0 0.0
  %6028 = vmatpush1.msra.mxu0 %v5993
  %6029 = vmatprep.subr.mxu0 0.0
  %6030 = vmatpush1.msra.mxu0 0.0
  %6031 = vmatprep.subr.mxu0 0.0
  %6032 = vmatpush1.msra.mxu0 0.0
  %6033 = vmatprep.subr.mxu0 0.0
  %6034 = vmatpush1.msra.mxu0 0.0
  %6035 = vmatprep.subr.mxu0 0.0
  %6036 = vmatpush1.msra.mxu0 0.0
  %6037 = vmatprep.subr.mxu0 0.0
  %6038 = vmatpush1.msra.mxu0 0.0
  %6039 = vmatprep.subr.mxu0 0.0
  %6040 = vmatpush1.msra.mxu0 0.0
  %6041 = vmatprep.subr.mxu0 0.0
  %6042 = vmatpush1.msra.mxu0 0.0
  %6043 = vmatprep.subr.mxu0 0.0
  %6044 = vmatpush1.msra.mxu0 0.0
  %6045 = vmatprep.subr.mxu0 0.0
  %6046 = vmatpush1.msra.mxu0 0.0
  %6047 = vmatprep.subr.mxu0 0.0
  %6048 = vmatpush1.msra.mxu0 0.0
  %6049 = vmatprep.subr.mxu0 0.0
  %6050 = vmatpush1.msra.mxu0 0.0
  %6051 = vmatprep.subr.mxu0 0.0
  %6052 = vmatpush1.msra.mxu0 0.0
  %6053 = vmatprep.subr.mxu0 0.0
  %6054 = vmatpush1.msra.mxu0 0.0
  %6055 = vmatprep.subr.mxu0 0.0
  %6056 = vmatpush1.msra.mxu0 0.0
  %6057 = vmatprep.subr.mxu0 0.0
  %6058 = vmatpush1.msra.mxu0 0.0
  %6059 = vmatprep.subr.mxu0 0.0
  %6060 = vmatpush1.msra.mxu0 0.0
  %6061 = vmatprep.subr.mxu0 0.0
  %6062 = vmatpush1.msra.mxu0 0.0
  %6063 = vmatprep.subr.mxu0 0.0
  %6064 = vmatpush1.msra.mxu0 0.0
  %6065 = vmatprep.subr.mxu0 0.0
  %6066 = vmatpush1.msra.mxu0 0.0
  %6067 = vmatprep.subr.mxu0 0.0
  %6068 = vmatpush1.msra.mxu0 0.0
  %6069 = vmatprep.subr.mxu0 0.0
  %6070 = vmatpush1.msra.mxu0 0.0
  %6071 = vmatprep.subr.mxu0 0.0
  %6072 = vmatpush1.msra.mxu0 0.0
  %6073 = vmatprep.subr.mxu0 0.0
  %6074 = vmatpush1.msra.mxu0 0.0
  %6075 = vmatprep.subr.mxu0 0.0
  %6076 = vmatpush1.msra.mxu0 0.0
  %6077 = vmatprep.subr.mxu0 0.0
  %6078 = vmatpush1.msra.mxu0 0.0
  %6079 = vmatprep.subr.mxu0 0.0
  %6080 = vmatpush1.msra.mxu0 0.0
  %6081 = vmatprep.subr.mxu0 0.0
  %6082 = vmatpush1.msra.mxu0 0.0
  %6083 = vmatprep.subr.mxu0 0.0
  %6084 = vmatpush1.msra.mxu0 0.0
  %6085 = vmatprep.mubr.f32.mxu0 0.0
  %6086 = vmatmul.mubr.f32.gmra.mrb[0].mxu0 %v5995
  %v6087 = vpop.f32.mrb[0].mxu0
  %v6088 = vadd.f32 0.0, %v6087
  %v6089 = vpop.f32.mrb[0].mxu0
  %6090 = vmatprep.mubr.f32.mxu0 0.0
  %6091 = vmatmul.mubr.f32.gmra.mrb[0].mxu0 %v5998
  %v6092 = vpop.f32.mrb[0].mxu0
  %v6093 = vadd.f32 0.0, %v6092
  %v6094 = vpop.f32.mrb[0].mxu0
  %6095 = vmatprep.mubr.f32.mxu0 0.0
  %6096 = vmatmul.mubr.f32.gmra.mrb[0].mxu0 %v6001
  %v6097 = vpop.f32.mrb[0].mxu0
  %v6098 = vadd.f32 0.0, %v6097
  %v6099 = vpop.f32.mrb[0].mxu0
  %6100 = vmatprep.mubr.f32.mxu0 0.0
  %6101 = vmatmul.mubr.f32.gmra.mrb[0].mxu0 %v6004
  %v6102 = vpop.f32.mrb[0].mxu0
  %v6103 = vadd.f32 0.0, %v6102
  %v6104 = vpop.f32.mrb[0].mxu0
  %6105 = vmatprep.mubr.f32.mxu0 0.0
  %6106 = vmatmul.mubr.f32.gmra.mrb[0].mxu0 %v6007
  %v6107 = vpop.f32.mrb[0].mxu0
  %v6108 = vadd.f32 0.0, %v6107
  %v6109 = vpop.f32.mrb[0].mxu0
  %6110 = vmatprep.mubr.f32.mxu0 0.0
  %6111 = vmatmul.mubr.f32.gmra.mrb[0].mxu0 %v6010
  %v6112 = vpop.f32.mrb[0].mxu0
  %v6113 = vadd.f32 0.0, %v6112
  %v6114 = vpop.f32.mrb[0].mxu0
  %6115 = vmatprep.mubr.f32.mxu0 0.0
  %6116 = vmatmul.mubr.f32.gmra.mrb[0].mxu0 %v6013
  %v6117 = vpop.f32.mrb[0].mxu0
  %v6118 = vadd.f32 0.0, %v6117
  %v6119 = vpop.f32.mrb[0].mxu0
  %6120 = vmatprep.mubr.f32.mxu0 0.0
  %6121 = vmatmul.mubr.f32.gmra.mrb[0].mxu0 %v6016
  %v6122 = vpop.f32.mrb[0].mxu0
  %v6123 = vadd.f32 0.0, %v6122
  %v6124 = vpop.f32.mrb[0].mxu0
  %6125 = vmatprep.mubr.f32.mxu0 0.0
  %6126 = vmatmul.mubr.f32.gmra.mrb[0].mxu0 %v6019
  %v6127 = vpop.f32.mrb[0].mxu0
  %v6128 = vadd.f32 0.0, %v6127
  %v6129 = vpop.f32.mrb[0].mxu0
  %6130 = vdwg.mxu0
  %v6131 = vadd.f32 %v5826, %v6088
  %v6132 = vadd.f32 %v5827, %v6093
  %v6133 = vadd.f32 %v5828, %v6098
  %v6134 = vadd.f32 %v5829, %v6103
  %v6135 = vadd.f32 %v5830, %v6108
  %v6136 = vadd.f32 %v5831, %v6113
  %v6137 = vadd.f32 %v5832, %v6118
  %v6138 = vadd.f32 %v5833, %v6123
  %v6139 = vadd.f32 %v5834, %v6128
  %v6140 = vld [vmem:[%s0 + $0x5a0] sm:$0xff]
  %v6141 = vld [vmem:[%s0 + $0x5a8] sm:$0xff]
  %v6142 = vld [vmem:[%s0 + $0x5b0] sm:$0xff]
  %v6143 = vld [vmem:[%s0 + $0x5b8] sm:$0xff]
  %v6144 = vld [vmem:[%s0 + $0x5c0] sm:$0xff]
  %v6145 = vld [vmem:[%s0 + $0x5c8] sm:$0xff]
  %v6146 = vld [vmem:[%s0 + $0x5d0] sm:$0xff]
  %v6147 = vld [vmem:[%s0 + $0x5d8] sm:$0xff]
  %v6148 = vld [vmem:[%s0 + $0x5e0] sm:$0xff]
  %v6150 = vsel %vm61, %v6140, 0
  %v6153 = vsel %vm61, %v6141, 0
  %v6156 = vsel %vm61, %v6142, 0
  %v6159 = vsel %vm61, %v6143, 0
  %v6162 = vsel %vm61, %v6144, 0
  %v6165 = vsel %vm61, %v6145, 0
  %v6168 = vsel %vm61, %v6146, 0
  %v6171 = vsel %vm61, %v6147, 0
  %v6174 = vsel %vm61, %v6148, 0
  %6176 = vmatprep.subr.mxu0 0.0
  %6177 = vmatpush1.msra.mxu0 %v32
  %6178 = vmatprep.subr.mxu0 0.0
  %6179 = vmatpush1.msra.mxu0 %v33
  %6180 = vmatprep.subr.mxu0 0.0
  %6181 = vmatpush1.msra.mxu0 %v34
  %6182 = vmatprep.subr.mxu0 0.0
  %6183 = vmatpush1.msra.mxu0 %v35
  %6184 = vmatprep.subr.mxu0 0.0
  %6185 = vmatpush1.msra.mxu0 %v36
  %6186 = vmatprep.subr.mxu0 0.0
  %6187 = vmatpush1.msra.mxu0 %v37
  %6188 = vmatprep.subr.mxu0 0.0
  %6189 = vmatpush1.msra.mxu0 %v38
  %6190 = vmatprep.subr.mxu0 0.0
  %6191 = vmatpush1.msra.mxu0 %v39
  %6192 = vmatprep.subr.mxu0 0.0
  %6193 = vmatpush1.msra.mxu0 %v40
  %6194 = vmatprep.subr.mxu0 0.0
  %6195 = vmatpush1.msra.mxu0 %v41
  %6196 = vmatprep.subr.mxu0 0.0
  %6197 = vmatpush1.msra.mxu0 %v42
  %6198 = vmatprep.subr.mxu0 0.0
  %6199 = vmatpush1.msra.mxu0 %v43
  %6200 = vmatprep.subr.mxu0 0.0
  %6201 = vmatpush1.msra.mxu0 %v91
  %6202 = vmatprep.subr.mxu0 0.0
  %6203 = vmatpush1.msra.mxu0 0.0
  %6204 = vmatprep.subr.mxu0 0.0
  %6205 = vmatpush1.msra.mxu0 0.0
  %6206 = vmatprep.subr.mxu0 0.0
  %6207 = vmatpush1.msra.mxu0 0.0
  %6208 = vmatprep.subr.mxu0 0.0
  %6209 = vmatpush1.msra.mxu0 0.0
  %6210 = vmatprep.subr.mxu0 0.0
  %6211 = vmatpush1.msra.mxu0 0.0
  %6212 = vmatprep.subr.mxu0 0.0
  %6213 = vmatpush1.msra.mxu0 0.0
  %6214 = vmatprep.subr.mxu0 0.0
  %6215 = vmatpush1.msra.mxu0 0.0
  %6216 = vmatprep.subr.mxu0 0.0
  %6217 = vmatpush1.msra.mxu0 0.0
  %6218 = vmatprep.subr.mxu0 0.0
  %6219 = vmatpush1.msra.mxu0 0.0
  %6220 = vmatprep.subr.mxu0 0.0
  %6221 = vmatpush1.msra.mxu0 0.0
  %6222 = vmatprep.subr.mxu0 0.0
  %6223 = vmatpush1.msra.mxu0 0.0
  %6224 = vmatprep.subr.mxu0 0.0
  %6225 = vmatpush1.msra.mxu0 0.0
  %6226 = vmatprep.subr.mxu0 0.0
  %6227 = vmatpush1.msra.mxu0 0.0
  %6228 = vmatprep.subr.mxu0 0.0
  %6229 = vmatpush1.msra.mxu0 0.0
  %6230 = vmatprep.subr.mxu0 0.0
  %6231 = vmatpush1.msra.mxu0 0.0
  %6232 = vmatprep.subr.mxu0 0.0
  %6233 = vmatpush1.msra.mxu0 0.0
  %6234 = vmatprep.subr.mxu0 0.0
  %6235 = vmatpush1.msra.mxu0 0.0
  %6236 = vmatprep.subr.mxu0 0.0
  %6237 = vmatpush1.msra.mxu0 0.0
  %6238 = vmatprep.subr.mxu0 0.0
  %6239 = vmatpush1.msra.mxu0 0.0
  %6240 = vmatprep.mubr.f32.mxu0 0.0
  %6241 = vmatmul.mubr.f32.gmra.mrb[0].mxu0 %v6150
  %v6242 = vpop.f32.mrb[0].mxu0
  %v6243 = vadd.f32 %v59, %v6242
  %v6244 = vpop.f32.mrb[0].mxu0
  %6245 = vmatprep.mubr.f32.mxu0 0.0
  %6246 = vmatmul.mubr.f32.gmra.mrb[0].mxu0 %v6153
  %v6247 = vpop.f32.mrb[0].mxu0
  %v6248 = vadd.f32 %v59, %v6247
  %v6249 = vpop.f32.mrb[0].mxu0
  %6250 = vmatprep.mubr.f32.mxu0 0.0
  %6251 = vmatmul.mubr.f32.gmra.mrb[0].mxu0 %v6156
  %v6252 = vpop.f32.mrb[0].mxu0
  %v6253 = vadd.f32 %v59, %v6252
  %v6254 = vpop.f32.mrb[0].mxu0
  %6255 = vmatprep.mubr.f32.mxu0 0.0
  %6256 = vmatmul.mubr.f32.gmra.mrb[0].mxu0 %v6159
  %v6257 = vpop.f32.mrb[0].mxu0
  %v6258 = vadd.f32 %v59, %v6257
  %v6259 = vpop.f32.mrb[0].mxu0
  %6260 = vmatprep.mubr.f32.mxu0 0.0
  %6261 = vmatmul.mubr.f32.gmra.mrb[0].mxu0 %v6162
  %v6262 = vpop.f32.mrb[0].mxu0
  %v6263 = vadd.f32 %v59, %v6262
  %v6264 = vpop.f32.mrb[0].mxu0
  %6265 = vmatprep.mubr.f32.mxu0 0.0
  %6266 = vmatmul.mubr.f32.gmra.mrb[0].mxu0 %v6165
  %v6267 = vpop.f32.mrb[0].mxu0
  %v6268 = vadd.f32 %v59, %v6267
  %v6269 = vpop.f32.mrb[0].mxu0
  %6270 = vmatprep.mubr.f32.mxu0 0.0
  %6271 = vmatmul.mubr.f32.gmra.mrb[0].mxu0 %v6168
  %v6272 = vpop.f32.mrb[0].mxu0
  %v6273 = vadd.f32 %v59, %v6272
  %v6274 = vpop.f32.mrb[0].mxu0
  %6275 = vmatprep.mubr.f32.mxu0 0.0
  %6276 = vmatmul.mubr.f32.gmra.mrb[0].mxu0 %v6171
  %v6277 = vpop.f32.mrb[0].mxu0
  %v6278 = vadd.f32 %v59, %v6277
  %v6279 = vpop.f32.mrb[0].mxu0
  %6280 = vmatprep.mubr.f32.mxu0 0.0
  %6281 = vmatmul.mubr.f32.gmra.mrb[0].mxu0 %v6174
  %v6282 = vpop.f32.mrb[0].mxu0
  %v6283 = vadd.f32 %v59, %v6282
  %v6284 = vpop.f32.mrb[0].mxu0
  %6285 = vdwg.mxu0
  %v6286 = vmax.f32 %v6243, 0.0
  %v6287 = vmax.f32 %v6248, 0.0
  %v6288 = vmax.f32 %v6253, 0.0
  %v6289 = vmax.f32 %v6258, 0.0
  %v6290 = vmax.f32 %v6263, 0.0
  %v6291 = vmax.f32 %v6268, 0.0
  %v6292 = vmax.f32 %v6273, 0.0
  %v6293 = vmax.f32 %v6278, 0.0
  %v6294 = vmax.f32 %v6283, 0.0
  %v6295 = vld [vmem:[%s3 + $0x280] sm:$0xff]
  %v6296 = vld [vmem:[%s3 + $0x288] sm:$0xff]
  %v6297 = vld [vmem:[%s3 + $0x290] sm:$0xff]
  %v6298 = vld [vmem:[%s3 + $0x298] sm:$0xff]
  %v6300 = vsel %vm375, %v6286, 0
  %v6303 = vsel %vm375, %v6287, 0
  %v6306 = vsel %vm375, %v6288, 0
  %v6309 = vsel %vm375, %v6289, 0
  %v6312 = vsel %vm375, %v6290, 0
  %v6315 = vsel %vm375, %v6291, 0
  %v6318 = vsel %vm375, %v6292, 0
  %v6321 = vsel %vm375, %v6293, 0
  %v6324 = vsel %vm375, %v6294, 0
  %6326 = vmatprep.subr.mxu0 0.0
  %6327 = vmatpush1.msra.mxu0 %v6295
  %6328 = vmatprep.subr.mxu0 0.0
  %6329 = vmatpush1.msra.mxu0 %v6296
  %6330 = vmatprep.subr.mxu0 0.0
  %6331 = vmatpush1.msra.mxu0 %v6297
  %6332 = vmatprep.subr.mxu0 0.0
  %6333 = vmatpush1.msra.mxu0 %v6298
  %6334 = vmatprep.subr.mxu0 0.0
  %6335 = vmatpush1.msra.mxu0 0.0
  %6336 = vmatprep.subr.mxu0 0.0
  %6337 = vmatpush1.msra.mxu0 0.0
  %6338 = vmatprep.subr.mxu0 0.0
  %6339 = vmatpush1.msra.mxu0 0.0
  %6340 = vmatprep.subr.mxu0 0.0
  %6341 = vmatpush1.msra.mxu0 0.0
  %6342 = vmatprep.subr.mxu0 0.0
  %6343 = vmatpush1.msra.mxu0 0.0
  %6344 = vmatprep.subr.mxu0 0.0
  %6345 = vmatpush1.msra.mxu0 0.0
  %6346 = vmatprep.subr.mxu0 0.0
  %6347 = vmatpush1.msra.mxu0 0.0
  %6348 = vmatprep.subr.mxu0 0.0
  %6349 = vmatpush1.msra.mxu0 0.0
  %6350 = vmatprep.subr.mxu0 0.0
  %6351 = vmatpush1.msra.mxu0 0.0
  %6352 = vmatprep.subr.mxu0 0.0
  %6353 = vmatpush1.msra.mxu0 0.0
  %6354 = vmatprep.subr.mxu0 0.0
  %6355 = vmatpush1.msra.mxu0 0.0
  %6356 = vmatprep.subr.mxu0 0.0
  %6357 = vmatpush1.msra.mxu0 0.0
  %6358 = vmatprep.subr.mxu0 0.0
  %6359 = vmatpush1.msra.mxu0 0.0
  %6360 = vmatprep.subr.mxu0 0.0
  %6361 = vmatpush1.msra.mxu0 0.0
  %6362 = vmatprep.subr.mxu0 0.0
  %6363 = vmatpush1.msra.mxu0 0.0
  %6364 = vmatprep.subr.mxu0 0.0
  %6365 = vmatpush1.msra.mxu0 0.0
  %6366 = vmatprep.subr.mxu0 0.0
  %6367 = vmatpush1.msra.mxu0 0.0
  %6368 = vmatprep.subr.mxu0 0.0
  %6369 = vmatpush1.msra.mxu0 0.0
  %6370 = vmatprep.subr.mxu0 0.0
  %6371 = vmatpush1.msra.mxu0 0.0
  %6372 = vmatprep.subr.mxu0 0.0
  %6373 = vmatpush1.msra.mxu0 0.0
  %6374 = vmatprep.subr.mxu0 0.0
  %6375 = vmatpush1.msra.mxu0 0.0
  %6376 = vmatprep.subr.mxu0 0.0
  %6377 = vmatpush1.msra.mxu0 0.0
  %6378 = vmatprep.subr.mxu0 0.0
  %6379 = vmatpush1.msra.mxu0 0.0
  %6380 = vmatprep.subr.mxu0 0.0
  %6381 = vmatpush1.msra.mxu0 0.0
  %6382 = vmatprep.subr.mxu0 0.0
  %6383 = vmatpush1.msra.mxu0 0.0
  %6384 = vmatprep.subr.mxu0 0.0
  %6385 = vmatpush1.msra.mxu0 0.0
  %6386 = vmatprep.subr.mxu0 0.0
  %6387 = vmatpush1.msra.mxu0 0.0
  %6388 = vmatprep.subr.mxu0 0.0
  %6389 = vmatpush1.msra.mxu0 0.0
  %6390 = vmatprep.mubr.f32.mxu0 0.0
  %6391 = vmatmul.mubr.f32.gmra.mrb[0].mxu0 %v6300
  %v6392 = vpop.f32.mrb[0].mxu0
  %v6393 = vadd.f32 0.0, %v6392
  %v6394 = vpop.f32.mrb[0].mxu0
  %6395 = vmatprep.mubr.f32.mxu0 0.0
  %6396 = vmatmul.mubr.f32.gmra.mrb[0].mxu0 %v6303
  %v6397 = vpop.f32.mrb[0].mxu0
  %v6398 = vadd.f32 0.0, %v6397
  %v6399 = vpop.f32.mrb[0].mxu0
  %6400 = vmatprep.mubr.f32.mxu0 0.0
  %6401 = vmatmul.mubr.f32.gmra.mrb[0].mxu0 %v6306
  %v6402 = vpop.f32.mrb[0].mxu0
  %v6403 = vadd.f32 0.0, %v6402
  %v6404 = vpop.f32.mrb[0].mxu0
  %6405 = vmatprep.mubr.f32.mxu0 0.0
  %6406 = vmatmul.mubr.f32.gmra.mrb[0].mxu0 %v6309
  %v6407 = vpop.f32.mrb[0].mxu0
  %v6408 = vadd.f32 0.0, %v6407
  %v6409 = vpop.f32.mrb[0].mxu0
  %6410 = vmatprep.mubr.f32.mxu0 0.0
  %6411 = vmatmul.mubr.f32.gmra.mrb[0].mxu0 %v6312
  %v6412 = vpop.f32.mrb[0].mxu0
  %v6413 = vadd.f32 0.0, %v6412
  %v6414 = vpop.f32.mrb[0].mxu0
  %6415 = vmatprep.mubr.f32.mxu0 0.0
  %6416 = vmatmul.mubr.f32.gmra.mrb[0].mxu0 %v6315
  %v6417 = vpop.f32.mrb[0].mxu0
  %v6418 = vadd.f32 0.0, %v6417
  %v6419 = vpop.f32.mrb[0].mxu0
  %6420 = vmatprep.mubr.f32.mxu0 0.0
  %6421 = vmatmul.mubr.f32.gmra.mrb[0].mxu0 %v6318
  %v6422 = vpop.f32.mrb[0].mxu0
  %v6423 = vadd.f32 0.0, %v6422
  %v6424 = vpop.f32.mrb[0].mxu0
  %6425 = vmatprep.mubr.f32.mxu0 0.0
  %6426 = vmatmul.mubr.f32.gmra.mrb[0].mxu0 %v6321
  %v6427 = vpop.f32.mrb[0].mxu0
  %v6428 = vadd.f32 0.0, %v6427
  %v6429 = vpop.f32.mrb[0].mxu0
  %6430 = vmatprep.mubr.f32.mxu0 0.0
  %6431 = vmatmul.mubr.f32.gmra.mrb[0].mxu0 %v6324
  %v6432 = vpop.f32.mrb[0].mxu0
  %v6433 = vadd.f32 0.0, %v6432
  %v6434 = vpop.f32.mrb[0].mxu0
  %6435 = vdwg.mxu0
  %v6436 = vadd.f32 %v6131, %v6393
  %v6437 = vadd.f32 %v6132, %v6398
  %v6438 = vadd.f32 %v6133, %v6403
  %v6439 = vadd.f32 %v6134, %v6408
  %v6440 = vadd.f32 %v6135, %v6413
  %v6441 = vadd.f32 %v6136, %v6418
  %v6442 = vadd.f32 %v6137, %v6423
  %v6443 = vadd.f32 %v6138, %v6428
  %v6444 = vadd.f32 %v6139, %v6433
  %v6445 = vld [vmem:[%s0 + $0x5e8] sm:$0xff]
  %v6446 = vld [vmem:[%s0 + $0x5f0] sm:$0xff]
  %v6447 = vld [vmem:[%s0 + $0x5f8] sm:$0xff]
  %v6448 = vld [vmem:[%s0 + $0x600] sm:$0xff]
  %v6449 = vld [vmem:[%s0 + $0x608] sm:$0xff]
  %v6450 = vld [vmem:[%s0 + $0x610] sm:$0xff]
  %v6451 = vld [vmem:[%s0 + $0x618] sm:$0xff]
  %v6452 = vld [vmem:[%s0 + $0x620] sm:$0xff]
  %v6453 = vld [vmem:[%s0 + $0x628] sm:$0xff]
  %v6455 = vsel %vm61, %v6445, 0
  %v6458 = vsel %vm61, %v6446, 0
  %v6461 = vsel %vm61, %v6447, 0
  %v6464 = vsel %vm61, %v6448, 0
  %v6467 = vsel %vm61, %v6449, 0
  %v6470 = vsel %vm61, %v6450, 0
  %v6473 = vsel %vm61, %v6451, 0
  %v6476 = vsel %vm61, %v6452, 0
  %v6479 = vsel %vm61, %v6453, 0
  %6481 = vmatprep.subr.mxu0 0.0
  %6482 = vmatpush1.msra.mxu0 %v32
  %6483 = vmatprep.subr.mxu0 0.0
  %6484 = vmatpush1.msra.mxu0 %v33
  %6485 = vmatprep.subr.mxu0 0.0
  %6486 = vmatpush1.msra.mxu0 %v34
  %6487 = vmatprep.subr.mxu0 0.0
  %6488 = vmatpush1.msra.mxu0 %v35
  %6489 = vmatprep.subr.mxu0 0.0
  %6490 = vmatpush1.msra.mxu0 %v36
  %6491 = vmatprep.subr.mxu0 0.0
  %6492 = vmatpush1.msra.mxu0 %v37
  %6493 = vmatprep.subr.mxu0 0.0
  %6494 = vmatpush1.msra.mxu0 %v38
  %6495 = vmatprep.subr.mxu0 0.0
  %6496 = vmatpush1.msra.mxu0 %v39
  %6497 = vmatprep.subr.mxu0 0.0
  %6498 = vmatpush1.msra.mxu0 %v40
  %6499 = vmatprep.subr.mxu0 0.0
  %6500 = vmatpush1.msra.mxu0 %v41
  %6501 = vmatprep.subr.mxu0 0.0
  %6502 = vmatpush1.msra.mxu0 %v42
  %6503 = vmatprep.subr.mxu0 0.0
  %6504 = vmatpush1.msra.mxu0 %v43
  %6505 = vmatprep.subr.mxu0 0.0
  %6506 = vmatpush1.msra.mxu0 %v91
  %6507 = vmatprep.subr.mxu0 0.0
  %6508 = vmatpush1.msra.mxu0 0.0
  %6509 = vmatprep.subr.mxu0 0.0
  %6510 = vmatpush1.msra.mxu0 0.0
  %6511 = vmatprep.subr.mxu0 0.0
  %6512 = vmatpush1.msra.mxu0 0.0
  %6513 = vmatprep.subr.mxu0 0.0
  %6514 = vmatpush1.msra.mxu0 0.0
  %6515 = vmatprep.subr.mxu0 0.0
  %6516 = vmatpush1.msra.mxu0 0.0
  %6517 = vmatprep.subr.mxu0 0.0
  %6518 = vmatpush1.msra.mxu0 0.0
  %6519 = vmatprep.subr.mxu0 0.0
  %6520 = vmatpush1.msra.mxu0 0.0
  %6521 = vmatprep.subr.mxu0 0.0
  %6522 = vmatpush1.msra.mxu0 0.0
  %6523 = vmatprep.subr.mxu0 0.0
  %6524 = vmatpush1.msra.mxu0 0.0
  %6525 = vmatprep.subr.mxu0 0.0
  %6526 = vmatpush1.msra.mxu0 0.0
  %6527 = vmatprep.subr.mxu0 0.0
  %6528 = vmatpush1.msra.mxu0 0.0
  %6529 = vmatprep.subr.mxu0 0.0
  %6530 = vmatpush1.msra.mxu0 0.0
  %6531 = vmatprep.subr.mxu0 0.0
  %6532 = vmatpush1.msra.mxu0 0.0
  %6533 = vmatprep.subr.mxu0 0.0
  %6534 = vmatpush1.msra.mxu0 0.0
  %6535 = vmatprep.subr.mxu0 0.0
  %6536 = vmatpush1.msra.mxu0 0.0
  %6537 = vmatprep.subr.mxu0 0.0
  %6538 = vmatpush1.msra.mxu0 0.0
  %6539 = vmatprep.subr.mxu0 0.0
  %6540 = vmatpush1.msra.mxu0 0.0
  %6541 = vmatprep.subr.mxu0 0.0
  %6542 = vmatpush1.msra.mxu0 0.0
  %6543 = vmatprep.subr.mxu0 0.0
  %6544 = vmatpush1.msra.mxu0 0.0
  %6545 = vmatprep.mubr.f32.mxu0 0.0
  %6546 = vmatmul.mubr.f32.gmra.mrb[0].mxu0 %v6455
  %v6547 = vpop.f32.mrb[0].mxu0
  %v6548 = vadd.f32 %v59, %v6547
  %v6549 = vpop.f32.mrb[0].mxu0
  %6550 = vmatprep.mubr.f32.mxu0 0.0
  %6551 = vmatmul.mubr.f32.gmra.mrb[0].mxu0 %v6458
  %v6552 = vpop.f32.mrb[0].mxu0
  %v6553 = vadd.f32 %v59, %v6552
  %v6554 = vpop.f32.mrb[0].mxu0
  %6555 = vmatprep.mubr.f32.mxu0 0.0
  %6556 = vmatmul.mubr.f32.gmra.mrb[0].mxu0 %v6461
  %v6557 = vpop.f32.mrb[0].mxu0
  %v6558 = vadd.f32 %v59, %v6557
  %v6559 = vpop.f32.mrb[0].mxu0
  %6560 = vmatprep.mubr.f32.mxu0 0.0
  %6561 = vmatmul.mubr.f32.gmra.mrb[0].mxu0 %v6464
  %v6562 = vpop.f32.mrb[0].mxu0
  %v6563 = vadd.f32 %v59, %v6562
  %v6564 = vpop.f32.mrb[0].mxu0
  %6565 = vmatprep.mubr.f32.mxu0 0.0
  %6566 = vmatmul.mubr.f32.gmra.mrb[0].mxu0 %v6467
  %v6567 = vpop.f32.mrb[0].mxu0
  %v6568 = vadd.f32 %v59, %v6567
  %v6569 = vpop.f32.mrb[0].mxu0
  %6570 = vmatprep.mubr.f32.mxu0 0.0
  %6571 = vmatmul.mubr.f32.gmra.mrb[0].mxu0 %v6470
  %v6572 = vpop.f32.mrb[0].mxu0
  %v6573 = vadd.f32 %v59, %v6572
  %v6574 = vpop.f32.mrb[0].mxu0
  %6575 = vmatprep.mubr.f32.mxu0 0.0
  %6576 = vmatmul.mubr.f32.gmra.mrb[0].mxu0 %v6473
  %v6577 = vpop.f32.mrb[0].mxu0
  %v6578 = vadd.f32 %v59, %v6577
  %v6579 = vpop.f32.mrb[0].mxu0
  %6580 = vmatprep.mubr.f32.mxu0 0.0
  %6581 = vmatmul.mubr.f32.gmra.mrb[0].mxu0 %v6476
  %v6582 = vpop.f32.mrb[0].mxu0
  %v6583 = vadd.f32 %v59, %v6582
  %v6584 = vpop.f32.mrb[0].mxu0
  %6585 = vmatprep.mubr.f32.mxu0 0.0
  %6586 = vmatmul.mubr.f32.gmra.mrb[0].mxu0 %v6479
  %v6587 = vpop.f32.mrb[0].mxu0
  %v6588 = vadd.f32 %v59, %v6587
  %v6589 = vpop.f32.mrb[0].mxu0
  %6590 = vdwg.mxu0
  %v6591 = vmax.f32 %v6548, 0.0
  %v6592 = vmax.f32 %v6553, 0.0
  %v6593 = vmax.f32 %v6558, 0.0
  %v6594 = vmax.f32 %v6563, 0.0
  %v6595 = vmax.f32 %v6568, 0.0
  %v6596 = vmax.f32 %v6573, 0.0
  %v6597 = vmax.f32 %v6578, 0.0
  %v6598 = vmax.f32 %v6583, 0.0
  %v6599 = vmax.f32 %v6588, 0.0
  %v6600 = vld [vmem:[%s3 + $0x2a0] sm:$0xff]
  %v6601 = vld [vmem:[%s3 + $0x2a8] sm:$0xff]
  %v6602 = vld [vmem:[%s3 + $0x2b0] sm:$0xff]
  %v6603 = vld [vmem:[%s3 + $0x2b8] sm:$0xff]
  %v6605 = vsel %vm375, %v6591, 0
  %v6608 = vsel %vm375, %v6592, 0
  %v6611 = vsel %vm375, %v6593, 0
  %v6614 = vsel %vm375, %v6594, 0
  %v6617 = vsel %vm375, %v6595, 0
  %v6620 = vsel %vm375, %v6596, 0
  %v6623 = vsel %vm375, %v6597, 0
  %v6626 = vsel %vm375, %v6598, 0
  %v6629 = vsel %vm375, %v6599, 0
  %6631 = vmatprep.subr.mxu0 0.0
  %6632 = vmatpush1.msra.mxu0 %v6600
  %6633 = vmatprep.subr.mxu0 0.0
  %6634 = vmatpush1.msra.mxu0 %v6601
  %6635 = vmatprep.subr.mxu0 0.0
  %6636 = vmatpush1.msra.mxu0 %v6602
  %6637 = vmatprep.subr.mxu0 0.0
  %6638 = vmatpush1.msra.mxu0 %v6603
  %6639 = vmatprep.subr.mxu0 0.0
  %6640 = vmatpush1.msra.mxu0 0.0
  %6641 = vmatprep.subr.mxu0 0.0
  %6642 = vmatpush1.msra.mxu0 0.0
  %6643 = vmatprep.subr.mxu0 0.0
  %6644 = vmatpush1.msra.mxu0 0.0
  %6645 = vmatprep.subr.mxu0 0.0
  %6646 = vmatpush1.msra.mxu0 0.0
  %6647 = vmatprep.subr.mxu0 0.0
  %6648 = vmatpush1.msra.mxu0 0.0
  %6649 = vmatprep.subr.mxu0 0.0
  %6650 = vmatpush1.msra.mxu0 0.0
  %6651 = vmatprep.subr.mxu0 0.0
  %6652 = vmatpush1.msra.mxu0 0.0
  %6653 = vmatprep.subr.mxu0 0.0
  %6654 = vmatpush1.msra.mxu0 0.0
  %6655 = vmatprep.subr.mxu0 0.0
  %6656 = vmatpush1.msra.mxu0 0.0
  %6657 = vmatprep.subr.mxu0 0.0
  %6658 = vmatpush1.msra.mxu0 0.0
  %6659 = vmatprep.subr.mxu0 0.0
  %6660 = vmatpush1.msra.mxu0 0.0
  %6661 = vmatprep.subr.mxu0 0.0
  %6662 = vmatpush1.msra.mxu0 0.0
  %6663 = vmatprep.subr.mxu0 0.0
  %6664 = vmatpush1.msra.mxu0 0.0
  %6665 = vmatprep.subr.mxu0 0.0
  %6666 = vmatpush1.msra.mxu0 0.0
  %6667 = vmatprep.subr.mxu0 0.0
  %6668 = vmatpush1.msra.mxu0 0.0
  %6669 = vmatprep.subr.mxu0 0.0
  %6670 = vmatpush1.msra.mxu0 0.0
  %6671 = vmatprep.subr.mxu0 0.0
  %6672 = vmatpush1.msra.mxu0 0.0
  %6673 = vmatprep.subr.mxu0 0.0
  %6674 = vmatpush1.msra.mxu0 0.0
  %6675 = vmatprep.subr.mxu0 0.0
  %6676 = vmatpush1.msra.mxu0 0.0
  %6677 = vmatprep.subr.mxu0 0.0
  %6678 = vmatpush1.msra.mxu0 0.0
  %6679 = vmatprep.subr.mxu0 0.0
  %6680 = vmatpush1.msra.mxu0 0.0
  %6681 = vmatprep.subr.mxu0 0.0
  %6682 = vmatpush1.msra.mxu0 0.0
  %6683 = vmatprep.subr.mxu0 0.0
  %6684 = vmatpush1.msra.mxu0 0.0
  %6685 = vmatprep.subr.mxu0 0.0
  %6686 = vmatpush1.msra.mxu0 0.0
  %6687 = vmatprep.subr.mxu0 0.0
  %6688 = vmatpush1.msra.mxu0 0.0
  %6689 = vmatprep.subr.mxu0 0.0
  %6690 = vmatpush1.msra.mxu0 0.0
  %6691 = vmatprep.subr.mxu0 0.0
  %6692 = vmatpush1.msra.mxu0 0.0
  %6693 = vmatprep.subr.mxu0 0.0
  %6694 = vmatpush1.msra.mxu0 0.0
  %6695 = vmatprep.mubr.f32.mxu0 0.0
  %6696 = vmatmul.mubr.f32.gmra.mrb[0].mxu0 %v6605
  %v6697 = vpop.f32.mrb[0].mxu0
  %v6698 = vadd.f32 0.0, %v6697
  %v6699 = vpop.f32.mrb[0].mxu0
  %6700 = vmatprep.mubr.f32.mxu0 0.0
  %6701 = vmatmul.mubr.f32.gmra.mrb[0].mxu0 %v6608
  %v6702 = vpop.f32.mrb[0].mxu0
  %v6703 = vadd.f32 0.0, %v6702
  %v6704 = vpop.f32.mrb[0].mxu0
  %6705 = vmatprep.mubr.f32.mxu0 0.0
  %6706 = vmatmul.mubr.f32.gmra.mrb[0].mxu0 %v6611
  %v6707 = vpop.f32.mrb[0].mxu0
  %v6708 = vadd.f32 0.0, %v6707
  %v6709 = vpop.f32.mrb[0].mxu0
  %6710 = vmatprep.mubr.f32.mxu0 0.0
  %6711 = vmatmul.mubr.f32.gmra.mrb[0].mxu0 %v6614
  %v6712 = vpop.f32.mrb[0].mxu0
  %v6713 = vadd.f32 0.0, %v6712
  %v6714 = vpop.f32.mrb[0].mxu0
  %6715 = vmatprep.mubr.f32.mxu0 0.0
  %6716 = vmatmul.mubr.f32.gmra.mrb[0].mxu0 %v6617
  %v6717 = vpop.f32.mrb[0].mxu0
  %v6718 = vadd.f32 0.0, %v6717
  %v6719 = vpop.f32.mrb[0].mxu0
  %6720 = vmatprep.mubr.f32.mxu0 0.0
  %6721 = vmatmul.mubr.f32.gmra.mrb[0].mxu0 %v6620
  %v6722 = vpop.f32.mrb[0].mxu0
  %v6723 = vadd.f32 0.0, %v6722
  %v6724 = vpop.f32.mrb[0].mxu0
  %6725 = vmatprep.mubr.f32.mxu0 0.0
  %6726 = vmatmul.mubr.f32.gmra.mrb[0].mxu0 %v6623
  %v6727 = vpop.f32.mrb[0].mxu0
  %v6728 = vadd.f32 0.0, %v6727
  %v6729 = vpop.f32.mrb[0].mxu0
  %6730 = vmatprep.mubr.f32.mxu0 0.0
  %6731 = vmatmul.mubr.f32.gmra.mrb[0].mxu0 %v6626
  %v6732 = vpop.f32.mrb[0].mxu0
  %v6733 = vadd.f32 0.0, %v6732
  %v6734 = vpop.f32.mrb[0].mxu0
  %6735 = vmatprep.mubr.f32.mxu0 0.0
  %6736 = vmatmul.mubr.f32.gmra.mrb[0].mxu0 %v6629
  %v6737 = vpop.f32.mrb[0].mxu0
  %v6738 = vadd.f32 0.0, %v6737
  %v6739 = vpop.f32.mrb[0].mxu0
  %6740 = vdwg.mxu0
  %v6741 = vadd.f32 %v6436, %v6698
  %v6742 = vadd.f32 %v6437, %v6703
  %v6743 = vadd.f32 %v6438, %v6708
  %v6744 = vadd.f32 %v6439, %v6713
  %v6745 = vadd.f32 %v6440, %v6718
  %v6746 = vadd.f32 %v6441, %v6723
  %v6747 = vadd.f32 %v6442, %v6728
  %v6748 = vadd.f32 %v6443, %v6733
  %v6749 = vadd.f32 %v6444, %v6738
  %v6750 = vld [vmem:[%s0 + $0x630] sm:$0xff]
  %v6751 = vld [vmem:[%s0 + $0x638] sm:$0xff]
  %v6752 = vld [vmem:[%s0 + $0x640] sm:$0xff]
  %v6753 = vld [vmem:[%s0 + $0x648] sm:$0xff]
  %v6754 = vld [vmem:[%s0 + $0x650] sm:$0xff]
  %v6755 = vld [vmem:[%s0 + $0x658] sm:$0xff]
  %v6756 = vld [vmem:[%s0 + $0x660] sm:$0xff]
  %v6757 = vld [vmem:[%s0 + $0x668] sm:$0xff]
  %v6758 = vld [vmem:[%s0 + $0x670] sm:$0xff]
  %v6760 = vsel %vm61, %v6750, 0
  %v6763 = vsel %vm61, %v6751, 0
  %v6766 = vsel %vm61, %v6752, 0
  %v6769 = vsel %vm61, %v6753, 0
  %v6772 = vsel %vm61, %v6754, 0
  %v6775 = vsel %vm61, %v6755, 0
  %v6778 = vsel %vm61, %v6756, 0
  %v6781 = vsel %vm61, %v6757, 0
  %v6784 = vsel %vm61, %v6758, 0
  %6786 = vmatprep.subr.mxu0 0.0
  %6787 = vmatpush1.msra.mxu0 %v32
  %6788 = vmatprep.subr.mxu0 0.0
  %6789 = vmatpush1.msra.mxu0 %v33
  %6790 = vmatprep.subr.mxu0 0.0
  %6791 = vmatpush1.msra.mxu0 %v34
  %6792 = vmatprep.subr.mxu0 0.0
  %6793 = vmatpush1.msra.mxu0 %v35
  %6794 = vmatprep.subr.mxu0 0.0
  %6795 = vmatpush1.msra.mxu0 %v36
  %6796 = vmatprep.subr.mxu0 0.0
  %6797 = vmatpush1.msra.mxu0 %v37
  %6798 = vmatprep.subr.mxu0 0.0
  %6799 = vmatpush1.msra.mxu0 %v38
  %6800 = vmatprep.subr.mxu0 0.0
  %6801 = vmatpush1.msra.mxu0 %v39
  %6802 = vmatprep.subr.mxu0 0.0
  %6803 = vmatpush1.msra.mxu0 %v40
  %6804 = vmatprep.subr.mxu0 0.0
  %6805 = vmatpush1.msra.mxu0 %v41
  %6806 = vmatprep.subr.mxu0 0.0
  %6807 = vmatpush1.msra.mxu0 %v42
  %6808 = vmatprep.subr.mxu0 0.0
  %6809 = vmatpush1.msra.mxu0 %v43
  %6810 = vmatprep.subr.mxu0 0.0
  %6811 = vmatpush1.msra.mxu0 %v91
  %6812 = vmatprep.subr.mxu0 0.0
  %6813 = vmatpush1.msra.mxu0 0.0
  %6814 = vmatprep.subr.mxu0 0.0
  %6815 = vmatpush1.msra.mxu0 0.0
  %6816 = vmatprep.subr.mxu0 0.0
  %6817 = vmatpush1.msra.mxu0 0.0
  %6818 = vmatprep.subr.mxu0 0.0
  %6819 = vmatpush1.msra.mxu0 0.0
  %6820 = vmatprep.subr.mxu0 0.0
  %6821 = vmatpush1.msra.mxu0 0.0
  %6822 = vmatprep.subr.mxu0 0.0
  %6823 = vmatpush1.msra.mxu0 0.0
  %6824 = vmatprep.subr.mxu0 0.0
  %6825 = vmatpush1.msra.mxu0 0.0
  %6826 = vmatprep.subr.mxu0 0.0
  %6827 = vmatpush1.msra.mxu0 0.0
  %6828 = vmatprep.subr.mxu0 0.0
  %6829 = vmatpush1.msra.mxu0 0.0
  %6830 = vmatprep.subr.mxu0 0.0
  %6831 = vmatpush1.msra.mxu0 0.0
  %6832 = vmatprep.subr.mxu0 0.0
  %6833 = vmatpush1.msra.mxu0 0.0
  %6834 = vmatprep.subr.mxu0 0.0
  %6835 = vmatpush1.msra.mxu0 0.0
  %6836 = vmatprep.subr.mxu0 0.0
  %6837 = vmatpush1.msra.mxu0 0.0
  %6838 = vmatprep.subr.mxu0 0.0
  %6839 = vmatpush1.msra.mxu0 0.0
  %6840 = vmatprep.subr.mxu0 0.0
  %6841 = vmatpush1.msra.mxu0 0.0
  %6842 = vmatprep.subr.mxu0 0.0
  %6843 = vmatpush1.msra.mxu0 0.0
  %6844 = vmatprep.subr.mxu0 0.0
  %6845 = vmatpush1.msra.mxu0 0.0
  %6846 = vmatprep.subr.mxu0 0.0
  %6847 = vmatpush1.msra.mxu0 0.0
  %6848 = vmatprep.subr.mxu0 0.0
  %6849 = vmatpush1.msra.mxu0 0.0
  %6850 = vmatprep.mubr.f32.mxu0 0.0
  %6851 = vmatmul.mubr.f32.gmra.mrb[0].mxu0 %v6760
  %v6852 = vpop.f32.mrb[0].mxu0
  %v6853 = vadd.f32 %v59, %v6852
  %v6854 = vpop.f32.mrb[0].mxu0
  %6855 = vmatprep.mubr.f32.mxu0 0.0
  %6856 = vmatmul.mubr.f32.gmra.mrb[0].mxu0 %v6763
  %v6857 = vpop.f32.mrb[0].mxu0
  %v6858 = vadd.f32 %v59, %v6857
  %v6859 = vpop.f32.mrb[0].mxu0
  %6860 = vmatprep.mubr.f32.mxu0 0.0
  %6861 = vmatmul.mubr.f32.gmra.mrb[0].mxu0 %v6766
  %v6862 = vpop.f32.mrb[0].mxu0
  %v6863 = vadd.f32 %v59, %v6862
  %v6864 = vpop.f32.mrb[0].mxu0
  %6865 = vmatprep.mubr.f32.mxu0 0.0
  %6866 = vmatmul.mubr.f32.gmra.mrb[0].mxu0 %v6769
  %v6867 = vpop.f32.mrb[0].mxu0
  %v6868 = vadd.f32 %v59, %v6867
  %v6869 = vpop.f32.mrb[0].mxu0
  %6870 = vmatprep.mubr.f32.mxu0 0.0
  %6871 = vmatmul.mubr.f32.gmra.mrb[0].mxu0 %v6772
  %v6872 = vpop.f32.mrb[0].mxu0
  %v6873 = vadd.f32 %v59, %v6872
  %v6874 = vpop.f32.mrb[0].mxu0
  %6875 = vmatprep.mubr.f32.mxu0 0.0
  %6876 = vmatmul.mubr.f32.gmra.mrb[0].mxu0 %v6775
  %v6877 = vpop.f32.mrb[0].mxu0
  %v6878 = vadd.f32 %v59, %v6877
  %v6879 = vpop.f32.mrb[0].mxu0
  %6880 = vmatprep.mubr.f32.mxu0 0.0
  %6881 = vmatmul.mubr.f32.gmra.mrb[0].mxu0 %v6778
  %v6882 = vpop.f32.mrb[0].mxu0
  %v6883 = vadd.f32 %v59, %v6882
  %v6884 = vpop.f32.mrb[0].mxu0
  %6885 = vmatprep.mubr.f32.mxu0 0.0
  %6886 = vmatmul.mubr.f32.gmra.mrb[0].mxu0 %v6781
  %v6887 = vpop.f32.mrb[0].mxu0
  %v6888 = vadd.f32 %v59, %v6887
  %v6889 = vpop.f32.mrb[0].mxu0
  %6890 = vmatprep.mubr.f32.mxu0 0.0
  %6891 = vmatmul.mubr.f32.gmra.mrb[0].mxu0 %v6784
  %v6892 = vpop.f32.mrb[0].mxu0
  %v6893 = vadd.f32 %v59, %v6892
  %v6894 = vpop.f32.mrb[0].mxu0
  %6895 = vdwg.mxu0
  %v6896 = vmax.f32 %v6853, 0.0
  %v6897 = vmax.f32 %v6858, 0.0
  %v6898 = vmax.f32 %v6863, 0.0
  %v6899 = vmax.f32 %v6868, 0.0
  %v6900 = vmax.f32 %v6873, 0.0
  %v6901 = vmax.f32 %v6878, 0.0
  %v6902 = vmax.f32 %v6883, 0.0
  %v6903 = vmax.f32 %v6888, 0.0
  %v6904 = vmax.f32 %v6893, 0.0
  %v6905 = vld [vmem:[%s3 + $0x2c0] sm:$0xff]
  %v6906 = vld [vmem:[%s3 + $0x2c8] sm:$0xff]
  %v6907 = vld [vmem:[%s3 + $0x2d0] sm:$0xff]
  %v6908 = vld [vmem:[%s3 + $0x2d8] sm:$0xff]
  %v6910 = vsel %vm375, %v6896, 0
  %v6913 = vsel %vm375, %v6897, 0
  %v6916 = vsel %vm375, %v6898, 0
  %v6919 = vsel %vm375, %v6899, 0
  %v6922 = vsel %vm375, %v6900, 0
  %v6925 = vsel %vm375, %v6901, 0
  %v6928 = vsel %vm375, %v6902, 0
  %v6931 = vsel %vm375, %v6903, 0
  %v6934 = vsel %vm375, %v6904, 0
  %6936 = vmatprep.subr.mxu0 0.0
  %6937 = vmatpush1.msra.mxu0 %v6905
  %6938 = vmatprep.subr.mxu0 0.0
  %6939 = vmatpush1.msra.mxu0 %v6906
  %6940 = vmatprep.subr.mxu0 0.0
  %6941 = vmatpush1.msra.mxu0 %v6907
  %6942 = vmatprep.subr.mxu0 0.0
  %6943 = vmatpush1.msra.mxu0 %v6908
  %6944 = vmatprep.subr.mxu0 0.0
  %6945 = vmatpush1.msra.mxu0 0.0
  %6946 = vmatprep.subr.mxu0 0.0
  %6947 = vmatpush1.msra.mxu0 0.0
  %6948 = vmatprep.subr.mxu0 0.0
  %6949 = vmatpush1.msra.mxu0 0.0
  %6950 = vmatprep.subr.mxu0 0.0
  %6951 = vmatpush1.msra.mxu0 0.0
  %6952 = vmatprep.subr.mxu0 0.0
  %6953 = vmatpush1.msra.mxu0 0.0
  %6954 = vmatprep.subr.mxu0 0.0
  %6955 = vmatpush1.msra.mxu0 0.0
  %6956 = vmatprep.subr.mxu0 0.0
  %6957 = vmatpush1.msra.mxu0 0.0
  %6958 = vmatprep.subr.mxu0 0.0
  %6959 = vmatpush1.msra.mxu0 0.0
  %6960 = vmatprep.subr.mxu0 0.0
  %6961 = vmatpush1.msra.mxu0 0.0
  %6962 = vmatprep.subr.mxu0 0.0
  %6963 = vmatpush1.msra.mxu0 0.0
  %6964 = vmatprep.subr.mxu0 0.0
  %6965 = vmatpush1.msra.mxu0 0.0
  %6966 = vmatprep.subr.mxu0 0.0
  %6967 = vmatpush1.msra.mxu0 0.0
  %6968 = vmatprep.subr.mxu0 0.0
  %6969 = vmatpush1.msra.mxu0 0.0
  %6970 = vmatprep.subr.mxu0 0.0
  %6971 = vmatpush1.msra.mxu0 0.0
  %6972 = vmatprep.subr.mxu0 0.0
  %6973 = vmatpush1.msra.mxu0 0.0
  %6974 = vmatprep.subr.mxu0 0.0
  %6975 = vmatpush1.msra.mxu0 0.0
  %6976 = vmatprep.subr.mxu0 0.0
  %6977 = vmatpush1.msra.mxu0 0.0
  %6978 = vmatprep.subr.mxu0 0.0
  %6979 = vmatpush1.msra.mxu0 0.0
  %6980 = vmatprep.subr.mxu0 0.0
  %6981 = vmatpush1.msra.mxu0 0.0
  %6982 = vmatprep.subr.mxu0 0.0
  %6983 = vmatpush1.msra.mxu0 0.0
  %6984 = vmatprep.subr.mxu0 0.0
  %6985 = vmatpush1.msra.mxu0 0.0
  %6986 = vmatprep.subr.mxu0 0.0
  %6987 = vmatpush1.msra.mxu0 0.0
  %6988 = vmatprep.subr.mxu0 0.0
  %6989 = vmatpush1.msra.mxu0 0.0
  %6990 = vmatprep.subr.mxu0 0.0
  %6991 = vmatpush1.msra.mxu0 0.0
  %6992 = vmatprep.subr.mxu0 0.0
  %6993 = vmatpush1.msra.mxu0 0.0
  %6994 = vmatprep.subr.mxu0 0.0
  %6995 = vmatpush1.msra.mxu0 0.0
  %6996 = vmatprep.subr.mxu0 0.0
  %6997 = vmatpush1.msra.mxu0 0.0
  %6998 = vmatprep.subr.mxu0 0.0
  %6999 = vmatpush1.msra.mxu0 0.0
  %7000 = vmatprep.mubr.f32.mxu0 0.0
  %7001 = vmatmul.mubr.f32.gmra.mrb[0].mxu0 %v6910
  %v7002 = vpop.f32.mrb[0].mxu0
  %v7003 = vadd.f32 0.0, %v7002
  %v7004 = vpop.f32.mrb[0].mxu0
  %7005 = vmatprep.mubr.f32.mxu0 0.0
  %7006 = vmatmul.mubr.f32.gmra.mrb[0].mxu0 %v6913
  %v7007 = vpop.f32.mrb[0].mxu0
  %v7008 = vadd.f32 0.0, %v7007
  %v7009 = vpop.f32.mrb[0].mxu0
  %7010 = vmatprep.mubr.f32.mxu0 0.0
  %7011 = vmatmul.mubr.f32.gmra.mrb[0].mxu0 %v6916
  %v7012 = vpop.f32.mrb[0].mxu0
  %v7013 = vadd.f32 0.0, %v7012
  %v7014 = vpop.f32.mrb[0].mxu0
  %7015 = vmatprep.mubr.f32.mxu0 0.0
  %7016 = vmatmul.mubr.f32.gmra.mrb[0].mxu0 %v6919
  %v7017 = vpop.f32.mrb[0].mxu0
  %v7018 = vadd.f32 0.0, %v7017
  %v7019 = vpop.f32.mrb[0].mxu0
  %7020 = vmatprep.mubr.f32.mxu0 0.0
  %7021 = vmatmul.mubr.f32.gmra.mrb[0].mxu0 %v6922
  %v7022 = vpop.f32.mrb[0].mxu0
  %v7023 = vadd.f32 0.0, %v7022
  %v7024 = vpop.f32.mrb[0].mxu0
  %7025 = vmatprep.mubr.f32.mxu0 0.0
  %7026 = vmatmul.mubr.f32.gmra.mrb[0].mxu0 %v6925
  %v7027 = vpop.f32.mrb[0].mxu0
  %v7028 = vadd.f32 0.0, %v7027
  %v7029 = vpop.f32.mrb[0].mxu0
  %7030 = vmatprep.mubr.f32.mxu0 0.0
  %7031 = vmatmul.mubr.f32.gmra.mrb[0].mxu0 %v6928
  %v7032 = vpop.f32.mrb[0].mxu0
  %v7033 = vadd.f32 0.0, %v7032
  %v7034 = vpop.f32.mrb[0].mxu0
  %7035 = vmatprep.mubr.f32.mxu0 0.0
  %7036 = vmatmul.mubr.f32.gmra.mrb[0].mxu0 %v6931
  %v7037 = vpop.f32.mrb[0].mxu0
  %v7038 = vadd.f32 0.0, %v7037
  %v7039 = vpop.f32.mrb[0].mxu0
  %7040 = vmatprep.mubr.f32.mxu0 0.0
  %7041 = vmatmul.mubr.f32.gmra.mrb[0].mxu0 %v6934
  %v7042 = vpop.f32.mrb[0].mxu0
  %v7043 = vadd.f32 0.0, %v7042
  %v7044 = vpop.f32.mrb[0].mxu0
  %7045 = vdwg.mxu0
  %v7046 = vadd.f32 %v6741, %v7003
  %v7047 = vadd.f32 %v6742, %v7008
  %v7048 = vadd.f32 %v6743, %v7013
  %v7049 = vadd.f32 %v6744, %v7018
  %v7050 = vadd.f32 %v6745, %v7023
  %v7051 = vadd.f32 %v6746, %v7028
  %v7052 = vadd.f32 %v6747, %v7033
  %v7053 = vadd.f32 %v6748, %v7038
  %v7054 = vadd.f32 %v6749, %v7043
  %v7055 = vld [vmem:[%s0 + $0x678] sm:$0xff]
  %v7056 = vld [vmem:[%s0 + $0x680] sm:$0xff]
  %v7057 = vld [vmem:[%s0 + $0x688] sm:$0xff]
  %v7058 = vld [vmem:[%s0 + $0x690] sm:$0xff]
  %v7059 = vld [vmem:[%s0 + $0x698] sm:$0xff]
  %v7060 = vld [vmem:[%s0 + $0x6a0] sm:$0xff]
  %v7061 = vld [vmem:[%s0 + $0x6a8] sm:$0xff]
  %v7062 = vld [vmem:[%s0 + $0x6b0] sm:$0xff]
  %v7063 = vld [vmem:[%s0 + $0x6b8] sm:$0xff]
  %v7065 = vsel %vm61, %v7055, 0
  %v7068 = vsel %vm61, %v7056, 0
  %v7071 = vsel %vm61, %v7057, 0
  %v7074 = vsel %vm61, %v7058, 0
  %v7077 = vsel %vm61, %v7059, 0
  %v7080 = vsel %vm61, %v7060, 0
  %v7083 = vsel %vm61, %v7061, 0
  %v7086 = vsel %vm61, %v7062, 0
  %v7089 = vsel %vm61, %v7063, 0
  %7091 = vmatprep.subr.mxu0 0.0
  %7092 = vmatpush1.msra.mxu0 %v32
  %7093 = vmatprep.subr.mxu0 0.0
  %7094 = vmatpush1.msra.mxu0 %v33
  %7095 = vmatprep.subr.mxu0 0.0
  %7096 = vmatpush1.msra.mxu0 %v34
  %7097 = vmatprep.subr.mxu0 0.0
  %7098 = vmatpush1.msra.mxu0 %v35
  %7099 = vmatprep.subr.mxu0 0.0
  %7100 = vmatpush1.msra.mxu0 %v36
  %7101 = vmatprep.subr.mxu0 0.0
  %7102 = vmatpush1.msra.mxu0 %v37
  %7103 = vmatprep.subr.mxu0 0.0
  %7104 = vmatpush1.msra.mxu0 %v38
  %7105 = vmatprep.subr.mxu0 0.0
  %7106 = vmatpush1.msra.mxu0 %v39
  %7107 = vmatprep.subr.mxu0 0.0
  %7108 = vmatpush1.msra.mxu0 %v40
  %7109 = vmatprep.subr.mxu0 0.0
  %7110 = vmatpush1.msra.mxu0 %v41
  %7111 = vmatprep.subr.mxu0 0.0
  %7112 = vmatpush1.msra.mxu0 %v42
  %7113 = vmatprep.subr.mxu0 0.0
  %7114 = vmatpush1.msra.mxu0 %v43
  %7115 = vmatprep.subr.mxu0 0.0
  %7116 = vmatpush1.msra.mxu0 %v91
  %7117 = vmatprep.subr.mxu0 0.0
  %7118 = vmatpush1.msra.mxu0 0.0
  %7119 = vmatprep.subr.mxu0 0.0
  %7120 = vmatpush1.msra.mxu0 0.0
  %7121 = vmatprep.subr.mxu0 0.0
  %7122 = vmatpush1.msra.mxu0 0.0
  %7123 = vmatprep.subr.mxu0 0.0
  %7124 = vmatpush1.msra.mxu0 0.0
  %7125 = vmatprep.subr.mxu0 0.0
  %7126 = vmatpush1.msra.mxu0 0.0
  %7127 = vmatprep.subr.mxu0 0.0
  %7128 = vmatpush1.msra.mxu0 0.0
  %7129 = vmatprep.subr.mxu0 0.0
  %7130 = vmatpush1.msra.mxu0 0.0
  %7131 = vmatprep.subr.mxu0 0.0
  %7132 = vmatpush1.msra.mxu0 0.0
  %7133 = vmatprep.subr.mxu0 0.0
  %7134 = vmatpush1.msra.mxu0 0.0
  %7135 = vmatprep.subr.mxu0 0.0
  %7136 = vmatpush1.msra.mxu0 0.0
  %7137 = vmatprep.subr.mxu0 0.0
  %7138 = vmatpush1.msra.mxu0 0.0
  %7139 = vmatprep.subr.mxu0 0.0
  %7140 = vmatpush1.msra.mxu0 0.0
  %7141 = vmatprep.subr.mxu0 0.0
  %7142 = vmatpush1.msra.mxu0 0.0
  %7143 = vmatprep.subr.mxu0 0.0
  %7144 = vmatpush1.msra.mxu0 0.0
  %7145 = vmatprep.subr.mxu0 0.0
  %7146 = vmatpush1.msra.mxu0 0.0
  %7147 = vmatprep.subr.mxu0 0.0
  %7148 = vmatpush1.msra.mxu0 0.0
  %7149 = vmatprep.subr.mxu0 0.0
  %7150 = vmatpush1.msra.mxu0 0.0
  %7151 = vmatprep.subr.mxu0 0.0
  %7152 = vmatpush1.msra.mxu0 0.0
  %7153 = vmatprep.subr.mxu0 0.0
  %7154 = vmatpush1.msra.mxu0 0.0
  %7155 = vmatprep.mubr.f32.mxu0 0.0
  %7156 = vmatmul.mubr.f32.gmra.mrb[0].mxu0 %v7065
  %v7157 = vpop.f32.mrb[0].mxu0
  %v7158 = vadd.f32 %v59, %v7157
  %v7159 = vpop.f32.mrb[0].mxu0
  %7160 = vmatprep.mubr.f32.mxu0 0.0
  %7161 = vmatmul.mubr.f32.gmra.mrb[0].mxu0 %v7068
  %v7162 = vpop.f32.mrb[0].mxu0
  %v7163 = vadd.f32 %v59, %v7162
  %v7164 = vpop.f32.mrb[0].mxu0
  %7165 = vmatprep.mubr.f32.mxu0 0.0
  %7166 = vmatmul.mubr.f32.gmra.mrb[0].mxu0 %v7071
  %v7167 = vpop.f32.mrb[0].mxu0
  %v7168 = vadd.f32 %v59, %v7167
  %v7169 = vpop.f32.mrb[0].mxu0
  %7170 = vmatprep.mubr.f32.mxu0 0.0
  %7171 = vmatmul.mubr.f32.gmra.mrb[0].mxu0 %v7074
  %v7172 = vpop.f32.mrb[0].mxu0
  %v7173 = vadd.f32 %v59, %v7172
  %v7174 = vpop.f32.mrb[0].mxu0
  %7175 = vmatprep.mubr.f32.mxu0 0.0
  %7176 = vmatmul.mubr.f32.gmra.mrb[0].mxu0 %v7077
  %v7177 = vpop.f32.mrb[0].mxu0
  %v7178 = vadd.f32 %v59, %v7177
  %v7179 = vpop.f32.mrb[0].mxu0
  %7180 = vmatprep.mubr.f32.mxu0 0.0
  %7181 = vmatmul.mubr.f32.gmra.mrb[0].mxu0 %v7080
  %v7182 = vpop.f32.mrb[0].mxu0
  %v7183 = vadd.f32 %v59, %v7182
  %v7184 = vpop.f32.mrb[0].mxu0
  %7185 = vmatprep.mubr.f32.mxu0 0.0
  %7186 = vmatmul.mubr.f32.gmra.mrb[0].mxu0 %v7083
  %v7187 = vpop.f32.mrb[0].mxu0
  %v7188 = vadd.f32 %v59, %v7187
  %v7189 = vpop.f32.mrb[0].mxu0
  %7190 = vmatprep.mubr.f32.mxu0 0.0
  %7191 = vmatmul.mubr.f32.gmra.mrb[0].mxu0 %v7086
  %v7192 = vpop.f32.mrb[0].mxu0
  %v7193 = vadd.f32 %v59, %v7192
  %v7194 = vpop.f32.mrb[0].mxu0
  %7195 = vmatprep.mubr.f32.mxu0 0.0
  %7196 = vmatmul.mubr.f32.gmra.mrb[0].mxu0 %v7089
  %v7197 = vpop.f32.mrb[0].mxu0
  %v7198 = vadd.f32 %v59, %v7197
  %v7199 = vpop.f32.mrb[0].mxu0
  %7200 = vdwg.mxu0
  %v7201 = vmax.f32 %v7158, 0.0
  %v7202 = vmax.f32 %v7163, 0.0
  %v7203 = vmax.f32 %v7168, 0.0
  %v7204 = vmax.f32 %v7173, 0.0
  %v7205 = vmax.f32 %v7178, 0.0
  %v7206 = vmax.f32 %v7183, 0.0
  %v7207 = vmax.f32 %v7188, 0.0
  %v7208 = vmax.f32 %v7193, 0.0
  %v7209 = vmax.f32 %v7198, 0.0
  %v7210 = vld [vmem:[%s3 + $0x2e0] sm:$0xff]
  %v7211 = vld [vmem:[%s3 + $0x2e8] sm:$0xff]
  %v7212 = vld [vmem:[%s3 + $0x2f0] sm:$0xff]
  %v7213 = vld [vmem:[%s3 + $0x2f8] sm:$0xff]
  %v7215 = vsel %vm375, %v7201, 0
  %v7218 = vsel %vm375, %v7202, 0
  %v7221 = vsel %vm375, %v7203, 0
  %v7224 = vsel %vm375, %v7204, 0
  %v7227 = vsel %vm375, %v7205, 0
  %v7230 = vsel %vm375, %v7206, 0
  %v7233 = vsel %vm375, %v7207, 0
  %v7236 = vsel %vm375, %v7208, 0
  %v7239 = vsel %vm375, %v7209, 0
  %7241 = vmatprep.subr.mxu0 0.0
  %7242 = vmatpush1.msra.mxu0 %v7210
  %7243 = vmatprep.subr.mxu0 0.0
  %7244 = vmatpush1.msra.mxu0 %v7211
  %7245 = vmatprep.subr.mxu0 0.0
  %7246 = vmatpush1.msra.mxu0 %v7212
  %7247 = vmatprep.subr.mxu0 0.0
  %7248 = vmatpush1.msra.mxu0 %v7213
  %7249 = vmatprep.subr.mxu0 0.0
  %7250 = vmatpush1.msra.mxu0 0.0
  %7251 = vmatprep.subr.mxu0 0.0
  %7252 = vmatpush1.msra.mxu0 0.0
  %7253 = vmatprep.subr.mxu0 0.0
  %7254 = vmatpush1.msra.mxu0 0.0
  %7255 = vmatprep.subr.mxu0 0.0
  %7256 = vmatpush1.msra.mxu0 0.0
  %7257 = vmatprep.subr.mxu0 0.0
  %7258 = vmatpush1.msra.mxu0 0.0
  %7259 = vmatprep.subr.mxu0 0.0
  %7260 = vmatpush1.msra.mxu0 0.0
  %7261 = vmatprep.subr.mxu0 0.0
  %7262 = vmatpush1.msra.mxu0 0.0
  %7263 = vmatprep.subr.mxu0 0.0
  %7264 = vmatpush1.msra.mxu0 0.0
  %7265 = vmatprep.subr.mxu0 0.0
  %7266 = vmatpush1.msra.mxu0 0.0
  %7267 = vmatprep.subr.mxu0 0.0
  %7268 = vmatpush1.msra.mxu0 0.0
  %7269 = vmatprep.subr.mxu0 0.0
  %7270 = vmatpush1.msra.mxu0 0.0
  %7271 = vmatprep.subr.mxu0 0.0
  %7272 = vmatpush1.msra.mxu0 0.0
  %7273 = vmatprep.subr.mxu0 0.0
  %7274 = vmatpush1.msra.mxu0 0.0
  %7275 = vmatprep.subr.mxu0 0.0
  %7276 = vmatpush1.msra.mxu0 0.0
  %7277 = vmatprep.subr.mxu0 0.0
  %7278 = vmatpush1.msra.mxu0 0.0
  %7279 = vmatprep.subr.mxu0 0.0
  %7280 = vmatpush1.msra.mxu0 0.0
  %7281 = vmatprep.subr.mxu0 0.0
  %7282 = vmatpush1.msra.mxu0 0.0
  %7283 = vmatprep.subr.mxu0 0.0
  %7284 = vmatpush1.msra.mxu0 0.0
  %7285 = vmatprep.subr.mxu0 0.0
  %7286 = vmatpush1.msra.mxu0 0.0
  %7287 = vmatprep.subr.mxu0 0.0
  %7288 = vmatpush1.msra.mxu0 0.0
  %7289 = vmatprep.subr.mxu0 0.0
  %7290 = vmatpush1.msra.mxu0 0.0
  %7291 = vmatprep.subr.mxu0 0.0
  %7292 = vmatpush1.msra.mxu0 0.0
  %7293 = vmatprep.subr.mxu0 0.0
  %7294 = vmatpush1.msra.mxu0 0.0
  %7295 = vmatprep.subr.mxu0 0.0
  %7296 = vmatpush1.msra.mxu0 0.0
  %7297 = vmatprep.subr.mxu0 0.0
  %7298 = vmatpush1.msra.mxu0 0.0
  %7299 = vmatprep.subr.mxu0 0.0
  %7300 = vmatpush1.msra.mxu0 0.0
  %7301 = vmatprep.subr.mxu0 0.0
  %7302 = vmatpush1.msra.mxu0 0.0
  %7303 = vmatprep.subr.mxu0 0.0
  %7304 = vmatpush1.msra.mxu0 0.0
  %7305 = vmatprep.mubr.f32.mxu0 0.0
  %7306 = vmatmul.mubr.f32.gmra.mrb[0].mxu0 %v7215
  %v7307 = vpop.f32.mrb[0].mxu0
  %v7308 = vadd.f32 0.0, %v7307
  %v7309 = vpop.f32.mrb[0].mxu0
  %7310 = vmatprep.mubr.f32.mxu0 0.0
  %7311 = vmatmul.mubr.f32.gmra.mrb[0].mxu0 %v7218
  %v7312 = vpop.f32.mrb[0].mxu0
  %v7313 = vadd.f32 0.0, %v7312
  %v7314 = vpop.f32.mrb[0].mxu0
  %7315 = vmatprep.mubr.f32.mxu0 0.0
  %7316 = vmatmul.mubr.f32.gmra.mrb[0].mxu0 %v7221
  %v7317 = vpop.f32.mrb[0].mxu0
  %v7318 = vadd.f32 0.0, %v7317
  %v7319 = vpop.f32.mrb[0].mxu0
  %7320 = vmatprep.mubr.f32.mxu0 0.0
  %7321 = vmatmul.mubr.f32.gmra.mrb[0].mxu0 %v7224
  %v7322 = vpop.f32.mrb[0].mxu0
  %v7323 = vadd.f32 0.0, %v7322
  %v7324 = vpop.f32.mrb[0].mxu0
  %7325 = vmatprep.mubr.f32.mxu0 0.0
  %7326 = vmatmul.mubr.f32.gmra.mrb[0].mxu0 %v7227
  %v7327 = vpop.f32.mrb[0].mxu0
  %v7328 = vadd.f32 0.0, %v7327
  %v7329 = vpop.f32.mrb[0].mxu0
  %7330 = vmatprep.mubr.f32.mxu0 0.0
  %7331 = vmatmul.mubr.f32.gmra.mrb[0].mxu0 %v7230
  %v7332 = vpop.f32.mrb[0].mxu0
  %v7333 = vadd.f32 0.0, %v7332
  %v7334 = vpop.f32.mrb[0].mxu0
  %7335 = vmatprep.mubr.f32.mxu0 0.0
  %7336 = vmatmul.mubr.f32.gmra.mrb[0].mxu0 %v7233
  %v7337 = vpop.f32.mrb[0].mxu0
  %v7338 = vadd.f32 0.0, %v7337
  %v7339 = vpop.f32.mrb[0].mxu0
  %7340 = vmatprep.mubr.f32.mxu0 0.0
  %7341 = vmatmul.mubr.f32.gmra.mrb[0].mxu0 %v7236
  %v7342 = vpop.f32.mrb[0].mxu0
  %v7343 = vadd.f32 0.0, %v7342
  %v7344 = vpop.f32.mrb[0].mxu0
  %7345 = vmatprep.mubr.f32.mxu0 0.0
  %7346 = vmatmul.mubr.f32.gmra.mrb[0].mxu0 %v7239
  %v7347 = vpop.f32.mrb[0].mxu0
  %v7348 = vadd.f32 0.0, %v7347
  %v7349 = vpop.f32.mrb[0].mxu0
  %7350 = vdwg.mxu0
  %v7351 = vadd.f32 %v7046, %v7308
  %v7352 = vadd.f32 %v7047, %v7313
  %v7353 = vadd.f32 %v7048, %v7318
  %v7354 = vadd.f32 %v7049, %v7323
  %v7355 = vadd.f32 %v7050, %v7328
  %v7356 = vadd.f32 %v7051, %v7333
  %v7357 = vadd.f32 %v7052, %v7338
  %v7358 = vadd.f32 %v7053, %v7343
  %v7359 = vadd.f32 %v7054, %v7348
  %v7360 = vld [vmem:[%s0 + $0x6c0] sm:$0xff]
  %v7361 = vld [vmem:[%s0 + $0x6c8] sm:$0xff]
  %v7362 = vld [vmem:[%s0 + $0x6d0] sm:$0xff]
  %v7363 = vld [vmem:[%s0 + $0x6d8] sm:$0xff]
  %v7364 = vld [vmem:[%s0 + $0x6e0] sm:$0xff]
  %v7365 = vld [vmem:[%s0 + $0x6e8] sm:$0xff]
  %v7366 = vld [vmem:[%s0 + $0x6f0] sm:$0xff]
  %v7367 = vld [vmem:[%s0 + $0x6f8] sm:$0xff]
  %v7368 = vld [vmem:[%s0 + $0x700] sm:$0xff]
  %v7370 = vsel %vm61, %v7360, 0
  %v7373 = vsel %vm61, %v7361, 0
  %v7376 = vsel %vm61, %v7362, 0
  %v7379 = vsel %vm61, %v7363, 0
  %v7382 = vsel %vm61, %v7364, 0
  %v7385 = vsel %vm61, %v7365, 0
  %v7388 = vsel %vm61, %v7366, 0
  %v7391 = vsel %vm61, %v7367, 0
  %v7394 = vsel %vm61, %v7368, 0
  %7396 = vmatprep.subr.mxu0 0.0
  %7397 = vmatpush1.msra.mxu0 %v32
  %7398 = vmatprep.subr.mxu0 0.0
  %7399 = vmatpush1.msra.mxu0 %v33
  %7400 = vmatprep.subr.mxu0 0.0
  %7401 = vmatpush1.msra.mxu0 %v34
  %7402 = vmatprep.subr.mxu0 0.0
  %7403 = vmatpush1.msra.mxu0 %v35
  %7404 = vmatprep.subr.mxu0 0.0
  %7405 = vmatpush1.msra.mxu0 %v36
  %7406 = vmatprep.subr.mxu0 0.0
  %7407 = vmatpush1.msra.mxu0 %v37
  %7408 = vmatprep.subr.mxu0 0.0
  %7409 = vmatpush1.msra.mxu0 %v38
  %7410 = vmatprep.subr.mxu0 0.0
  %7411 = vmatpush1.msra.mxu0 %v39
  %7412 = vmatprep.subr.mxu0 0.0
  %7413 = vmatpush1.msra.mxu0 %v40
  %7414 = vmatprep.subr.mxu0 0.0
  %7415 = vmatpush1.msra.mxu0 %v41
  %7416 = vmatprep.subr.mxu0 0.0
  %7417 = vmatpush1.msra.mxu0 %v42
  %7418 = vmatprep.subr.mxu0 0.0
  %7419 = vmatpush1.msra.mxu0 %v43
  %7420 = vmatprep.subr.mxu0 0.0
  %7421 = vmatpush1.msra.mxu0 %v91
  %7422 = vmatprep.subr.mxu0 0.0
  %7423 = vmatpush1.msra.mxu0 0.0
  %7424 = vmatprep.subr.mxu0 0.0
  %7425 = vmatpush1.msra.mxu0 0.0
  %7426 = vmatprep.subr.mxu0 0.0
  %7427 = vmatpush1.msra.mxu0 0.0
  %7428 = vmatprep.subr.mxu0 0.0
  %7429 = vmatpush1.msra.mxu0 0.0
  %7430 = vmatprep.subr.mxu0 0.0
  %7431 = vmatpush1.msra.mxu0 0.0
  %7432 = vmatprep.subr.mxu0 0.0
  %7433 = vmatpush1.msra.mxu0 0.0
  %7434 = vmatprep.subr.mxu0 0.0
  %7435 = vmatpush1.msra.mxu0 0.0
  %7436 = vmatprep.subr.mxu0 0.0
  %7437 = vmatpush1.msra.mxu0 0.0
  %7438 = vmatprep.subr.mxu0 0.0
  %7439 = vmatpush1.msra.mxu0 0.0
  %7440 = vmatprep.subr.mxu0 0.0
  %7441 = vmatpush1.msra.mxu0 0.0
  %7442 = vmatprep.subr.mxu0 0.0
  %7443 = vmatpush1.msra.mxu0 0.0
  %7444 = vmatprep.subr.mxu0 0.0
  %7445 = vmatpush1.msra.mxu0 0.0
  %7446 = vmatprep.subr.mxu0 0.0
  %7447 = vmatpush1.msra.mxu0 0.0
  %7448 = vmatprep.subr.mxu0 0.0
  %7449 = vmatpush1.msra.mxu0 0.0
  %7450 = vmatprep.subr.mxu0 0.0
  %7451 = vmatpush1.msra.mxu0 0.0
  %7452 = vmatprep.subr.mxu0 0.0
  %7453 = vmatpush1.msra.mxu0 0.0
  %7454 = vmatprep.subr.mxu0 0.0
  %7455 = vmatpush1.msra.mxu0 0.0
  %7456 = vmatprep.subr.mxu0 0.0
  %7457 = vmatpush1.msra.mxu0 0.0
  %7458 = vmatprep.subr.mxu0 0.0
  %7459 = vmatpush1.msra.mxu0 0.0
  %7460 = vmatprep.mubr.f32.mxu0 0.0
  %7461 = vmatmul.mubr.f32.gmra.mrb[0].mxu0 %v7370
  %v7462 = vpop.f32.mrb[0].mxu0
  %v7463 = vadd.f32 %v59, %v7462
  %v7464 = vpop.f32.mrb[0].mxu0
  %7465 = vmatprep.mubr.f32.mxu0 0.0
  %7466 = vmatmul.mubr.f32.gmra.mrb[0].mxu0 %v7373
  %v7467 = vpop.f32.mrb[0].mxu0
  %v7468 = vadd.f32 %v59, %v7467
  %v7469 = vpop.f32.mrb[0].mxu0
  %7470 = vmatprep.mubr.f32.mxu0 0.0
  %7471 = vmatmul.mubr.f32.gmra.mrb[0].mxu0 %v7376
  %v7472 = vpop.f32.mrb[0].mxu0
  %v7473 = vadd.f32 %v59, %v7472
  %v7474 = vpop.f32.mrb[0].mxu0
  %7475 = vmatprep.mubr.f32.mxu0 0.0
  %7476 = vmatmul.mubr.f32.gmra.mrb[0].mxu0 %v7379
  %v7477 = vpop.f32.mrb[0].mxu0
  %v7478 = vadd.f32 %v59, %v7477
  %v7479 = vpop.f32.mrb[0].mxu0
  %7480 = vmatprep.mubr.f32.mxu0 0.0
  %7481 = vmatmul.mubr.f32.gmra.mrb[0].mxu0 %v7382
  %v7482 = vpop.f32.mrb[0].mxu0
  %v7483 = vadd.f32 %v59, %v7482
  %v7484 = vpop.f32.mrb[0].mxu0
  %7485 = vmatprep.mubr.f32.mxu0 0.0
  %7486 = vmatmul.mubr.f32.gmra.mrb[0].mxu0 %v7385
  %v7487 = vpop.f32.mrb[0].mxu0
  %v7488 = vadd.f32 %v59, %v7487
  %v7489 = vpop.f32.mrb[0].mxu0
  %7490 = vmatprep.mubr.f32.mxu0 0.0
  %7491 = vmatmul.mubr.f32.gmra.mrb[0].mxu0 %v7388
  %v7492 = vpop.f32.mrb[0].mxu0
  %v7493 = vadd.f32 %v59, %v7492
  %v7494 = vpop.f32.mrb[0].mxu0
  %7495 = vmatprep.mubr.f32.mxu0 0.0
  %7496 = vmatmul.mubr.f32.gmra.mrb[0].mxu0 %v7391
  %v7497 = vpop.f32.mrb[0].mxu0
  %v7498 = vadd.f32 %v59, %v7497
  %v7499 = vpop.f32.mrb[0].mxu0
  %7500 = vmatprep.mubr.f32.mxu0 0.0
  %7501 = vmatmul.mubr.f32.gmra.mrb[0].mxu0 %v7394
  %v7502 = vpop.f32.mrb[0].mxu0
  %v7503 = vadd.f32 %v59, %v7502
  %v7504 = vpop.f32.mrb[0].mxu0
  %7505 = vdwg.mxu0
  %v7506 = vmax.f32 %v7463, 0.0
  %v7507 = vmax.f32 %v7468, 0.0
  %v7508 = vmax.f32 %v7473, 0.0
  %v7509 = vmax.f32 %v7478, 0.0
  %v7510 = vmax.f32 %v7483, 0.0
  %v7511 = vmax.f32 %v7488, 0.0
  %v7512 = vmax.f32 %v7493, 0.0
  %v7513 = vmax.f32 %v7498, 0.0
  %v7514 = vmax.f32 %v7503, 0.0
  %v7515 = vld [vmem:[%s3 + $0x300] sm:$0xff]
  %v7516 = vld [vmem:[%s3 + $0x308] sm:$0xff]
  %v7517 = vld [vmem:[%s3 + $0x310] sm:$0xff]
  %v7518 = vld [vmem:[%s3 + $0x318] sm:$0xff]
  %v7520 = vsel %vm375, %v7506, 0
  %v7523 = vsel %vm375, %v7507, 0
  %v7526 = vsel %vm375, %v7508, 0
  %v7529 = vsel %vm375, %v7509, 0
  %v7532 = vsel %vm375, %v7510, 0
  %v7535 = vsel %vm375, %v7511, 0
  %v7538 = vsel %vm375, %v7512, 0
  %v7541 = vsel %vm375, %v7513, 0
  %v7544 = vsel %vm375, %v7514, 0
  %7546 = vmatprep.subr.mxu0 0.0
  %7547 = vmatpush1.msra.mxu0 %v7515
  %7548 = vmatprep.subr.mxu0 0.0
  %7549 = vmatpush1.msra.mxu0 %v7516
  %7550 = vmatprep.subr.mxu0 0.0
  %7551 = vmatpush1.msra.mxu0 %v7517
  %7552 = vmatprep.subr.mxu0 0.0
  %7553 = vmatpush1.msra.mxu0 %v7518
  %7554 = vmatprep.subr.mxu0 0.0
  %7555 = vmatpush1.msra.mxu0 0.0
  %7556 = vmatprep.subr.mxu0 0.0
  %7557 = vmatpush1.msra.mxu0 0.0
  %7558 = vmatprep.subr.mxu0 0.0
  %7559 = vmatpush1.msra.mxu0 0.0
  %7560 = vmatprep.subr.mxu0 0.0
  %7561 = vmatpush1.msra.mxu0 0.0
  %7562 = vmatprep.subr.mxu0 0.0
  %7563 = vmatpush1.msra.mxu0 0.0
  %7564 = vmatprep.subr.mxu0 0.0
  %7565 = vmatpush1.msra.mxu0 0.0
  %7566 = vmatprep.subr.mxu0 0.0
  %7567 = vmatpush1.msra.mxu0 0.0
  %7568 = vmatprep.subr.mxu0 0.0
  %7569 = vmatpush1.msra.mxu0 0.0
  %7570 = vmatprep.subr.mxu0 0.0
  %7571 = vmatpush1.msra.mxu0 0.0
  %7572 = vmatprep.subr.mxu0 0.0
  %7573 = vmatpush1.msra.mxu0 0.0
  %7574 = vmatprep.subr.mxu0 0.0
  %7575 = vmatpush1.msra.mxu0 0.0
  %7576 = vmatprep.subr.mxu0 0.0
  %7577 = vmatpush1.msra.mxu0 0.0
  %7578 = vmatprep.subr.mxu0 0.0
  %7579 = vmatpush1.msra.mxu0 0.0
  %7580 = vmatprep.subr.mxu0 0.0
  %7581 = vmatpush1.msra.mxu0 0.0
  %7582 = vmatprep.subr.mxu0 0.0
  %7583 = vmatpush1.msra.mxu0 0.0
  %7584 = vmatprep.subr.mxu0 0.0
  %7585 = vmatpush1.msra.mxu0 0.0
  %7586 = vmatprep.subr.mxu0 0.0
  %7587 = vmatpush1.msra.mxu0 0.0
  %7588 = vmatprep.subr.mxu0 0.0
  %7589 = vmatpush1.msra.mxu0 0.0
  %7590 = vmatprep.subr.mxu0 0.0
  %7591 = vmatpush1.msra.mxu0 0.0
  %7592 = vmatprep.subr.mxu0 0.0
  %7593 = vmatpush1.msra.mxu0 0.0
  %7594 = vmatprep.subr.mxu0 0.0
  %7595 = vmatpush1.msra.mxu0 0.0
  %7596 = vmatprep.subr.mxu0 0.0
  %7597 = vmatpush1.msra.mxu0 0.0
  %7598 = vmatprep.subr.mxu0 0.0
  %7599 = vmatpush1.msra.mxu0 0.0
  %7600 = vmatprep.subr.mxu0 0.0
  %7601 = vmatpush1.msra.mxu0 0.0
  %7602 = vmatprep.subr.mxu0 0.0
  %7603 = vmatpush1.msra.mxu0 0.0
  %7604 = vmatprep.subr.mxu0 0.0
  %7605 = vmatpush1.msra.mxu0 0.0
  %7606 = vmatprep.subr.mxu0 0.0
  %7607 = vmatpush1.msra.mxu0 0.0
  %7608 = vmatprep.subr.mxu0 0.0
  %7609 = vmatpush1.msra.mxu0 0.0
  %7610 = vmatprep.mubr.f32.mxu0 0.0
  %7611 = vmatmul.mubr.f32.gmra.mrb[0].mxu0 %v7520
  %v7612 = vpop.f32.mrb[0].mxu0
  %v7613 = vadd.f32 0.0, %v7612
  %v7614 = vpop.f32.mrb[0].mxu0
  %7615 = vmatprep.mubr.f32.mxu0 0.0
  %7616 = vmatmul.mubr.f32.gmra.mrb[0].mxu0 %v7523
  %v7617 = vpop.f32.mrb[0].mxu0
  %v7618 = vadd.f32 0.0, %v7617
  %v7619 = vpop.f32.mrb[0].mxu0
  %7620 = vmatprep.mubr.f32.mxu0 0.0
  %7621 = vmatmul.mubr.f32.gmra.mrb[0].mxu0 %v7526
  %v7622 = vpop.f32.mrb[0].mxu0
  %v7623 = vadd.f32 0.0, %v7622
  %v7624 = vpop.f32.mrb[0].mxu0
  %7625 = vmatprep.mubr.f32.mxu0 0.0
  %7626 = vmatmul.mubr.f32.gmra.mrb[0].mxu0 %v7529
  %v7627 = vpop.f32.mrb[0].mxu0
  %v7628 = vadd.f32 0.0, %v7627
  %v7629 = vpop.f32.mrb[0].mxu0
  %7630 = vmatprep.mubr.f32.mxu0 0.0
  %7631 = vmatmul.mubr.f32.gmra.mrb[0].mxu0 %v7532
  %v7632 = vpop.f32.mrb[0].mxu0
  %v7633 = vadd.f32 0.0, %v7632
  %v7634 = vpop.f32.mrb[0].mxu0
  %7635 = vmatprep.mubr.f32.mxu0 0.0
  %7636 = vmatmul.mubr.f32.gmra.mrb[0].mxu0 %v7535
  %v7637 = vpop.f32.mrb[0].mxu0
  %v7638 = vadd.f32 0.0, %v7637
  %v7639 = vpop.f32.mrb[0].mxu0
  %7640 = vmatprep.mubr.f32.mxu0 0.0
  %7641 = vmatmul.mubr.f32.gmra.mrb[0].mxu0 %v7538
  %v7642 = vpop.f32.mrb[0].mxu0
  %v7643 = vadd.f32 0.0, %v7642
  %v7644 = vpop.f32.mrb[0].mxu0
  %7645 = vmatprep.mubr.f32.mxu0 0.0
  %7646 = vmatmul.mubr.f32.gmra.mrb[0].mxu0 %v7541
  %v7647 = vpop.f32.mrb[0].mxu0
  %v7648 = vadd.f32 0.0, %v7647
  %v7649 = vpop.f32.mrb[0].mxu0
  %7650 = vmatprep.mubr.f32.mxu0 0.0
  %7651 = vmatmul.mubr.f32.gmra.mrb[0].mxu0 %v7544
  %v7652 = vpop.f32.mrb[0].mxu0
  %v7653 = vadd.f32 0.0, %v7652
  %v7654 = vpop.f32.mrb[0].mxu0
  %7655 = vdwg.mxu0
  %v7656 = vadd.f32 %v7351, %v7613
  %v7657 = vadd.f32 %v7352, %v7618
  %v7658 = vadd.f32 %v7353, %v7623
  %v7659 = vadd.f32 %v7354, %v7628
  %v7660 = vadd.f32 %v7355, %v7633
  %v7661 = vadd.f32 %v7356, %v7638
  %v7662 = vadd.f32 %v7357, %v7643
  %v7663 = vadd.f32 %v7358, %v7648
  %v7664 = vadd.f32 %v7359, %v7653
  %v7665 = vld [vmem:[%s4] sm:$0x1]
  %v7667 = vlaneseq
  %v7668 = vshrl.u32 %v7667, 7
  %v7669 = vsub.s32 0, %v7668
  %v7670 = vrot.slane %v7665, %v7669
  %v7672 = vadd.f32 %v7656, %v7670
  %v7673 = vadd.f32 %v7657, %v7670
  %v7674 = vadd.f32 %v7658, %v7670
  %v7675 = vadd.f32 %v7659, %v7670
  %v7676 = vadd.f32 %v7660, %v7670
  %v7677 = vadd.f32 %v7661, %v7670
  %v7678 = vadd.f32 %v7662, %v7670
  %v7679 = vadd.f32 %v7663, %v7670
  %v7680 = vadd.f32 %v7664, %v7670
  %v7681 = vmax.f32 %v7672, 0.0
  %v7682 = vmax.f32 %v7673, 0.0
  %v7683 = vmax.f32 %v7674, 0.0
  %v7684 = vmax.f32 %v7675, 0.0
  %v7685 = vmax.f32 %v7676, 0.0
  %v7686 = vmax.f32 %v7677, 0.0
  %v7687 = vmax.f32 %v7678, 0.0
  %v7688 = vmax.f32 %v7679, 0.0
  %v7689 = vmax.f32 %v7680, 0.0
  %v7690 = vld [vmem:[%s5] sm:$0xff]
  %v7691 = vld [vmem:[%s5 + $0x8] sm:$0xff]
  %v7692 = vld [vmem:[%s5 + $0x10] sm:$0xff]
  %v7693 = vld [vmem:[%s5 + $0x18] sm:$0xff]
  %v7694 = vld [vmem:[%s5 + $0x20] sm:$0xff]
  %v7695 = vld [vmem:[%s5 + $0x28] sm:$0xff]
  %v7696 = vld [vmem:[%s5 + $0x30] sm:$0xff]
  %v7697 = vld [vmem:[%s5 + $0x38] sm:$0xff]
  %v7698 = vld [vmem:[%s5 + $0x40] sm:$0xff]
  %v7699 = vld [vmem:[%s5 + $0x48] sm:$0xff]
  %v7700 = vld [vmem:[%s5 + $0x50] sm:$0xff]
  %v7701 = vld [vmem:[%s5 + $0x58] sm:$0xff]
  %v7702 = vld [vmem:[%s5 + $0x60] sm:$0xff]
  %v7703 = vld [vmem:[%s5 + $0x68] sm:$0xff]
  %v7704 = vld [vmem:[%s5 + $0x70] sm:$0xff]
  %v7705 = vld [vmem:[%s5 + $0x78] sm:$0xff]
  %v7706 = vld [vmem:[%s5 + $0x80] sm:$0xff]
  %v7707 = vld [vmem:[%s5 + $0x88] sm:$0xff]
  %v7708 = vld [vmem:[%s5 + $0x90] sm:$0xff]
  %v7709 = vld [vmem:[%s5 + $0x98] sm:$0xff]
  %v7710 = vld [vmem:[%s5 + $0xa0] sm:$0xff]
  %v7711 = vld [vmem:[%s5 + $0xa8] sm:$0xff]
  %v7712 = vld [vmem:[%s5 + $0xb0] sm:$0xff]
  %v7713 = vld [vmem:[%s5 + $0xb8] sm:$0xff]
  %v7714 = vld [vmem:[%s5 + $0xc0] sm:$0xff]
  %v7715 = vld [vmem:[%s5 + $0xc8] sm:$0xff]
  %v7716 = vld [vmem:[%s5 + $0xd0] sm:$0xff]
  %v7717 = vld [vmem:[%s5 + $0xd8] sm:$0xff]
  %v7718 = vld [vmem:[%s5 + $0xe0] sm:$0xff]
  %v7719 = vld [vmem:[%s5 + $0xe8] sm:$0xff]
  %v7720 = vld [vmem:[%s5 + $0xf0] sm:$0xff]
  %v7721 = vld [vmem:[%s5 + $0xf8] sm:$0xff]
  %v7722 = vld [vmem:[%s5 + $0x100] sm:$0xff]
  %v7723 = vld [vmem:[%s5 + $0x108] sm:$0xff]
  %v7724 = vld [vmem:[%s5 + $0x110] sm:$0xff]
  %v7725 = vld [vmem:[%s5 + $0x118] sm:$0xff]
  %v7726 = vld [vmem:[%s5 + $0x120] sm:$0xff]
  %v7727 = vld [vmem:[%s5 + $0x128] sm:$0xff]
  %v7728 = vld [vmem:[%s5 + $0x130] sm:$0xff]
  %v7729 = vld [vmem:[%s5 + $0x138] sm:$0xff]
  %v7730 = vld [vmem:[%s5 + $0x140] sm:$0xff]
  %v7731 = vld [vmem:[%s5 + $0x148] sm:$0xff]
  %v7732 = vld [vmem:[%s5 + $0x150] sm:$0xff]
  %v7733 = vld [vmem:[%s5 + $0x158] sm:$0xff]
  %v7734 = vld [vmem:[%s5 + $0x160] sm:$0xff]
  %v7735 = vld [vmem:[%s5 + $0x168] sm:$0xff]
  %v7736 = vld [vmem:[%s5 + $0x170] sm:$0xff]
  %v7737 = vld [vmem:[%s5 + $0x178] sm:$0xff]
  %v7738 = vld [vmem:[%s5 + $0x180] sm:$0xff]
  %v7739 = vld [vmem:[%s5 + $0x188] sm:$0xff]
  %v7740 = vld [vmem:[%s5 + $0x190] sm:$0xff]
  %v7741 = vld [vmem:[%s5 + $0x198] sm:$0xff]
  %v7742 = vld [vmem:[%s5 + $0x1a0] sm:$0xff]
  %v7743 = vld [vmem:[%s5 + $0x1a8] sm:$0xff]
  %v7744 = vld [vmem:[%s5 + $0x1b0] sm:$0xff]
  %v7745 = vld [vmem:[%s5 + $0x1b8] sm:$0xff]
  %v7746 = vld [vmem:[%s5 + $0x1c0] sm:$0xff]
  %v7747 = vld [vmem:[%s5 + $0x1c8] sm:$0xff]
  %v7748 = vld [vmem:[%s5 + $0x1d0] sm:$0xff]
  %v7749 = vld [vmem:[%s5 + $0x1d8] sm:$0xff]
  %v7750 = vld [vmem:[%s5 + $0x1e0] sm:$0xff]
  %v7751 = vld [vmem:[%s5 + $0x1e8] sm:$0xff]
  %v7752 = vld [vmem:[%s5 + $0x1f0] sm:$0xff]
  %v7753 = vld [vmem:[%s5 + $0x1f8] sm:$0xff]
  %vm7754 = vcmask 523264
  %v7756 = vsel %vm7754, %v7682, 0
  %7758 = vmatprep.subr.mxu0 %v7723
  %7759 = vmatpush1.msra.mxu0 %v7722
  %7760 = vmatprep.subr.mxu0 %v7727
  %7761 = vmatpush1.msra.mxu0 %v7726
  %7762 = vmatprep.subr.mxu0 %v7731
  %7763 = vmatpush1.msra.mxu0 %v7730
  %7764 = vmatprep.subr.mxu0 %v7735
  %7765 = vmatpush1.msra.mxu0 %v7734
  %7766 = vmatprep.subr.mxu0 %v7739
  %7767 = vmatpush1.msra.mxu0 %v7738
  %7768 = vmatprep.subr.mxu0 %v7743
  %7769 = vmatpush1.msra.mxu0 %v7742
  %7770 = vmatprep.subr.mxu0 %v7747
  %7771 = vmatpush1.msra.mxu0 %v7746
  %7772 = vmatprep.subr.mxu0 %v7751
  %7773 = vmatpush1.msra.mxu0 %v7750
  %7774 = vmatprep.subr.mxu0 0.0
  %7775 = vmatpush1.msra.mxu0 0.0
  %7776 = vmatprep.subr.mxu0 0.0
  %7777 = vmatpush1.msra.mxu0 0.0
  %7778 = vmatprep.subr.mxu0 0.0
  %7779 = vmatpush1.msra.mxu0 0.0
  %7780 = vmatprep.subr.mxu0 0.0
  %7781 = vmatpush1.msra.mxu0 0.0
  %7782 = vmatprep.subr.mxu0 0.0
  %7783 = vmatpush1.msra.mxu0 0.0
  %7784 = vmatprep.subr.mxu0 0.0
  %7785 = vmatpush1.msra.mxu0 0.0
  %7786 = vmatprep.subr.mxu0 0.0
  %7787 = vmatpush1.msra.mxu0 0.0
  %7788 = vmatprep.subr.mxu0 0.0
  %7789 = vmatpush1.msra.mxu0 0.0
  %7790 = vmatprep.subr.mxu0 0.0
  %7791 = vmatpush1.msra.mxu0 0.0
  %7792 = vmatprep.subr.mxu0 0.0
  %7793 = vmatpush1.msra.mxu0 0.0
  %7794 = vmatprep.subr.mxu0 0.0
  %7795 = vmatpush1.msra.mxu0 0.0
  %7796 = vmatprep.subr.mxu0 0.0
  %7797 = vmatpush1.msra.mxu0 0.0
  %7798 = vmatprep.subr.mxu0 0.0
  %7799 = vmatpush1.msra.mxu0 0.0
  %7800 = vmatprep.subr.mxu0 0.0
  %7801 = vmatpush1.msra.mxu0 0.0
  %7802 = vmatprep.subr.mxu0 0.0
  %7803 = vmatpush1.msra.mxu0 0.0
  %7804 = vmatprep.subr.mxu0 0.0
  %7805 = vmatpush1.msra.mxu0 0.0
  %7806 = vmatprep.subr.mxu0 0.0
  %7807 = vmatpush1.msra.mxu0 0.0
  %7808 = vmatprep.subr.mxu0 0.0
  %7809 = vmatpush1.msra.mxu0 0.0
  %7810 = vmatprep.subr.mxu0 0.0
  %7811 = vmatpush1.msra.mxu0 0.0
  %7812 = vmatprep.subr.mxu0 0.0
  %7813 = vmatpush1.msra.mxu0 0.0
  %7814 = vmatprep.subr.mxu0 0.0
  %7815 = vmatpush1.msra.mxu0 0.0
  %7816 = vmatprep.subr.mxu0 0.0
  %7817 = vmatpush1.msra.mxu0 0.0
  %7818 = vmatprep.subr.mxu0 0.0
  %7819 = vmatpush1.msra.mxu0 0.0
  %7820 = vmatprep.subr.mxu0 0.0
  %7821 = vmatpush1.msra.mxu0 0.0
  %7822 = vmatprep.mubr.f32.mxu0 0.0
  %7823 = vmatmul.mubr.f32.gmra.mrb[0].mxu0 %v7756
  %v7824 = vpop.f32.mrb[0].mxu0
  %v7825 = vadd.f32 0.0, %v7824
  %v7826 = vpop.f32.mrb[0].mxu0
  %v7827 = vadd.f32 0.0, %v7826
  %7828 = vdwg.mxu0
  %7829 = vmatprep.subr.mxu0 %v7725
  %7830 = vmatpush1.msra.mxu0 %v7724
  %7831 = vmatprep.subr.mxu0 %v7729
  %7832 = vmatpush1.msra.mxu0 %v7728
  %7833 = vmatprep.subr.mxu0 %v7733
  %7834 = vmatpush1.msra.mxu0 %v7732
  %7835 = vmatprep.subr.mxu0 %v7737
  %7836 = vmatpush1.msra.mxu0 %v7736
  %7837 = vmatprep.subr.mxu0 %v7741
  %7838 = vmatpush1.msra.mxu0 %v7740
  %7839 = vmatprep.subr.mxu0 %v7745
  %7840 = vmatpush1.msra.mxu0 %v7744
  %7841 = vmatprep.subr.mxu0 %v7749
  %7842 = vmatpush1.msra.mxu0 %v7748
  %7843 = vmatprep.subr.mxu0 %v7753
  %7844 = vmatpush1.msra.mxu0 %v7752
  %7845 = vmatprep.subr.mxu0 0.0
  %7846 = vmatpush1.msra.mxu0 0.0
  %7847 = vmatprep.subr.mxu0 0.0
  %7848 = vmatpush1.msra.mxu0 0.0
  %7849 = vmatprep.subr.mxu0 0.0
  %7850 = vmatpush1.msra.mxu0 0.0
  %7851 = vmatprep.subr.mxu0 0.0
  %7852 = vmatpush1.msra.mxu0 0.0
  %7853 = vmatprep.subr.mxu0 0.0
  %7854 = vmatpush1.msra.mxu0 0.0
  %7855 = vmatprep.subr.mxu0 0.0
  %7856 = vmatpush1.msra.mxu0 0.0
  %7857 = vmatprep.subr.mxu0 0.0
  %7858 = vmatpush1.msra.mxu0 0.0
  %7859 = vmatprep.subr.mxu0 0.0
  %7860 = vmatpush1.msra.mxu0 0.0
  %7861 = vmatprep.subr.mxu0 0.0
  %7862 = vmatpush1.msra.mxu0 0.0
  %7863 = vmatprep.subr.mxu0 0.0
  %7864 = vmatpush1.msra.mxu0 0.0
  %7865 = vmatprep.subr.mxu0 0.0
  %7866 = vmatpush1.msra.mxu0 0.0
  %7867 = vmatprep.subr.mxu0 0.0
  %7868 = vmatpush1.msra.mxu0 0.0
  %7869 = vmatprep.subr.mxu0 0.0
  %7870 = vmatpush1.msra.mxu0 0.0
  %7871 = vmatprep.subr.mxu0 0.0
  %7872 = vmatpush1.msra.mxu0 0.0
  %7873 = vmatprep.subr.mxu0 0.0
  %7874 = vmatpush1.msra.mxu0 0.0
  %7875 = vmatprep.subr.mxu0 0.0
  %7876 = vmatpush1.msra.mxu0 0.0
  %7877 = vmatprep.subr.mxu0 0.0
  %7878 = vmatpush1.msra.mxu0 0.0
  %7879 = vmatprep.subr.mxu0 0.0
  %7880 = vmatpush1.msra.mxu0 0.0
  %7881 = vmatprep.subr.mxu0 0.0
  %7882 = vmatpush1.msra.mxu0 0.0
  %7883 = vmatprep.subr.mxu0 0.0
  %7884 = vmatpush1.msra.mxu0 0.0
  %7885 = vmatprep.subr.mxu0 0.0
  %7886 = vmatpush1.msra.mxu0 0.0
  %7887 = vmatprep.subr.mxu0 0.0
  %7888 = vmatpush1.msra.mxu0 0.0
  %7889 = vmatprep.subr.mxu0 0.0
  %7890 = vmatpush1.msra.mxu0 0.0
  %7891 = vmatprep.subr.mxu0 0.0
  %7892 = vmatpush1.msra.mxu0 0.0
  %7893 = vmatprep.mubr.f32.mxu0 0.0
  %7894 = vmatmul.mubr.f32.gmra.mrb[0].mxu0 %v7756
  %v7895 = vpop.f32.mrb[0].mxu0
  %v7896 = vadd.f32 0.0, %v7895
  %v7897 = vpop.f32.mrb[0].mxu0
  %v7898 = vadd.f32 0.0, %v7897
  %7899 = vdwg.mxu0
  %v7901 = vsel %vm7754, %v7681, 0
  %7903 = vmatprep.subr.mxu0 %v7691
  %7904 = vmatpush1.msra.mxu0 %v7690
  %7905 = vmatprep.subr.mxu0 %v7695
  %7906 = vmatpush1.msra.mxu0 %v7694
  %7907 = vmatprep.subr.mxu0 %v7699
  %7908 = vmatpush1.msra.mxu0 %v7698
  %7909 = vmatprep.subr.mxu0 %v7703
  %7910 = vmatpush1.msra.mxu0 %v7702
  %7911 = vmatprep.subr.mxu0 %v7707
  %7912 = vmatpush1.msra.mxu0 %v7706
  %7913 = vmatprep.subr.mxu0 %v7711
  %7914 = vmatpush1.msra.mxu0 %v7710
  %7915 = vmatprep.subr.mxu0 %v7715
  %7916 = vmatpush1.msra.mxu0 %v7714
  %7917 = vmatprep.subr.mxu0 %v7719
  %7918 = vmatpush1.msra.mxu0 %v7718
  %7919 = vmatprep.subr.mxu0 0.0
  %7920 = vmatpush1.msra.mxu0 0.0
  %7921 = vmatprep.subr.mxu0 0.0
  %7922 = vmatpush1.msra.mxu0 0.0
  %7923 = vmatprep.subr.mxu0 0.0
  %7924 = vmatpush1.msra.mxu0 0.0
  %7925 = vmatprep.subr.mxu0 0.0
  %7926 = vmatpush1.msra.mxu0 0.0
  %7927 = vmatprep.subr.mxu0 0.0
  %7928 = vmatpush1.msra.mxu0 0.0
  %7929 = vmatprep.subr.mxu0 0.0
  %7930 = vmatpush1.msra.mxu0 0.0
  %7931 = vmatprep.subr.mxu0 0.0
  %7932 = vmatpush1.msra.mxu0 0.0
  %7933 = vmatprep.subr.mxu0 0.0
  %7934 = vmatpush1.msra.mxu0 0.0
  %7935 = vmatprep.subr.mxu0 0.0
  %7936 = vmatpush1.msra.mxu0 0.0
  %7937 = vmatprep.subr.mxu0 0.0
  %7938 = vmatpush1.msra.mxu0 0.0
  %7939 = vmatprep.subr.mxu0 0.0
  %7940 = vmatpush1.msra.mxu0 0.0
  %7941 = vmatprep.subr.mxu0 0.0
  %7942 = vmatpush1.msra.mxu0 0.0
  %7943 = vmatprep.subr.mxu0 0.0
  %7944 = vmatpush1.msra.mxu0 0.0
  %7945 = vmatprep.subr.mxu0 0.0
  %7946 = vmatpush1.msra.mxu0 0.0
  %7947 = vmatprep.subr.mxu0 0.0
  %7948 = vmatpush1.msra.mxu0 0.0
  %7949 = vmatprep.subr.mxu0 0.0
  %7950 = vmatpush1.msra.mxu0 0.0
  %7951 = vmatprep.subr.mxu0 0.0
  %7952 = vmatpush1.msra.mxu0 0.0
  %7953 = vmatprep.subr.mxu0 0.0
  %7954 = vmatpush1.msra.mxu0 0.0
  %7955 = vmatprep.subr.mxu0 0.0
  %7956 = vmatpush1.msra.mxu0 0.0
  %7957 = vmatprep.subr.mxu0 0.0
  %7958 = vmatpush1.msra.mxu0 0.0
  %7959 = vmatprep.subr.mxu0 0.0
  %7960 = vmatpush1.msra.mxu0 0.0
  %7961 = vmatprep.subr.mxu0 0.0
  %7962 = vmatpush1.msra.mxu0 0.0
  %7963 = vmatprep.subr.mxu0 0.0
  %7964 = vmatpush1.msra.mxu0 0.0
  %7965 = vmatprep.subr.mxu0 0.0
  %7966 = vmatpush1.msra.mxu0 0.0
  %7967 = vmatprep.mubr.f32.mxu0 0.0
  %7968 = vmatmul.mubr.f32.gmra.mrb[0].mxu0 %v7901
  %v7969 = vpop.f32.mrb[0].mxu0
  %v7970 = vadd.f32 %v7825, %v7969
  %v7971 = vpop.f32.mrb[0].mxu0
  %v7972 = vadd.f32 %v7827, %v7971
  %7973 = vdwg.mxu0
  %7974 = vmatprep.subr.mxu0 %v7693
  %7975 = vmatpush1.msra.mxu0 %v7692
  %7976 = vmatprep.subr.mxu0 %v7697
  %7977 = vmatpush1.msra.mxu0 %v7696
  %7978 = vmatprep.subr.mxu0 %v7701
  %7979 = vmatpush1.msra.mxu0 %v7700
  %7980 = vmatprep.subr.mxu0 %v7705
  %7981 = vmatpush1.msra.mxu0 %v7704
  %7982 = vmatprep.subr.mxu0 %v7709
  %7983 = vmatpush1.msra.mxu0 %v7708
  %7984 = vmatprep.subr.mxu0 %v7713
  %7985 = vmatpush1.msra.mxu0 %v7712
  %7986 = vmatprep.subr.mxu0 %v7717
  %7987 = vmatpush1.msra.mxu0 %v7716
  %7988 = vmatprep.subr.mxu0 %v7721
  %7989 = vmatpush1.msra.mxu0 %v7720
  %7990 = vmatprep.subr.mxu0 0.0
  %7991 = vmatpush1.msra.mxu0 0.0
  %7992 = vmatprep.subr.mxu0 0.0
  %7993 = vmatpush1.msra.mxu0 0.0
  %7994 = vmatprep.subr.mxu0 0.0
  %7995 = vmatpush1.msra.mxu0 0.0
  %7996 = vmatprep.subr.mxu0 0.0
  %7997 = vmatpush1.msra.mxu0 0.0
  %7998 = vmatprep.subr.mxu0 0.0
  %7999 = vmatpush1.msra.mxu0 0.0
  %8000 = vmatprep.subr.mxu0 0.0
  %8001 = vmatpush1.msra.mxu0 0.0
  %8002 = vmatprep.subr.mxu0 0.0
  %8003 = vmatpush1.msra.mxu0 0.0
  %8004 = vmatprep.subr.mxu0 0.0
  %8005 = vmatpush1.msra.mxu0 0.0
  %8006 = vmatprep.subr.mxu0 0.0
  %8007 = vmatpush1.msra.mxu0 0.0
  %8008 = vmatprep.subr.mxu0 0.0
  %8009 = vmatpush1.msra.mxu0 0.0
  %8010 = vmatprep.subr.mxu0 0.0
  %8011 = vmatpush1.msra.mxu0 0.0
  %8012 = vmatprep.subr.mxu0 0.0
  %8013 = vmatpush1.msra.mxu0 0.0
  %8014 = vmatprep.subr.mxu0 0.0
  %8015 = vmatpush1.msra.mxu0 0.0
  %8016 = vmatprep.subr.mxu0 0.0
  %8017 = vmatpush1.msra.mxu0 0.0
  %8018 = vmatprep.subr.mxu0 0.0
  %8019 = vmatpush1.msra.mxu0 0.0
  %8020 = vmatprep.subr.mxu0 0.0
  %8021 = vmatpush1.msra.mxu0 0.0
  %8022 = vmatprep.subr.mxu0 0.0
  %8023 = vmatpush1.msra.mxu0 0.0
  %8024 = vmatprep.subr.mxu0 0.0
  %8025 = vmatpush1.msra.mxu0 0.0
  %8026 = vmatprep.subr.mxu0 0.0
  %8027 = vmatpush1.msra.mxu0 0.0
  %8028 = vmatprep.subr.mxu0 0.0
  %8029 = vmatpush1.msra.mxu0 0.0
  %8030 = vmatprep.subr.mxu0 0.0
  %8031 = vmatpush1.msra.mxu0 0.0
  %8032 = vmatprep.subr.mxu0 0.0
  %8033 = vmatpush1.msra.mxu0 0.0
  %8034 = vmatprep.subr.mxu0 0.0
  %8035 = vmatpush1.msra.mxu0 0.0
  %8036 = vmatprep.subr.mxu0 0.0
  %8037 = vmatpush1.msra.mxu0 0.0
  %8038 = vmatprep.mubr.f32.mxu0 0.0
  %8039 = vmatmul.mubr.f32.gmra.mrb[0].mxu0 %v7901
  %v8040 = vpop.f32.mrb[0].mxu0
  %v8041 = vadd.f32 %v7896, %v8040
  %v8042 = vpop.f32.mrb[0].mxu0
  %v8043 = vadd.f32 %v7898, %v8042
  %8044 = vdwg.mxu0
  %v8045 = vld [vmem:[%s5 + $0x200] sm:$0xff]
  %v8046 = vld [vmem:[%s5 + $0x208] sm:$0xff]
  %v8047 = vld [vmem:[%s5 + $0x210] sm:$0xff]
  %v8048 = vld [vmem:[%s5 + $0x218] sm:$0xff]
  %v8049 = vld [vmem:[%s5 + $0x220] sm:$0xff]
  %v8050 = vld [vmem:[%s5 + $0x228] sm:$0xff]
  %v8051 = vld [vmem:[%s5 + $0x230] sm:$0xff]
  %v8052 = vld [vmem:[%s5 + $0x238] sm:$0xff]
  %v8053 = vld [vmem:[%s5 + $0x240] sm:$0xff]
  %v8054 = vld [vmem:[%s5 + $0x248] sm:$0xff]
  %v8055 = vld [vmem:[%s5 + $0x250] sm:$0xff]
  %v8056 = vld [vmem:[%s5 + $0x258] sm:$0xff]
  %v8057 = vld [vmem:[%s5 + $0x260] sm:$0xff]
  %v8058 = vld [vmem:[%s5 + $0x268] sm:$0xff]
  %v8059 = vld [vmem:[%s5 + $0x270] sm:$0xff]
  %v8060 = vld [vmem:[%s5 + $0x278] sm:$0xff]
  %v8061 = vld [vmem:[%s5 + $0x280] sm:$0xff]
  %v8062 = vld [vmem:[%s5 + $0x288] sm:$0xff]
  %v8063 = vld [vmem:[%s5 + $0x290] sm:$0xff]
  %v8064 = vld [vmem:[%s5 + $0x298] sm:$0xff]
  %v8065 = vld [vmem:[%s5 + $0x2a0] sm:$0xff]
  %v8066 = vld [vmem:[%s5 + $0x2a8] sm:$0xff]
  %v8067 = vld [vmem:[%s5 + $0x2b0] sm:$0xff]
  %v8068 = vld [vmem:[%s5 + $0x2b8] sm:$0xff]
  %v8069 = vld [vmem:[%s5 + $0x2c0] sm:$0xff]
  %v8070 = vld [vmem:[%s5 + $0x2c8] sm:$0xff]
  %v8071 = vld [vmem:[%s5 + $0x2d0] sm:$0xff]
  %v8072 = vld [vmem:[%s5 + $0x2d8] sm:$0xff]
  %v8073 = vld [vmem:[%s5 + $0x2e0] sm:$0xff]
  %v8074 = vld [vmem:[%s5 + $0x2e8] sm:$0xff]
  %v8075 = vld [vmem:[%s5 + $0x2f0] sm:$0xff]
  %v8076 = vld [vmem:[%s5 + $0x2f8] sm:$0xff]
  %v8078 = vsel %vm7754, %v7683, 0
  %8080 = vmatprep.subr.mxu0 %v8046
  %8081 = vmatpush1.msra.mxu0 %v8045
  %8082 = vmatprep.subr.mxu0 %v8050
  %8083 = vmatpush1.msra.mxu0 %v8049
  %8084 = vmatprep.subr.mxu0 %v8054
  %8085 = vmatpush1.msra.mxu0 %v8053
  %8086 = vmatprep.subr.mxu0 %v8058
  %8087 = vmatpush1.msra.mxu0 %v8057
  %8088 = vmatprep.subr.mxu0 %v8062
  %8089 = vmatpush1.msra.mxu0 %v8061
  %8090 = vmatprep.subr.mxu0 %v8066
  %8091 = vmatpush1.msra.mxu0 %v8065
  %8092 = vmatprep.subr.mxu0 %v8070
  %8093 = vmatpush1.msra.mxu0 %v8069
  %8094 = vmatprep.subr.mxu0 %v8074
  %8095 = vmatpush1.msra.mxu0 %v8073
  %8096 = vmatprep.subr.mxu0 0.0
  %8097 = vmatpush1.msra.mxu0 0.0
  %8098 = vmatprep.subr.mxu0 0.0
  %8099 = vmatpush1.msra.mxu0 0.0
  %8100 = vmatprep.subr.mxu0 0.0
  %8101 = vmatpush1.msra.mxu0 0.0
  %8102 = vmatprep.subr.mxu0 0.0
  %8103 = vmatpush1.msra.mxu0 0.0
  %8104 = vmatprep.subr.mxu0 0.0
  %8105 = vmatpush1.msra.mxu0 0.0
  %8106 = vmatprep.subr.mxu0 0.0
  %8107 = vmatpush1.msra.mxu0 0.0
  %8108 = vmatprep.subr.mxu0 0.0
  %8109 = vmatpush1.msra.mxu0 0.0
  %8110 = vmatprep.subr.mxu0 0.0
  %8111 = vmatpush1.msra.mxu0 0.0
  %8112 = vmatprep.subr.mxu0 0.0
  %8113 = vmatpush1.msra.mxu0 0.0
  %8114 = vmatprep.subr.mxu0 0.0
  %8115 = vmatpush1.msra.mxu0 0.0
  %8116 = vmatprep.subr.mxu0 0.0
  %8117 = vmatpush1.msra.mxu0 0.0
  %8118 = vmatprep.subr.mxu0 0.0
  %8119 = vmatpush1.msra.mxu0 0.0
  %8120 = vmatprep.subr.mxu0 0.0
  %8121 = vmatpush1.msra.mxu0 0.0
  %8122 = vmatprep.subr.mxu0 0.0
  %8123 = vmatpush1.msra.mxu0 0.0
  %8124 = vmatprep.subr.mxu0 0.0
  %8125 = vmatpush1.msra.mxu0 0.0
  %8126 = vmatprep.subr.mxu0 0.0
  %8127 = vmatpush1.msra.mxu0 0.0
  %8128 = vmatprep.subr.mxu0 0.0
  %8129 = vmatpush1.msra.mxu0 0.0
  %8130 = vmatprep.subr.mxu0 0.0
  %8131 = vmatpush1.msra.mxu0 0.0
  %8132 = vmatprep.subr.mxu0 0.0
  %8133 = vmatpush1.msra.mxu0 0.0
  %8134 = vmatprep.subr.mxu0 0.0
  %8135 = vmatpush1.msra.mxu0 0.0
  %8136 = vmatprep.subr.mxu0 0.0
  %8137 = vmatpush1.msra.mxu0 0.0
  %8138 = vmatprep.subr.mxu0 0.0
  %8139 = vmatpush1.msra.mxu0 0.0
  %8140 = vmatprep.subr.mxu0 0.0
  %8141 = vmatpush1.msra.mxu0 0.0
  %8142 = vmatprep.subr.mxu0 0.0
  %8143 = vmatpush1.msra.mxu0 0.0
  %8144 = vmatprep.mubr.f32.mxu0 0.0
  %8145 = vmatmul.mubr.f32.gmra.mrb[0].mxu0 %v8078
  %v8146 = vpop.f32.mrb[0].mxu0
  %v8147 = vadd.f32 0.0, %v8146
  %v8148 = vpop.f32.mrb[0].mxu0
  %v8149 = vadd.f32 0.0, %v8148
  %8150 = vdwg.mxu0
  %8151 = vmatprep.subr.mxu0 %v8048
  %8152 = vmatpush1.msra.mxu0 %v8047
  %8153 = vmatprep.subr.mxu0 %v8052
  %8154 = vmatpush1.msra.mxu0 %v8051
  %8155 = vmatprep.subr.mxu0 %v8056
  %8156 = vmatpush1.msra.mxu0 %v8055
  %8157 = vmatprep.subr.mxu0 %v8060
  %8158 = vmatpush1.msra.mxu0 %v8059
  %8159 = vmatprep.subr.mxu0 %v8064
  %8160 = vmatpush1.msra.mxu0 %v8063
  %8161 = vmatprep.subr.mxu0 %v8068
  %8162 = vmatpush1.msra.mxu0 %v8067
  %8163 = vmatprep.subr.mxu0 %v8072
  %8164 = vmatpush1.msra.mxu0 %v8071
  %8165 = vmatprep.subr.mxu0 %v8076
  %8166 = vmatpush1.msra.mxu0 %v8075
  %8167 = vmatprep.subr.mxu0 0.0
  %8168 = vmatpush1.msra.mxu0 0.0
  %8169 = vmatprep.subr.mxu0 0.0
  %8170 = vmatpush1.msra.mxu0 0.0
  %8171 = vmatprep.subr.mxu0 0.0
  %8172 = vmatpush1.msra.mxu0 0.0
  %8173 = vmatprep.subr.mxu0 0.0
  %8174 = vmatpush1.msra.mxu0 0.0
  %8175 = vmatprep.subr.mxu0 0.0
  %8176 = vmatpush1.msra.mxu0 0.0
  %8177 = vmatprep.subr.mxu0 0.0
  %8178 = vmatpush1.msra.mxu0 0.0
  %8179 = vmatprep.subr.mxu0 0.0
  %8180 = vmatpush1.msra.mxu0 0.0
  %8181 = vmatprep.subr.mxu0 0.0
  %8182 = vmatpush1.msra.mxu0 0.0
  %8183 = vmatprep.subr.mxu0 0.0
  %8184 = vmatpush1.msra.mxu0 0.0
  %8185 = vmatprep.subr.mxu0 0.0
  %8186 = vmatpush1.msra.mxu0 0.0
  %8187 = vmatprep.subr.mxu0 0.0
  %8188 = vmatpush1.msra.mxu0 0.0
  %8189 = vmatprep.subr.mxu0 0.0
  %8190 = vmatpush1.msra.mxu0 0.0
  %8191 = vmatprep.subr.mxu0 0.0
  %8192 = vmatpush1.msra.mxu0 0.0
  %8193 = vmatprep.subr.mxu0 0.0
  %8194 = vmatpush1.msra.mxu0 0.0
  %8195 = vmatprep.subr.mxu0 0.0
  %8196 = vmatpush1.msra.mxu0 0.0
  %8197 = vmatprep.subr.mxu0 0.0
  %8198 = vmatpush1.msra.mxu0 0.0
  %8199 = vmatprep.subr.mxu0 0.0
  %8200 = vmatpush1.msra.mxu0 0.0
  %8201 = vmatprep.subr.mxu0 0.0
  %8202 = vmatpush1.msra.mxu0 0.0
  %8203 = vmatprep.subr.mxu0 0.0
  %8204 = vmatpush1.msra.mxu0 0.0
  %8205 = vmatprep.subr.mxu0 0.0
  %8206 = vmatpush1.msra.mxu0 0.0
  %8207 = vmatprep.subr.mxu0 0.0
  %8208 = vmatpush1.msra.mxu0 0.0
  %8209 = vmatprep.subr.mxu0 0.0
  %8210 = vmatpush1.msra.mxu0 0.0
  %8211 = vmatprep.subr.mxu0 0.0
  %8212 = vmatpush1.msra.mxu0 0.0
  %8213 = vmatprep.subr.mxu0 0.0
  %8214 = vmatpush1.msra.mxu0 0.0
  %8215 = vmatprep.mubr.f32.mxu0 0.0
  %8216 = vmatmul.mubr.f32.gmra.mrb[0].mxu0 %v8078
  %v8217 = vpop.f32.mrb[0].mxu0
  %v8218 = vadd.f32 0.0, %v8217
  %v8219 = vpop.f32.mrb[0].mxu0
  %v8220 = vadd.f32 0.0, %v8219
  %8221 = vdwg.mxu0
  %v8222 = vadd.f32 %v7970, %v8147
  %v8223 = vadd.f32 %v7972, %v8149
  %v8224 = vadd.f32 %v8041, %v8218
  %v8225 = vadd.f32 %v8043, %v8220
  %v8226 = vld [vmem:[%s5 + $0x300] sm:$0xff]
  %v8227 = vld [vmem:[%s5 + $0x308] sm:$0xff]
  %v8228 = vld [vmem:[%s5 + $0x310] sm:$0xff]
  %v8229 = vld [vmem:[%s5 + $0x318] sm:$0xff]
  %v8230 = vld [vmem:[%s5 + $0x320] sm:$0xff]
  %v8231 = vld [vmem:[%s5 + $0x328] sm:$0xff]
  %v8232 = vld [vmem:[%s5 + $0x330] sm:$0xff]
  %v8233 = vld [vmem:[%s5 + $0x338] sm:$0xff]
  %v8234 = vld [vmem:[%s5 + $0x340] sm:$0xff]
  %v8235 = vld [vmem:[%s5 + $0x348] sm:$0xff]
  %v8236 = vld [vmem:[%s5 + $0x350] sm:$0xff]
  %v8237 = vld [vmem:[%s5 + $0x358] sm:$0xff]
  %v8238 = vld [vmem:[%s5 + $0x360] sm:$0xff]
  %v8239 = vld [vmem:[%s5 + $0x368] sm:$0xff]
  %v8240 = vld [vmem:[%s5 + $0x370] sm:$0xff]
  %v8241 = vld [vmem:[%s5 + $0x378] sm:$0xff]
  %v8242 = vld [vmem:[%s5 + $0x380] sm:$0xff]
  %v8243 = vld [vmem:[%s5 + $0x388] sm:$0xff]
  %v8244 = vld [vmem:[%s5 + $0x390] sm:$0xff]
  %v8245 = vld [vmem:[%s5 + $0x398] sm:$0xff]
  %v8246 = vld [vmem:[%s5 + $0x3a0] sm:$0xff]
  %v8247 = vld [vmem:[%s5 + $0x3a8] sm:$0xff]
  %v8248 = vld [vmem:[%s5 + $0x3b0] sm:$0xff]
  %v8249 = vld [vmem:[%s5 + $0x3b8] sm:$0xff]
  %v8250 = vld [vmem:[%s5 + $0x3c0] sm:$0xff]
  %v8251 = vld [vmem:[%s5 + $0x3c8] sm:$0xff]
  %v8252 = vld [vmem:[%s5 + $0x3d0] sm:$0xff]
  %v8253 = vld [vmem:[%s5 + $0x3d8] sm:$0xff]
  %v8254 = vld [vmem:[%s5 + $0x3e0] sm:$0xff]
  %v8255 = vld [vmem:[%s5 + $0x3e8] sm:$0xff]
  %v8256 = vld [vmem:[%s5 + $0x3f0] sm:$0xff]
  %v8257 = vld [vmem:[%s5 + $0x3f8] sm:$0xff]
  %v8259 = vsel %vm7754, %v7684, 0
  %8261 = vmatprep.subr.mxu0 %v8227
  %8262 = vmatpush1.msra.mxu0 %v8226
  %8263 = vmatprep.subr.mxu0 %v8231
  %8264 = vmatpush1.msra.mxu0 %v8230
  %8265 = vmatprep.subr.mxu0 %v8235
  %8266 = vmatpush1.msra.mxu0 %v8234
  %8267 = vmatprep.subr.mxu0 %v8239
  %8268 = vmatpush1.msra.mxu0 %v8238
  %8269 = vmatprep.subr.mxu0 %v8243
  %8270 = vmatpush1.msra.mxu0 %v8242
  %8271 = vmatprep.subr.mxu0 %v8247
  %8272 = vmatpush1.msra.mxu0 %v8246
  %8273 = vmatprep.subr.mxu0 %v8251
  %8274 = vmatpush1.msra.mxu0 %v8250
  %8275 = vmatprep.subr.mxu0 %v8255
  %8276 = vmatpush1.msra.mxu0 %v8254
  %8277 = vmatprep.subr.mxu0 0.0
  %8278 = vmatpush1.msra.mxu0 0.0
  %8279 = vmatprep.subr.mxu0 0.0
  %8280 = vmatpush1.msra.mxu0 0.0
  %8281 = vmatprep.subr.mxu0 0.0
  %8282 = vmatpush1.msra.mxu0 0.0
  %8283 = vmatprep.subr.mxu0 0.0
  %8284 = vmatpush1.msra.mxu0 0.0
  %8285 = vmatprep.subr.mxu0 0.0
  %8286 = vmatpush1.msra.mxu0 0.0
  %8287 = vmatprep.subr.mxu0 0.0
  %8288 = vmatpush1.msra.mxu0 0.0
  %8289 = vmatprep.subr.mxu0 0.0
  %8290 = vmatpush1.msra.mxu0 0.0
  %8291 = vmatprep.subr.mxu0 0.0
  %8292 = vmatpush1.msra.mxu0 0.0
  %8293 = vmatprep.subr.mxu0 0.0
  %8294 = vmatpush1.msra.mxu0 0.0
  %8295 = vmatprep.subr.mxu0 0.0
  %8296 = vmatpush1.msra.mxu0 0.0
  %8297 = vmatprep.subr.mxu0 0.0
  %8298 = vmatpush1.msra.mxu0 0.0
  %8299 = vmatprep.subr.mxu0 0.0
  %8300 = vmatpush1.msra.mxu0 0.0
  %8301 = vmatprep.subr.mxu0 0.0
  %8302 = vmatpush1.msra.mxu0 0.0
  %8303 = vmatprep.subr.mxu0 0.0
  %8304 = vmatpush1.msra.mxu0 0.0
  %8305 = vmatprep.subr.mxu0 0.0
  %8306 = vmatpush1.msra.mxu0 0.0
  %8307 = vmatprep.subr.mxu0 0.0
  %8308 = vmatpush1.msra.mxu0 0.0
  %8309 = vmatprep.subr.mxu0 0.0
  %8310 = vmatpush1.msra.mxu0 0.0
  %8311 = vmatprep.subr.mxu0 0.0
  %8312 = vmatpush1.msra.mxu0 0.0
  %8313 = vmatprep.subr.mxu0 0.0
  %8314 = vmatpush1.msra.mxu0 0.0
  %8315 = vmatprep.subr.mxu0 0.0
  %8316 = vmatpush1.msra.mxu0 0.0
  %8317 = vmatprep.subr.mxu0 0.0
  %8318 = vmatpush1.msra.mxu0 0.0
  %8319 = vmatprep.subr.mxu0 0.0
  %8320 = vmatpush1.msra.mxu0 0.0
  %8321 = vmatprep.subr.mxu0 0.0
  %8322 = vmatpush1.msra.mxu0 0.0
  %8323 = vmatprep.subr.mxu0 0.0
  %8324 = vmatpush1.msra.mxu0 0.0
  %8325 = vmatprep.mubr.f32.mxu0 0.0
  %8326 = vmatmul.mubr.f32.gmra.mrb[0].mxu0 %v8259
  %v8327 = vpop.f32.mrb[0].mxu0
  %v8328 = vadd.f32 0.0, %v8327
  %v8329 = vpop.f32.mrb[0].mxu0
  %v8330 = vadd.f32 0.0, %v8329
  %8331 = vdwg.mxu0
  %8332 = vmatprep.subr.mxu0 %v8229
  %8333 = vmatpush1.msra.mxu0 %v8228
  %8334 = vmatprep.subr.mxu0 %v8233
  %8335 = vmatpush1.msra.mxu0 %v8232
  %8336 = vmatprep.subr.mxu0 %v8237
  %8337 = vmatpush1.msra.mxu0 %v8236
  %8338 = vmatprep.subr.mxu0 %v8241
  %8339 = vmatpush1.msra.mxu0 %v8240
  %8340 = vmatprep.subr.mxu0 %v8245
  %8341 = vmatpush1.msra.mxu0 %v8244
  %8342 = vmatprep.subr.mxu0 %v8249
  %8343 = vmatpush1.msra.mxu0 %v8248
  %8344 = vmatprep.subr.mxu0 %v8253
  %8345 = vmatpush1.msra.mxu0 %v8252
  %8346 = vmatprep.subr.mxu0 %v8257
  %8347 = vmatpush1.msra.mxu0 %v8256
  %8348 = vmatprep.subr.mxu0 0.0
  %8349 = vmatpush1.msra.mxu0 0.0
  %8350 = vmatprep.subr.mxu0 0.0
  %8351 = vmatpush1.msra.mxu0 0.0
  %8352 = vmatprep.subr.mxu0 0.0
  %8353 = vmatpush1.msra.mxu0 0.0
  %8354 = vmatprep.subr.mxu0 0.0
  %8355 = vmatpush1.msra.mxu0 0.0
  %8356 = vmatprep.subr.mxu0 0.0
  %8357 = vmatpush1.msra.mxu0 0.0
  %8358 = vmatprep.subr.mxu0 0.0
  %8359 = vmatpush1.msra.mxu0 0.0
  %8360 = vmatprep.subr.mxu0 0.0
  %8361 = vmatpush1.msra.mxu0 0.0
  %8362 = vmatprep.subr.mxu0 0.0
  %8363 = vmatpush1.msra.mxu0 0.0
  %8364 = vmatprep.subr.mxu0 0.0
  %8365 = vmatpush1.msra.mxu0 0.0
  %8366 = vmatprep.subr.mxu0 0.0
  %8367 = vmatpush1.msra.mxu0 0.0
  %8368 = vmatprep.subr.mxu0 0.0
  %8369 = vmatpush1.msra.mxu0 0.0
  %8370 = vmatprep.subr.mxu0 0.0
  %8371 = vmatpush1.msra.mxu0 0.0
  %8372 = vmatprep.subr.mxu0 0.0
  %8373 = vmatpush1.msra.mxu0 0.0
  %8374 = vmatprep.subr.mxu0 0.0
  %8375 = vmatpush1.msra.mxu0 0.0
  %8376 = vmatprep.subr.mxu0 0.0
  %8377 = vmatpush1.msra.mxu0 0.0
  %8378 = vmatprep.subr.mxu0 0.0
  %8379 = vmatpush1.msra.mxu0 0.0
  %8380 = vmatprep.subr.mxu0 0.0
  %8381 = vmatpush1.msra.mxu0 0.0
  %8382 = vmatprep.subr.mxu0 0.0
  %8383 = vmatpush1.msra.mxu0 0.0
  %8384 = vmatprep.subr.mxu0 0.0
  %8385 = vmatpush1.msra.mxu0 0.0
  %8386 = vmatprep.subr.mxu0 0.0
  %8387 = vmatpush1.msra.mxu0 0.0
  %8388 = vmatprep.subr.mxu0 0.0
  %8389 = vmatpush1.msra.mxu0 0.0
  %8390 = vmatprep.subr.mxu0 0.0
  %8391 = vmatpush1.msra.mxu0 0.0
  %8392 = vmatprep.subr.mxu0 0.0
  %8393 = vmatpush1.msra.mxu0 0.0
  %8394 = vmatprep.subr.mxu0 0.0
  %8395 = vmatpush1.msra.mxu0 0.0
  %8396 = vmatprep.mubr.f32.mxu0 0.0
  %8397 = vmatmul.mubr.f32.gmra.mrb[0].mxu0 %v8259
  %v8398 = vpop.f32.mrb[0].mxu0
  %v8399 = vadd.f32 0.0, %v8398
  %v8400 = vpop.f32.mrb[0].mxu0
  %v8401 = vadd.f32 0.0, %v8400
  %8402 = vdwg.mxu0
  %v8403 = vadd.f32 %v8222, %v8328
  %v8404 = vadd.f32 %v8223, %v8330
  %v8405 = vadd.f32 %v8224, %v8399
  %v8406 = vadd.f32 %v8225, %v8401
  %v8407 = vld [vmem:[%s5 + $0x400] sm:$0xff]
  %v8408 = vld [vmem:[%s5 + $0x408] sm:$0xff]
  %v8409 = vld [vmem:[%s5 + $0x410] sm:$0xff]
  %v8410 = vld [vmem:[%s5 + $0x418] sm:$0xff]
  %v8411 = vld [vmem:[%s5 + $0x420] sm:$0xff]
  %v8412 = vld [vmem:[%s5 + $0x428] sm:$0xff]
  %v8413 = vld [vmem:[%s5 + $0x430] sm:$0xff]
  %v8414 = vld [vmem:[%s5 + $0x438] sm:$0xff]
  %v8415 = vld [vmem:[%s5 + $0x440] sm:$0xff]
  %v8416 = vld [vmem:[%s5 + $0x448] sm:$0xff]
  %v8417 = vld [vmem:[%s5 + $0x450] sm:$0xff]
  %v8418 = vld [vmem:[%s5 + $0x458] sm:$0xff]
  %v8419 = vld [vmem:[%s5 + $0x460] sm:$0xff]
  %v8420 = vld [vmem:[%s5 + $0x468] sm:$0xff]
  %v8421 = vld [vmem:[%s5 + $0x470] sm:$0xff]
  %v8422 = vld [vmem:[%s5 + $0x478] sm:$0xff]
  %v8423 = vld [vmem:[%s5 + $0x480] sm:$0xff]
  %v8424 = vld [vmem:[%s5 + $0x488] sm:$0xff]
  %v8425 = vld [vmem:[%s5 + $0x490] sm:$0xff]
  %v8426 = vld [vmem:[%s5 + $0x498] sm:$0xff]
  %v8427 = vld [vmem:[%s5 + $0x4a0] sm:$0xff]
  %v8428 = vld [vmem:[%s5 + $0x4a8] sm:$0xff]
  %v8429 = vld [vmem:[%s5 + $0x4b0] sm:$0xff]
  %v8430 = vld [vmem:[%s5 + $0x4b8] sm:$0xff]
  %v8431 = vld [vmem:[%s5 + $0x4c0] sm:$0xff]
  %v8432 = vld [vmem:[%s5 + $0x4c8] sm:$0xff]
  %v8433 = vld [vmem:[%s5 + $0x4d0] sm:$0xff]
  %v8434 = vld [vmem:[%s5 + $0x4d8] sm:$0xff]
  %v8435 = vld [vmem:[%s5 + $0x4e0] sm:$0xff]
  %v8436 = vld [vmem:[%s5 + $0x4e8] sm:$0xff]
  %v8437 = vld [vmem:[%s5 + $0x4f0] sm:$0xff]
  %v8438 = vld [vmem:[%s5 + $0x4f8] sm:$0xff]
  %v8440 = vsel %vm7754, %v7685, 0
  %8442 = vmatprep.subr.mxu0 %v8408
  %8443 = vmatpush1.msra.mxu0 %v8407
  %8444 = vmatprep.subr.mxu0 %v8412
  %8445 = vmatpush1.msra.mxu0 %v8411
  %8446 = vmatprep.subr.mxu0 %v8416
  %8447 = vmatpush1.msra.mxu0 %v8415
  %8448 = vmatprep.subr.mxu0 %v8420
  %8449 = vmatpush1.msra.mxu0 %v8419
  %8450 = vmatprep.subr.mxu0 %v8424
  %8451 = vmatpush1.msra.mxu0 %v8423
  %8452 = vmatprep.subr.mxu0 %v8428
  %8453 = vmatpush1.msra.mxu0 %v8427
  %8454 = vmatprep.subr.mxu0 %v8432
  %8455 = vmatpush1.msra.mxu0 %v8431
  %8456 = vmatprep.subr.mxu0 %v8436
  %8457 = vmatpush1.msra.mxu0 %v8435
  %8458 = vmatprep.subr.mxu0 0.0
  %8459 = vmatpush1.msra.mxu0 0.0
  %8460 = vmatprep.subr.mxu0 0.0
  %8461 = vmatpush1.msra.mxu0 0.0
  %8462 = vmatprep.subr.mxu0 0.0
  %8463 = vmatpush1.msra.mxu0 0.0
  %8464 = vmatprep.subr.mxu0 0.0
  %8465 = vmatpush1.msra.mxu0 0.0
  %8466 = vmatprep.subr.mxu0 0.0
  %8467 = vmatpush1.msra.mxu0 0.0
  %8468 = vmatprep.subr.mxu0 0.0
  %8469 = vmatpush1.msra.mxu0 0.0
  %8470 = vmatprep.subr.mxu0 0.0
  %8471 = vmatpush1.msra.mxu0 0.0
  %8472 = vmatprep.subr.mxu0 0.0
  %8473 = vmatpush1.msra.mxu0 0.0
  %8474 = vmatprep.subr.mxu0 0.0
  %8475 = vmatpush1.msra.mxu0 0.0
  %8476 = vmatprep.subr.mxu0 0.0
  %8477 = vmatpush1.msra.mxu0 0.0
  %8478 = vmatprep.subr.mxu0 0.0
  %8479 = vmatpush1.msra.mxu0 0.0
  %8480 = vmatprep.subr.mxu0 0.0
  %8481 = vmatpush1.msra.mxu0 0.0
  %8482 = vmatprep.subr.mxu0 0.0
  %8483 = vmatpush1.msra.mxu0 0.0
  %8484 = vmatprep.subr.mxu0 0.0
  %8485 = vmatpush1.msra.mxu0 0.0
  %8486 = vmatprep.subr.mxu0 0.0
  %8487 = vmatpush1.msra.mxu0 0.0
  %8488 = vmatprep.subr.mxu0 0.0
  %8489 = vmatpush1.msra.mxu0 0.0
  %8490 = vmatprep.subr.mxu0 0.0
  %8491 = vmatpush1.msra.mxu0 0.0
  %8492 = vmatprep.subr.mxu0 0.0
  %8493 = vmatpush1.msra.mxu0 0.0
  %8494 = vmatprep.subr.mxu0 0.0
  %8495 = vmatpush1.msra.mxu0 0.0
  %8496 = vmatprep.subr.mxu0 0.0
  %8497 = vmatpush1.msra.mxu0 0.0
  %8498 = vmatprep.subr.mxu0 0.0
  %8499 = vmatpush1.msra.mxu0 0.0
  %8500 = vmatprep.subr.mxu0 0.0
  %8501 = vmatpush1.msra.mxu0 0.0
  %8502 = vmatprep.subr.mxu0 0.0
  %8503 = vmatpush1.msra.mxu0 0.0
  %8504 = vmatprep.subr.mxu0 0.0
  %8505 = vmatpush1.msra.mxu0 0.0
  %8506 = vmatprep.mubr.f32.mxu0 0.0
  %8507 = vmatmul.mubr.f32.gmra.mrb[0].mxu0 %v8440
  %v8508 = vpop.f32.mrb[0].mxu0
  %v8509 = vadd.f32 0.0, %v8508
  %v8510 = vpop.f32.mrb[0].mxu0
  %v8511 = vadd.f32 0.0, %v8510
  %8512 = vdwg.mxu0
  %8513 = vmatprep.subr.mxu0 %v8410
  %8514 = vmatpush1.msra.mxu0 %v8409
  %8515 = vmatprep.subr.mxu0 %v8414
  %8516 = vmatpush1.msra.mxu0 %v8413
  %8517 = vmatprep.subr.mxu0 %v8418
  %8518 = vmatpush1.msra.mxu0 %v8417
  %8519 = vmatprep.subr.mxu0 %v8422
  %8520 = vmatpush1.msra.mxu0 %v8421
  %8521 = vmatprep.subr.mxu0 %v8426
  %8522 = vmatpush1.msra.mxu0 %v8425
  %8523 = vmatprep.subr.mxu0 %v8430
  %8524 = vmatpush1.msra.mxu0 %v8429
  %8525 = vmatprep.subr.mxu0 %v8434
  %8526 = vmatpush1.msra.mxu0 %v8433
  %8527 = vmatprep.subr.mxu0 %v8438
  %8528 = vmatpush1.msra.mxu0 %v8437
  %8529 = vmatprep.subr.mxu0 0.0
  %8530 = vmatpush1.msra.mxu0 0.0
  %8531 = vmatprep.subr.mxu0 0.0
  %8532 = vmatpush1.msra.mxu0 0.0
  %8533 = vmatprep.subr.mxu0 0.0
  %8534 = vmatpush1.msra.mxu0 0.0
  %8535 = vmatprep.subr.mxu0 0.0
  %8536 = vmatpush1.msra.mxu0 0.0
  %8537 = vmatprep.subr.mxu0 0.0
  %8538 = vmatpush1.msra.mxu0 0.0
  %8539 = vmatprep.subr.mxu0 0.0
  %8540 = vmatpush1.msra.mxu0 0.0
  %8541 = vmatprep.subr.mxu0 0.0
  %8542 = vmatpush1.msra.mxu0 0.0
  %8543 = vmatprep.subr.mxu0 0.0
  %8544 = vmatpush1.msra.mxu0 0.0
  %8545 = vmatprep.subr.mxu0 0.0
  %8546 = vmatpush1.msra.mxu0 0.0
  %8547 = vmatprep.subr.mxu0 0.0
  %8548 = vmatpush1.msra.mxu0 0.0
  %8549 = vmatprep.subr.mxu0 0.0
  %8550 = vmatpush1.msra.mxu0 0.0
  %8551 = vmatprep.subr.mxu0 0.0
  %8552 = vmatpush1.msra.mxu0 0.0
  %8553 = vmatprep.subr.mxu0 0.0
  %8554 = vmatpush1.msra.mxu0 0.0
  %8555 = vmatprep.subr.mxu0 0.0
  %8556 = vmatpush1.msra.mxu0 0.0
  %8557 = vmatprep.subr.mxu0 0.0
  %8558 = vmatpush1.msra.mxu0 0.0
  %8559 = vmatprep.subr.mxu0 0.0
  %8560 = vmatpush1.msra.mxu0 0.0
  %8561 = vmatprep.subr.mxu0 0.0
  %8562 = vmatpush1.msra.mxu0 0.0
  %8563 = vmatprep.subr.mxu0 0.0
  %8564 = vmatpush1.msra.mxu0 0.0
  %8565 = vmatprep.subr.mxu0 0.0
  %8566 = vmatpush1.msra.mxu0 0.0
  %8567 = vmatprep.subr.mxu0 0.0
  %8568 = vmatpush1.msra.mxu0 0.0
  %8569 = vmatprep.subr.mxu0 0.0
  %8570 = vmatpush1.msra.mxu0 0.0
  %8571 = vmatprep.subr.mxu0 0.0
  %8572 = vmatpush1.msra.mxu0 0.0
  %8573 = vmatprep.subr.mxu0 0.0
  %8574 = vmatpush1.msra.mxu0 0.0
  %8575 = vmatprep.subr.mxu0 0.0
  %8576 = vmatpush1.msra.mxu0 0.0
  %8577 = vmatprep.mubr.f32.mxu0 0.0
  %8578 = vmatmul.mubr.f32.gmra.mrb[0].mxu0 %v8440
  %v8579 = vpop.f32.mrb[0].mxu0
  %v8580 = vadd.f32 0.0, %v8579
  %v8581 = vpop.f32.mrb[0].mxu0
  %v8582 = vadd.f32 0.0, %v8581
  %8583 = vdwg.mxu0
  %v8584 = vadd.f32 %v8403, %v8509
  %v8585 = vadd.f32 %v8404, %v8511
  %v8586 = vadd.f32 %v8405, %v8580
  %v8587 = vadd.f32 %v8406, %v8582
  %v8588 = vld [vmem:[%s5 + $0x500] sm:$0xff]
  %v8589 = vld [vmem:[%s5 + $0x508] sm:$0xff]
  %v8590 = vld [vmem:[%s5 + $0x510] sm:$0xff]
  %v8591 = vld [vmem:[%s5 + $0x518] sm:$0xff]
  %v8592 = vld [vmem:[%s5 + $0x520] sm:$0xff]
  %v8593 = vld [vmem:[%s5 + $0x528] sm:$0xff]
  %v8594 = vld [vmem:[%s5 + $0x530] sm:$0xff]
  %v8595 = vld [vmem:[%s5 + $0x538] sm:$0xff]
  %v8596 = vld [vmem:[%s5 + $0x540] sm:$0xff]
  %v8597 = vld [vmem:[%s5 + $0x548] sm:$0xff]
  %v8598 = vld [vmem:[%s5 + $0x550] sm:$0xff]
  %v8599 = vld [vmem:[%s5 + $0x558] sm:$0xff]
  %v8600 = vld [vmem:[%s5 + $0x560] sm:$0xff]
  %v8601 = vld [vmem:[%s5 + $0x568] sm:$0xff]
  %v8602 = vld [vmem:[%s5 + $0x570] sm:$0xff]
  %v8603 = vld [vmem:[%s5 + $0x578] sm:$0xff]
  %v8604 = vld [vmem:[%s5 + $0x580] sm:$0xff]
  %v8605 = vld [vmem:[%s5 + $0x588] sm:$0xff]
  %v8606 = vld [vmem:[%s5 + $0x590] sm:$0xff]
  %v8607 = vld [vmem:[%s5 + $0x598] sm:$0xff]
  %v8608 = vld [vmem:[%s5 + $0x5a0] sm:$0xff]
  %v8609 = vld [vmem:[%s5 + $0x5a8] sm:$0xff]
  %v8610 = vld [vmem:[%s5 + $0x5b0] sm:$0xff]
  %v8611 = vld [vmem:[%s5 + $0x5b8] sm:$0xff]
  %v8612 = vld [vmem:[%s5 + $0x5c0] sm:$0xff]
  %v8613 = vld [vmem:[%s5 + $0x5c8] sm:$0xff]
  %v8614 = vld [vmem:[%s5 + $0x5d0] sm:$0xff]
  %v8615 = vld [vmem:[%s5 + $0x5d8] sm:$0xff]
  %v8616 = vld [vmem:[%s5 + $0x5e0] sm:$0xff]
  %v8617 = vld [vmem:[%s5 + $0x5e8] sm:$0xff]
  %v8618 = vld [vmem:[%s5 + $0x5f0] sm:$0xff]
  %v8619 = vld [vmem:[%s5 + $0x5f8] sm:$0xff]
  %v8621 = vsel %vm7754, %v7686, 0
  %8623 = vmatprep.subr.mxu0 %v8589
  %8624 = vmatpush1.msra.mxu0 %v8588
  %8625 = vmatprep.subr.mxu0 %v8593
  %8626 = vmatpush1.msra.mxu0 %v8592
  %8627 = vmatprep.subr.mxu0 %v8597
  %8628 = vmatpush1.msra.mxu0 %v8596
  %8629 = vmatprep.subr.mxu0 %v8601
  %8630 = vmatpush1.msra.mxu0 %v8600
  %8631 = vmatprep.subr.mxu0 %v8605
  %8632 = vmatpush1.msra.mxu0 %v8604
  %8633 = vmatprep.subr.mxu0 %v8609
  %8634 = vmatpush1.msra.mxu0 %v8608
  %8635 = vmatprep.subr.mxu0 %v8613
  %8636 = vmatpush1.msra.mxu0 %v8612
  %8637 = vmatprep.subr.mxu0 %v8617
  %8638 = vmatpush1.msra.mxu0 %v8616
  %8639 = vmatprep.subr.mxu0 0.0
  %8640 = vmatpush1.msra.mxu0 0.0
  %8641 = vmatprep.subr.mxu0 0.0
  %8642 = vmatpush1.msra.mxu0 0.0
  %8643 = vmatprep.subr.mxu0 0.0
  %8644 = vmatpush1.msra.mxu0 0.0
  %8645 = vmatprep.subr.mxu0 0.0
  %8646 = vmatpush1.msra.mxu0 0.0
  %8647 = vmatprep.subr.mxu0 0.0
  %8648 = vmatpush1.msra.mxu0 0.0
  %8649 = vmatprep.subr.mxu0 0.0
  %8650 = vmatpush1.msra.mxu0 0.0
  %8651 = vmatprep.subr.mxu0 0.0
  %8652 = vmatpush1.msra.mxu0 0.0
  %8653 = vmatprep.subr.mxu0 0.0
  %8654 = vmatpush1.msra.mxu0 0.0
  %8655 = vmatprep.subr.mxu0 0.0
  %8656 = vmatpush1.msra.mxu0 0.0
  %8657 = vmatprep.subr.mxu0 0.0
  %8658 = vmatpush1.msra.mxu0 0.0
  %8659 = vmatprep.subr.mxu0 0.0
  %8660 = vmatpush1.msra.mxu0 0.0
  %8661 = vmatprep.subr.mxu0 0.0
  %8662 = vmatpush1.msra.mxu0 0.0
  %8663 = vmatprep.subr.mxu0 0.0
  %8664 = vmatpush1.msra.mxu0 0.0
  %8665 = vmatprep.subr.mxu0 0.0
  %8666 = vmatpush1.msra.mxu0 0.0
  %8667 = vmatprep.subr.mxu0 0.0
  %8668 = vmatpush1.msra.mxu0 0.0
  %8669 = vmatprep.subr.mxu0 0.0
  %8670 = vmatpush1.msra.mxu0 0.0
  %8671 = vmatprep.subr.mxu0 0.0
  %8672 = vmatpush1.msra.mxu0 0.0
  %8673 = vmatprep.subr.mxu0 0.0
  %8674 = vmatpush1.msra.mxu0 0.0
  %8675 = vmatprep.subr.mxu0 0.0
  %8676 = vmatpush1.msra.mxu0 0.0
  %8677 = vmatprep.subr.mxu0 0.0
  %8678 = vmatpush1.msra.mxu0 0.0
  %8679 = vmatprep.subr.mxu0 0.0
  %8680 = vmatpush1.msra.mxu0 0.0
  %8681 = vmatprep.subr.mxu0 0.0
  %8682 = vmatpush1.msra.mxu0 0.0
  %8683 = vmatprep.subr.mxu0 0.0
  %8684 = vmatpush1.msra.mxu0 0.0
  %8685 = vmatprep.subr.mxu0 0.0
  %8686 = vmatpush1.msra.mxu0 0.0
  %8687 = vmatprep.mubr.f32.mxu0 0.0
  %8688 = vmatmul.mubr.f32.gmra.mrb[0].mxu0 %v8621
  %v8689 = vpop.f32.mrb[0].mxu0
  %v8690 = vadd.f32 0.0, %v8689
  %v8691 = vpop.f32.mrb[0].mxu0
  %v8692 = vadd.f32 0.0, %v8691
  %8693 = vdwg.mxu0
  %8694 = vmatprep.subr.mxu0 %v8591
  %8695 = vmatpush1.msra.mxu0 %v8590
  %8696 = vmatprep.subr.mxu0 %v8595
  %8697 = vmatpush1.msra.mxu0 %v8594
  %8698 = vmatprep.subr.mxu0 %v8599
  %8699 = vmatpush1.msra.mxu0 %v8598
  %8700 = vmatprep.subr.mxu0 %v8603
  %8701 = vmatpush1.msra.mxu0 %v8602
  %8702 = vmatprep.subr.mxu0 %v8607
  %8703 = vmatpush1.msra.mxu0 %v8606
  %8704 = vmatprep.subr.mxu0 %v8611
  %8705 = vmatpush1.msra.mxu0 %v8610
  %8706 = vmatprep.subr.mxu0 %v8615
  %8707 = vmatpush1.msra.mxu0 %v8614
  %8708 = vmatprep.subr.mxu0 %v8619
  %8709 = vmatpush1.msra.mxu0 %v8618
  %8710 = vmatprep.subr.mxu0 0.0
  %8711 = vmatpush1.msra.mxu0 0.0
  %8712 = vmatprep.subr.mxu0 0.0
  %8713 = vmatpush1.msra.mxu0 0.0
  %8714 = vmatprep.subr.mxu0 0.0
  %8715 = vmatpush1.msra.mxu0 0.0
  %8716 = vmatprep.subr.mxu0 0.0
  %8717 = vmatpush1.msra.mxu0 0.0
  %8718 = vmatprep.subr.mxu0 0.0
  %8719 = vmatpush1.msra.mxu0 0.0
  %8720 = vmatprep.subr.mxu0 0.0
  %8721 = vmatpush1.msra.mxu0 0.0
  %8722 = vmatprep.subr.mxu0 0.0
  %8723 = vmatpush1.msra.mxu0 0.0
  %8724 = vmatprep.subr.mxu0 0.0
  %8725 = vmatpush1.msra.mxu0 0.0
  %8726 = vmatprep.subr.mxu0 0.0
  %8727 = vmatpush1.msra.mxu0 0.0
  %8728 = vmatprep.subr.mxu0 0.0
  %8729 = vmatpush1.msra.mxu0 0.0
  %8730 = vmatprep.subr.mxu0 0.0
  %8731 = vmatpush1.msra.mxu0 0.0
  %8732 = vmatprep.subr.mxu0 0.0
  %8733 = vmatpush1.msra.mxu0 0.0
  %8734 = vmatprep.subr.mxu0 0.0
  %8735 = vmatpush1.msra.mxu0 0.0
  %8736 = vmatprep.subr.mxu0 0.0
  %8737 = vmatpush1.msra.mxu0 0.0
  %8738 = vmatprep.subr.mxu0 0.0
  %8739 = vmatpush1.msra.mxu0 0.0
  %8740 = vmatprep.subr.mxu0 0.0
  %8741 = vmatpush1.msra.mxu0 0.0
  %8742 = vmatprep.subr.mxu0 0.0
  %8743 = vmatpush1.msra.mxu0 0.0
  %8744 = vmatprep.subr.mxu0 0.0
  %8745 = vmatpush1.msra.mxu0 0.0
  %8746 = vmatprep.subr.mxu0 0.0
  %8747 = vmatpush1.msra.mxu0 0.0
  %8748 = vmatprep.subr.mxu0 0.0
  %8749 = vmatpush1.msra.mxu0 0.0
  %8750 = vmatprep.subr.mxu0 0.0
  %8751 = vmatpush1.msra.mxu0 0.0
  %8752 = vmatprep.subr.mxu0 0.0
  %8753 = vmatpush1.msra.mxu0 0.0
  %8754 = vmatprep.subr.mxu0 0.0
  %8755 = vmatpush1.msra.mxu0 0.0
  %8756 = vmatprep.subr.mxu0 0.0
  %8757 = vmatpush1.msra.mxu0 0.0
  %8758 = vmatprep.mubr.f32.mxu0 0.0
  %8759 = vmatmul.mubr.f32.gmra.mrb[0].mxu0 %v8621
  %v8760 = vpop.f32.mrb[0].mxu0
  %v8761 = vadd.f32 0.0, %v8760
  %v8762 = vpop.f32.mrb[0].mxu0
  %v8763 = vadd.f32 0.0, %v8762
  %8764 = vdwg.mxu0
  %v8765 = vadd.f32 %v8584, %v8690
  %v8766 = vadd.f32 %v8585, %v8692
  %v8767 = vadd.f32 %v8586, %v8761
  %v8768 = vadd.f32 %v8587, %v8763
  %v8769 = vld [vmem:[%s5 + $0x600] sm:$0xff]
  %v8770 = vld [vmem:[%s5 + $0x608] sm:$0xff]
  %v8771 = vld [vmem:[%s5 + $0x610] sm:$0xff]
  %v8772 = vld [vmem:[%s5 + $0x618] sm:$0xff]
  %v8773 = vld [vmem:[%s5 + $0x620] sm:$0xff]
  %v8774 = vld [vmem:[%s5 + $0x628] sm:$0xff]
  %v8775 = vld [vmem:[%s5 + $0x630] sm:$0xff]
  %v8776 = vld [vmem:[%s5 + $0x638] sm:$0xff]
  %v8777 = vld [vmem:[%s5 + $0x640] sm:$0xff]
  %v8778 = vld [vmem:[%s5 + $0x648] sm:$0xff]
  %v8779 = vld [vmem:[%s5 + $0x650] sm:$0xff]
  %v8780 = vld [vmem:[%s5 + $0x658] sm:$0xff]
  %v8781 = vld [vmem:[%s5 + $0x660] sm:$0xff]
  %v8782 = vld [vmem:[%s5 + $0x668] sm:$0xff]
  %v8783 = vld [vmem:[%s5 + $0x670] sm:$0xff]
  %v8784 = vld [vmem:[%s5 + $0x678] sm:$0xff]
  %v8785 = vld [vmem:[%s5 + $0x680] sm:$0xff]
  %v8786 = vld [vmem:[%s5 + $0x688] sm:$0xff]
  %v8787 = vld [vmem:[%s5 + $0x690] sm:$0xff]
  %v8788 = vld [vmem:[%s5 + $0x698] sm:$0xff]
  %v8789 = vld [vmem:[%s5 + $0x6a0] sm:$0xff]
  %v8790 = vld [vmem:[%s5 + $0x6a8] sm:$0xff]
  %v8791 = vld [vmem:[%s5 + $0x6b0] sm:$0xff]
  %v8792 = vld [vmem:[%s5 + $0x6b8] sm:$0xff]
  %v8793 = vld [vmem:[%s5 + $0x6c0] sm:$0xff]
  %v8794 = vld [vmem:[%s5 + $0x6c8] sm:$0xff]
  %v8795 = vld [vmem:[%s5 + $0x6d0] sm:$0xff]
  %v8796 = vld [vmem:[%s5 + $0x6d8] sm:$0xff]
  %v8797 = vld [vmem:[%s5 + $0x6e0] sm:$0xff]
  %v8798 = vld [vmem:[%s5 + $0x6e8] sm:$0xff]
  %v8799 = vld [vmem:[%s5 + $0x6f0] sm:$0xff]
  %v8800 = vld [vmem:[%s5 + $0x6f8] sm:$0xff]
  %v8802 = vsel %vm7754, %v7687, 0
  %8804 = vmatprep.subr.mxu0 %v8770
  %8805 = vmatpush1.msra.mxu0 %v8769
  %8806 = vmatprep.subr.mxu0 %v8774
  %8807 = vmatpush1.msra.mxu0 %v8773
  %8808 = vmatprep.subr.mxu0 %v8778
  %8809 = vmatpush1.msra.mxu0 %v8777
  %8810 = vmatprep.subr.mxu0 %v8782
  %8811 = vmatpush1.msra.mxu0 %v8781
  %8812 = vmatprep.subr.mxu0 %v8786
  %8813 = vmatpush1.msra.mxu0 %v8785
  %8814 = vmatprep.subr.mxu0 %v8790
  %8815 = vmatpush1.msra.mxu0 %v8789
  %8816 = vmatprep.subr.mxu0 %v8794
  %8817 = vmatpush1.msra.mxu0 %v8793
  %8818 = vmatprep.subr.mxu0 %v8798
  %8819 = vmatpush1.msra.mxu0 %v8797
  %8820 = vmatprep.subr.mxu0 0.0
  %8821 = vmatpush1.msra.mxu0 0.0
  %8822 = vmatprep.subr.mxu0 0.0
  %8823 = vmatpush1.msra.mxu0 0.0
  %8824 = vmatprep.subr.mxu0 0.0
  %8825 = vmatpush1.msra.mxu0 0.0
  %8826 = vmatprep.subr.mxu0 0.0
  %8827 = vmatpush1.msra.mxu0 0.0
  %8828 = vmatprep.subr.mxu0 0.0
  %8829 = vmatpush1.msra.mxu0 0.0
  %8830 = vmatprep.subr.mxu0 0.0
  %8831 = vmatpush1.msra.mxu0 0.0
  %8832 = vmatprep.subr.mxu0 0.0
  %8833 = vmatpush1.msra.mxu0 0.0
  %8834 = vmatprep.subr.mxu0 0.0
  %8835 = vmatpush1.msra.mxu0 0.0
  %8836 = vmatprep.subr.mxu0 0.0
  %8837 = vmatpush1.msra.mxu0 0.0
  %8838 = vmatprep.subr.mxu0 0.0
  %8839 = vmatpush1.msra.mxu0 0.0
  %8840 = vmatprep.subr.mxu0 0.0
  %8841 = vmatpush1.msra.mxu0 0.0
  %8842 = vmatprep.subr.mxu0 0.0
  %8843 = vmatpush1.msra.mxu0 0.0
  %8844 = vmatprep.subr.mxu0 0.0
  %8845 = vmatpush1.msra.mxu0 0.0
  %8846 = vmatprep.subr.mxu0 0.0
  %8847 = vmatpush1.msra.mxu0 0.0
  %8848 = vmatprep.subr.mxu0 0.0
  %8849 = vmatpush1.msra.mxu0 0.0
  %8850 = vmatprep.subr.mxu0 0.0
  %8851 = vmatpush1.msra.mxu0 0.0
  %8852 = vmatprep.subr.mxu0 0.0
  %8853 = vmatpush1.msra.mxu0 0.0
  %8854 = vmatprep.subr.mxu0 0.0
  %8855 = vmatpush1.msra.mxu0 0.0
  %8856 = vmatprep.subr.mxu0 0.0
  %8857 = vmatpush1.msra.mxu0 0.0
  %8858 = vmatprep.subr.mxu0 0.0
  %8859 = vmatpush1.msra.mxu0 0.0
  %8860 = vmatprep.subr.mxu0 0.0
  %8861 = vmatpush1.msra.mxu0 0.0
  %8862 = vmatprep.subr.mxu0 0.0
  %8863 = vmatpush1.msra.mxu0 0.0
  %8864 = vmatprep.subr.mxu0 0.0
  %8865 = vmatpush1.msra.mxu0 0.0
  %8866 = vmatprep.subr.mxu0 0.0
  %8867 = vmatpush1.msra.mxu0 0.0
  %8868 = vmatprep.mubr.f32.mxu0 0.0
  %8869 = vmatmul.mubr.f32.gmra.mrb[0].mxu0 %v8802
  %v8870 = vpop.f32.mrb[0].mxu0
  %v8871 = vadd.f32 0.0, %v8870
  %v8872 = vpop.f32.mrb[0].mxu0
  %v8873 = vadd.f32 0.0, %v8872
  %8874 = vdwg.mxu0
  %8875 = vmatprep.subr.mxu0 %v8772
  %8876 = vmatpush1.msra.mxu0 %v8771
  %8877 = vmatprep.subr.mxu0 %v8776
  %8878 = vmatpush1.msra.mxu0 %v8775
  %8879 = vmatprep.subr.mxu0 %v8780
  %8880 = vmatpush1.msra.mxu0 %v8779
  %8881 = vmatprep.subr.mxu0 %v8784
  %8882 = vmatpush1.msra.mxu0 %v8783
  %8883 = vmatprep.subr.mxu0 %v8788
  %8884 = vmatpush1.msra.mxu0 %v8787
  %8885 = vmatprep.subr.mxu0 %v8792
  %8886 = vmatpush1.msra.mxu0 %v8791
  %8887 = vmatprep.subr.mxu0 %v8796
  %8888 = vmatpush1.msra.mxu0 %v8795
  %8889 = vmatprep.subr.mxu0 %v8800
  %8890 = vmatpush1.msra.mxu0 %v8799
  %8891 = vmatprep.subr.mxu0 0.0
  %8892 = vmatpush1.msra.mxu0 0.0
  %8893 = vmatprep.subr.mxu0 0.0
  %8894 = vmatpush1.msra.mxu0 0.0
  %8895 = vmatprep.subr.mxu0 0.0
  %8896 = vmatpush1.msra.mxu0 0.0
  %8897 = vmatprep.subr.mxu0 0.0
  %8898 = vmatpush1.msra.mxu0 0.0
  %8899 = vmatprep.subr.mxu0 0.0
  %8900 = vmatpush1.msra.mxu0 0.0
  %8901 = vmatprep.subr.mxu0 0.0
  %8902 = vmatpush1.msra.mxu0 0.0
  %8903 = vmatprep.subr.mxu0 0.0
  %8904 = vmatpush1.msra.mxu0 0.0
  %8905 = vmatprep.subr.mxu0 0.0
  %8906 = vmatpush1.msra.mxu0 0.0
  %8907 = vmatprep.subr.mxu0 0.0
  %8908 = vmatpush1.msra.mxu0 0.0
  %8909 = vmatprep.subr.mxu0 0.0
  %8910 = vmatpush1.msra.mxu0 0.0
  %8911 = vmatprep.subr.mxu0 0.0
  %8912 = vmatpush1.msra.mxu0 0.0
  %8913 = vmatprep.subr.mxu0 0.0
  %8914 = vmatpush1.msra.mxu0 0.0
  %8915 = vmatprep.subr.mxu0 0.0
  %8916 = vmatpush1.msra.mxu0 0.0
  %8917 = vmatprep.subr.mxu0 0.0
  %8918 = vmatpush1.msra.mxu0 0.0
  %8919 = vmatprep.subr.mxu0 0.0
  %8920 = vmatpush1.msra.mxu0 0.0
  %8921 = vmatprep.subr.mxu0 0.0
  %8922 = vmatpush1.msra.mxu0 0.0
  %8923 = vmatprep.subr.mxu0 0.0
  %8924 = vmatpush1.msra.mxu0 0.0
  %8925 = vmatprep.subr.mxu0 0.0
  %8926 = vmatpush1.msra.mxu0 0.0
  %8927 = vmatprep.subr.mxu0 0.0
  %8928 = vmatpush1.msra.mxu0 0.0
  %8929 = vmatprep.subr.mxu0 0.0
  %8930 = vmatpush1.msra.mxu0 0.0
  %8931 = vmatprep.subr.mxu0 0.0
  %8932 = vmatpush1.msra.mxu0 0.0
  %8933 = vmatprep.subr.mxu0 0.0
  %8934 = vmatpush1.msra.mxu0 0.0
  %8935 = vmatprep.subr.mxu0 0.0
  %8936 = vmatpush1.msra.mxu0 0.0
  %8937 = vmatprep.subr.mxu0 0.0
  %8938 = vmatpush1.msra.mxu0 0.0
  %8939 = vmatprep.mubr.f32.mxu0 0.0
  %8940 = vmatmul.mubr.f32.gmra.mrb[0].mxu0 %v8802
  %v8941 = vpop.f32.mrb[0].mxu0
  %v8942 = vadd.f32 0.0, %v8941
  %v8943 = vpop.f32.mrb[0].mxu0
  %v8944 = vadd.f32 0.0, %v8943
  %8945 = vdwg.mxu0
  %v8946 = vadd.f32 %v8765, %v8871
  %v8947 = vadd.f32 %v8766, %v8873
  %v8948 = vadd.f32 %v8767, %v8942
  %v8949 = vadd.f32 %v8768, %v8944
  %v8950 = vld [vmem:[%s5 + $0x700] sm:$0xff]
  %v8951 = vld [vmem:[%s5 + $0x708] sm:$0xff]
  %v8952 = vld [vmem:[%s5 + $0x710] sm:$0xff]
  %v8953 = vld [vmem:[%s5 + $0x718] sm:$0xff]
  %v8954 = vld [vmem:[%s5 + $0x720] sm:$0xff]
  %v8955 = vld [vmem:[%s5 + $0x728] sm:$0xff]
  %v8956 = vld [vmem:[%s5 + $0x730] sm:$0xff]
  %v8957 = vld [vmem:[%s5 + $0x738] sm:$0xff]
  %v8958 = vld [vmem:[%s5 + $0x740] sm:$0xff]
  %v8959 = vld [vmem:[%s5 + $0x748] sm:$0xff]
  %v8960 = vld [vmem:[%s5 + $0x750] sm:$0xff]
  %v8961 = vld [vmem:[%s5 + $0x758] sm:$0xff]
  %v8962 = vld [vmem:[%s5 + $0x760] sm:$0xff]
  %v8963 = vld [vmem:[%s5 + $0x768] sm:$0xff]
  %v8964 = vld [vmem:[%s5 + $0x770] sm:$0xff]
  %v8965 = vld [vmem:[%s5 + $0x778] sm:$0xff]
  %v8966 = vld [vmem:[%s5 + $0x780] sm:$0xff]
  %v8967 = vld [vmem:[%s5 + $0x788] sm:$0xff]
  %v8968 = vld [vmem:[%s5 + $0x790] sm:$0xff]
  %v8969 = vld [vmem:[%s5 + $0x798] sm:$0xff]
  %v8970 = vld [vmem:[%s5 + $0x7a0] sm:$0xff]
  %v8971 = vld [vmem:[%s5 + $0x7a8] sm:$0xff]
  %v8972 = vld [vmem:[%s5 + $0x7b0] sm:$0xff]
  %v8973 = vld [vmem:[%s5 + $0x7b8] sm:$0xff]
  %v8974 = vld [vmem:[%s5 + $0x7c0] sm:$0xff]
  %v8975 = vld [vmem:[%s5 + $0x7c8] sm:$0xff]
  %v8976 = vld [vmem:[%s5 + $0x7d0] sm:$0xff]
  %v8977 = vld [vmem:[%s5 + $0x7d8] sm:$0xff]
  %v8978 = vld [vmem:[%s5 + $0x7e0] sm:$0xff]
  %v8979 = vld [vmem:[%s5 + $0x7e8] sm:$0xff]
  %v8980 = vld [vmem:[%s5 + $0x7f0] sm:$0xff]
  %v8981 = vld [vmem:[%s5 + $0x7f8] sm:$0xff]
  %v8983 = vsel %vm7754, %v7688, 0
  %8985 = vmatprep.subr.mxu0 %v8951
  %8986 = vmatpush1.msra.mxu0 %v8950
  %8987 = vmatprep.subr.mxu0 %v8955
  %8988 = vmatpush1.msra.mxu0 %v8954
  %8989 = vmatprep.subr.mxu0 %v8959
  %8990 = vmatpush1.msra.mxu0 %v8958
  %8991 = vmatprep.subr.mxu0 %v8963
  %8992 = vmatpush1.msra.mxu0 %v8962
  %8993 = vmatprep.subr.mxu0 %v8967
  %8994 = vmatpush1.msra.mxu0 %v8966
  %8995 = vmatprep.subr.mxu0 %v8971
  %8996 = vmatpush1.msra.mxu0 %v8970
  %8997 = vmatprep.subr.mxu0 %v8975
  %8998 = vmatpush1.msra.mxu0 %v8974
  %8999 = vmatprep.subr.mxu0 %v8979
  %9000 = vmatpush1.msra.mxu0 %v8978
  %9001 = vmatprep.subr.mxu0 0.0
  %9002 = vmatpush1.msra.mxu0 0.0
  %9003 = vmatprep.subr.mxu0 0.0
  %9004 = vmatpush1.msra.mxu0 0.0
  %9005 = vmatprep.subr.mxu0 0.0
  %9006 = vmatpush1.msra.mxu0 0.0
  %9007 = vmatprep.subr.mxu0 0.0
  %9008 = vmatpush1.msra.mxu0 0.0
  %9009 = vmatprep.subr.mxu0 0.0
  %9010 = vmatpush1.msra.mxu0 0.0
  %9011 = vmatprep.subr.mxu0 0.0
  %9012 = vmatpush1.msra.mxu0 0.0
  %9013 = vmatprep.subr.mxu0 0.0
  %9014 = vmatpush1.msra.mxu0 0.0
  %9015 = vmatprep.subr.mxu0 0.0
  %9016 = vmatpush1.msra.mxu0 0.0
  %9017 = vmatprep.subr.mxu0 0.0
  %9018 = vmatpush1.msra.mxu0 0.0
  %9019 = vmatprep.subr.mxu0 0.0
  %9020 = vmatpush1.msra.mxu0 0.0
  %9021 = vmatprep.subr.mxu0 0.0
  %9022 = vmatpush1.msra.mxu0 0.0
  %9023 = vmatprep.subr.mxu0 0.0
  %9024 = vmatpush1.msra.mxu0 0.0
  %9025 = vmatprep.subr.mxu0 0.0
  %9026 = vmatpush1.msra.mxu0 0.0
  %9027 = vmatprep.subr.mxu0 0.0
  %9028 = vmatpush1.msra.mxu0 0.0
  %9029 = vmatprep.subr.mxu0 0.0
  %9030 = vmatpush1.msra.mxu0 0.0
  %9031 = vmatprep.subr.mxu0 0.0
  %9032 = vmatpush1.msra.mxu0 0.0
  %9033 = vmatprep.subr.mxu0 0.0
  %9034 = vmatpush1.msra.mxu0 0.0
  %9035 = vmatprep.subr.mxu0 0.0
  %9036 = vmatpush1.msra.mxu0 0.0
  %9037 = vmatprep.subr.mxu0 0.0
  %9038 = vmatpush1.msra.mxu0 0.0
  %9039 = vmatprep.subr.mxu0 0.0
  %9040 = vmatpush1.msra.mxu0 0.0
  %9041 = vmatprep.subr.mxu0 0.0
  %9042 = vmatpush1.msra.mxu0 0.0
  %9043 = vmatprep.subr.mxu0 0.0
  %9044 = vmatpush1.msra.mxu0 0.0
  %9045 = vmatprep.subr.mxu0 0.0
  %9046 = vmatpush1.msra.mxu0 0.0
  %9047 = vmatprep.subr.mxu0 0.0
  %9048 = vmatpush1.msra.mxu0 0.0
  %9049 = vmatprep.mubr.f32.mxu0 0.0
  %9050 = vmatmul.mubr.f32.gmra.mrb[0].mxu0 %v8983
  %v9051 = vpop.f32.mrb[0].mxu0
  %v9052 = vadd.f32 0.0, %v9051
  %v9053 = vpop.f32.mrb[0].mxu0
  %v9054 = vadd.f32 0.0, %v9053
  %9055 = vdwg.mxu0
  %9056 = vmatprep.subr.mxu0 %v8953
  %9057 = vmatpush1.msra.mxu0 %v8952
  %9058 = vmatprep.subr.mxu0 %v8957
  %9059 = vmatpush1.msra.mxu0 %v8956
  %9060 = vmatprep.subr.mxu0 %v8961
  %9061 = vmatpush1.msra.mxu0 %v8960
  %9062 = vmatprep.subr.mxu0 %v8965
  %9063 = vmatpush1.msra.mxu0 %v8964
  %9064 = vmatprep.subr.mxu0 %v8969
  %9065 = vmatpush1.msra.mxu0 %v8968
  %9066 = vmatprep.subr.mxu0 %v8973
  %9067 = vmatpush1.msra.mxu0 %v8972
  %9068 = vmatprep.subr.mxu0 %v8977
  %9069 = vmatpush1.msra.mxu0 %v8976
  %9070 = vmatprep.subr.mxu0 %v8981
  %9071 = vmatpush1.msra.mxu0 %v8980
  %9072 = vmatprep.subr.mxu0 0.0
  %9073 = vmatpush1.msra.mxu0 0.0
  %9074 = vmatprep.subr.mxu0 0.0
  %9075 = vmatpush1.msra.mxu0 0.0
  %9076 = vmatprep.subr.mxu0 0.0
  %9077 = vmatpush1.msra.mxu0 0.0
  %9078 = vmatprep.subr.mxu0 0.0
  %9079 = vmatpush1.msra.mxu0 0.0
  %9080 = vmatprep.subr.mxu0 0.0
  %9081 = vmatpush1.msra.mxu0 0.0
  %9082 = vmatprep.subr.mxu0 0.0
  %9083 = vmatpush1.msra.mxu0 0.0
  %9084 = vmatprep.subr.mxu0 0.0
  %9085 = vmatpush1.msra.mxu0 0.0
  %9086 = vmatprep.subr.mxu0 0.0
  %9087 = vmatpush1.msra.mxu0 0.0
  %9088 = vmatprep.subr.mxu0 0.0
  %9089 = vmatpush1.msra.mxu0 0.0
  %9090 = vmatprep.subr.mxu0 0.0
  %9091 = vmatpush1.msra.mxu0 0.0
  %9092 = vmatprep.subr.mxu0 0.0
  %9093 = vmatpush1.msra.mxu0 0.0
  %9094 = vmatprep.subr.mxu0 0.0
  %9095 = vmatpush1.msra.mxu0 0.0
  %9096 = vmatprep.subr.mxu0 0.0
  %9097 = vmatpush1.msra.mxu0 0.0
  %9098 = vmatprep.subr.mxu0 0.0
  %9099 = vmatpush1.msra.mxu0 0.0
  %9100 = vmatprep.subr.mxu0 0.0
  %9101 = vmatpush1.msra.mxu0 0.0
  %9102 = vmatprep.subr.mxu0 0.0
  %9103 = vmatpush1.msra.mxu0 0.0
  %9104 = vmatprep.subr.mxu0 0.0
  %9105 = vmatpush1.msra.mxu0 0.0
  %9106 = vmatprep.subr.mxu0 0.0
  %9107 = vmatpush1.msra.mxu0 0.0
  %9108 = vmatprep.subr.mxu0 0.0
  %9109 = vmatpush1.msra.mxu0 0.0
  %9110 = vmatprep.subr.mxu0 0.0
  %9111 = vmatpush1.msra.mxu0 0.0
  %9112 = vmatprep.subr.mxu0 0.0
  %9113 = vmatpush1.msra.mxu0 0.0
  %9114 = vmatprep.subr.mxu0 0.0
  %9115 = vmatpush1.msra.mxu0 0.0
  %9116 = vmatprep.subr.mxu0 0.0
  %9117 = vmatpush1.msra.mxu0 0.0
  %9118 = vmatprep.subr.mxu0 0.0
  %9119 = vmatpush1.msra.mxu0 0.0
  %9120 = vmatprep.mubr.f32.mxu0 0.0
  %9121 = vmatmul.mubr.f32.gmra.mrb[0].mxu0 %v8983
  %v9122 = vpop.f32.mrb[0].mxu0
  %v9123 = vadd.f32 0.0, %v9122
  %v9124 = vpop.f32.mrb[0].mxu0
  %v9125 = vadd.f32 0.0, %v9124
  %9126 = vdwg.mxu0
  %v9127 = vadd.f32 %v8946, %v9052
  %v9128 = vadd.f32 %v8947, %v9054
  %v9129 = vadd.f32 %v8948, %v9123
  %v9130 = vadd.f32 %v8949, %v9125
  %v9131 = vld [vmem:[%s5 + $0x800] sm:$0xff]
  %v9132 = vld [vmem:[%s5 + $0x808] sm:$0xff]
  %v9133 = vld [vmem:[%s5 + $0x810] sm:$0xff]
  %v9134 = vld [vmem:[%s5 + $0x818] sm:$0xff]
  %v9135 = vld [vmem:[%s5 + $0x820] sm:$0xff]
  %v9136 = vld [vmem:[%s5 + $0x828] sm:$0xff]
  %v9137 = vld [vmem:[%s5 + $0x830] sm:$0xff]
  %v9138 = vld [vmem:[%s5 + $0x838] sm:$0xff]
  %v9139 = vld [vmem:[%s5 + $0x840] sm:$0xff]
  %v9140 = vld [vmem:[%s5 + $0x848] sm:$0xff]
  %v9141 = vld [vmem:[%s5 + $0x850] sm:$0xff]
  %v9142 = vld [vmem:[%s5 + $0x858] sm:$0xff]
  %v9143 = vld [vmem:[%s5 + $0x860] sm:$0xff]
  %v9144 = vld [vmem:[%s5 + $0x868] sm:$0xff]
  %v9145 = vld [vmem:[%s5 + $0x870] sm:$0xff]
  %v9146 = vld [vmem:[%s5 + $0x878] sm:$0xff]
  %v9147 = vld [vmem:[%s5 + $0x880] sm:$0xff]
  %v9148 = vld [vmem:[%s5 + $0x888] sm:$0xff]
  %v9149 = vld [vmem:[%s5 + $0x890] sm:$0xff]
  %v9150 = vld [vmem:[%s5 + $0x898] sm:$0xff]
  %v9151 = vld [vmem:[%s5 + $0x8a0] sm:$0xff]
  %v9152 = vld [vmem:[%s5 + $0x8a8] sm:$0xff]
  %v9153 = vld [vmem:[%s5 + $0x8b0] sm:$0xff]
  %v9154 = vld [vmem:[%s5 + $0x8b8] sm:$0xff]
  %v9155 = vld [vmem:[%s5 + $0x8c0] sm:$0xff]
  %v9156 = vld [vmem:[%s5 + $0x8c8] sm:$0xff]
  %v9157 = vld [vmem:[%s5 + $0x8d0] sm:$0xff]
  %v9158 = vld [vmem:[%s5 + $0x8d8] sm:$0xff]
  %v9159 = vld [vmem:[%s5 + $0x8e0] sm:$0xff]
  %v9160 = vld [vmem:[%s5 + $0x8e8] sm:$0xff]
  %v9161 = vld [vmem:[%s5 + $0x8f0] sm:$0xff]
  %v9162 = vld [vmem:[%s5 + $0x8f8] sm:$0xff]
  %v9164 = vsel %vm7754, %v7689, 0
  %9166 = vmatprep.subr.mxu0 %v9132
  %9167 = vmatpush1.msra.mxu0 %v9131
  %9168 = vmatprep.subr.mxu0 %v9136
  %9169 = vmatpush1.msra.mxu0 %v9135
  %9170 = vmatprep.subr.mxu0 %v9140
  %9171 = vmatpush1.msra.mxu0 %v9139
  %9172 = vmatprep.subr.mxu0 %v9144
  %9173 = vmatpush1.msra.mxu0 %v9143
  %9174 = vmatprep.subr.mxu0 %v9148
  %9175 = vmatpush1.msra.mxu0 %v9147
  %9176 = vmatprep.subr.mxu0 %v9152
  %9177 = vmatpush1.msra.mxu0 %v9151
  %9178 = vmatprep.subr.mxu0 %v9156
  %9179 = vmatpush1.msra.mxu0 %v9155
  %9180 = vmatprep.subr.mxu0 %v9160
  %9181 = vmatpush1.msra.mxu0 %v9159
  %9182 = vmatprep.subr.mxu0 0.0
  %9183 = vmatpush1.msra.mxu0 0.0
  %9184 = vmatprep.subr.mxu0 0.0
  %9185 = vmatpush1.msra.mxu0 0.0
  %9186 = vmatprep.subr.mxu0 0.0
  %9187 = vmatpush1.msra.mxu0 0.0
  %9188 = vmatprep.subr.mxu0 0.0
  %9189 = vmatpush1.msra.mxu0 0.0
  %9190 = vmatprep.subr.mxu0 0.0
  %9191 = vmatpush1.msra.mxu0 0.0
  %9192 = vmatprep.subr.mxu0 0.0
  %9193 = vmatpush1.msra.mxu0 0.0
  %9194 = vmatprep.subr.mxu0 0.0
  %9195 = vmatpush1.msra.mxu0 0.0
  %9196 = vmatprep.subr.mxu0 0.0
  %9197 = vmatpush1.msra.mxu0 0.0
  %9198 = vmatprep.subr.mxu0 0.0
  %9199 = vmatpush1.msra.mxu0 0.0
  %9200 = vmatprep.subr.mxu0 0.0
  %9201 = vmatpush1.msra.mxu0 0.0
  %9202 = vmatprep.subr.mxu0 0.0
  %9203 = vmatpush1.msra.mxu0 0.0
  %9204 = vmatprep.subr.mxu0 0.0
  %9205 = vmatpush1.msra.mxu0 0.0
  %9206 = vmatprep.subr.mxu0 0.0
  %9207 = vmatpush1.msra.mxu0 0.0
  %9208 = vmatprep.subr.mxu0 0.0
  %9209 = vmatpush1.msra.mxu0 0.0
  %9210 = vmatprep.subr.mxu0 0.0
  %9211 = vmatpush1.msra.mxu0 0.0
  %9212 = vmatprep.subr.mxu0 0.0
  %9213 = vmatpush1.msra.mxu0 0.0
  %9214 = vmatprep.subr.mxu0 0.0
  %9215 = vmatpush1.msra.mxu0 0.0
  %9216 = vmatprep.subr.mxu0 0.0
  %9217 = vmatpush1.msra.mxu0 0.0
  %9218 = vmatprep.subr.mxu0 0.0
  %9219 = vmatpush1.msra.mxu0 0.0
  %9220 = vmatprep.subr.mxu0 0.0
  %9221 = vmatpush1.msra.mxu0 0.0
  %9222 = vmatprep.subr.mxu0 0.0
  %9223 = vmatpush1.msra.mxu0 0.0
  %9224 = vmatprep.subr.mxu0 0.0
  %9225 = vmatpush1.msra.mxu0 0.0
  %9226 = vmatprep.subr.mxu0 0.0
  %9227 = vmatpush1.msra.mxu0 0.0
  %9228 = vmatprep.subr.mxu0 0.0
  %9229 = vmatpush1.msra.mxu0 0.0
  %9230 = vmatprep.mubr.f32.mxu0 0.0
  %9231 = vmatmul.mubr.f32.gmra.mrb[0].mxu0 %v9164
  %v9232 = vpop.f32.mrb[0].mxu0
  %v9233 = vadd.f32 0.0, %v9232
  %v9234 = vpop.f32.mrb[0].mxu0
  %v9235 = vadd.f32 0.0, %v9234
  %9236 = vdwg.mxu0
  %9237 = vmatprep.subr.mxu0 %v9134
  %9238 = vmatpush1.msra.mxu0 %v9133
  %9239 = vmatprep.subr.mxu0 %v9138
  %9240 = vmatpush1.msra.mxu0 %v9137
  %9241 = vmatprep.subr.mxu0 %v9142
  %9242 = vmatpush1.msra.mxu0 %v9141
  %9243 = vmatprep.subr.mxu0 %v9146
  %9244 = vmatpush1.msra.mxu0 %v9145
  %9245 = vmatprep.subr.mxu0 %v9150
  %9246 = vmatpush1.msra.mxu0 %v9149
  %9247 = vmatprep.subr.mxu0 %v9154
  %9248 = vmatpush1.msra.mxu0 %v9153
  %9249 = vmatprep.subr.mxu0 %v9158
  %9250 = vmatpush1.msra.mxu0 %v9157
  %9251 = vmatprep.subr.mxu0 %v9162
  %9252 = vmatpush1.msra.mxu0 %v9161
  %9253 = vmatprep.subr.mxu0 0.0
  %9254 = vmatpush1.msra.mxu0 0.0
  %9255 = vmatprep.subr.mxu0 0.0
  %9256 = vmatpush1.msra.mxu0 0.0
  %9257 = vmatprep.subr.mxu0 0.0
  %9258 = vmatpush1.msra.mxu0 0.0
  %9259 = vmatprep.subr.mxu0 0.0
  %9260 = vmatpush1.msra.mxu0 0.0
  %9261 = vmatprep.subr.mxu0 0.0
  %9262 = vmatpush1.msra.mxu0 0.0
  %9263 = vmatprep.subr.mxu0 0.0
  %9264 = vmatpush1.msra.mxu0 0.0
  %9265 = vmatprep.subr.mxu0 0.0
  %9266 = vmatpush1.msra.mxu0 0.0
  %9267 = vmatprep.subr.mxu0 0.0
  %9268 = vmatpush1.msra.mxu0 0.0
  %9269 = vmatprep.subr.mxu0 0.0
  %9270 = vmatpush1.msra.mxu0 0.0
  %9271 = vmatprep.subr.mxu0 0.0
  %9272 = vmatpush1.msra.mxu0 0.0
  %9273 = vmatprep.subr.mxu0 0.0
  %9274 = vmatpush1.msra.mxu0 0.0
  %9275 = vmatprep.subr.mxu0 0.0
  %9276 = vmatpush1.msra.mxu0 0.0
  %9277 = vmatprep.subr.mxu0 0.0
  %9278 = vmatpush1.msra.mxu0 0.0
  %9279 = vmatprep.subr.mxu0 0.0
  %9280 = vmatpush1.msra.mxu0 0.0
  %9281 = vmatprep.subr.mxu0 0.0
  %9282 = vmatpush1.msra.mxu0 0.0
  %9283 = vmatprep.subr.mxu0 0.0
  %9284 = vmatpush1.msra.mxu0 0.0
  %9285 = vmatprep.subr.mxu0 0.0
  %9286 = vmatpush1.msra.mxu0 0.0
  %9287 = vmatprep.subr.mxu0 0.0
  %9288 = vmatpush1.msra.mxu0 0.0
  %9289 = vmatprep.subr.mxu0 0.0
  %9290 = vmatpush1.msra.mxu0 0.0
  %9291 = vmatprep.subr.mxu0 0.0
  %9292 = vmatpush1.msra.mxu0 0.0
  %9293 = vmatprep.subr.mxu0 0.0
  %9294 = vmatpush1.msra.mxu0 0.0
  %9295 = vmatprep.subr.mxu0 0.0
  %9296 = vmatpush1.msra.mxu0 0.0
  %9297 = vmatprep.subr.mxu0 0.0
  %9298 = vmatpush1.msra.mxu0 0.0
  %9299 = vmatprep.subr.mxu0 0.0
  %9300 = vmatpush1.msra.mxu0 0.0
  %9301 = vmatprep.mubr.f32.mxu0 0.0
  %9302 = vmatmul.mubr.f32.gmra.mrb[0].mxu0 %v9164
  %v9303 = vpop.f32.mrb[0].mxu0
  %v9304 = vadd.f32 0.0, %v9303
  %v9305 = vpop.f32.mrb[0].mxu0
  %v9306 = vadd.f32 0.0, %v9305
  %9307 = vdwg.mxu0
  %v9308 = vadd.f32 %v9127, %v9233
  %v9309 = vadd.f32 %v9128, %v9235
  %v9310 = vadd.f32 %v9129, %v9304
  %v9311 = vadd.f32 %v9130, %v9306
  %v9312 = vld [vmem:[%s6] sm:$0xf]
  %v9314 = vlaneseq
  %v9315 = vshrl.u32 %v9314, 7
  %v9316 = vsub.s32 0, %v9315
  %v9317 = vrot.slane %v9312, %v9316
  %v9318 = vlaneseq
  %v9319 = vshrl.u32 %v9318, 7
  %v9320 = vsub.s32 1, %v9319
  %v9321 = vrot.slane %v9312, %v9320
  %v9322 = vlaneseq
  %v9323 = vshrl.u32 %v9322, 7
  %v9324 = vsub.s32 2, %v9323
  %v9325 = vrot.slane %v9312, %v9324
  %v9326 = vlaneseq
  %v9327 = vshrl.u32 %v9326, 7
  %v9328 = vsub.s32 3, %v9327
  %v9329 = vrot.slane %v9312, %v9328
  %v9334 = vadd.f32 %v9308, %v9317
  %v9335 = vadd.f32 %v9309, %v9321
  %v9336 = vadd.f32 %v9310, %v9325
  %v9337 = vadd.f32 %v9311, %v9329
  %v9338 = vmax.f32 %v9334, 0.0
  %v9339 = vmax.f32 %v9335, 0.0
  %v9340 = vmax.f32 %v9336, 0.0
  %v9341 = vmax.f32 %v9337, 0.0
  %v9342 = vld [vmem:[%s7] sm:$0xff]
  %v9343 = vld [vmem:[%s7 + $0x8] sm:$0xff]
  %v9344 = vld [vmem:[%s7 + $0x10] sm:$0xff]
  %v9345 = vld [vmem:[%s7 + $0x18] sm:$0xff]
  %v9346 = vld [vmem:[%s7 + $0x20] sm:$0xff]
  %v9347 = vld [vmem:[%s7 + $0x28] sm:$0xff]
  %v9348 = vld [vmem:[%s7 + $0x30] sm:$0xff]
  %v9349 = vld [vmem:[%s7 + $0x38] sm:$0xff]
  %v9350 = vld [vmem:[%s7 + $0x40] sm:$0xff]
  %v9351 = vld [vmem:[%s7 + $0x48] sm:$0xff]
  %v9352 = vld [vmem:[%s7 + $0x50] sm:$0xff]
  %v9353 = vld [vmem:[%s7 + $0x58] sm:$0xff]
  %v9354 = vld [vmem:[%s7 + $0x60] sm:$0xff]
  %v9355 = vld [vmem:[%s7 + $0x68] sm:$0xff]
  %v9356 = vld [vmem:[%s7 + $0x70] sm:$0xff]
  %v9357 = vld [vmem:[%s7 + $0x78] sm:$0xff]
  %v9358 = vld [vmem:[%s7 + $0x80] sm:$0xff]
  %v9359 = vld [vmem:[%s7 + $0x88] sm:$0xff]
  %v9360 = vld [vmem:[%s7 + $0x90] sm:$0xff]
  %v9361 = vld [vmem:[%s7 + $0x98] sm:$0xff]
  %v9362 = vld [vmem:[%s7 + $0xa0] sm:$0xff]
  %v9363 = vld [vmem:[%s7 + $0xa8] sm:$0xff]
  %v9364 = vld [vmem:[%s7 + $0xb0] sm:$0xff]
  %v9365 = vld [vmem:[%s7 + $0xb8] sm:$0xff]
  %v9366 = vld [vmem:[%s7 + $0xc0] sm:$0xff]
  %v9367 = vld [vmem:[%s7 + $0xc8] sm:$0xff]
  %v9368 = vld [vmem:[%s7 + $0xd0] sm:$0xff]
  %v9369 = vld [vmem:[%s7 + $0xd8] sm:$0xff]
  %v9370 = vld [vmem:[%s7 + $0xe0] sm:$0xff]
  %v9371 = vld [vmem:[%s7 + $0xe8] sm:$0xff]
  %v9372 = vld [vmem:[%s7 + $0xf0] sm:$0xff]
  %v9373 = vld [vmem:[%s7 + $0xf8] sm:$0xff]
  %v9374 = vld [vmem:[%s7 + $0x100] sm:$0xff]
  %v9375 = vld [vmem:[%s7 + $0x108] sm:$0xff]
  %v9376 = vld [vmem:[%s7 + $0x110] sm:$0xff]
  %v9377 = vld [vmem:[%s7 + $0x118] sm:$0xff]
  %v9378 = vld [vmem:[%s7 + $0x120] sm:$0xff]
  %v9379 = vld [vmem:[%s7 + $0x128] sm:$0xff]
  %v9380 = vld [vmem:[%s7 + $0x130] sm:$0xff]
  %v9381 = vld [vmem:[%s7 + $0x138] sm:$0xff]
  %v9382 = vld [vmem:[%s7 + $0x140] sm:$0xff]
  %v9383 = vld [vmem:[%s7 + $0x148] sm:$0xff]
  %v9384 = vld [vmem:[%s7 + $0x150] sm:$0xff]
  %v9385 = vld [vmem:[%s7 + $0x158] sm:$0xff]
  %v9386 = vld [vmem:[%s7 + $0x160] sm:$0xff]
  %v9387 = vld [vmem:[%s7 + $0x168] sm:$0xff]
  %v9388 = vld [vmem:[%s7 + $0x170] sm:$0xff]
  %v9389 = vld [vmem:[%s7 + $0x178] sm:$0xff]
  %v9390 = vld [vmem:[%s7 + $0x180] sm:$0xff]
  %v9391 = vld [vmem:[%s7 + $0x188] sm:$0xff]
  %v9392 = vld [vmem:[%s7 + $0x190] sm:$0xff]
  %v9393 = vld [vmem:[%s7 + $0x198] sm:$0xff]
  %v9394 = vld [vmem:[%s7 + $0x1a0] sm:$0xff]
  %v9395 = vld [vmem:[%s7 + $0x1a8] sm:$0xff]
  %v9396 = vld [vmem:[%s7 + $0x1b0] sm:$0xff]
  %v9397 = vld [vmem:[%s7 + $0x1b8] sm:$0xff]
  %v9398 = vld [vmem:[%s7 + $0x1c0] sm:$0xff]
  %v9399 = vld [vmem:[%s7 + $0x1c8] sm:$0xff]
  %v9400 = vld [vmem:[%s7 + $0x1d0] sm:$0xff]
  %v9401 = vld [vmem:[%s7 + $0x1d8] sm:$0xff]
  %v9402 = vld [vmem:[%s7 + $0x1e0] sm:$0xff]
  %v9403 = vld [vmem:[%s7 + $0x1e8] sm:$0xff]
  %v9404 = vld [vmem:[%s7 + $0x1f0] sm:$0xff]
  %v9405 = vld [vmem:[%s7 + $0x1f8] sm:$0xff]
  %v9406 = vld [vmem:[%s7 + $0x200] sm:$0xff]
  %v9407 = vld [vmem:[%s7 + $0x208] sm:$0xff]
  %v9408 = vld [vmem:[%s7 + $0x210] sm:$0xff]
  %v9409 = vld [vmem:[%s7 + $0x218] sm:$0xff]
  %v9410 = vld [vmem:[%s7 + $0x220] sm:$0xff]
  %v9411 = vld [vmem:[%s7 + $0x228] sm:$0xff]
  %v9412 = vld [vmem:[%s7 + $0x230] sm:$0xff]
  %v9413 = vld [vmem:[%s7 + $0x238] sm:$0xff]
  %v9414 = vld [vmem:[%s7 + $0x240] sm:$0xff]
  %v9415 = vld [vmem:[%s7 + $0x248] sm:$0xff]
  %v9416 = vld [vmem:[%s7 + $0x250] sm:$0xff]
  %v9417 = vld [vmem:[%s7 + $0x258] sm:$0xff]
  %v9418 = vld [vmem:[%s7 + $0x260] sm:$0xff]
  %v9419 = vld [vmem:[%s7 + $0x268] sm:$0xff]
  %v9420 = vld [vmem:[%s7 + $0x270] sm:$0xff]
  %v9421 = vld [vmem:[%s7 + $0x278] sm:$0xff]
  %v9422 = vld [vmem:[%s7 + $0x280] sm:$0xff]
  %v9423 = vld [vmem:[%s7 + $0x288] sm:$0xff]
  %v9424 = vld [vmem:[%s7 + $0x290] sm:$0xff]
  %v9425 = vld [vmem:[%s7 + $0x298] sm:$0xff]
  %v9426 = vld [vmem:[%s7 + $0x2a0] sm:$0xff]
  %v9427 = vld [vmem:[%s7 + $0x2a8] sm:$0xff]
  %v9428 = vld [vmem:[%s7 + $0x2b0] sm:$0xff]
  %v9429 = vld [vmem:[%s7 + $0x2b8] sm:$0xff]
  %v9430 = vld [vmem:[%s7 + $0x2c0] sm:$0xff]
  %v9431 = vld [vmem:[%s7 + $0x2c8] sm:$0xff]
  %v9432 = vld [vmem:[%s7 + $0x2d0] sm:$0xff]
  %v9433 = vld [vmem:[%s7 + $0x2d8] sm:$0xff]
  %v9434 = vld [vmem:[%s7 + $0x2e0] sm:$0xff]
  %v9435 = vld [vmem:[%s7 + $0x2e8] sm:$0xff]
  %v9436 = vld [vmem:[%s7 + $0x2f0] sm:$0xff]
  %v9437 = vld [vmem:[%s7 + $0x2f8] sm:$0xff]
  %v9438 = vld [vmem:[%s7 + $0x300] sm:$0xff]
  %v9439 = vld [vmem:[%s7 + $0x308] sm:$0xff]
  %v9440 = vld [vmem:[%s7 + $0x310] sm:$0xff]
  %v9441 = vld [vmem:[%s7 + $0x318] sm:$0xff]
  %v9442 = vld [vmem:[%s7 + $0x320] sm:$0xff]
  %v9443 = vld [vmem:[%s7 + $0x328] sm:$0xff]
  %v9444 = vld [vmem:[%s7 + $0x330] sm:$0xff]
  %v9445 = vld [vmem:[%s7 + $0x338] sm:$0xff]
  %v9446 = vld [vmem:[%s7 + $0x340] sm:$0xff]
  %v9447 = vld [vmem:[%s7 + $0x348] sm:$0xff]
  %v9448 = vld [vmem:[%s7 + $0x350] sm:$0xff]
  %v9449 = vld [vmem:[%s7 + $0x358] sm:$0xff]
  %v9450 = vld [vmem:[%s7 + $0x360] sm:$0xff]
  %v9451 = vld [vmem:[%s7 + $0x368] sm:$0xff]
  %v9452 = vld [vmem:[%s7 + $0x370] sm:$0xff]
  %v9453 = vld [vmem:[%s7 + $0x378] sm:$0xff]
  %v9454 = vld [vmem:[%s7 + $0x380] sm:$0xff]
  %v9455 = vld [vmem:[%s7 + $0x388] sm:$0xff]
  %v9456 = vld [vmem:[%s7 + $0x390] sm:$0xff]
  %v9457 = vld [vmem:[%s7 + $0x398] sm:$0xff]
  %v9458 = vld [vmem:[%s7 + $0x3a0] sm:$0xff]
  %v9459 = vld [vmem:[%s7 + $0x3a8] sm:$0xff]
  %v9460 = vld [vmem:[%s7 + $0x3b0] sm:$0xff]
  %v9461 = vld [vmem:[%s7 + $0x3b8] sm:$0xff]
  %v9462 = vld [vmem:[%s7 + $0x3c0] sm:$0xff]
  %v9463 = vld [vmem:[%s7 + $0x3c8] sm:$0xff]
  %v9464 = vld [vmem:[%s7 + $0x3d0] sm:$0xff]
  %v9465 = vld [vmem:[%s7 + $0x3d8] sm:$0xff]
  %v9466 = vld [vmem:[%s7 + $0x3e0] sm:$0xff]
  %v9467 = vld [vmem:[%s7 + $0x3e8] sm:$0xff]
  %v9468 = vld [vmem:[%s7 + $0x3f0] sm:$0xff]
  %v9469 = vld [vmem:[%s7 + $0x3f8] sm:$0xff]
  %v9470 = vld [vmem:[%s7 + $0x400] sm:$0xff]
  %v9471 = vld [vmem:[%s7 + $0x408] sm:$0xff]
  %v9472 = vld [vmem:[%s7 + $0x410] sm:$0xff]
  %v9473 = vld [vmem:[%s7 + $0x418] sm:$0xff]
  %v9474 = vld [vmem:[%s7 + $0x420] sm:$0xff]
  %v9475 = vld [vmem:[%s7 + $0x428] sm:$0xff]
  %v9476 = vld [vmem:[%s7 + $0x430] sm:$0xff]
  %v9477 = vld [vmem:[%s7 + $0x438] sm:$0xff]
  %v9478 = vld [vmem:[%s7 + $0x440] sm:$0xff]
  %v9479 = vld [vmem:[%s7 + $0x448] sm:$0xff]
  %v9480 = vld [vmem:[%s7 + $0x450] sm:$0xff]
  %v9481 = vld [vmem:[%s7 + $0x458] sm:$0xff]
  %v9482 = vld [vmem:[%s7 + $0x460] sm:$0xff]
  %v9483 = vld [vmem:[%s7 + $0x468] sm:$0xff]
  %v9484 = vld [vmem:[%s7 + $0x470] sm:$0xff]
  %v9485 = vld [vmem:[%s7 + $0x478] sm:$0xff]
  %v9486 = vld [vmem:[%s7 + $0x480] sm:$0xff]
  %v9487 = vld [vmem:[%s7 + $0x488] sm:$0xff]
  %v9488 = vld [vmem:[%s7 + $0x490] sm:$0xff]
  %v9489 = vld [vmem:[%s7 + $0x498] sm:$0xff]
  %v9490 = vld [vmem:[%s7 + $0x4a0] sm:$0xff]
  %v9491 = vld [vmem:[%s7 + $0x4a8] sm:$0xff]
  %v9492 = vld [vmem:[%s7 + $0x4b0] sm:$0xff]
  %v9493 = vld [vmem:[%s7 + $0x4b8] sm:$0xff]
  %v9494 = vld [vmem:[%s7 + $0x4c0] sm:$0xff]
  %v9495 = vld [vmem:[%s7 + $0x4c8] sm:$0xff]
  %v9496 = vld [vmem:[%s7 + $0x4d0] sm:$0xff]
  %v9497 = vld [vmem:[%s7 + $0x4d8] sm:$0xff]
  %v9498 = vld [vmem:[%s7 + $0x4e0] sm:$0xff]
  %v9499 = vld [vmem:[%s7 + $0x4e8] sm:$0xff]
  %v9500 = vld [vmem:[%s7 + $0x4f0] sm:$0xff]
  %v9501 = vld [vmem:[%s7 + $0x4f8] sm:$0xff]
  %v9502 = vld [vmem:[%s7 + $0x500] sm:$0xff]
  %v9503 = vld [vmem:[%s7 + $0x508] sm:$0xff]
  %v9504 = vld [vmem:[%s7 + $0x510] sm:$0xff]
  %v9505 = vld [vmem:[%s7 + $0x518] sm:$0xff]
  %v9506 = vld [vmem:[%s7 + $0x520] sm:$0xff]
  %v9507 = vld [vmem:[%s7 + $0x528] sm:$0xff]
  %v9508 = vld [vmem:[%s7 + $0x530] sm:$0xff]
  %v9509 = vld [vmem:[%s7 + $0x538] sm:$0xff]
  %v9510 = vld [vmem:[%s7 + $0x540] sm:$0xff]
  %v9511 = vld [vmem:[%s7 + $0x548] sm:$0xff]
  %v9512 = vld [vmem:[%s7 + $0x550] sm:$0xff]
  %v9513 = vld [vmem:[%s7 + $0x558] sm:$0xff]
  %v9514 = vld [vmem:[%s7 + $0x560] sm:$0xff]
  %v9515 = vld [vmem:[%s7 + $0x568] sm:$0xff]
  %v9516 = vld [vmem:[%s7 + $0x570] sm:$0xff]
  %v9517 = vld [vmem:[%s7 + $0x578] sm:$0xff]
  %v9518 = vld [vmem:[%s7 + $0x580] sm:$0xff]
  %v9519 = vld [vmem:[%s7 + $0x588] sm:$0xff]
  %v9520 = vld [vmem:[%s7 + $0x590] sm:$0xff]
  %v9521 = vld [vmem:[%s7 + $0x598] sm:$0xff]
  %v9522 = vld [vmem:[%s7 + $0x5a0] sm:$0xff]
  %v9523 = vld [vmem:[%s7 + $0x5a8] sm:$0xff]
  %v9524 = vld [vmem:[%s7 + $0x5b0] sm:$0xff]
  %v9525 = vld [vmem:[%s7 + $0x5b8] sm:$0xff]
  %v9526 = vld [vmem:[%s7 + $0x5c0] sm:$0xff]
  %v9527 = vld [vmem:[%s7 + $0x5c8] sm:$0xff]
  %v9528 = vld [vmem:[%s7 + $0x5d0] sm:$0xff]
  %v9529 = vld [vmem:[%s7 + $0x5d8] sm:$0xff]
  %v9530 = vld [vmem:[%s7 + $0x5e0] sm:$0xff]
  %v9531 = vld [vmem:[%s7 + $0x5e8] sm:$0xff]
  %v9532 = vld [vmem:[%s7 + $0x5f0] sm:$0xff]
  %v9533 = vld [vmem:[%s7 + $0x5f8] sm:$0xff]
  %v9534 = vld [vmem:[%s8] sm:$0x7]
  %v9536 = vlaneseq
  %v9537 = vshrl.u32 %v9536, 7
  %v9538 = vsub.s32 0, %v9537
  %v9539 = vrot.slane %v9534, %v9538
  %v9540 = vlaneseq
  %v9541 = vshrl.u32 %v9540, 7
  %v9542 = vsub.s32 1, %v9541
  %v9543 = vrot.slane %v9534, %v9542
  %v9544 = vlaneseq
  %v9545 = vshrl.u32 %v9544, 7
  %v9546 = vsub.s32 2, %v9545
  %v9547 = vrot.slane %v9534, %v9546
  %9551 = vmatprep.subr.mxu0 %v9343
  %9552 = vmatpush1.msra.mxu0 %v9342
  %9553 = vmatprep.subr.mxu0 %v9346
  %9554 = vmatpush1.msra.mxu0 %v9345
  %9555 = vmatprep.subr.mxu0 %v9349
  %9556 = vmatpush1.msra.mxu0 %v9348
  %9557 = vmatprep.subr.mxu0 %v9352
  %9558 = vmatpush1.msra.mxu0 %v9351
  %9559 = vmatprep.subr.mxu0 %v9355
  %9560 = vmatpush1.msra.mxu0 %v9354
  %9561 = vmatprep.subr.mxu0 %v9358
  %9562 = vmatpush1.msra.mxu0 %v9357
  %9563 = vmatprep.subr.mxu0 %v9361
  %9564 = vmatpush1.msra.mxu0 %v9360
  %9565 = vmatprep.subr.mxu0 %v9364
  %9566 = vmatpush1.msra.mxu0 %v9363
  %9567 = vmatprep.subr.mxu0 %v9367
  %9568 = vmatpush1.msra.mxu0 %v9366
  %9569 = vmatprep.subr.mxu0 %v9370
  %9570 = vmatpush1.msra.mxu0 %v9369
  %9571 = vmatprep.subr.mxu0 %v9373
  %9572 = vmatpush1.msra.mxu0 %v9372
  %9573 = vmatprep.subr.mxu0 %v9376
  %9574 = vmatpush1.msra.mxu0 %v9375
  %9575 = vmatprep.subr.mxu0 %v9379
  %9576 = vmatpush1.msra.mxu0 %v9378
  %9577 = vmatprep.subr.mxu0 %v9382
  %9578 = vmatpush1.msra.mxu0 %v9381
  %9579 = vmatprep.subr.mxu0 %v9385
  %9580 = vmatpush1.msra.mxu0 %v9384
  %9581 = vmatprep.subr.mxu0 %v9388
  %9582 = vmatpush1.msra.mxu0 %v9387
  %9583 = vmatprep.subr.mxu0 %v9391
  %9584 = vmatpush1.msra.mxu0 %v9390
  %9585 = vmatprep.subr.mxu0 %v9394
  %9586 = vmatpush1.msra.mxu0 %v9393
  %9587 = vmatprep.subr.mxu0 %v9397
  %9588 = vmatpush1.msra.mxu0 %v9396
  %9589 = vmatprep.subr.mxu0 %v9400
  %9590 = vmatpush1.msra.mxu0 %v9399
  %9591 = vmatprep.subr.mxu0 %v9403
  %9592 = vmatpush1.msra.mxu0 %v9402
  %9593 = vmatprep.subr.mxu0 %v9406
  %9594 = vmatpush1.msra.mxu0 %v9405
  %9595 = vmatprep.subr.mxu0 %v9409
  %9596 = vmatpush1.msra.mxu0 %v9408
  %9597 = vmatprep.subr.mxu0 %v9412
  %9598 = vmatpush1.msra.mxu0 %v9411
  %9599 = vmatprep.subr.mxu0 %v9415
  %9600 = vmatpush1.msra.mxu0 %v9414
  %9601 = vmatprep.subr.mxu0 %v9418
  %9602 = vmatpush1.msra.mxu0 %v9417
  %9603 = vmatprep.subr.mxu0 %v9421
  %9604 = vmatpush1.msra.mxu0 %v9420
  %9605 = vmatprep.subr.mxu0 %v9424
  %9606 = vmatpush1.msra.mxu0 %v9423
  %9607 = vmatprep.subr.mxu0 %v9427
  %9608 = vmatpush1.msra.mxu0 %v9426
  %9609 = vmatprep.subr.mxu0 %v9430
  %9610 = vmatpush1.msra.mxu0 %v9429
  %9611 = vmatprep.subr.mxu0 %v9433
  %9612 = vmatpush1.msra.mxu0 %v9432
  %9613 = vmatprep.subr.mxu0 %v9436
  %9614 = vmatpush1.msra.mxu0 %v9435
  %9615 = vmatprep.mubr.f32.mxu0 %v9339
  %9616 = vmatmul.mubr.f32.gmra.mrb[0].mxu0 %v9338
  %v9617 = vpop.f32.mrb[0].mxu0
  %v9618 = vadd.f32 %v9539, %v9617
  %v9619 = vpop.f32.mrb[0].mxu0
  %v9620 = vadd.f32 %v9543, %v9619
  %9621 = vdwg.mxu0
  %9622 = vmatprep.subr.mxu0 %v9439
  %9623 = vmatpush1.msra.mxu0 %v9438
  %9624 = vmatprep.subr.mxu0 %v9442
  %9625 = vmatpush1.msra.mxu0 %v9441
  %9626 = vmatprep.subr.mxu0 %v9445
  %9627 = vmatpush1.msra.mxu0 %v9444
  %9628 = vmatprep.subr.mxu0 %v9448
  %9629 = vmatpush1.msra.mxu0 %v9447
  %9630 = vmatprep.subr.mxu0 %v9451
  %9631 = vmatpush1.msra.mxu0 %v9450
  %9632 = vmatprep.subr.mxu0 %v9454
  %9633 = vmatpush1.msra.mxu0 %v9453
  %9634 = vmatprep.subr.mxu0 %v9457
  %9635 = vmatpush1.msra.mxu0 %v9456
  %9636 = vmatprep.subr.mxu0 %v9460
  %9637 = vmatpush1.msra.mxu0 %v9459
  %9638 = vmatprep.subr.mxu0 %v9463
  %9639 = vmatpush1.msra.mxu0 %v9462
  %9640 = vmatprep.subr.mxu0 %v9466
  %9641 = vmatpush1.msra.mxu0 %v9465
  %9642 = vmatprep.subr.mxu0 %v9469
  %9643 = vmatpush1.msra.mxu0 %v9468
  %9644 = vmatprep.subr.mxu0 %v9472
  %9645 = vmatpush1.msra.mxu0 %v9471
  %9646 = vmatprep.subr.mxu0 %v9475
  %9647 = vmatpush1.msra.mxu0 %v9474
  %9648 = vmatprep.subr.mxu0 %v9478
  %9649 = vmatpush1.msra.mxu0 %v9477
  %9650 = vmatprep.subr.mxu0 %v9481
  %9651 = vmatpush1.msra.mxu0 %v9480
  %9652 = vmatprep.subr.mxu0 %v9484
  %9653 = vmatpush1.msra.mxu0 %v9483
  %9654 = vmatprep.subr.mxu0 %v9487
  %9655 = vmatpush1.msra.mxu0 %v9486
  %9656 = vmatprep.subr.mxu0 %v9490
  %9657 = vmatpush1.msra.mxu0 %v9489
  %9658 = vmatprep.subr.mxu0 %v9493
  %9659 = vmatpush1.msra.mxu0 %v9492
  %9660 = vmatprep.subr.mxu0 %v9496
  %9661 = vmatpush1.msra.mxu0 %v9495
  %9662 = vmatprep.subr.mxu0 %v9499
  %9663 = vmatpush1.msra.mxu0 %v9498
  %9664 = vmatprep.subr.mxu0 %v9502
  %9665 = vmatpush1.msra.mxu0 %v9501
  %9666 = vmatprep.subr.mxu0 %v9505
  %9667 = vmatpush1.msra.mxu0 %v9504
  %9668 = vmatprep.subr.mxu0 %v9508
  %9669 = vmatpush1.msra.mxu0 %v9507
  %9670 = vmatprep.subr.mxu0 %v9511
  %9671 = vmatpush1.msra.mxu0 %v9510
  %9672 = vmatprep.subr.mxu0 %v9514
  %9673 = vmatpush1.msra.mxu0 %v9513
  %9674 = vmatprep.subr.mxu0 %v9517
  %9675 = vmatpush1.msra.mxu0 %v9516
  %9676 = vmatprep.subr.mxu0 %v9520
  %9677 = vmatpush1.msra.mxu0 %v9519
  %9678 = vmatprep.subr.mxu0 %v9523
  %9679 = vmatpush1.msra.mxu0 %v9522
  %9680 = vmatprep.subr.mxu0 %v9526
  %9681 = vmatpush1.msra.mxu0 %v9525
  %9682 = vmatprep.subr.mxu0 %v9529
  %9683 = vmatpush1.msra.mxu0 %v9528
  %9684 = vmatprep.subr.mxu0 %v9532
  %9685 = vmatpush1.msra.mxu0 %v9531
  %9686 = vmatprep.mubr.f32.mxu0 %v9341
  %9687 = vmatmul.mubr.f32.gmra.mrb[0].mxu0 %v9340
  %v9688 = vpop.f32.mrb[0].mxu0
  %v9689 = vadd.f32 %v9618, %v9688
  %v9690 = vpop.f32.mrb[0].mxu0
  %v9691 = vadd.f32 %v9620, %v9690
  %9692 = vdwg.mxu0
  %9693 = vmatprep.subr.mxu0 0.0
  %9694 = vmatpush1.msra.mxu0 %v9344
  %9695 = vmatprep.subr.mxu0 0.0
  %9696 = vmatpush1.msra.mxu0 %v9347
  %9697 = vmatprep.subr.mxu0 0.0
  %9698 = vmatpush1.msra.mxu0 %v9350
  %9699 = vmatprep.subr.mxu0 0.0
  %9700 = vmatpush1.msra.mxu0 %v9353
  %9701 = vmatprep.subr.mxu0 0.0
  %9702 = vmatpush1.msra.mxu0 %v9356
  %9703 = vmatprep.subr.mxu0 0.0
  %9704 = vmatpush1.msra.mxu0 %v9359
  %9705 = vmatprep.subr.mxu0 0.0
  %9706 = vmatpush1.msra.mxu0 %v9362
  %9707 = vmatprep.subr.mxu0 0.0
  %9708 = vmatpush1.msra.mxu0 %v9365
  %9709 = vmatprep.subr.mxu0 0.0
  %9710 = vmatpush1.msra.mxu0 %v9368
  %9711 = vmatprep.subr.mxu0 0.0
  %9712 = vmatpush1.msra.mxu0 %v9371
  %9713 = vmatprep.subr.mxu0 0.0
  %9714 = vmatpush1.msra.mxu0 %v9374
  %9715 = vmatprep.subr.mxu0 0.0
  %9716 = vmatpush1.msra.mxu0 %v9377
  %9717 = vmatprep.subr.mxu0 0.0
  %9718 = vmatpush1.msra.mxu0 %v9380
  %9719 = vmatprep.subr.mxu0 0.0
  %9720 = vmatpush1.msra.mxu0 %v9383
  %9721 = vmatprep.subr.mxu0 0.0
  %9722 = vmatpush1.msra.mxu0 %v9386
  %9723 = vmatprep.subr.mxu0 0.0
  %9724 = vmatpush1.msra.mxu0 %v9389
  %9725 = vmatprep.subr.mxu0 0.0
  %9726 = vmatpush1.msra.mxu0 %v9392
  %9727 = vmatprep.subr.mxu0 0.0
  %9728 = vmatpush1.msra.mxu0 %v9395
  %9729 = vmatprep.subr.mxu0 0.0
  %9730 = vmatpush1.msra.mxu0 %v9398
  %9731 = vmatprep.subr.mxu0 0.0
  %9732 = vmatpush1.msra.mxu0 %v9401
  %9733 = vmatprep.subr.mxu0 0.0
  %9734 = vmatpush1.msra.mxu0 %v9404
  %9735 = vmatprep.subr.mxu0 0.0
  %9736 = vmatpush1.msra.mxu0 %v9407
  %9737 = vmatprep.subr.mxu0 0.0
  %9738 = vmatpush1.msra.mxu0 %v9410
  %9739 = vmatprep.subr.mxu0 0.0
  %9740 = vmatpush1.msra.mxu0 %v9413
  %9741 = vmatprep.subr.mxu0 0.0
  %9742 = vmatpush1.msra.mxu0 %v9416
  %9743 = vmatprep.subr.mxu0 0.0
  %9744 = vmatpush1.msra.mxu0 %v9419
  %9745 = vmatprep.subr.mxu0 0.0
  %9746 = vmatpush1.msra.mxu0 %v9422
  %9747 = vmatprep.subr.mxu0 0.0
  %9748 = vmatpush1.msra.mxu0 %v9425
  %9749 = vmatprep.subr.mxu0 0.0
  %9750 = vmatpush1.msra.mxu0 %v9428
  %9751 = vmatprep.subr.mxu0 0.0
  %9752 = vmatpush1.msra.mxu0 %v9431
  %9753 = vmatprep.subr.mxu0 0.0
  %9754 = vmatpush1.msra.mxu0 %v9434
  %9755 = vmatprep.subr.mxu0 0.0
  %9756 = vmatpush1.msra.mxu0 %v9437
  %9757 = vmatprep.mubr.f32.mxu0 %v9339
  %9758 = vmatmul.mubr.f32.gmra.mrb[0].mxu0 %v9338
  %v9759 = vpop.f32.mrb[0].mxu0
  %v9760 = vadd.f32 %v9547, %v9759
  %v9761 = vpop.f32.mrb[0].mxu0
  %9762 = vdwg.mxu0
  %9763 = vmatprep.subr.mxu0 0.0
  %9764 = vmatpush1.msra.mxu0 %v9440
  %9765 = vmatprep.subr.mxu0 0.0
  %9766 = vmatpush1.msra.mxu0 %v9443
  %9767 = vmatprep.subr.mxu0 0.0
  %9768 = vmatpush1.msra.mxu0 %v9446
  %9769 = vmatprep.subr.mxu0 0.0
  %9770 = vmatpush1.msra.mxu0 %v9449
  %9771 = vmatprep.subr.mxu0 0.0
  %9772 = vmatpush1.msra.mxu0 %v9452
  %9773 = vmatprep.subr.mxu0 0.0
  %9774 = vmatpush1.msra.mxu0 %v9455
  %9775 = vmatprep.subr.mxu0 0.0
  %9776 = vmatpush1.msra.mxu0 %v9458
  %9777 = vmatprep.subr.mxu0 0.0
  %9778 = vmatpush1.msra.mxu0 %v9461
  %9779 = vmatprep.subr.mxu0 0.0
  %9780 = vmatpush1.msra.mxu0 %v9464
  %9781 = vmatprep.subr.mxu0 0.0
  %9782 = vmatpush1.msra.mxu0 %v9467
  %9783 = vmatprep.subr.mxu0 0.0
  %9784 = vmatpush1.msra.mxu0 %v9470
  %9785 = vmatprep.subr.mxu0 0.0
  %9786 = vmatpush1.msra.mxu0 %v9473
  %9787 = vmatprep.subr.mxu0 0.0
  %9788 = vmatpush1.msra.mxu0 %v9476
  %9789 = vmatprep.subr.mxu0 0.0
  %9790 = vmatpush1.msra.mxu0 %v9479
  %9791 = vmatprep.subr.mxu0 0.0
  %9792 = vmatpush1.msra.mxu0 %v9482
  %9793 = vmatprep.subr.mxu0 0.0
  %9794 = vmatpush1.msra.mxu0 %v9485
  %9795 = vmatprep.subr.mxu0 0.0
  %9796 = vmatpush1.msra.mxu0 %v9488
  %9797 = vmatprep.subr.mxu0 0.0
  %9798 = vmatpush1.msra.mxu0 %v9491
  %9799 = vmatprep.subr.mxu0 0.0
  %9800 = vmatpush1.msra.mxu0 %v9494
  %9801 = vmatprep.subr.mxu0 0.0
  %9802 = vmatpush1.msra.mxu0 %v9497
  %9803 = vmatprep.subr.mxu0 0.0
  %9804 = vmatpush1.msra.mxu0 %v9500
  %9805 = vmatprep.subr.mxu0 0.0
  %9806 = vmatpush1.msra.mxu0 %v9503
  %9807 = vmatprep.subr.mxu0 0.0
  %9808 = vmatpush1.msra.mxu0 %v9506
  %9809 = vmatprep.subr.mxu0 0.0
  %9810 = vmatpush1.msra.mxu0 %v9509
  %9811 = vmatprep.subr.mxu0 0.0
  %9812 = vmatpush1.msra.mxu0 %v9512
  %9813 = vmatprep.subr.mxu0 0.0
  %9814 = vmatpush1.msra.mxu0 %v9515
  %9815 = vmatprep.subr.mxu0 0.0
  %9816 = vmatpush1.msra.mxu0 %v9518
  %9817 = vmatprep.subr.mxu0 0.0
  %9818 = vmatpush1.msra.mxu0 %v9521
  %9819 = vmatprep.subr.mxu0 0.0
  %9820 = vmatpush1.msra.mxu0 %v9524
  %9821 = vmatprep.subr.mxu0 0.0
  %9822 = vmatpush1.msra.mxu0 %v9527
  %9823 = vmatprep.subr.mxu0 0.0
  %9824 = vmatpush1.msra.mxu0 %v9530
  %9825 = vmatprep.subr.mxu0 0.0
  %9826 = vmatpush1.msra.mxu0 %v9533
  %9827 = vmatprep.mubr.f32.mxu0 %v9341
  %9828 = vmatmul.mubr.f32.gmra.mrb[0].mxu0 %v9340
  %v9829 = vpop.f32.mrb[0].mxu0
  %v9830 = vadd.f32 %v9760, %v9829
  %v9831 = vpop.f32.mrb[0].mxu0
  %9832 = vdwg.mxu0
  %9833 = vst [vmem:[%s9] sm:$0xff] %v9689
  %9834 = vst [vmem:[%s9 + $0x8] sm:$0xff] %v9691
  %vm9835 = vcmask 408576
  %9836 = vst.msk [vmem:[%s9 + $0x10] sm:$0xff] %vm9835, %v9830
  // Predicated region
  $region38: #{dueling_dqn_forward.1} parent=0 // pred_check
    _
  $region39: #{dueling_dqn_forward.1} parent=0 // pred_check_branch
    %9838 = sbr.rel (0) target = $region41
  $region40: #{dueling_dqn_forward.1} parent=0 // pred_region
    _
  $region41: #{dueling_dqn_forward.1} parent=0 // pred_fallthru
    _
  // Predicated region
  $region42: #{dueling_dqn_forward.1} parent=0 // pred_check
    _
  $region43: #{dueling_dqn_forward.1} parent=0 // pred_check_branch
    %9840 = sbr.rel (0) target = $region45
  $region44: #{dueling_dqn_forward.1} parent=0 // pred_region
    _
  $region45: #{dueling_dqn_forward.1} parent=0 // pred_fallthru
    _

</llo_original>
